<compile_context>
chip_gen: v7x
topology: tpu7x:2x2x1
jax: 0.10.0
libtpu: 0.0.40
codegen_flags: <defaults>
</compile_context>

<pallas_src>
import jax
import jax.numpy as jnp
import numpy as np
from jax.experimental import pallas as pl
from jax.experimental.pallas import tpu as pltpu


def _round_up(x, m):
    return (x + m - 1) // m * m


def _nbytes(shape, dtype):
    return int(np.prod(shape)) * jnp.dtype(dtype).itemsize


def _sigmoid(x):
    # One EUP op (tanh) instead of exp + divide; exact identity.
    return 0.5 * jnp.tanh(0.5 * x) + 0.5


# ----------------------------------------------------------------------------
# Fused multi-layer GRU kernel (one pallas_call for the whole encoder).
# ----------------------------------------------------------------------------
def make_gru_kernel(num_layers, Tc, Bc, Dp, Hp, compute_dtype):
    L = num_layers
    H3 = 3 * Hp
    has_wihr = L > 1
    cast_needed = jnp.dtype(compute_dtype) != jnp.dtype(jnp.float32)

    def kernel(*refs):
        it = iter(refs)
        x_ref = next(it)                     # (Tc, Bc, Dp)   input chunk (compute dtype)
        wih0_ref = next(it)                  # (Dp, 3Hp)      layer-0 W_ih^T
        wihr_ref = next(it) if has_wihr else None   # (L-1, Hp, 3Hp) W_ih^T layers 1..
        whh_ref = next(it)                   # (L, Hp, 3Hp)   W_hh^T
        bgi_ref = next(it)                   # (L, 1, 3Hp) f32: b_ih + [b_hr, b_hz, 0]
        bhn_ref = next(it)                   # (L, 1, Hp)  f32: b_hn only
        out_ref = next(it)                   # (Tc, Bc, Hp) f32
        h_ref = next(it)                     # (L, Bc, Hp) f32   hidden carry (scratch)
        act_ref = next(it)                   # (Tc, Bc, Hp) compute_dtype (scratch)
        gi_ref = next(it)                    # (Tc, Bc, 3Hp) compute_dtype (scratch)

        # Zero the hidden-state carry at the start of every batch strip.
        @pl.when(pl.program_id(1) == 0)
        def _init():
            h_ref[...] = jnp.zeros_like(h_ref)

        for l in range(L):
            # --- (1) hoisted input projection for the WHOLE chunk (off the serial
            #         path); b_ih and the r/z hidden biases folded in here.
            if l == 0:
                inp = x_ref[...].reshape(Tc * Bc, Dp)
                w_in = wih0_ref[...]
            else:
                inp = act_ref[...].reshape(Tc * Bc, Hp)      # already compute_dtype
                w_in = wihr_ref[l - 1]
            gi = jnp.dot(inp, w_in, preferred_element_type=jnp.float32)
            gi_ref[...] = (gi.reshape(Tc, Bc, H3) + bgi_ref[l]).astype(gi_ref.dtype)

            # --- (2) serial recurrence: only the small (Bc,Hp)x(Hp,3Hp) dot remains.
            whh_l = whh_ref[l]               # (Hp, 3Hp), VMEM-resident
            bhn_l = bhn_ref[l]               # (1, Hp) sublane-broadcast add
            last = (l == L - 1)

            def step(t, carry):
                if cast_needed:
                    h, h_c = carry           # f32 carry + compute-dtype copy
                else:
                    h = carry
                    h_c = h
                gh = jnp.dot(h_c, whh_l, preferred_element_type=jnp.float32)
                gi_t = gi_ref[t]             # (Bc, 3Hp)
                r = _sigmoid(gi_t[:, 0:Hp] + gh[:, 0:Hp])
                z = _sigmoid(gi_t[:, Hp:2 * Hp] + gh[:, Hp:2 * Hp])
                n = jnp.tanh(gi_t[:, 2 * Hp:] + r * (gh[:, 2 * Hp:] + bhn_l))
                h_new = (1.0 - z) * n + z * h
                if cast_needed:
                    h_new_c = h_new.astype(compute_dtype)   # off the MXU chain
                    if last:
                        out_ref[t] = h_new
                    else:
                        act_ref[t] = h_new_c
                    return h_new, h_new_c
                else:
                    if last:
                        out_ref[t] = h_new
                    else:
                        act_ref[t] = h_new
                    return h_new

            h0 = h_ref[l]
            init = (h0, h0.astype(compute_dtype)) if cast_needed else h0
            unroll = min(Tc, 8)
            carry = jax.lax.fori_loop(0, Tc, step, init, unroll=unroll)
            h_ref[l] = carry[0] if cast_needed else carry

    return kernel


# ----------------------------------------------------------------------------
# Parameter packing: transpose + pad to lane-aligned gate layout, fold biases.
# ----------------------------------------------------------------------------
def pack_gru_params(params, in_size, hidden_size, compute_dtype):
    L = len(params)
    H = hidden_size
    Hp = _round_up(H, 128)          # each gate gets its own 128-lane-aligned block
    Dp = _round_up(in_size, 8)

    def pad_w(w, rows_p):           # (3H, rows) -> (rows_p, 3Hp), transposed per-gate
        w = np.asarray(w, np.float32)
        rows = w.shape[1]
        out = np.zeros((rows_p, 3 * Hp), np.float32)
        for g in range(3):
            out[:rows, g * Hp:g * Hp + H] = w[g * H:(g + 1) * H, :].T
        return out

    def pad_b3(b):                  # (3H,) -> (3Hp,)
        b = np.asarray(b, np.float32)
        out = np.zeros((3 * Hp,), np.float32)
        for g in range(3):
            out[g * Hp:g * Hp + H] = b[g * H:(g + 1) * H]
        return out

    w_ih0_t = jnp.asarray(pad_w(params[0][0], Dp), compute_dtype)
    w_ihr_t = (jnp.asarray(np.stack([pad_w(p[0], Hp) for p in params[1:]]),
                           compute_dtype) if L > 1 else None)
    w_hh_t = jnp.asarray(np.stack([pad_w(p[1], Hp) for p in params]), compute_dtype)

    # b_hr / b_hz are pure adds -> fold into the hoisted projection bias.
    # Only b_hn must stay inside r*(W_hn h + b_hn).
    bgi, bhn = [], []
    for (_, _, b_ih, b_hh) in params:
        bi, bh = pad_b3(b_ih), pad_b3(b_hh)
        bi[:2 * Hp] += bh[:2 * Hp]
        bgi.append(bi)
        bhn.append(bh[2 * Hp:])
    bgi = jnp.asarray(np.stack(bgi), jnp.float32)[:, None, :]   # (L, 1, 3Hp)
    bhn = jnp.asarray(np.stack(bhn), jnp.float32)[:, None, :]   # (L, 1, Hp)
    return w_ih0_t, w_ihr_t, w_hh_t, bgi, bhn, Hp, Dp


# ----------------------------------------------------------------------------
# GRUEncoder.forward wrapper (batch_first in / out, zero initial hidden state).
# ----------------------------------------------------------------------------
def gru_encoder_forward(x_btc, params, *, compute_dtype=jnp.float32,
                        t_chunk=16, b_chunk=256):
    """x_btc: (B, T, in_size) -> output (B, T, hidden_size), like module.forward."""
    B, T, D = x_btc.shape
    L = len(params)
    H = params[0][1].shape[1]       # hidden_size from w_hh

    w_ih0_t, w_ihr_t, w_hh_t, bgi, bhn, Hp, Dp = pack_gru_params(
        params, D, H, compute_dtype)
    H3 = 3 * Hp

    # Batch: pad to a multiple of 8 (f32 sublane); chunk at <=256 rows (full MXU
    # rows on v6e/v7x); batch chunks are the 'parallel' grid axis.
    Bp = _round_up(B, 8)
    if Bp > b_chunk:
        Bc = b_chunk
        Bp = _round_up(Bp, Bc)
    else:
        Bc = Bp
    # Time: streamed in chunks (bounded VMEM, double-buffered DMA).
    Tc = min(t_chunk, T)
    Tp = _round_up(T, Tc)

    x = jnp.transpose(x_btc, (1, 0, 2))                  # time-major (T, B, D)
    x_pad = jnp.zeros((Tp, Bp, Dp), compute_dtype)
    x_pad = x_pad.at[:T, :B, :D].set(x.astype(compute_dtype))

    kernel = make_gru_kernel(L, Tc, Bc, Dp, Hp, compute_dtype)
    grid = (Bp // Bc, Tp // Tc)

    # VMEM budget: 2x-buffered x/out blocks + single-buffered weights + scratch.
    vmem = 2 * _nbytes((Tc, Bc, Dp), compute_dtype)
    vmem += 2 * _nbytes((Tc, Bc, Hp), jnp.float32)
    vmem += _nbytes((Dp, H3), compute_dtype)
    if L > 1:
        vmem += _nbytes((L - 1, Hp, H3), compute_dtype)
    vmem += _nbytes((L, Hp, H3), compute_dtype)
    vmem += _nbytes((L, 1, H3), jnp.float32) + _nbytes((L, 1, Hp), jnp.float32)
    vmem += _nbytes((L, Bc, Hp), jnp.float32)            # hidden carry
    vmem += _nbytes((Tc, Bc, Hp), compute_dtype)         # inter-layer activations
    vmem += _nbytes((Tc, Bc, H3), compute_dtype)         # hoisted projections
    vmem_limit = min(max(int(vmem * 1.25) + (4 << 20), 32 << 20), 128 << 20)

    def _run(single_buffer_weights):
        res_kw = ({"pipeline_mode": pl.Buffered(1)} if single_buffer_weights else {})
        in_specs = [pl.BlockSpec((Tc, Bc, Dp), lambda b, t: (t, b, 0))]
        operands = [x_pad]
        in_specs.append(pl.BlockSpec((Dp, H3), lambda b, t: (0, 0), **res_kw))
        operands.append(w_ih0_t)
        if L > 1:
            in_specs.append(pl.BlockSpec((L - 1, Hp, H3),
                                         lambda b, t: (0, 0, 0), **res_kw))
            operands.append(w_ihr_t)
        in_specs.append(pl.BlockSpec((L, Hp, H3), lambda b, t: (0, 0, 0), **res_kw))
        operands.append(w_hh_t)
        in_specs.append(pl.BlockSpec((L, 1, H3), lambda b, t: (0, 0, 0), **res_kw))
        operands.append(bgi)
        in_specs.append(pl.BlockSpec((L, 1, Hp), lambda b, t: (0, 0, 0), **res_kw))
        operands.append(bhn)

        out = pl.pallas_call(
            kernel,
            out_shape=jax.ShapeDtypeStruct((Tp, Bp, Hp), jnp.float32),
            grid_spec=pltpu.PrefetchScalarGridSpec(
                num_scalar_prefetch=0,
                grid=grid,
                in_specs=in_specs,
                out_specs=pl.BlockSpec((Tc, Bc, Hp), lambda b, t: (t, b, 0)),
                scratch_shapes=[
                    pltpu.VMEM((L, Bc, Hp), jnp.float32),     # hidden carry
                    pltpu.VMEM((Tc, Bc, Hp), compute_dtype),  # inter-layer acts
                    pltpu.VMEM((Tc, Bc, H3), compute_dtype),  # hoisted projections
                ],
            ),
            compiler_params=pltpu.CompilerParams(
                dimension_semantics=("parallel", "arbitrary"),
                vmem_limit_bytes=vmem_limit,
            ),
        )(*operands)
        return jax.block_until_ready(out)

    try:
        out = _run(single_buffer_weights=True)
    except Exception:
        # Fallback: default (double-buffered) weight specs — always compiles.
        out = _run(single_buffer_weights=False)

    out = out[:T, :B, :H]                                # drop time/batch/lane padding
    return jnp.transpose(out, (1, 0, 2))                 # back to (B, T, H)


# ----------------------------------------------------------------------------
# Pure-JAX reference (same GRU equations) for correctness checks.
# ----------------------------------------------------------------------------
def gru_encoder_reference(x_btc, params):
    B, T, _ = x_btc.shape
    x = jnp.transpose(x_btc, (1, 0, 2)).astype(jnp.float32)
    for (w_ih, w_hh, b_ih, b_hh) in params:
        H = w_hh.shape[1]
        h = jnp.zeros((B, H), jnp.float32)
        outs = []
        for t in range(T):
            gi = x[t] @ w_ih.T + b_ih
            gh = h @ w_hh.T + b_hh
            r = jax.nn.sigmoid(gi[:, :H] + gh[:, :H])
            z = jax.nn.sigmoid(gi[:, H:2 * H] + gh[:, H:2 * H])
            n = jnp.tanh(gi[:, 2 * H:] + r * gh[:, 2 * H:])
            h = (1.0 - z) * n + z * h
            outs.append(h)
        x = jnp.stack(outs, axis=0)
    return jnp.transpose(x, (1, 0, 2))


def init_gru_params(key, in_size, hidden_size, num_layers):
    """PyTorch nn.GRU init: uniform(-1/sqrt(H), 1/sqrt(H)) for all params."""
    params = []
    bound = 1.0 / np.sqrt(hidden_size)
    for layer in range(num_layers):
        d_in = in_size if layer == 0 else hidden_size
        key, k1, k2, k3, k4 = jax.random.split(key, 5)
        w_ih = jax.random.uniform(k1, (3 * hidden_size, d_in), jnp.float32, -bound, bound)
        w_hh = jax.random.uniform(k2, (3 * hidden_size, hidden_size), jnp.float32, -bound, bound)
        b_ih = jax.random.uniform(k3, (3 * hidden_size,), jnp.float32, -bound, bound)
        b_hh = jax.random.uniform(k4, (3 * hidden_size,), jnp.float32, -bound, bound)
        params.append((w_ih, w_hh, b_ih, b_hh))
    return params


if __name__ == "__main__":
    # Small shapes consistent with GRUEncoder(in_size=4, hidden_size=32, num_layers=2)
    B, T, IN, H, L = 2, 8, 4, 32, 2

    key = jax.random.PRNGKey(0)
    key, kx = jax.random.split(key)
    x = jax.random.normal(kx, (B, T, IN), jnp.float32)   # batch_first input
    params = init_gru_params(key, IN, H, L)

    ref = jax.block_until_ready(gru_encoder_reference(x, params))

    # f32 matmul operands: tight check against the reference.
    out_f32 = jax.block_until_ready(
        gru_encoder_forward(x, params, compute_dtype=jnp.float32))
    assert out_f32.shape == (B, T, H), out_f32.shape
    assert np.allclose(np.asarray(out_f32), np.asarray(ref), atol=1e-4, rtol=1e-4), \
        "Pallas GRU (f32) output mismatch vs reference"

    # bf16 matmul operands / f32 accumulation and f32 hidden-state carry
    # (fast path on v6e / v7x MXU): loose check.
    out_bf16 = jax.block_until_ready(
        gru_encoder_forward(x, params, compute_dtype=jnp.bfloat16))
    assert np.allclose(np.asarray(out_bf16), np.asarray(ref), atol=5e-2, rtol=0), \
        "Pallas GRU (bf16) output mismatch vs reference"

    # Single-layer path (no wihr operand is passed at all).
    params1 = init_gru_params(jax.random.PRNGKey(1), IN, H, 1)
    ref1 = jax.block_until_ready(gru_encoder_reference(x, params1))
    out1 = jax.block_until_ready(gru_encoder_forward(x, params1))
    assert np.allclose(np.asarray(out1), np.asarray(ref1), atol=1e-4, rtol=1e-4), \
        "Pallas GRU (L=1) output mismatch vs reference"

    print("KERNEL_OK")
</pallas_src>

<mosaic_0001>
module attributes {stable_mosaic.version = 11 : i64} {
  func.func @kernel(%arg0: i32, %arg1: i32, %arg2: memref<8x8x8xf32, #tpu.memory_space<vmem>>, %arg3: memref<8x384xf32, #tpu.memory_space<vmem>>, %arg4: memref<1x128x384xf32, #tpu.memory_space<vmem>>, %arg5: memref<2x128x384xf32, #tpu.memory_space<vmem>>, %arg6: memref<2x1x384xf32, #tpu.memory_space<vmem>>, %arg7: memref<2x1x128xf32, #tpu.memory_space<vmem>>, %arg8: memref<8x8x128xf32, #tpu.memory_space<vmem>>, %arg9: memref<2x8x128xf32, #tpu.memory_space<vmem>>, %arg10: memref<8x8x128xf32, #tpu.memory_space<vmem>>, %arg11: memref<8x8x384xf32, #tpu.memory_space<vmem>>) attributes {dimension_semantics = [#tpu.dimension_semantics<parallel>, #tpu.dimension_semantics<arbitrary>], iteration_bounds = array<i64: 1, 1>, scalar_prefetch = 0 : i64, scratch_operands = 3 : i64, tpu.core_type = #tpu.core_type<tc>, window_params = [{transform_indices = @transform_0, window_bounds = array<i64: 8, 8, 8>}, {pipeline_mode = #tpu.pipeline_mode<synchronous>, transform_indices = @transform_1, window_bounds = array<i64: 8, 384>}, {pipeline_mode = #tpu.pipeline_mode<synchronous>, transform_indices = @transform_2, window_bounds = array<i64: 1, 128, 384>}, {pipeline_mode = #tpu.pipeline_mode<synchronous>, transform_indices = @transform_3, window_bounds = array<i64: 2, 128, 384>}, {pipeline_mode = #tpu.pipeline_mode<synchronous>, transform_indices = @transform_4, window_bounds = array<i64: 2, 1, 384>}, {pipeline_mode = #tpu.pipeline_mode<synchronous>, transform_indices = @transform_5, window_bounds = array<i64: 2, 1, 128>}, {transform_indices = @transform_6, window_bounds = array<i64: 8, 8, 128>}]} {
    %c0_i32 = arith.constant 0 : i32
    %0 = arith.cmpi eq, %arg1, %c0_i32 : i32
    %1 = arith.extui %0 : i1 to i32
    %c0_i32_0 = arith.constant 0 : i32
    %2 = arith.cmpi ne, %1, %c0_i32_0 : i32
    scf.if %2 {
      %cst_249 = arith.constant 0.000000e+00 : f32
      %684 = vector.broadcast %cst_249 : f32 to vector<2x8x128xf32>
      %c0_250 = arith.constant 0 : index
      %c0_251 = arith.constant 0 : index
      %c0_252 = arith.constant 0 : index
      %685 = vector.load %arg9[%c0_250, %c0_251, %c0_252] : memref<2x8x128xf32, #tpu.memory_space<vmem>>, vector<2x8x128xf32>
      tpu.vector_store %arg9[%c0_250, %c0_251, %c0_252], %684 {strides = array<i32>} : memref<2x8x128xf32, #tpu.memory_space<vmem>>, vector<2x8x128xf32>,
    } else {
    }
    %c0 = arith.constant 0 : index
    %c0_1 = arith.constant 0 : index
    %c0_2 = arith.constant 0 : index
    %3 = vector.load %arg2[%c0, %c0_1, %c0_2] : memref<8x8x8xf32, #tpu.memory_space<vmem>>, vector<8x8x8xf32>
    %4 = vector.shape_cast %3 : vector<8x8x8xf32> to vector<64x8xf32>
    %c0_3 = arith.constant 0 : index
    %c0_4 = arith.constant 0 : index
    %5 = vector.load %arg3[%c0_3, %c0_4] : memref<8x384xf32, #tpu.memory_space<vmem>>, vector<8x384xf32>
    %cst = arith.constant dense<0.000000e+00> : vector<64x384xf32>
    %6 = tpu.matmul %4, %5, %cst {dimension_numbers = #tpu.dot_dimension_numbers<[1], [0], [0], [1], [0, 0, 1, 1], [], []>} : vector<64x8xf32>, vector<8x384xf32>, vector<64x384xf32> -> vector<64x384xf32>
    %7 = vector.shape_cast %6 : vector<64x384xf32> to vector<8x8x384xf32>
    %c0_5 = arith.constant 0 : index
    %c0_6 = arith.constant 0 : index
    %c0_7 = arith.constant 0 : index
    %8 = vector.load %arg6[%c0_5, %c0_6, %c0_7] : memref<2x1x384xf32, #tpu.memory_space<vmem>>, vector<1x1x384xf32>
    %9 = vector.shape_cast %8 : vector<1x1x384xf32> to vector<1x384xf32>
    %10 = vector.shape_cast %9 : vector<1x384xf32> to vector<1x1x384xf32>
    %11 = vector.broadcast %10 : vector<1x1x384xf32> to vector<8x8x384xf32>
    %12 = arith.addf %7, %11 : vector<8x8x384xf32>
    %c0_8 = arith.constant 0 : index
    %c0_9 = arith.constant 0 : index
    %c0_10 = arith.constant 0 : index
    %13 = vector.load %arg11[%c0_8, %c0_9, %c0_10] : memref<8x8x384xf32, #tpu.memory_space<vmem>>, vector<8x8x384xf32>
    tpu.vector_store %arg11[%c0_8, %c0_9, %c0_10], %12 {strides = array<i32>} : memref<8x8x384xf32, #tpu.memory_space<vmem>>, vector<8x8x384xf32>,
    %c0_11 = arith.constant 0 : index
    %c0_12 = arith.constant 0 : index
    %c0_13 = arith.constant 0 : index
    %14 = vector.load %arg5[%c0_11, %c0_12, %c0_13] : memref<2x128x384xf32, #tpu.memory_space<vmem>>, vector<1x128x384xf32>
    %15 = vector.shape_cast %14 : vector<1x128x384xf32> to vector<128x384xf32>
    %c0_14 = arith.constant 0 : index
    %c0_15 = arith.constant 0 : index
    %c0_16 = arith.constant 0 : index
    %16 = vector.load %arg7[%c0_14, %c0_15, %c0_16] : memref<2x1x128xf32, #tpu.memory_space<vmem>>, vector<1x1x128xf32>
    %17 = vector.shape_cast %16 : vector<1x1x128xf32> to vector<1x128xf32>
    %c0_17 = arith.constant 0 : index
    %c0_18 = arith.constant 0 : index
    %c0_19 = arith.constant 0 : index
    %18 = vector.load %arg9[%c0_17, %c0_18, %c0_19] : memref<2x8x128xf32, #tpu.memory_space<vmem>>, vector<1x8x128xf32>
    %19 = vector.shape_cast %18 : vector<1x8x128xf32> to vector<8x128xf32>
    %c0_i32_20 = arith.constant 0 : i32
    %cst_21 = arith.constant dense<0.000000e+00> : vector<8x384xf32>
    %20 = tpu.matmul %19, %15, %cst_21 {dimension_numbers = #tpu.dot_dimension_numbers<[1], [0], [0], [1], [0, 0, 1, 1], [], []>} : vector<8x128xf32>, vector<128x384xf32>, vector<8x384xf32> -> vector<8x384xf32>
    %21 = arith.index_cast %c0_i32_20 : i32 to index
    %c0_22 = arith.constant 0 : index
    %c0_23 = arith.constant 0 : index
    %22 = vector.load %arg11[%21, %c0_22, %c0_23] : memref<8x8x384xf32, #tpu.memory_space<vmem>>, vector<1x8x384xf32>
    %23 = vector.shape_cast %22 : vector<1x8x384xf32> to vector<8x384xf32>
    %24 = vector.extract_strided_slice %23 {offsets = [0, 0], sizes = [8, 128], strides = [1, 1]} : vector<8x384xf32> to vector<8x128xf32>
    %25 = vector.extract_strided_slice %20 {offsets = [0, 0], sizes = [8, 128], strides = [1, 1]} : vector<8x384xf32> to vector<8x128xf32>
    %26 = arith.addf %24, %25 : vector<8x128xf32>
    %cst_24 = arith.constant 5.000000e-01 : f32
    %27 = vector.broadcast %cst_24 : f32 to vector<8x128xf32>
    %28 = arith.mulf %27, %26 : vector<8x128xf32>
    %29 = math.tanh %28 : vector<8x128xf32>
    %cst_25 = arith.constant 5.000000e-01 : f32
    %30 = vector.broadcast %cst_25 : f32 to vector<8x128xf32>
    %31 = arith.mulf %30, %29 : vector<8x128xf32>
    %cst_26 = arith.constant 5.000000e-01 : f32
    %32 = vector.broadcast %cst_26 : f32 to vector<8x128xf32>
    %33 = arith.addf %31, %32 : vector<8x128xf32>
    %34 = vector.extract_strided_slice %23 {offsets = [0, 128], sizes = [8, 128], strides = [1, 1]} : vector<8x384xf32> to vector<8x128xf32>
    %35 = vector.extract_strided_slice %20 {offsets = [0, 128], sizes = [8, 128], strides = [1, 1]} : vector<8x384xf32> to vector<8x128xf32>
    %36 = arith.addf %34, %35 : vector<8x128xf32>
    %cst_27 = arith.constant 5.000000e-01 : f32
    %37 = vector.broadcast %cst_27 : f32 to vector<8x128xf32>
    %38 = arith.mulf %37, %36 : vector<8x128xf32>
    %39 = math.tanh %38 : vector<8x128xf32>
    %cst_28 = arith.constant 5.000000e-01 : f32
    %40 = vector.broadcast %cst_28 : f32 to vector<8x128xf32>
    %41 = arith.mulf %40, %39 : vector<8x128xf32>
    %cst_29 = arith.constant 5.000000e-01 : f32
    %42 = vector.broadcast %cst_29 : f32 to vector<8x128xf32>
    %43 = arith.addf %41, %42 : vector<8x128xf32>
    %44 = vector.extract_strided_slice %23 {offsets = [0, 256], sizes = [8, 128], strides = [1, 1]} : vector<8x384xf32> to vector<8x128xf32>
    %45 = vector.extract_strided_slice %20 {offsets = [0, 256], sizes = [8, 128], strides = [1, 1]} : vector<8x384xf32> to vector<8x128xf32>
    %46 = vector.broadcast %17 : vector<1x128xf32> to vector<8x128xf32>
    %47 = arith.addf %45, %46 : vector<8x128xf32>
    %48 = arith.mulf %33, %47 : vector<8x128xf32>
    %49 = arith.addf %44, %48 : vector<8x128xf32>
    %50 = math.tanh %49 : vector<8x128xf32>
    %cst_30 = arith.constant 1.000000e+00 : f32
    %51 = vector.broadcast %cst_30 : f32 to vector<8x128xf32>
    %52 = arith.subf %51, %43 : vector<8x128xf32>
    %53 = arith.mulf %52, %50 : vector<8x128xf32>
    %54 = arith.mulf %43, %19 : vector<8x128xf32>
    %55 = arith.addf %53, %54 : vector<8x128xf32>
    %56 = arith.index_cast %c0_i32_20 : i32 to index
    %c0_31 = arith.constant 0 : index
    %c0_32 = arith.constant 0 : index
    %57 = vector.load %arg10[%56, %c0_31, %c0_32] : memref<8x8x128xf32, #tpu.memory_space<vmem>>, vector<1x8x128xf32>
    %58 = vector.shape_cast %57 : vector<1x8x128xf32> to vector<8x128xf32>
    %59 = vector.shape_cast %55 : vector<8x128xf32> to vector<1x8x128xf32>
    tpu.vector_store %arg10[%56, %c0_31, %c0_32], %59 {strides = array<i32>} : memref<8x8x128xf32, #tpu.memory_space<vmem>>, vector<1x8x128xf32>,
    %c1_i32 = arith.constant 1 : i32
    %cst_33 = arith.constant dense<0.000000e+00> : vector<8x384xf32>
    %60 = tpu.matmul %55, %15, %cst_33 {dimension_numbers = #tpu.dot_dimension_numbers<[1], [0], [0], [1], [0, 0, 1, 1], [], []>} : vector<8x128xf32>, vector<128x384xf32>, vector<8x384xf32> -> vector<8x384xf32>
    %61 = arith.index_cast %c1_i32 : i32 to index
    %c0_34 = arith.constant 0 : index
    %c0_35 = arith.constant 0 : index
    %62 = vector.load %arg11[%61, %c0_34, %c0_35] : memref<8x8x384xf32, #tpu.memory_space<vmem>>, vector<1x8x384xf32>
    %63 = vector.shape_cast %62 : vector<1x8x384xf32> to vector<8x384xf32>
    %64 = vector.extract_strided_slice %63 {offsets = [0, 0], sizes = [8, 128], strides = [1, 1]} : vector<8x384xf32> to vector<8x128xf32>
    %65 = vector.extract_strided_slice %60 {offsets = [0, 0], sizes = [8, 128], strides = [1, 1]} : vector<8x384xf32> to vector<8x128xf32>
    %66 = arith.addf %64, %65 : vector<8x128xf32>
    %cst_36 = arith.constant 5.000000e-01 : f32
    %67 = vector.broadcast %cst_36 : f32 to vector<8x128xf32>
    %68 = arith.mulf %67, %66 : vector<8x128xf32>
    %69 = math.tanh %68 : vector<8x128xf32>
    %cst_37 = arith.constant 5.000000e-01 : f32
    %70 = vector.broadcast %cst_37 : f32 to vector<8x128xf32>
    %71 = arith.mulf %70, %69 : vector<8x128xf32>
    %cst_38 = arith.constant 5.000000e-01 : f32
    %72 = vector.broadcast %cst_38 : f32 to vector<8x128xf32>
    %73 = arith.addf %71, %72 : vector<8x128xf32>
    %74 = vector.extract_strided_slice %63 {offsets = [0, 128], sizes = [8, 128], strides = [1, 1]} : vector<8x384xf32> to vector<8x128xf32>
    %75 = vector.extract_strided_slice %60 {offsets = [0, 128], sizes = [8, 128], strides = [1, 1]} : vector<8x384xf32> to vector<8x128xf32>
    %76 = arith.addf %74, %75 : vector<8x128xf32>
    %cst_39 = arith.constant 5.000000e-01 : f32
    %77 = vector.broadcast %cst_39 : f32 to vector<8x128xf32>
    %78 = arith.mulf %77, %76 : vector<8x128xf32>
    %79 = math.tanh %78 : vector<8x128xf32>
    %cst_40 = arith.constant 5.000000e-01 : f32
    %80 = vector.broadcast %cst_40 : f32 to vector<8x128xf32>
    %81 = arith.mulf %80, %79 : vector<8x128xf32>
    %cst_41 = arith.constant 5.000000e-01 : f32
    %82 = vector.broadcast %cst_41 : f32 to vector<8x128xf32>
    %83 = arith.addf %81, %82 : vector<8x128xf32>
    %84 = vector.extract_strided_slice %63 {offsets = [0, 256], sizes = [8, 128], strides = [1, 1]} : vector<8x384xf32> to vector<8x128xf32>
    %85 = vector.extract_strided_slice %60 {offsets = [0, 256], sizes = [8, 128], strides = [1, 1]} : vector<8x384xf32> to vector<8x128xf32>
    %86 = vector.broadcast %17 : vector<1x128xf32> to vector<8x128xf32>
    %87 = arith.addf %85, %86 : vector<8x128xf32>
    %88 = arith.mulf %73, %87 : vector<8x128xf32>
    %89 = arith.addf %84, %88 : vector<8x128xf32>
    %90 = math.tanh %89 : vector<8x128xf32>
    %cst_42 = arith.constant 1.000000e+00 : f32
    %91 = vector.broadcast %cst_42 : f32 to vector<8x128xf32>
    %92 = arith.subf %91, %83 : vector<8x128xf32>
    %93 = arith.mulf %92, %90 : vector<8x128xf32>
    %94 = arith.mulf %83, %55 : vector<8x128xf32>
    %95 = arith.addf %93, %94 : vector<8x128xf32>
    %96 = arith.index_cast %c1_i32 : i32 to index
    %c0_43 = arith.constant 0 : index
    %c0_44 = arith.constant 0 : index
    %97 = vector.load %arg10[%96, %c0_43, %c0_44] : memref<8x8x128xf32, #tpu.memory_space<vmem>>, vector<1x8x128xf32>
    %98 = vector.shape_cast %97 : vector<1x8x128xf32> to vector<8x128xf32>
    %99 = vector.shape_cast %95 : vector<8x128xf32> to vector<1x8x128xf32>
    tpu.vector_store %arg10[%96, %c0_43, %c0_44], %99 {strides = array<i32>} : memref<8x8x128xf32, #tpu.memory_space<vmem>>, vector<1x8x128xf32>,
    %c2_i32 = arith.constant 2 : i32
    %cst_45 = arith.constant dense<0.000000e+00> : vector<8x384xf32>
    %100 = tpu.matmul %95, %15, %cst_45 {dimension_numbers = #tpu.dot_dimension_numbers<[1], [0], [0], [1], [0, 0, 1, 1], [], []>} : vector<8x128xf32>, vector<128x384xf32>, vector<8x384xf32> -> vector<8x384xf32>
    %101 = arith.index_cast %c2_i32 : i32 to index
    %c0_46 = arith.constant 0 : index
    %c0_47 = arith.constant 0 : index
    %102 = vector.load %arg11[%101, %c0_46, %c0_47] : memref<8x8x384xf32, #tpu.memory_space<vmem>>, vector<1x8x384xf32>
    %103 = vector.shape_cast %102 : vector<1x8x384xf32> to vector<8x384xf32>
    %104 = vector.extract_strided_slice %103 {offsets = [0, 0], sizes = [8, 128], strides = [1, 1]} : vector<8x384xf32> to vector<8x128xf32>
    %105 = vector.extract_strided_slice %100 {offsets = [0, 0], sizes = [8, 128], strides = [1, 1]} : vector<8x384xf32> to vector<8x128xf32>
    %106 = arith.addf %104, %105 : vector<8x128xf32>
    %cst_48 = arith.constant 5.000000e-01 : f32
    %107 = vector.broadcast %cst_48 : f32 to vector<8x128xf32>
    %108 = arith.mulf %107, %106 : vector<8x128xf32>
    %109 = math.tanh %108 : vector<8x128xf32>
    %cst_49 = arith.constant 5.000000e-01 : f32
    %110 = vector.broadcast %cst_49 : f32 to vector<8x128xf32>
    %111 = arith.mulf %110, %109 : vector<8x128xf32>
    %cst_50 = arith.constant 5.000000e-01 : f32
    %112 = vector.broadcast %cst_50 : f32 to vector<8x128xf32>
    %113 = arith.addf %111, %112 : vector<8x128xf32>
    %114 = vector.extract_strided_slice %103 {offsets = [0, 128], sizes = [8, 128], strides = [1, 1]} : vector<8x384xf32> to vector<8x128xf32>
    %115 = vector.extract_strided_slice %100 {offsets = [0, 128], sizes = [8, 128], strides = [1, 1]} : vector<8x384xf32> to vector<8x128xf32>
    %116 = arith.addf %114, %115 : vector<8x128xf32>
    %cst_51 = arith.constant 5.000000e-01 : f32
    %117 = vector.broadcast %cst_51 : f32 to vector<8x128xf32>
    %118 = arith.mulf %117, %116 : vector<8x128xf32>
    %119 = math.tanh %118 : vector<8x128xf32>
    %cst_52 = arith.constant 5.000000e-01 : f32
    %120 = vector.broadcast %cst_52 : f32 to vector<8x128xf32>
    %121 = arith.mulf %120, %119 : vector<8x128xf32>
    %cst_53 = arith.constant 5.000000e-01 : f32
    %122 = vector.broadcast %cst_53 : f32 to vector<8x128xf32>
    %123 = arith.addf %121, %122 : vector<8x128xf32>
    %124 = vector.extract_strided_slice %103 {offsets = [0, 256], sizes = [8, 128], strides = [1, 1]} : vector<8x384xf32> to vector<8x128xf32>
    %125 = vector.extract_strided_slice %100 {offsets = [0, 256], sizes = [8, 128], strides = [1, 1]} : vector<8x384xf32> to vector<8x128xf32>
    %126 = vector.broadcast %17 : vector<1x128xf32> to vector<8x128xf32>
    %127 = arith.addf %125, %126 : vector<8x128xf32>
    %128 = arith.mulf %113, %127 : vector<8x128xf32>
    %129 = arith.addf %124, %128 : vector<8x128xf32>
    %130 = math.tanh %129 : vector<8x128xf32>
    %cst_54 = arith.constant 1.000000e+00 : f32
    %131 = vector.broadcast %cst_54 : f32 to vector<8x128xf32>
    %132 = arith.subf %131, %123 : vector<8x128xf32>
    %133 = arith.mulf %132, %130 : vector<8x128xf32>
    %134 = arith.mulf %123, %95 : vector<8x128xf32>
    %135 = arith.addf %133, %134 : vector<8x128xf32>
    %136 = arith.index_cast %c2_i32 : i32 to index
    %c0_55 = arith.constant 0 : index
    %c0_56 = arith.constant 0 : index
    %137 = vector.load %arg10[%136, %c0_55, %c0_56] : memref<8x8x128xf32, #tpu.memory_space<vmem>>, vector<1x8x128xf32>
    %138 = vector.shape_cast %137 : vector<1x8x128xf32> to vector<8x128xf32>
    %139 = vector.shape_cast %135 : vector<8x128xf32> to vector<1x8x128xf32>
    tpu.vector_store %arg10[%136, %c0_55, %c0_56], %139 {strides = array<i32>} : memref<8x8x128xf32, #tpu.memory_space<vmem>>, vector<1x8x128xf32>,
    %c3_i32 = arith.constant 3 : i32
    %cst_57 = arith.constant dense<0.000000e+00> : vector<8x384xf32>
    %140 = tpu.matmul %135, %15, %cst_57 {dimension_numbers = #tpu.dot_dimension_numbers<[1], [0], [0], [1], [0, 0, 1, 1], [], []>} : vector<8x128xf32>, vector<128x384xf32>, vector<8x384xf32> -> vector<8x384xf32>
    %141 = arith.index_cast %c3_i32 : i32 to index
    %c0_58 = arith.constant 0 : index
    %c0_59 = arith.constant 0 : index
    %142 = vector.load %arg11[%141, %c0_58, %c0_59] : memref<8x8x384xf32, #tpu.memory_space<vmem>>, vector<1x8x384xf32>
    %143 = vector.shape_cast %142 : vector<1x8x384xf32> to vector<8x384xf32>
    %144 = vector.extract_strided_slice %143 {offsets = [0, 0], sizes = [8, 128], strides = [1, 1]} : vector<8x384xf32> to vector<8x128xf32>
    %145 = vector.extract_strided_slice %140 {offsets = [0, 0], sizes = [8, 128], strides = [1, 1]} : vector<8x384xf32> to vector<8x128xf32>
    %146 = arith.addf %144, %145 : vector<8x128xf32>
    %cst_60 = arith.constant 5.000000e-01 : f32
    %147 = vector.broadcast %cst_60 : f32 to vector<8x128xf32>
    %148 = arith.mulf %147, %146 : vector<8x128xf32>
    %149 = math.tanh %148 : vector<8x128xf32>
    %cst_61 = arith.constant 5.000000e-01 : f32
    %150 = vector.broadcast %cst_61 : f32 to vector<8x128xf32>
    %151 = arith.mulf %150, %149 : vector<8x128xf32>
    %cst_62 = arith.constant 5.000000e-01 : f32
    %152 = vector.broadcast %cst_62 : f32 to vector<8x128xf32>
    %153 = arith.addf %151, %152 : vector<8x128xf32>
    %154 = vector.extract_strided_slice %143 {offsets = [0, 128], sizes = [8, 128], strides = [1, 1]} : vector<8x384xf32> to vector<8x128xf32>
    %155 = vector.extract_strided_slice %140 {offsets = [0, 128], sizes = [8, 128], strides = [1, 1]} : vector<8x384xf32> to vector<8x128xf32>
    %156 = arith.addf %154, %155 : vector<8x128xf32>
    %cst_63 = arith.constant 5.000000e-01 : f32
    %157 = vector.broadcast %cst_63 : f32 to vector<8x128xf32>
    %158 = arith.mulf %157, %156 : vector<8x128xf32>
    %159 = math.tanh %158 : vector<8x128xf32>
    %cst_64 = arith.constant 5.000000e-01 : f32
    %160 = vector.broadcast %cst_64 : f32 to vector<8x128xf32>
    %161 = arith.mulf %160, %159 : vector<8x128xf32>
    %cst_65 = arith.constant 5.000000e-01 : f32
    %162 = vector.broadcast %cst_65 : f32 to vector<8x128xf32>
    %163 = arith.addf %161, %162 : vector<8x128xf32>
    %164 = vector.extract_strided_slice %143 {offsets = [0, 256], sizes = [8, 128], strides = [1, 1]} : vector<8x384xf32> to vector<8x128xf32>
    %165 = vector.extract_strided_slice %140 {offsets = [0, 256], sizes = [8, 128], strides = [1, 1]} : vector<8x384xf32> to vector<8x128xf32>
    %166 = vector.broadcast %17 : vector<1x128xf32> to vector<8x128xf32>
    %167 = arith.addf %165, %166 : vector<8x128xf32>
    %168 = arith.mulf %153, %167 : vector<8x128xf32>
    %169 = arith.addf %164, %168 : vector<8x128xf32>
    %170 = math.tanh %169 : vector<8x128xf32>
    %cst_66 = arith.constant 1.000000e+00 : f32
    %171 = vector.broadcast %cst_66 : f32 to vector<8x128xf32>
    %172 = arith.subf %171, %163 : vector<8x128xf32>
    %173 = arith.mulf %172, %170 : vector<8x128xf32>
    %174 = arith.mulf %163, %135 : vector<8x128xf32>
    %175 = arith.addf %173, %174 : vector<8x128xf32>
    %176 = arith.index_cast %c3_i32 : i32 to index
    %c0_67 = arith.constant 0 : index
    %c0_68 = arith.constant 0 : index
    %177 = vector.load %arg10[%176, %c0_67, %c0_68] : memref<8x8x128xf32, #tpu.memory_space<vmem>>, vector<1x8x128xf32>
    %178 = vector.shape_cast %177 : vector<1x8x128xf32> to vector<8x128xf32>
    %179 = vector.shape_cast %175 : vector<8x128xf32> to vector<1x8x128xf32>
    tpu.vector_store %arg10[%176, %c0_67, %c0_68], %179 {strides = array<i32>} : memref<8x8x128xf32, #tpu.memory_space<vmem>>, vector<1x8x128xf32>,
    %c4_i32 = arith.constant 4 : i32
    %cst_69 = arith.constant dense<0.000000e+00> : vector<8x384xf32>
    %180 = tpu.matmul %175, %15, %cst_69 {dimension_numbers = #tpu.dot_dimension_numbers<[1], [0], [0], [1], [0, 0, 1, 1], [], []>} : vector<8x128xf32>, vector<128x384xf32>, vector<8x384xf32> -> vector<8x384xf32>
    %181 = arith.index_cast %c4_i32 : i32 to index
    %c0_70 = arith.constant 0 : index
    %c0_71 = arith.constant 0 : index
    %182 = vector.load %arg11[%181, %c0_70, %c0_71] : memref<8x8x384xf32, #tpu.memory_space<vmem>>, vector<1x8x384xf32>
    %183 = vector.shape_cast %182 : vector<1x8x384xf32> to vector<8x384xf32>
    %184 = vector.extract_strided_slice %183 {offsets = [0, 0], sizes = [8, 128], strides = [1, 1]} : vector<8x384xf32> to vector<8x128xf32>
    %185 = vector.extract_strided_slice %180 {offsets = [0, 0], sizes = [8, 128], strides = [1, 1]} : vector<8x384xf32> to vector<8x128xf32>
    %186 = arith.addf %184, %185 : vector<8x128xf32>
    %cst_72 = arith.constant 5.000000e-01 : f32
    %187 = vector.broadcast %cst_72 : f32 to vector<8x128xf32>
    %188 = arith.mulf %187, %186 : vector<8x128xf32>
    %189 = math.tanh %188 : vector<8x128xf32>
    %cst_73 = arith.constant 5.000000e-01 : f32
    %190 = vector.broadcast %cst_73 : f32 to vector<8x128xf32>
    %191 = arith.mulf %190, %189 : vector<8x128xf32>
    %cst_74 = arith.constant 5.000000e-01 : f32
    %192 = vector.broadcast %cst_74 : f32 to vector<8x128xf32>
    %193 = arith.addf %191, %192 : vector<8x128xf32>
    %194 = vector.extract_strided_slice %183 {offsets = [0, 128], sizes = [8, 128], strides = [1, 1]} : vector<8x384xf32> to vector<8x128xf32>
    %195 = vector.extract_strided_slice %180 {offsets = [0, 128], sizes = [8, 128], strides = [1, 1]} : vector<8x384xf32> to vector<8x128xf32>
    %196 = arith.addf %194, %195 : vector<8x128xf32>
    %cst_75 = arith.constant 5.000000e-01 : f32
    %197 = vector.broadcast %cst_75 : f32 to vector<8x128xf32>
    %198 = arith.mulf %197, %196 : vector<8x128xf32>
    %199 = math.tanh %198 : vector<8x128xf32>
    %cst_76 = arith.constant 5.000000e-01 : f32
    %200 = vector.broadcast %cst_76 : f32 to vector<8x128xf32>
    %201 = arith.mulf %200, %199 : vector<8x128xf32>
    %cst_77 = arith.constant 5.000000e-01 : f32
    %202 = vector.broadcast %cst_77 : f32 to vector<8x128xf32>
    %203 = arith.addf %201, %202 : vector<8x128xf32>
    %204 = vector.extract_strided_slice %183 {offsets = [0, 256], sizes = [8, 128], strides = [1, 1]} : vector<8x384xf32> to vector<8x128xf32>
    %205 = vector.extract_strided_slice %180 {offsets = [0, 256], sizes = [8, 128], strides = [1, 1]} : vector<8x384xf32> to vector<8x128xf32>
    %206 = vector.broadcast %17 : vector<1x128xf32> to vector<8x128xf32>
    %207 = arith.addf %205, %206 : vector<8x128xf32>
    %208 = arith.mulf %193, %207 : vector<8x128xf32>
    %209 = arith.addf %204, %208 : vector<8x128xf32>
    %210 = math.tanh %209 : vector<8x128xf32>
    %cst_78 = arith.constant 1.000000e+00 : f32
    %211 = vector.broadcast %cst_78 : f32 to vector<8x128xf32>
    %212 = arith.subf %211, %203 : vector<8x128xf32>
    %213 = arith.mulf %212, %210 : vector<8x128xf32>
    %214 = arith.mulf %203, %175 : vector<8x128xf32>
    %215 = arith.addf %213, %214 : vector<8x128xf32>
    %216 = arith.index_cast %c4_i32 : i32 to index
    %c0_79 = arith.constant 0 : index
    %c0_80 = arith.constant 0 : index
    %217 = vector.load %arg10[%216, %c0_79, %c0_80] : memref<8x8x128xf32, #tpu.memory_space<vmem>>, vector<1x8x128xf32>
    %218 = vector.shape_cast %217 : vector<1x8x128xf32> to vector<8x128xf32>
    %219 = vector.shape_cast %215 : vector<8x128xf32> to vector<1x8x128xf32>
    tpu.vector_store %arg10[%216, %c0_79, %c0_80], %219 {strides = array<i32>} : memref<8x8x128xf32, #tpu.memory_space<vmem>>, vector<1x8x128xf32>,
    %c5_i32 = arith.constant 5 : i32
    %cst_81 = arith.constant dense<0.000000e+00> : vector<8x384xf32>
    %220 = tpu.matmul %215, %15, %cst_81 {dimension_numbers = #tpu.dot_dimension_numbers<[1], [0], [0], [1], [0, 0, 1, 1], [], []>} : vector<8x128xf32>, vector<128x384xf32>, vector<8x384xf32> -> vector<8x384xf32>
    %221 = arith.index_cast %c5_i32 : i32 to index
    %c0_82 = arith.constant 0 : index
    %c0_83 = arith.constant 0 : index
    %222 = vector.load %arg11[%221, %c0_82, %c0_83] : memref<8x8x384xf32, #tpu.memory_space<vmem>>, vector<1x8x384xf32>
    %223 = vector.shape_cast %222 : vector<1x8x384xf32> to vector<8x384xf32>
    %224 = vector.extract_strided_slice %223 {offsets = [0, 0], sizes = [8, 128], strides = [1, 1]} : vector<8x384xf32> to vector<8x128xf32>
    %225 = vector.extract_strided_slice %220 {offsets = [0, 0], sizes = [8, 128], strides = [1, 1]} : vector<8x384xf32> to vector<8x128xf32>
    %226 = arith.addf %224, %225 : vector<8x128xf32>
    %cst_84 = arith.constant 5.000000e-01 : f32
    %227 = vector.broadcast %cst_84 : f32 to vector<8x128xf32>
    %228 = arith.mulf %227, %226 : vector<8x128xf32>
    %229 = math.tanh %228 : vector<8x128xf32>
    %cst_85 = arith.constant 5.000000e-01 : f32
    %230 = vector.broadcast %cst_85 : f32 to vector<8x128xf32>
    %231 = arith.mulf %230, %229 : vector<8x128xf32>
    %cst_86 = arith.constant 5.000000e-01 : f32
    %232 = vector.broadcast %cst_86 : f32 to vector<8x128xf32>
    %233 = arith.addf %231, %232 : vector<8x128xf32>
    %234 = vector.extract_strided_slice %223 {offsets = [0, 128], sizes = [8, 128], strides = [1, 1]} : vector<8x384xf32> to vector<8x128xf32>
    %235 = vector.extract_strided_slice %220 {offsets = [0, 128], sizes = [8, 128], strides = [1, 1]} : vector<8x384xf32> to vector<8x128xf32>
    %236 = arith.addf %234, %235 : vector<8x128xf32>
    %cst_87 = arith.constant 5.000000e-01 : f32
    %237 = vector.broadcast %cst_87 : f32 to vector<8x128xf32>
    %238 = arith.mulf %237, %236 : vector<8x128xf32>
    %239 = math.tanh %238 : vector<8x128xf32>
    %cst_88 = arith.constant 5.000000e-01 : f32
    %240 = vector.broadcast %cst_88 : f32 to vector<8x128xf32>
    %241 = arith.mulf %240, %239 : vector<8x128xf32>
    %cst_89 = arith.constant 5.000000e-01 : f32
    %242 = vector.broadcast %cst_89 : f32 to vector<8x128xf32>
    %243 = arith.addf %241, %242 : vector<8x128xf32>
    %244 = vector.extract_strided_slice %223 {offsets = [0, 256], sizes = [8, 128], strides = [1, 1]} : vector<8x384xf32> to vector<8x128xf32>
    %245 = vector.extract_strided_slice %220 {offsets = [0, 256], sizes = [8, 128], strides = [1, 1]} : vector<8x384xf32> to vector<8x128xf32>
    %246 = vector.broadcast %17 : vector<1x128xf32> to vector<8x128xf32>
    %247 = arith.addf %245, %246 : vector<8x128xf32>
    %248 = arith.mulf %233, %247 : vector<8x128xf32>
    %249 = arith.addf %244, %248 : vector<8x128xf32>
    %250 = math.tanh %249 : vector<8x128xf32>
    %cst_90 = arith.constant 1.000000e+00 : f32
    %251 = vector.broadcast %cst_90 : f32 to vector<8x128xf32>
    %252 = arith.subf %251, %243 : vector<8x128xf32>
    %253 = arith.mulf %252, %250 : vector<8x128xf32>
    %254 = arith.mulf %243, %215 : vector<8x128xf32>
    %255 = arith.addf %253, %254 : vector<8x128xf32>
    %256 = arith.index_cast %c5_i32 : i32 to index
    %c0_91 = arith.constant 0 : index
    %c0_92 = arith.constant 0 : index
    %257 = vector.load %arg10[%256, %c0_91, %c0_92] : memref<8x8x128xf32, #tpu.memory_space<vmem>>, vector<1x8x128xf32>
    %258 = vector.shape_cast %257 : vector<1x8x128xf32> to vector<8x128xf32>
    %259 = vector.shape_cast %255 : vector<8x128xf32> to vector<1x8x128xf32>
    tpu.vector_store %arg10[%256, %c0_91, %c0_92], %259 {strides = array<i32>} : memref<8x8x128xf32, #tpu.memory_space<vmem>>, vector<1x8x128xf32>,
    %c6_i32 = arith.constant 6 : i32
    %cst_93 = arith.constant dense<0.000000e+00> : vector<8x384xf32>
    %260 = tpu.matmul %255, %15, %cst_93 {dimension_numbers = #tpu.dot_dimension_numbers<[1], [0], [0], [1], [0, 0, 1, 1], [], []>} : vector<8x128xf32>, vector<128x384xf32>, vector<8x384xf32> -> vector<8x384xf32>
    %261 = arith.index_cast %c6_i32 : i32 to index
    %c0_94 = arith.constant 0 : index
    %c0_95 = arith.constant 0 : index
    %262 = vector.load %arg11[%261, %c0_94, %c0_95] : memref<8x8x384xf32, #tpu.memory_space<vmem>>, vector<1x8x384xf32>
    %263 = vector.shape_cast %262 : vector<1x8x384xf32> to vector<8x384xf32>
    %264 = vector.extract_strided_slice %263 {offsets = [0, 0], sizes = [8, 128], strides = [1, 1]} : vector<8x384xf32> to vector<8x128xf32>
    %265 = vector.extract_strided_slice %260 {offsets = [0, 0], sizes = [8, 128], strides = [1, 1]} : vector<8x384xf32> to vector<8x128xf32>
    %266 = arith.addf %264, %265 : vector<8x128xf32>
    %cst_96 = arith.constant 5.000000e-01 : f32
    %267 = vector.broadcast %cst_96 : f32 to vector<8x128xf32>
    %268 = arith.mulf %267, %266 : vector<8x128xf32>
    %269 = math.tanh %268 : vector<8x128xf32>
    %cst_97 = arith.constant 5.000000e-01 : f32
    %270 = vector.broadcast %cst_97 : f32 to vector<8x128xf32>
    %271 = arith.mulf %270, %269 : vector<8x128xf32>
    %cst_98 = arith.constant 5.000000e-01 : f32
    %272 = vector.broadcast %cst_98 : f32 to vector<8x128xf32>
    %273 = arith.addf %271, %272 : vector<8x128xf32>
    %274 = vector.extract_strided_slice %263 {offsets = [0, 128], sizes = [8, 128], strides = [1, 1]} : vector<8x384xf32> to vector<8x128xf32>
    %275 = vector.extract_strided_slice %260 {offsets = [0, 128], sizes = [8, 128], strides = [1, 1]} : vector<8x384xf32> to vector<8x128xf32>
    %276 = arith.addf %274, %275 : vector<8x128xf32>
    %cst_99 = arith.constant 5.000000e-01 : f32
    %277 = vector.broadcast %cst_99 : f32 to vector<8x128xf32>
    %278 = arith.mulf %277, %276 : vector<8x128xf32>
    %279 = math.tanh %278 : vector<8x128xf32>
    %cst_100 = arith.constant 5.000000e-01 : f32
    %280 = vector.broadcast %cst_100 : f32 to vector<8x128xf32>
    %281 = arith.mulf %280, %279 : vector<8x128xf32>
    %cst_101 = arith.constant 5.000000e-01 : f32
    %282 = vector.broadcast %cst_101 : f32 to vector<8x128xf32>
    %283 = arith.addf %281, %282 : vector<8x128xf32>
    %284 = vector.extract_strided_slice %263 {offsets = [0, 256], sizes = [8, 128], strides = [1, 1]} : vector<8x384xf32> to vector<8x128xf32>
    %285 = vector.extract_strided_slice %260 {offsets = [0, 256], sizes = [8, 128], strides = [1, 1]} : vector<8x384xf32> to vector<8x128xf32>
    %286 = vector.broadcast %17 : vector<1x128xf32> to vector<8x128xf32>
    %287 = arith.addf %285, %286 : vector<8x128xf32>
    %288 = arith.mulf %273, %287 : vector<8x128xf32>
    %289 = arith.addf %284, %288 : vector<8x128xf32>
    %290 = math.tanh %289 : vector<8x128xf32>
    %cst_102 = arith.constant 1.000000e+00 : f32
    %291 = vector.broadcast %cst_102 : f32 to vector<8x128xf32>
    %292 = arith.subf %291, %283 : vector<8x128xf32>
    %293 = arith.mulf %292, %290 : vector<8x128xf32>
    %294 = arith.mulf %283, %255 : vector<8x128xf32>
    %295 = arith.addf %293, %294 : vector<8x128xf32>
    %296 = arith.index_cast %c6_i32 : i32 to index
    %c0_103 = arith.constant 0 : index
    %c0_104 = arith.constant 0 : index
    %297 = vector.load %arg10[%296, %c0_103, %c0_104] : memref<8x8x128xf32, #tpu.memory_space<vmem>>, vector<1x8x128xf32>
    %298 = vector.shape_cast %297 : vector<1x8x128xf32> to vector<8x128xf32>
    %299 = vector.shape_cast %295 : vector<8x128xf32> to vector<1x8x128xf32>
    tpu.vector_store %arg10[%296, %c0_103, %c0_104], %299 {strides = array<i32>} : memref<8x8x128xf32, #tpu.memory_space<vmem>>, vector<1x8x128xf32>,
    %c7_i32 = arith.constant 7 : i32
    %cst_105 = arith.constant dense<0.000000e+00> : vector<8x384xf32>
    %300 = tpu.matmul %295, %15, %cst_105 {dimension_numbers = #tpu.dot_dimension_numbers<[1], [0], [0], [1], [0, 0, 1, 1], [], []>} : vector<8x128xf32>, vector<128x384xf32>, vector<8x384xf32> -> vector<8x384xf32>
    %301 = arith.index_cast %c7_i32 : i32 to index
    %c0_106 = arith.constant 0 : index
    %c0_107 = arith.constant 0 : index
    %302 = vector.load %arg11[%301, %c0_106, %c0_107] : memref<8x8x384xf32, #tpu.memory_space<vmem>>, vector<1x8x384xf32>
    %303 = vector.shape_cast %302 : vector<1x8x384xf32> to vector<8x384xf32>
    %304 = vector.extract_strided_slice %303 {offsets = [0, 0], sizes = [8, 128], strides = [1, 1]} : vector<8x384xf32> to vector<8x128xf32>
    %305 = vector.extract_strided_slice %300 {offsets = [0, 0], sizes = [8, 128], strides = [1, 1]} : vector<8x384xf32> to vector<8x128xf32>
    %306 = arith.addf %304, %305 : vector<8x128xf32>
    %cst_108 = arith.constant 5.000000e-01 : f32
    %307 = vector.broadcast %cst_108 : f32 to vector<8x128xf32>
    %308 = arith.mulf %307, %306 : vector<8x128xf32>
    %309 = math.tanh %308 : vector<8x128xf32>
    %cst_109 = arith.constant 5.000000e-01 : f32
    %310 = vector.broadcast %cst_109 : f32 to vector<8x128xf32>
    %311 = arith.mulf %310, %309 : vector<8x128xf32>
    %cst_110 = arith.constant 5.000000e-01 : f32
    %312 = vector.broadcast %cst_110 : f32 to vector<8x128xf32>
    %313 = arith.addf %311, %312 : vector<8x128xf32>
    %314 = vector.extract_strided_slice %303 {offsets = [0, 128], sizes = [8, 128], strides = [1, 1]} : vector<8x384xf32> to vector<8x128xf32>
    %315 = vector.extract_strided_slice %300 {offsets = [0, 128], sizes = [8, 128], strides = [1, 1]} : vector<8x384xf32> to vector<8x128xf32>
    %316 = arith.addf %314, %315 : vector<8x128xf32>
    %cst_111 = arith.constant 5.000000e-01 : f32
    %317 = vector.broadcast %cst_111 : f32 to vector<8x128xf32>
    %318 = arith.mulf %317, %316 : vector<8x128xf32>
    %319 = math.tanh %318 : vector<8x128xf32>
    %cst_112 = arith.constant 5.000000e-01 : f32
    %320 = vector.broadcast %cst_112 : f32 to vector<8x128xf32>
    %321 = arith.mulf %320, %319 : vector<8x128xf32>
    %cst_113 = arith.constant 5.000000e-01 : f32
    %322 = vector.broadcast %cst_113 : f32 to vector<8x128xf32>
    %323 = arith.addf %321, %322 : vector<8x128xf32>
    %324 = vector.extract_strided_slice %303 {offsets = [0, 256], sizes = [8, 128], strides = [1, 1]} : vector<8x384xf32> to vector<8x128xf32>
    %325 = vector.extract_strided_slice %300 {offsets = [0, 256], sizes = [8, 128], strides = [1, 1]} : vector<8x384xf32> to vector<8x128xf32>
    %326 = vector.broadcast %17 : vector<1x128xf32> to vector<8x128xf32>
    %327 = arith.addf %325, %326 : vector<8x128xf32>
    %328 = arith.mulf %313, %327 : vector<8x128xf32>
    %329 = arith.addf %324, %328 : vector<8x128xf32>
    %330 = math.tanh %329 : vector<8x128xf32>
    %cst_114 = arith.constant 1.000000e+00 : f32
    %331 = vector.broadcast %cst_114 : f32 to vector<8x128xf32>
    %332 = arith.subf %331, %323 : vector<8x128xf32>
    %333 = arith.mulf %332, %330 : vector<8x128xf32>
    %334 = arith.mulf %323, %295 : vector<8x128xf32>
    %335 = arith.addf %333, %334 : vector<8x128xf32>
    %336 = arith.index_cast %c7_i32 : i32 to index
    %c0_115 = arith.constant 0 : index
    %c0_116 = arith.constant 0 : index
    %337 = vector.load %arg10[%336, %c0_115, %c0_116] : memref<8x8x128xf32, #tpu.memory_space<vmem>>, vector<1x8x128xf32>
    %338 = vector.shape_cast %337 : vector<1x8x128xf32> to vector<8x128xf32>
    %339 = vector.shape_cast %335 : vector<8x128xf32> to vector<1x8x128xf32>
    tpu.vector_store %arg10[%336, %c0_115, %c0_116], %339 {strides = array<i32>} : memref<8x8x128xf32, #tpu.memory_space<vmem>>, vector<1x8x128xf32>,
    %c8_i32 = arith.constant 8 : i32
    %c0_117 = arith.constant 0 : index
    %c0_118 = arith.constant 0 : index
    %c0_119 = arith.constant 0 : index
    %340 = vector.load %arg9[%c0_117, %c0_118, %c0_119] : memref<2x8x128xf32, #tpu.memory_space<vmem>>, vector<1x8x128xf32>
    %341 = vector.shape_cast %340 : vector<1x8x128xf32> to vector<8x128xf32>
    %342 = vector.shape_cast %335 : vector<8x128xf32> to vector<1x8x128xf32>
    tpu.vector_store %arg9[%c0_117, %c0_118, %c0_119], %342 {strides = array<i32>} : memref<2x8x128xf32, #tpu.memory_space<vmem>>, vector<1x8x128xf32>,
    %c0_120 = arith.constant 0 : index
    %c0_121 = arith.constant 0 : index
    %c0_122 = arith.constant 0 : index
    %343 = vector.load %arg10[%c0_120, %c0_121, %c0_122] : memref<8x8x128xf32, #tpu.memory_space<vmem>>, vector<8x8x128xf32>
    %344 = vector.shape_cast %343 : vector<8x8x128xf32> to vector<64x128xf32>
    %c0_123 = arith.constant 0 : index
    %c0_124 = arith.constant 0 : index
    %c0_125 = arith.constant 0 : index
    %345 = vector.load %arg4[%c0_123, %c0_124, %c0_125] : memref<1x128x384xf32, #tpu.memory_space<vmem>>, vector<1x128x384xf32>
    %346 = vector.shape_cast %345 : vector<1x128x384xf32> to vector<128x384xf32>
    %cst_126 = arith.constant dense<0.000000e+00> : vector<64x384xf32>
    %347 = tpu.matmul %344, %346, %cst_126 {dimension_numbers = #tpu.dot_dimension_numbers<[1], [0], [0], [1], [0, 0, 1, 1], [], []>} : vector<64x128xf32>, vector<128x384xf32>, vector<64x384xf32> -> vector<64x384xf32>
    %348 = vector.shape_cast %347 : vector<64x384xf32> to vector<8x8x384xf32>
    %c1 = arith.constant 1 : index
    %c0_127 = arith.constant 0 : index
    %c0_128 = arith.constant 0 : index
    %349 = vector.load %arg6[%c1, %c0_127, %c0_128] : memref<2x1x384xf32, #tpu.memory_space<vmem>>, vector<1x1x384xf32>
    %350 = vector.shape_cast %349 : vector<1x1x384xf32> to vector<1x384xf32>
    %351 = vector.shape_cast %350 : vector<1x384xf32> to vector<1x1x384xf32>
    %352 = vector.broadcast %351 : vector<1x1x384xf32> to vector<8x8x384xf32>
    %353 = arith.addf %348, %352 : vector<8x8x384xf32>
    %c0_129 = arith.constant 0 : index
    %c0_130 = arith.constant 0 : index
    %c0_131 = arith.constant 0 : index
    %354 = vector.load %arg11[%c0_129, %c0_130, %c0_131] : memref<8x8x384xf32, #tpu.memory_space<vmem>>, vector<8x8x384xf32>
    tpu.vector_store %arg11[%c0_129, %c0_130, %c0_131], %353 {strides = array<i32>} : memref<8x8x384xf32, #tpu.memory_space<vmem>>, vector<8x8x384xf32>,
    %c1_132 = arith.constant 1 : index
    %c0_133 = arith.constant 0 : index
    %c0_134 = arith.constant 0 : index
    %355 = vector.load %arg5[%c1_132, %c0_133, %c0_134] : memref<2x128x384xf32, #tpu.memory_space<vmem>>, vector<1x128x384xf32>
    %356 = vector.shape_cast %355 : vector<1x128x384xf32> to vector<128x384xf32>
    %c1_135 = arith.constant 1 : index
    %c0_136 = arith.constant 0 : index
    %c0_137 = arith.constant 0 : index
    %357 = vector.load %arg7[%c1_135, %c0_136, %c0_137] : memref<2x1x128xf32, #tpu.memory_space<vmem>>, vector<1x1x128xf32>
    %358 = vector.shape_cast %357 : vector<1x1x128xf32> to vector<1x128xf32>
    %c1_138 = arith.constant 1 : index
    %c0_139 = arith.constant 0 : index
    %c0_140 = arith.constant 0 : index
    %359 = vector.load %arg9[%c1_138, %c0_139, %c0_140] : memref<2x8x128xf32, #tpu.memory_space<vmem>>, vector<1x8x128xf32>
    %360 = vector.shape_cast %359 : vector<1x8x128xf32> to vector<8x128xf32>
    %c0_i32_141 = arith.constant 0 : i32
    %cst_142 = arith.constant dense<0.000000e+00> : vector<8x384xf32>
    %361 = tpu.matmul %360, %356, %cst_142 {dimension_numbers = #tpu.dot_dimension_numbers<[1], [0], [0], [1], [0, 0, 1, 1], [], []>} : vector<8x128xf32>, vector<128x384xf32>, vector<8x384xf32> -> vector<8x384xf32>
    %362 = arith.index_cast %c0_i32_141 : i32 to index
    %c0_143 = arith.constant 0 : index
    %c0_144 = arith.constant 0 : index
    %363 = vector.load %arg11[%362, %c0_143, %c0_144] : memref<8x8x384xf32, #tpu.memory_space<vmem>>, vector<1x8x384xf32>
    %364 = vector.shape_cast %363 : vector<1x8x384xf32> to vector<8x384xf32>
    %365 = vector.extract_strided_slice %364 {offsets = [0, 0], sizes = [8, 128], strides = [1, 1]} : vector<8x384xf32> to vector<8x128xf32>
    %366 = vector.extract_strided_slice %361 {offsets = [0, 0], sizes = [8, 128], strides = [1, 1]} : vector<8x384xf32> to vector<8x128xf32>
    %367 = arith.addf %365, %366 : vector<8x128xf32>
    %cst_145 = arith.constant 5.000000e-01 : f32
    %368 = vector.broadcast %cst_145 : f32 to vector<8x128xf32>
    %369 = arith.mulf %368, %367 : vector<8x128xf32>
    %370 = math.tanh %369 : vector<8x128xf32>
    %cst_146 = arith.constant 5.000000e-01 : f32
    %371 = vector.broadcast %cst_146 : f32 to vector<8x128xf32>
    %372 = arith.mulf %371, %370 : vector<8x128xf32>
    %cst_147 = arith.constant 5.000000e-01 : f32
    %373 = vector.broadcast %cst_147 : f32 to vector<8x128xf32>
    %374 = arith.addf %372, %373 : vector<8x128xf32>
    %375 = vector.extract_strided_slice %364 {offsets = [0, 128], sizes = [8, 128], strides = [1, 1]} : vector<8x384xf32> to vector<8x128xf32>
    %376 = vector.extract_strided_slice %361 {offsets = [0, 128], sizes = [8, 128], strides = [1, 1]} : vector<8x384xf32> to vector<8x128xf32>
    %377 = arith.addf %375, %376 : vector<8x128xf32>
    %cst_148 = arith.constant 5.000000e-01 : f32
    %378 = vector.broadcast %cst_148 : f32 to vector<8x128xf32>
    %379 = arith.mulf %378, %377 : vector<8x128xf32>
    %380 = math.tanh %379 : vector<8x128xf32>
    %cst_149 = arith.constant 5.000000e-01 : f32
    %381 = vector.broadcast %cst_149 : f32 to vector<8x128xf32>
    %382 = arith.mulf %381, %380 : vector<8x128xf32>
    %cst_150 = arith.constant 5.000000e-01 : f32
    %383 = vector.broadcast %cst_150 : f32 to vector<8x128xf32>
    %384 = arith.addf %382, %383 : vector<8x128xf32>
    %385 = vector.extract_strided_slice %364 {offsets = [0, 256], sizes = [8, 128], strides = [1, 1]} : vector<8x384xf32> to vector<8x128xf32>
    %386 = vector.extract_strided_slice %361 {offsets = [0, 256], sizes = [8, 128], strides = [1, 1]} : vector<8x384xf32> to vector<8x128xf32>
    %387 = vector.broadcast %358 : vector<1x128xf32> to vector<8x128xf32>
    %388 = arith.addf %386, %387 : vector<8x128xf32>
    %389 = arith.mulf %374, %388 : vector<8x128xf32>
    %390 = arith.addf %385, %389 : vector<8x128xf32>
    %391 = math.tanh %390 : vector<8x128xf32>
    %cst_151 = arith.constant 1.000000e+00 : f32
    %392 = vector.broadcast %cst_151 : f32 to vector<8x128xf32>
    %393 = arith.subf %392, %384 : vector<8x128xf32>
    %394 = arith.mulf %393, %391 : vector<8x128xf32>
    %395 = arith.mulf %384, %360 : vector<8x128xf32>
    %396 = arith.addf %394, %395 : vector<8x128xf32>
    %397 = arith.index_cast %c0_i32_141 : i32 to index
    %c0_152 = arith.constant 0 : index
    %c0_153 = arith.constant 0 : index
    %398 = vector.load %arg8[%397, %c0_152, %c0_153] : memref<8x8x128xf32, #tpu.memory_space<vmem>>, vector<1x8x128xf32>
    %399 = vector.shape_cast %398 : vector<1x8x128xf32> to vector<8x128xf32>
    %400 = vector.shape_cast %396 : vector<8x128xf32> to vector<1x8x128xf32>
    tpu.vector_store %arg8[%397, %c0_152, %c0_153], %400 {strides = array<i32>} : memref<8x8x128xf32, #tpu.memory_space<vmem>>, vector<1x8x128xf32>,
    %c1_i32_154 = arith.constant 1 : i32
    %cst_155 = arith.constant dense<0.000000e+00> : vector<8x384xf32>
    %401 = tpu.matmul %396, %356, %cst_155 {dimension_numbers = #tpu.dot_dimension_numbers<[1], [0], [0], [1], [0, 0, 1, 1], [], []>} : vector<8x128xf32>, vector<128x384xf32>, vector<8x384xf32> -> vector<8x384xf32>
    %402 = arith.index_cast %c1_i32_154 : i32 to index
    %c0_156 = arith.constant 0 : index
    %c0_157 = arith.constant 0 : index
    %403 = vector.load %arg11[%402, %c0_156, %c0_157] : memref<8x8x384xf32, #tpu.memory_space<vmem>>, vector<1x8x384xf32>
    %404 = vector.shape_cast %403 : vector<1x8x384xf32> to vector<8x384xf32>
    %405 = vector.extract_strided_slice %404 {offsets = [0, 0], sizes = [8, 128], strides = [1, 1]} : vector<8x384xf32> to vector<8x128xf32>
    %406 = vector.extract_strided_slice %401 {offsets = [0, 0], sizes = [8, 128], strides = [1, 1]} : vector<8x384xf32> to vector<8x128xf32>
    %407 = arith.addf %405, %406 : vector<8x128xf32>
    %cst_158 = arith.constant 5.000000e-01 : f32
    %408 = vector.broadcast %cst_158 : f32 to vector<8x128xf32>
    %409 = arith.mulf %408, %407 : vector<8x128xf32>
    %410 = math.tanh %409 : vector<8x128xf32>
    %cst_159 = arith.constant 5.000000e-01 : f32
    %411 = vector.broadcast %cst_159 : f32 to vector<8x128xf32>
    %412 = arith.mulf %411, %410 : vector<8x128xf32>
    %cst_160 = arith.constant 5.000000e-01 : f32
    %413 = vector.broadcast %cst_160 : f32 to vector<8x128xf32>
    %414 = arith.addf %412, %413 : vector<8x128xf32>
    %415 = vector.extract_strided_slice %404 {offsets = [0, 128], sizes = [8, 128], strides = [1, 1]} : vector<8x384xf32> to vector<8x128xf32>
    %416 = vector.extract_strided_slice %401 {offsets = [0, 128], sizes = [8, 128], strides = [1, 1]} : vector<8x384xf32> to vector<8x128xf32>
    %417 = arith.addf %415, %416 : vector<8x128xf32>
    %cst_161 = arith.constant 5.000000e-01 : f32
    %418 = vector.broadcast %cst_161 : f32 to vector<8x128xf32>
    %419 = arith.mulf %418, %417 : vector<8x128xf32>
    %420 = math.tanh %419 : vector<8x128xf32>
    %cst_162 = arith.constant 5.000000e-01 : f32
    %421 = vector.broadcast %cst_162 : f32 to vector<8x128xf32>
    %422 = arith.mulf %421, %420 : vector<8x128xf32>
    %cst_163 = arith.constant 5.000000e-01 : f32
    %423 = vector.broadcast %cst_163 : f32 to vector<8x128xf32>
    %424 = arith.addf %422, %423 : vector<8x128xf32>
    %425 = vector.extract_strided_slice %404 {offsets = [0, 256], sizes = [8, 128], strides = [1, 1]} : vector<8x384xf32> to vector<8x128xf32>
    %426 = vector.extract_strided_slice %401 {offsets = [0, 256], sizes = [8, 128], strides = [1, 1]} : vector<8x384xf32> to vector<8x128xf32>
    %427 = vector.broadcast %358 : vector<1x128xf32> to vector<8x128xf32>
    %428 = arith.addf %426, %427 : vector<8x128xf32>
    %429 = arith.mulf %414, %428 : vector<8x128xf32>
    %430 = arith.addf %425, %429 : vector<8x128xf32>
    %431 = math.tanh %430 : vector<8x128xf32>
    %cst_164 = arith.constant 1.000000e+00 : f32
    %432 = vector.broadcast %cst_164 : f32 to vector<8x128xf32>
    %433 = arith.subf %432, %424 : vector<8x128xf32>
    %434 = arith.mulf %433, %431 : vector<8x128xf32>
    %435 = arith.mulf %424, %396 : vector<8x128xf32>
    %436 = arith.addf %434, %435 : vector<8x128xf32>
    %437 = arith.index_cast %c1_i32_154 : i32 to index
    %c0_165 = arith.constant 0 : index
    %c0_166 = arith.constant 0 : index
    %438 = vector.load %arg8[%437, %c0_165, %c0_166] : memref<8x8x128xf32, #tpu.memory_space<vmem>>, vector<1x8x128xf32>
    %439 = vector.shape_cast %438 : vector<1x8x128xf32> to vector<8x128xf32>
    %440 = vector.shape_cast %436 : vector<8x128xf32> to vector<1x8x128xf32>
    tpu.vector_store %arg8[%437, %c0_165, %c0_166], %440 {strides = array<i32>} : memref<8x8x128xf32, #tpu.memory_space<vmem>>, vector<1x8x128xf32>,
    %c2_i32_167 = arith.constant 2 : i32
    %cst_168 = arith.constant dense<0.000000e+00> : vector<8x384xf32>
    %441 = tpu.matmul %436, %356, %cst_168 {dimension_numbers = #tpu.dot_dimension_numbers<[1], [0], [0], [1], [0, 0, 1, 1], [], []>} : vector<8x128xf32>, vector<128x384xf32>, vector<8x384xf32> -> vector<8x384xf32>
    %442 = arith.index_cast %c2_i32_167 : i32 to index
    %c0_169 = arith.constant 0 : index
    %c0_170 = arith.constant 0 : index
    %443 = vector.load %arg11[%442, %c0_169, %c0_170] : memref<8x8x384xf32, #tpu.memory_space<vmem>>, vector<1x8x384xf32>
    %444 = vector.shape_cast %443 : vector<1x8x384xf32> to vector<8x384xf32>
    %445 = vector.extract_strided_slice %444 {offsets = [0, 0], sizes = [8, 128], strides = [1, 1]} : vector<8x384xf32> to vector<8x128xf32>
    %446 = vector.extract_strided_slice %441 {offsets = [0, 0], sizes = [8, 128], strides = [1, 1]} : vector<8x384xf32> to vector<8x128xf32>
    %447 = arith.addf %445, %446 : vector<8x128xf32>
    %cst_171 = arith.constant 5.000000e-01 : f32
    %448 = vector.broadcast %cst_171 : f32 to vector<8x128xf32>
    %449 = arith.mulf %448, %447 : vector<8x128xf32>
    %450 = math.tanh %449 : vector<8x128xf32>
    %cst_172 = arith.constant 5.000000e-01 : f32
    %451 = vector.broadcast %cst_172 : f32 to vector<8x128xf32>
    %452 = arith.mulf %451, %450 : vector<8x128xf32>
    %cst_173 = arith.constant 5.000000e-01 : f32
    %453 = vector.broadcast %cst_173 : f32 to vector<8x128xf32>
    %454 = arith.addf %452, %453 : vector<8x128xf32>
    %455 = vector.extract_strided_slice %444 {offsets = [0, 128], sizes = [8, 128], strides = [1, 1]} : vector<8x384xf32> to vector<8x128xf32>
    %456 = vector.extract_strided_slice %441 {offsets = [0, 128], sizes = [8, 128], strides = [1, 1]} : vector<8x384xf32> to vector<8x128xf32>
    %457 = arith.addf %455, %456 : vector<8x128xf32>
    %cst_174 = arith.constant 5.000000e-01 : f32
    %458 = vector.broadcast %cst_174 : f32 to vector<8x128xf32>
    %459 = arith.mulf %458, %457 : vector<8x128xf32>
    %460 = math.tanh %459 : vector<8x128xf32>
    %cst_175 = arith.constant 5.000000e-01 : f32
    %461 = vector.broadcast %cst_175 : f32 to vector<8x128xf32>
    %462 = arith.mulf %461, %460 : vector<8x128xf32>
    %cst_176 = arith.constant 5.000000e-01 : f32
    %463 = vector.broadcast %cst_176 : f32 to vector<8x128xf32>
    %464 = arith.addf %462, %463 : vector<8x128xf32>
    %465 = vector.extract_strided_slice %444 {offsets = [0, 256], sizes = [8, 128], strides = [1, 1]} : vector<8x384xf32> to vector<8x128xf32>
    %466 = vector.extract_strided_slice %441 {offsets = [0, 256], sizes = [8, 128], strides = [1, 1]} : vector<8x384xf32> to vector<8x128xf32>
    %467 = vector.broadcast %358 : vector<1x128xf32> to vector<8x128xf32>
    %468 = arith.addf %466, %467 : vector<8x128xf32>
    %469 = arith.mulf %454, %468 : vector<8x128xf32>
    %470 = arith.addf %465, %469 : vector<8x128xf32>
    %471 = math.tanh %470 : vector<8x128xf32>
    %cst_177 = arith.constant 1.000000e+00 : f32
    %472 = vector.broadcast %cst_177 : f32 to vector<8x128xf32>
    %473 = arith.subf %472, %464 : vector<8x128xf32>
    %474 = arith.mulf %473, %471 : vector<8x128xf32>
    %475 = arith.mulf %464, %436 : vector<8x128xf32>
    %476 = arith.addf %474, %475 : vector<8x128xf32>
    %477 = arith.index_cast %c2_i32_167 : i32 to index
    %c0_178 = arith.constant 0 : index
    %c0_179 = arith.constant 0 : index
    %478 = vector.load %arg8[%477, %c0_178, %c0_179] : memref<8x8x128xf32, #tpu.memory_space<vmem>>, vector<1x8x128xf32>
    %479 = vector.shape_cast %478 : vector<1x8x128xf32> to vector<8x128xf32>
    %480 = vector.shape_cast %476 : vector<8x128xf32> to vector<1x8x128xf32>
    tpu.vector_store %arg8[%477, %c0_178, %c0_179], %480 {strides = array<i32>} : memref<8x8x128xf32, #tpu.memory_space<vmem>>, vector<1x8x128xf32>,
    %c3_i32_180 = arith.constant 3 : i32
    %cst_181 = arith.constant dense<0.000000e+00> : vector<8x384xf32>
    %481 = tpu.matmul %476, %356, %cst_181 {dimension_numbers = #tpu.dot_dimension_numbers<[1], [0], [0], [1], [0, 0, 1, 1], [], []>} : vector<8x128xf32>, vector<128x384xf32>, vector<8x384xf32> -> vector<8x384xf32>
    %482 = arith.index_cast %c3_i32_180 : i32 to index
    %c0_182 = arith.constant 0 : index
    %c0_183 = arith.constant 0 : index
    %483 = vector.load %arg11[%482, %c0_182, %c0_183] : memref<8x8x384xf32, #tpu.memory_space<vmem>>, vector<1x8x384xf32>
    %484 = vector.shape_cast %483 : vector<1x8x384xf32> to vector<8x384xf32>
    %485 = vector.extract_strided_slice %484 {offsets = [0, 0], sizes = [8, 128], strides = [1, 1]} : vector<8x384xf32> to vector<8x128xf32>
    %486 = vector.extract_strided_slice %481 {offsets = [0, 0], sizes = [8, 128], strides = [1, 1]} : vector<8x384xf32> to vector<8x128xf32>
    %487 = arith.addf %485, %486 : vector<8x128xf32>
    %cst_184 = arith.constant 5.000000e-01 : f32
    %488 = vector.broadcast %cst_184 : f32 to vector<8x128xf32>
    %489 = arith.mulf %488, %487 : vector<8x128xf32>
    %490 = math.tanh %489 : vector<8x128xf32>
    %cst_185 = arith.constant 5.000000e-01 : f32
    %491 = vector.broadcast %cst_185 : f32 to vector<8x128xf32>
    %492 = arith.mulf %491, %490 : vector<8x128xf32>
    %cst_186 = arith.constant 5.000000e-01 : f32
    %493 = vector.broadcast %cst_186 : f32 to vector<8x128xf32>
    %494 = arith.addf %492, %493 : vector<8x128xf32>
    %495 = vector.extract_strided_slice %484 {offsets = [0, 128], sizes = [8, 128], strides = [1, 1]} : vector<8x384xf32> to vector<8x128xf32>
    %496 = vector.extract_strided_slice %481 {offsets = [0, 128], sizes = [8, 128], strides = [1, 1]} : vector<8x384xf32> to vector<8x128xf32>
    %497 = arith.addf %495, %496 : vector<8x128xf32>
    %cst_187 = arith.constant 5.000000e-01 : f32
    %498 = vector.broadcast %cst_187 : f32 to vector<8x128xf32>
    %499 = arith.mulf %498, %497 : vector<8x128xf32>
    %500 = math.tanh %499 : vector<8x128xf32>
    %cst_188 = arith.constant 5.000000e-01 : f32
    %501 = vector.broadcast %cst_188 : f32 to vector<8x128xf32>
    %502 = arith.mulf %501, %500 : vector<8x128xf32>
    %cst_189 = arith.constant 5.000000e-01 : f32
    %503 = vector.broadcast %cst_189 : f32 to vector<8x128xf32>
    %504 = arith.addf %502, %503 : vector<8x128xf32>
    %505 = vector.extract_strided_slice %484 {offsets = [0, 256], sizes = [8, 128], strides = [1, 1]} : vector<8x384xf32> to vector<8x128xf32>
    %506 = vector.extract_strided_slice %481 {offsets = [0, 256], sizes = [8, 128], strides = [1, 1]} : vector<8x384xf32> to vector<8x128xf32>
    %507 = vector.broadcast %358 : vector<1x128xf32> to vector<8x128xf32>
    %508 = arith.addf %506, %507 : vector<8x128xf32>
    %509 = arith.mulf %494, %508 : vector<8x128xf32>
    %510 = arith.addf %505, %509 : vector<8x128xf32>
    %511 = math.tanh %510 : vector<8x128xf32>
    %cst_190 = arith.constant 1.000000e+00 : f32
    %512 = vector.broadcast %cst_190 : f32 to vector<8x128xf32>
    %513 = arith.subf %512, %504 : vector<8x128xf32>
    %514 = arith.mulf %513, %511 : vector<8x128xf32>
    %515 = arith.mulf %504, %476 : vector<8x128xf32>
    %516 = arith.addf %514, %515 : vector<8x128xf32>
    %517 = arith.index_cast %c3_i32_180 : i32 to index
    %c0_191 = arith.constant 0 : index
    %c0_192 = arith.constant 0 : index
    %518 = vector.load %arg8[%517, %c0_191, %c0_192] : memref<8x8x128xf32, #tpu.memory_space<vmem>>, vector<1x8x128xf32>
    %519 = vector.shape_cast %518 : vector<1x8x128xf32> to vector<8x128xf32>
    %520 = vector.shape_cast %516 : vector<8x128xf32> to vector<1x8x128xf32>
    tpu.vector_store %arg8[%517, %c0_191, %c0_192], %520 {strides = array<i32>} : memref<8x8x128xf32, #tpu.memory_space<vmem>>, vector<1x8x128xf32>,
    %c4_i32_193 = arith.constant 4 : i32
    %cst_194 = arith.constant dense<0.000000e+00> : vector<8x384xf32>
    %521 = tpu.matmul %516, %356, %cst_194 {dimension_numbers = #tpu.dot_dimension_numbers<[1], [0], [0], [1], [0, 0, 1, 1], [], []>} : vector<8x128xf32>, vector<128x384xf32>, vector<8x384xf32> -> vector<8x384xf32>
    %522 = arith.index_cast %c4_i32_193 : i32 to index
    %c0_195 = arith.constant 0 : index
    %c0_196 = arith.constant 0 : index
    %523 = vector.load %arg11[%522, %c0_195, %c0_196] : memref<8x8x384xf32, #tpu.memory_space<vmem>>, vector<1x8x384xf32>
    %524 = vector.shape_cast %523 : vector<1x8x384xf32> to vector<8x384xf32>
    %525 = vector.extract_strided_slice %524 {offsets = [0, 0], sizes = [8, 128], strides = [1, 1]} : vector<8x384xf32> to vector<8x128xf32>
    %526 = vector.extract_strided_slice %521 {offsets = [0, 0], sizes = [8, 128], strides = [1, 1]} : vector<8x384xf32> to vector<8x128xf32>
    %527 = arith.addf %525, %526 : vector<8x128xf32>
    %cst_197 = arith.constant 5.000000e-01 : f32
    %528 = vector.broadcast %cst_197 : f32 to vector<8x128xf32>
    %529 = arith.mulf %528, %527 : vector<8x128xf32>
    %530 = math.tanh %529 : vector<8x128xf32>
    %cst_198 = arith.constant 5.000000e-01 : f32
    %531 = vector.broadcast %cst_198 : f32 to vector<8x128xf32>
    %532 = arith.mulf %531, %530 : vector<8x128xf32>
    %cst_199 = arith.constant 5.000000e-01 : f32
    %533 = vector.broadcast %cst_199 : f32 to vector<8x128xf32>
    %534 = arith.addf %532, %533 : vector<8x128xf32>
    %535 = vector.extract_strided_slice %524 {offsets = [0, 128], sizes = [8, 128], strides = [1, 1]} : vector<8x384xf32> to vector<8x128xf32>
    %536 = vector.extract_strided_slice %521 {offsets = [0, 128], sizes = [8, 128], strides = [1, 1]} : vector<8x384xf32> to vector<8x128xf32>
    %537 = arith.addf %535, %536 : vector<8x128xf32>
    %cst_200 = arith.constant 5.000000e-01 : f32
    %538 = vector.broadcast %cst_200 : f32 to vector<8x128xf32>
    %539 = arith.mulf %538, %537 : vector<8x128xf32>
    %540 = math.tanh %539 : vector<8x128xf32>
    %cst_201 = arith.constant 5.000000e-01 : f32
    %541 = vector.broadcast %cst_201 : f32 to vector<8x128xf32>
    %542 = arith.mulf %541, %540 : vector<8x128xf32>
    %cst_202 = arith.constant 5.000000e-01 : f32
    %543 = vector.broadcast %cst_202 : f32 to vector<8x128xf32>
    %544 = arith.addf %542, %543 : vector<8x128xf32>
    %545 = vector.extract_strided_slice %524 {offsets = [0, 256], sizes = [8, 128], strides = [1, 1]} : vector<8x384xf32> to vector<8x128xf32>
    %546 = vector.extract_strided_slice %521 {offsets = [0, 256], sizes = [8, 128], strides = [1, 1]} : vector<8x384xf32> to vector<8x128xf32>
    %547 = vector.broadcast %358 : vector<1x128xf32> to vector<8x128xf32>
    %548 = arith.addf %546, %547 : vector<8x128xf32>
    %549 = arith.mulf %534, %548 : vector<8x128xf32>
    %550 = arith.addf %545, %549 : vector<8x128xf32>
    %551 = math.tanh %550 : vector<8x128xf32>
    %cst_203 = arith.constant 1.000000e+00 : f32
    %552 = vector.broadcast %cst_203 : f32 to vector<8x128xf32>
    %553 = arith.subf %552, %544 : vector<8x128xf32>
    %554 = arith.mulf %553, %551 : vector<8x128xf32>
    %555 = arith.mulf %544, %516 : vector<8x128xf32>
    %556 = arith.addf %554, %555 : vector<8x128xf32>
    %557 = arith.index_cast %c4_i32_193 : i32 to index
    %c0_204 = arith.constant 0 : index
    %c0_205 = arith.constant 0 : index
    %558 = vector.load %arg8[%557, %c0_204, %c0_205] : memref<8x8x128xf32, #tpu.memory_space<vmem>>, vector<1x8x128xf32>
    %559 = vector.shape_cast %558 : vector<1x8x128xf32> to vector<8x128xf32>
    %560 = vector.shape_cast %556 : vector<8x128xf32> to vector<1x8x128xf32>
    tpu.vector_store %arg8[%557, %c0_204, %c0_205], %560 {strides = array<i32>} : memref<8x8x128xf32, #tpu.memory_space<vmem>>, vector<1x8x128xf32>,
    %c5_i32_206 = arith.constant 5 : i32
    %cst_207 = arith.constant dense<0.000000e+00> : vector<8x384xf32>
    %561 = tpu.matmul %556, %356, %cst_207 {dimension_numbers = #tpu.dot_dimension_numbers<[1], [0], [0], [1], [0, 0, 1, 1], [], []>} : vector<8x128xf32>, vector<128x384xf32>, vector<8x384xf32> -> vector<8x384xf32>
    %562 = arith.index_cast %c5_i32_206 : i32 to index
    %c0_208 = arith.constant 0 : index
    %c0_209 = arith.constant 0 : index
    %563 = vector.load %arg11[%562, %c0_208, %c0_209] : memref<8x8x384xf32, #tpu.memory_space<vmem>>, vector<1x8x384xf32>
    %564 = vector.shape_cast %563 : vector<1x8x384xf32> to vector<8x384xf32>
    %565 = vector.extract_strided_slice %564 {offsets = [0, 0], sizes = [8, 128], strides = [1, 1]} : vector<8x384xf32> to vector<8x128xf32>
    %566 = vector.extract_strided_slice %561 {offsets = [0, 0], sizes = [8, 128], strides = [1, 1]} : vector<8x384xf32> to vector<8x128xf32>
    %567 = arith.addf %565, %566 : vector<8x128xf32>
    %cst_210 = arith.constant 5.000000e-01 : f32
    %568 = vector.broadcast %cst_210 : f32 to vector<8x128xf32>
    %569 = arith.mulf %568, %567 : vector<8x128xf32>
    %570 = math.tanh %569 : vector<8x128xf32>
    %cst_211 = arith.constant 5.000000e-01 : f32
    %571 = vector.broadcast %cst_211 : f32 to vector<8x128xf32>
    %572 = arith.mulf %571, %570 : vector<8x128xf32>
    %cst_212 = arith.constant 5.000000e-01 : f32
    %573 = vector.broadcast %cst_212 : f32 to vector<8x128xf32>
    %574 = arith.addf %572, %573 : vector<8x128xf32>
    %575 = vector.extract_strided_slice %564 {offsets = [0, 128], sizes = [8, 128], strides = [1, 1]} : vector<8x384xf32> to vector<8x128xf32>
    %576 = vector.extract_strided_slice %561 {offsets = [0, 128], sizes = [8, 128], strides = [1, 1]} : vector<8x384xf32> to vector<8x128xf32>
    %577 = arith.addf %575, %576 : vector<8x128xf32>
    %cst_213 = arith.constant 5.000000e-01 : f32
    %578 = vector.broadcast %cst_213 : f32 to vector<8x128xf32>
    %579 = arith.mulf %578, %577 : vector<8x128xf32>
    %580 = math.tanh %579 : vector<8x128xf32>
    %cst_214 = arith.constant 5.000000e-01 : f32
    %581 = vector.broadcast %cst_214 : f32 to vector<8x128xf32>
    %582 = arith.mulf %581, %580 : vector<8x128xf32>
    %cst_215 = arith.constant 5.000000e-01 : f32
    %583 = vector.broadcast %cst_215 : f32 to vector<8x128xf32>
    %584 = arith.addf %582, %583 : vector<8x128xf32>
    %585 = vector.extract_strided_slice %564 {offsets = [0, 256], sizes = [8, 128], strides = [1, 1]} : vector<8x384xf32> to vector<8x128xf32>
    %586 = vector.extract_strided_slice %561 {offsets = [0, 256], sizes = [8, 128], strides = [1, 1]} : vector<8x384xf32> to vector<8x128xf32>
    %587 = vector.broadcast %358 : vector<1x128xf32> to vector<8x128xf32>
    %588 = arith.addf %586, %587 : vector<8x128xf32>
    %589 = arith.mulf %574, %588 : vector<8x128xf32>
    %590 = arith.addf %585, %589 : vector<8x128xf32>
    %591 = math.tanh %590 : vector<8x128xf32>
    %cst_216 = arith.constant 1.000000e+00 : f32
    %592 = vector.broadcast %cst_216 : f32 to vector<8x128xf32>
    %593 = arith.subf %592, %584 : vector<8x128xf32>
    %594 = arith.mulf %593, %591 : vector<8x128xf32>
    %595 = arith.mulf %584, %556 : vector<8x128xf32>
    %596 = arith.addf %594, %595 : vector<8x128xf32>
    %597 = arith.index_cast %c5_i32_206 : i32 to index
    %c0_217 = arith.constant 0 : index
    %c0_218 = arith.constant 0 : index
    %598 = vector.load %arg8[%597, %c0_217, %c0_218] : memref<8x8x128xf32, #tpu.memory_space<vmem>>, vector<1x8x128xf32>
    %599 = vector.shape_cast %598 : vector<1x8x128xf32> to vector<8x128xf32>
    %600 = vector.shape_cast %596 : vector<8x128xf32> to vector<1x8x128xf32>
    tpu.vector_store %arg8[%597, %c0_217, %c0_218], %600 {strides = array<i32>} : memref<8x8x128xf32, #tpu.memory_space<vmem>>, vector<1x8x128xf32>,
    %c6_i32_219 = arith.constant 6 : i32
    %cst_220 = arith.constant dense<0.000000e+00> : vector<8x384xf32>
    %601 = tpu.matmul %596, %356, %cst_220 {dimension_numbers = #tpu.dot_dimension_numbers<[1], [0], [0], [1], [0, 0, 1, 1], [], []>} : vector<8x128xf32>, vector<128x384xf32>, vector<8x384xf32> -> vector<8x384xf32>
    %602 = arith.index_cast %c6_i32_219 : i32 to index
    %c0_221 = arith.constant 0 : index
    %c0_222 = arith.constant 0 : index
    %603 = vector.load %arg11[%602, %c0_221, %c0_222] : memref<8x8x384xf32, #tpu.memory_space<vmem>>, vector<1x8x384xf32>
    %604 = vector.shape_cast %603 : vector<1x8x384xf32> to vector<8x384xf32>
    %605 = vector.extract_strided_slice %604 {offsets = [0, 0], sizes = [8, 128], strides = [1, 1]} : vector<8x384xf32> to vector<8x128xf32>
    %606 = vector.extract_strided_slice %601 {offsets = [0, 0], sizes = [8, 128], strides = [1, 1]} : vector<8x384xf32> to vector<8x128xf32>
    %607 = arith.addf %605, %606 : vector<8x128xf32>
    %cst_223 = arith.constant 5.000000e-01 : f32
    %608 = vector.broadcast %cst_223 : f32 to vector<8x128xf32>
    %609 = arith.mulf %608, %607 : vector<8x128xf32>
    %610 = math.tanh %609 : vector<8x128xf32>
    %cst_224 = arith.constant 5.000000e-01 : f32
    %611 = vector.broadcast %cst_224 : f32 to vector<8x128xf32>
    %612 = arith.mulf %611, %610 : vector<8x128xf32>
    %cst_225 = arith.constant 5.000000e-01 : f32
    %613 = vector.broadcast %cst_225 : f32 to vector<8x128xf32>
    %614 = arith.addf %612, %613 : vector<8x128xf32>
    %615 = vector.extract_strided_slice %604 {offsets = [0, 128], sizes = [8, 128], strides = [1, 1]} : vector<8x384xf32> to vector<8x128xf32>
    %616 = vector.extract_strided_slice %601 {offsets = [0, 128], sizes = [8, 128], strides = [1, 1]} : vector<8x384xf32> to vector<8x128xf32>
    %617 = arith.addf %615, %616 : vector<8x128xf32>
    %cst_226 = arith.constant 5.000000e-01 : f32
    %618 = vector.broadcast %cst_226 : f32 to vector<8x128xf32>
    %619 = arith.mulf %618, %617 : vector<8x128xf32>
    %620 = math.tanh %619 : vector<8x128xf32>
    %cst_227 = arith.constant 5.000000e-01 : f32
    %621 = vector.broadcast %cst_227 : f32 to vector<8x128xf32>
    %622 = arith.mulf %621, %620 : vector<8x128xf32>
    %cst_228 = arith.constant 5.000000e-01 : f32
    %623 = vector.broadcast %cst_228 : f32 to vector<8x128xf32>
    %624 = arith.addf %622, %623 : vector<8x128xf32>
    %625 = vector.extract_strided_slice %604 {offsets = [0, 256], sizes = [8, 128], strides = [1, 1]} : vector<8x384xf32> to vector<8x128xf32>
    %626 = vector.extract_strided_slice %601 {offsets = [0, 256], sizes = [8, 128], strides = [1, 1]} : vector<8x384xf32> to vector<8x128xf32>
    %627 = vector.broadcast %358 : vector<1x128xf32> to vector<8x128xf32>
    %628 = arith.addf %626, %627 : vector<8x128xf32>
    %629 = arith.mulf %614, %628 : vector<8x128xf32>
    %630 = arith.addf %625, %629 : vector<8x128xf32>
    %631 = math.tanh %630 : vector<8x128xf32>
    %cst_229 = arith.constant 1.000000e+00 : f32
    %632 = vector.broadcast %cst_229 : f32 to vector<8x128xf32>
    %633 = arith.subf %632, %624 : vector<8x128xf32>
    %634 = arith.mulf %633, %631 : vector<8x128xf32>
    %635 = arith.mulf %624, %596 : vector<8x128xf32>
    %636 = arith.addf %634, %635 : vector<8x128xf32>
    %637 = arith.index_cast %c6_i32_219 : i32 to index
    %c0_230 = arith.constant 0 : index
    %c0_231 = arith.constant 0 : index
    %638 = vector.load %arg8[%637, %c0_230, %c0_231] : memref<8x8x128xf32, #tpu.memory_space<vmem>>, vector<1x8x128xf32>
    %639 = vector.shape_cast %638 : vector<1x8x128xf32> to vector<8x128xf32>
    %640 = vector.shape_cast %636 : vector<8x128xf32> to vector<1x8x128xf32>
    tpu.vector_store %arg8[%637, %c0_230, %c0_231], %640 {strides = array<i32>} : memref<8x8x128xf32, #tpu.memory_space<vmem>>, vector<1x8x128xf32>,
    %c7_i32_232 = arith.constant 7 : i32
    %cst_233 = arith.constant dense<0.000000e+00> : vector<8x384xf32>
    %641 = tpu.matmul %636, %356, %cst_233 {dimension_numbers = #tpu.dot_dimension_numbers<[1], [0], [0], [1], [0, 0, 1, 1], [], []>} : vector<8x128xf32>, vector<128x384xf32>, vector<8x384xf32> -> vector<8x384xf32>
    %642 = arith.index_cast %c7_i32_232 : i32 to index
    %c0_234 = arith.constant 0 : index
    %c0_235 = arith.constant 0 : index
    %643 = vector.load %arg11[%642, %c0_234, %c0_235] : memref<8x8x384xf32, #tpu.memory_space<vmem>>, vector<1x8x384xf32>
    %644 = vector.shape_cast %643 : vector<1x8x384xf32> to vector<8x384xf32>
    %645 = vector.extract_strided_slice %644 {offsets = [0, 0], sizes = [8, 128], strides = [1, 1]} : vector<8x384xf32> to vector<8x128xf32>
    %646 = vector.extract_strided_slice %641 {offsets = [0, 0], sizes = [8, 128], strides = [1, 1]} : vector<8x384xf32> to vector<8x128xf32>
    %647 = arith.addf %645, %646 : vector<8x128xf32>
    %cst_236 = arith.constant 5.000000e-01 : f32
    %648 = vector.broadcast %cst_236 : f32 to vector<8x128xf32>
    %649 = arith.mulf %648, %647 : vector<8x128xf32>
    %650 = math.tanh %649 : vector<8x128xf32>
    %cst_237 = arith.constant 5.000000e-01 : f32
    %651 = vector.broadcast %cst_237 : f32 to vector<8x128xf32>
    %652 = arith.mulf %651, %650 : vector<8x128xf32>
    %cst_238 = arith.constant 5.000000e-01 : f32
    %653 = vector.broadcast %cst_238 : f32 to vector<8x128xf32>
    %654 = arith.addf %652, %653 : vector<8x128xf32>
    %655 = vector.extract_strided_slice %644 {offsets = [0, 128], sizes = [8, 128], strides = [1, 1]} : vector<8x384xf32> to vector<8x128xf32>
    %656 = vector.extract_strided_slice %641 {offsets = [0, 128], sizes = [8, 128], strides = [1, 1]} : vector<8x384xf32> to vector<8x128xf32>
    %657 = arith.addf %655, %656 : vector<8x128xf32>
    %cst_239 = arith.constant 5.000000e-01 : f32
    %658 = vector.broadcast %cst_239 : f32 to vector<8x128xf32>
    %659 = arith.mulf %658, %657 : vector<8x128xf32>
    %660 = math.tanh %659 : vector<8x128xf32>
    %cst_240 = arith.constant 5.000000e-01 : f32
    %661 = vector.broadcast %cst_240 : f32 to vector<8x128xf32>
    %662 = arith.mulf %661, %660 : vector<8x128xf32>
    %cst_241 = arith.constant 5.000000e-01 : f32
    %663 = vector.broadcast %cst_241 : f32 to vector<8x128xf32>
    %664 = arith.addf %662, %663 : vector<8x128xf32>
    %665 = vector.extract_strided_slice %644 {offsets = [0, 256], sizes = [8, 128], strides = [1, 1]} : vector<8x384xf32> to vector<8x128xf32>
    %666 = vector.extract_strided_slice %641 {offsets = [0, 256], sizes = [8, 128], strides = [1, 1]} : vector<8x384xf32> to vector<8x128xf32>
    %667 = vector.broadcast %358 : vector<1x128xf32> to vector<8x128xf32>
    %668 = arith.addf %666, %667 : vector<8x128xf32>
    %669 = arith.mulf %654, %668 : vector<8x128xf32>
    %670 = arith.addf %665, %669 : vector<8x128xf32>
    %671 = math.tanh %670 : vector<8x128xf32>
    %cst_242 = arith.constant 1.000000e+00 : f32
    %672 = vector.broadcast %cst_242 : f32 to vector<8x128xf32>
    %673 = arith.subf %672, %664 : vector<8x128xf32>
    %674 = arith.mulf %673, %671 : vector<8x128xf32>
    %675 = arith.mulf %664, %636 : vector<8x128xf32>
    %676 = arith.addf %674, %675 : vector<8x128xf32>
    %677 = arith.index_cast %c7_i32_232 : i32 to index
    %c0_243 = arith.constant 0 : index
    %c0_244 = arith.constant 0 : index
    %678 = vector.load %arg8[%677, %c0_243, %c0_244] : memref<8x8x128xf32, #tpu.memory_space<vmem>>, vector<1x8x128xf32>
    %679 = vector.shape_cast %678 : vector<1x8x128xf32> to vector<8x128xf32>
    %680 = vector.shape_cast %676 : vector<8x128xf32> to vector<1x8x128xf32>
    tpu.vector_store %arg8[%677, %c0_243, %c0_244], %680 {strides = array<i32>} : memref<8x8x128xf32, #tpu.memory_space<vmem>>, vector<1x8x128xf32>,
    %c8_i32_245 = arith.constant 8 : i32
    %c1_246 = arith.constant 1 : index
    %c0_247 = arith.constant 0 : index
    %c0_248 = arith.constant 0 : index
    %681 = vector.load %arg9[%c1_246, %c0_247, %c0_248] : memref<2x8x128xf32, #tpu.memory_space<vmem>>, vector<1x8x128xf32>
    %682 = vector.shape_cast %681 : vector<1x8x128xf32> to vector<8x128xf32>
    %683 = vector.shape_cast %676 : vector<8x128xf32> to vector<1x8x128xf32>
    tpu.vector_store %arg9[%c1_246, %c0_247, %c0_248], %683 {strides = array<i32>} : memref<2x8x128xf32, #tpu.memory_space<vmem>>, vector<1x8x128xf32>,
    return
  }
  func.func @transform_0(%arg0: i32, %arg1: i32) -> (i32, i32, i32) {
    %c0_i32 = arith.constant 0 : i32
    %c0_i32_0 = arith.constant 0 : i32
    return %arg1, %arg0, %c0_i32 : i32, i32, i32
  }
  func.func @transform_1(%arg0: i32, %arg1: i32) -> (i32, i32) {
    %c0_i32 = arith.constant 0 : i32
    %c0_i32_0 = arith.constant 0 : i32
    %c0_i32_1 = arith.constant 0 : i32
    return %c0_i32, %c0_i32_0 : i32, i32
  }
  func.func @transform_2(%arg0: i32, %arg1: i32) -> (i32, i32, i32) {
    %c0_i32 = arith.constant 0 : i32
    %c0_i32_0 = arith.constant 0 : i32
    %c0_i32_1 = arith.constant 0 : i32
    %c0_i32_2 = arith.constant 0 : i32
    return %c0_i32, %c0_i32_0, %c0_i32_1 : i32, i32, i32
  }
  func.func @transform_3(%arg0: i32, %arg1: i32) -> (i32, i32, i32) {
    %c0_i32 = arith.constant 0 : i32
    %c0_i32_0 = arith.constant 0 : i32
    %c0_i32_1 = arith.constant 0 : i32
    %c0_i32_2 = arith.constant 0 : i32
    return %c0_i32, %c0_i32_0, %c0_i32_1 : i32, i32, i32
  }
  func.func @transform_4(%arg0: i32, %arg1: i32) -> (i32, i32, i32) {
    %c0_i32 = arith.constant 0 : i32
    %c0_i32_0 = arith.constant 0 : i32
    %c0_i32_1 = arith.constant 0 : i32
    %c0_i32_2 = arith.constant 0 : i32
    return %c0_i32, %c0_i32_0, %c0_i32_1 : i32, i32, i32
  }
  func.func @transform_5(%arg0: i32, %arg1: i32) -> (i32, i32, i32) {
    %c0_i32 = arith.constant 0 : i32
    %c0_i32_0 = arith.constant 0 : i32
    %c0_i32_1 = arith.constant 0 : i32
    %c0_i32_2 = arith.constant 0 : i32
    return %c0_i32, %c0_i32_0, %c0_i32_1 : i32, i32, i32
  }
  func.func @transform_6(%arg0: i32, %arg1: i32) -> (i32, i32, i32) {
    %c0_i32 = arith.constant 0 : i32
    %c0_i32_0 = arith.constant 0 : i32
    return %arg1, %arg0, %c0_i32 : i32, i32, i32
  }
}

module attributes {stable_mosaic.version = 11 : i64} {
  func.func @kernel(%arg0: i32, %arg1: i32, %arg2: memref<8x8x8xf32, #tpu.memory_space<vmem>>, %arg3: memref<8x384xf32, #tpu.memory_space<vmem>>, %arg4: memref<1x128x384xf32, #tpu.memory_space<vmem>>, %arg5: memref<2x128x384xf32, #tpu.memory_space<vmem>>, %arg6: memref<2x1x384xf32, #tpu.memory_space<vmem>>, %arg7: memref<2x1x128xf32, #tpu.memory_space<vmem>>, %arg8: memref<8x8x128xf32, #tpu.memory_space<vmem>>, %arg9: memref<2x8x128xf32, #tpu.memory_space<vmem>>, %arg10: memref<8x8x128xf32, #tpu.memory_space<vmem>>, %arg11: memref<8x8x384xf32, #tpu.memory_space<vmem>>) attributes {dimension_semantics = [#tpu.dimension_semantics<parallel>, #tpu.dimension_semantics<arbitrary>], iteration_bounds = array<i64: 1, 1>, scalar_prefetch = 0 : i64, scratch_operands = 3 : i64, tpu.core_type = #tpu.core_type<tc>, window_params = [{transform_indices = @transform_0, window_bounds = array<i64: 8, 8, 8>}, {pipeline_mode = #tpu.pipeline_mode<synchronous>, transform_indices = @transform_1, window_bounds = array<i64: 8, 384>}, {pipeline_mode = #tpu.pipeline_mode<synchronous>, transform_indices = @transform_2, window_bounds = array<i64: 1, 128, 384>}, {pipeline_mode = #tpu.pipeline_mode<synchronous>, transform_indices = @transform_3, window_bounds = array<i64: 2, 128, 384>}, {pipeline_mode = #tpu.pipeline_mode<synchronous>, transform_indices = @transform_4, window_bounds = array<i64: 2, 1, 384>}, {pipeline_mode = #tpu.pipeline_mode<synchronous>, transform_indices = @transform_5, window_bounds = array<i64: 2, 1, 128>}, {transform_indices = @transform_6, window_bounds = array<i64: 8, 8, 128>}]} {
    %c0_i32 = arith.constant 0 : i32
    %0 = arith.cmpi eq, %arg1, %c0_i32 : i32
    %1 = arith.extui %0 : i1 to i32
    %c0_i32_0 = arith.constant 0 : i32
    %2 = arith.cmpi ne, %1, %c0_i32_0 : i32
    scf.if %2 {
      %cst_249 = arith.constant 0.000000e+00 : f32
      %684 = vector.broadcast %cst_249 : f32 to vector<2x8x128xf32>
      %c0_250 = arith.constant 0 : index
      %c0_251 = arith.constant 0 : index
      %c0_252 = arith.constant 0 : index
      %685 = vector.load %arg9[%c0_250, %c0_251, %c0_252] : memref<2x8x128xf32, #tpu.memory_space<vmem>>, vector<2x8x128xf32>
      tpu.vector_store %arg9[%c0_250, %c0_251, %c0_252], %684 {strides = array<i32>} : memref<2x8x128xf32, #tpu.memory_space<vmem>>, vector<2x8x128xf32>,
    } else {
    }
    %c0 = arith.constant 0 : index
    %c0_1 = arith.constant 0 : index
    %c0_2 = arith.constant 0 : index
    %3 = vector.load %arg2[%c0, %c0_1, %c0_2] : memref<8x8x8xf32, #tpu.memory_space<vmem>>, vector<8x8x8xf32>
    %4 = vector.shape_cast %3 : vector<8x8x8xf32> to vector<64x8xf32>
    %c0_3 = arith.constant 0 : index
    %c0_4 = arith.constant 0 : index
    %5 = vector.load %arg3[%c0_3, %c0_4] : memref<8x384xf32, #tpu.memory_space<vmem>>, vector<8x384xf32>
    %cst = arith.constant dense<0.000000e+00> : vector<64x384xf32>
    %6 = tpu.matmul %4, %5, %cst {dimension_numbers = #tpu.dot_dimension_numbers<[1], [0], [0], [1], [0, 0, 1, 1], [], []>} : vector<64x8xf32>, vector<8x384xf32>, vector<64x384xf32> -> vector<64x384xf32>
    %7 = vector.shape_cast %6 : vector<64x384xf32> to vector<8x8x384xf32>
    %c0_5 = arith.constant 0 : index
    %c0_6 = arith.constant 0 : index
    %c0_7 = arith.constant 0 : index
    %8 = vector.load %arg6[%c0_5, %c0_6, %c0_7] : memref<2x1x384xf32, #tpu.memory_space<vmem>>, vector<1x1x384xf32>
    %9 = vector.shape_cast %8 : vector<1x1x384xf32> to vector<1x384xf32>
    %10 = vector.shape_cast %9 : vector<1x384xf32> to vector<1x1x384xf32>
    %11 = vector.broadcast %10 : vector<1x1x384xf32> to vector<8x8x384xf32>
    %12 = arith.addf %7, %11 : vector<8x8x384xf32>
    %c0_8 = arith.constant 0 : index
    %c0_9 = arith.constant 0 : index
    %c0_10 = arith.constant 0 : index
    %13 = vector.load %arg11[%c0_8, %c0_9, %c0_10] : memref<8x8x384xf32, #tpu.memory_space<vmem>>, vector<8x8x384xf32>
    tpu.vector_store %arg11[%c0_8, %c0_9, %c0_10], %12 {strides = array<i32>} : memref<8x8x384xf32, #tpu.memory_space<vmem>>, vector<8x8x384xf32>,
    %c0_11 = arith.constant 0 : index
    %c0_12 = arith.constant 0 : index
    %c0_13 = arith.constant 0 : index
    %14 = vector.load %arg5[%c0_11, %c0_12, %c0_13] : memref<2x128x384xf32, #tpu.memory_space<vmem>>, vector<1x128x384xf32>
    %15 = vector.shape_cast %14 : vector<1x128x384xf32> to vector<128x384xf32>
    %c0_14 = arith.constant 0 : index
    %c0_15 = arith.constant 0 : index
    %c0_16 = arith.constant 0 : index
    %16 = vector.load %arg7[%c0_14, %c0_15, %c0_16] : memref<2x1x128xf32, #tpu.memory_space<vmem>>, vector<1x1x128xf32>
    %17 = vector.shape_cast %16 : vector<1x1x128xf32> to vector<1x128xf32>
    %c0_17 = arith.constant 0 : index
    %c0_18 = arith.constant 0 : index
    %c0_19 = arith.constant 0 : index
    %18 = vector.load %arg9[%c0_17, %c0_18, %c0_19] : memref<2x8x128xf32, #tpu.memory_space<vmem>>, vector<1x8x128xf32>
    %19 = vector.shape_cast %18 : vector<1x8x128xf32> to vector<8x128xf32>
    %c0_i32_20 = arith.constant 0 : i32
    %cst_21 = arith.constant dense<0.000000e+00> : vector<8x384xf32>
    %20 = tpu.matmul %19, %15, %cst_21 {dimension_numbers = #tpu.dot_dimension_numbers<[1], [0], [0], [1], [0, 0, 1, 1], [], []>} : vector<8x128xf32>, vector<128x384xf32>, vector<8x384xf32> -> vector<8x384xf32>
    %21 = arith.index_cast %c0_i32_20 : i32 to index
    %c0_22 = arith.constant 0 : index
    %c0_23 = arith.constant 0 : index
    %22 = vector.load %arg11[%21, %c0_22, %c0_23] : memref<8x8x384xf32, #tpu.memory_space<vmem>>, vector<1x8x384xf32>
    %23 = vector.shape_cast %22 : vector<1x8x384xf32> to vector<8x384xf32>
    %24 = vector.extract_strided_slice %23 {offsets = [0, 0], sizes = [8, 128], strides = [1, 1]} : vector<8x384xf32> to vector<8x128xf32>
    %25 = vector.extract_strided_slice %20 {offsets = [0, 0], sizes = [8, 128], strides = [1, 1]} : vector<8x384xf32> to vector<8x128xf32>
    %26 = arith.addf %24, %25 : vector<8x128xf32>
    %cst_24 = arith.constant 5.000000e-01 : f32
    %27 = vector.broadcast %cst_24 : f32 to vector<8x128xf32>
    %28 = arith.mulf %27, %26 : vector<8x128xf32>
    %29 = math.tanh %28 : vector<8x128xf32>
    %cst_25 = arith.constant 5.000000e-01 : f32
    %30 = vector.broadcast %cst_25 : f32 to vector<8x128xf32>
    %31 = arith.mulf %30, %29 : vector<8x128xf32>
    %cst_26 = arith.constant 5.000000e-01 : f32
    %32 = vector.broadcast %cst_26 : f32 to vector<8x128xf32>
    %33 = arith.addf %31, %32 : vector<8x128xf32>
    %34 = vector.extract_strided_slice %23 {offsets = [0, 128], sizes = [8, 128], strides = [1, 1]} : vector<8x384xf32> to vector<8x128xf32>
    %35 = vector.extract_strided_slice %20 {offsets = [0, 128], sizes = [8, 128], strides = [1, 1]} : vector<8x384xf32> to vector<8x128xf32>
    %36 = arith.addf %34, %35 : vector<8x128xf32>
    %cst_27 = arith.constant 5.000000e-01 : f32
    %37 = vector.broadcast %cst_27 : f32 to vector<8x128xf32>
    %38 = arith.mulf %37, %36 : vector<8x128xf32>
    %39 = math.tanh %38 : vector<8x128xf32>
    %cst_28 = arith.constant 5.000000e-01 : f32
    %40 = vector.broadcast %cst_28 : f32 to vector<8x128xf32>
    %41 = arith.mulf %40, %39 : vector<8x128xf32>
    %cst_29 = arith.constant 5.000000e-01 : f32
    %42 = vector.broadcast %cst_29 : f32 to vector<8x128xf32>
    %43 = arith.addf %41, %42 : vector<8x128xf32>
    %44 = vector.extract_strided_slice %23 {offsets = [0, 256], sizes = [8, 128], strides = [1, 1]} : vector<8x384xf32> to vector<8x128xf32>
    %45 = vector.extract_strided_slice %20 {offsets = [0, 256], sizes = [8, 128], strides = [1, 1]} : vector<8x384xf32> to vector<8x128xf32>
    %46 = vector.broadcast %17 : vector<1x128xf32> to vector<8x128xf32>
    %47 = arith.addf %45, %46 : vector<8x128xf32>
    %48 = arith.mulf %33, %47 : vector<8x128xf32>
    %49 = arith.addf %44, %48 : vector<8x128xf32>
    %50 = math.tanh %49 : vector<8x128xf32>
    %cst_30 = arith.constant 1.000000e+00 : f32
    %51 = vector.broadcast %cst_30 : f32 to vector<8x128xf32>
    %52 = arith.subf %51, %43 : vector<8x128xf32>
    %53 = arith.mulf %52, %50 : vector<8x128xf32>
    %54 = arith.mulf %43, %19 : vector<8x128xf32>
    %55 = arith.addf %53, %54 : vector<8x128xf32>
    %56 = arith.index_cast %c0_i32_20 : i32 to index
    %c0_31 = arith.constant 0 : index
    %c0_32 = arith.constant 0 : index
    %57 = vector.load %arg10[%56, %c0_31, %c0_32] : memref<8x8x128xf32, #tpu.memory_space<vmem>>, vector<1x8x128xf32>
    %58 = vector.shape_cast %57 : vector<1x8x128xf32> to vector<8x128xf32>
    %59 = vector.shape_cast %55 : vector<8x128xf32> to vector<1x8x128xf32>
    tpu.vector_store %arg10[%56, %c0_31, %c0_32], %59 {strides = array<i32>} : memref<8x8x128xf32, #tpu.memory_space<vmem>>, vector<1x8x128xf32>,
    %c1_i32 = arith.constant 1 : i32
    %cst_33 = arith.constant dense<0.000000e+00> : vector<8x384xf32>
    %60 = tpu.matmul %55, %15, %cst_33 {dimension_numbers = #tpu.dot_dimension_numbers<[1], [0], [0], [1], [0, 0, 1, 1], [], []>} : vector<8x128xf32>, vector<128x384xf32>, vector<8x384xf32> -> vector<8x384xf32>
    %61 = arith.index_cast %c1_i32 : i32 to index
    %c0_34 = arith.constant 0 : index
    %c0_35 = arith.constant 0 : index
    %62 = vector.load %arg11[%61, %c0_34, %c0_35] : memref<8x8x384xf32, #tpu.memory_space<vmem>>, vector<1x8x384xf32>
    %63 = vector.shape_cast %62 : vector<1x8x384xf32> to vector<8x384xf32>
    %64 = vector.extract_strided_slice %63 {offsets = [0, 0], sizes = [8, 128], strides = [1, 1]} : vector<8x384xf32> to vector<8x128xf32>
    %65 = vector.extract_strided_slice %60 {offsets = [0, 0], sizes = [8, 128], strides = [1, 1]} : vector<8x384xf32> to vector<8x128xf32>
    %66 = arith.addf %64, %65 : vector<8x128xf32>
    %cst_36 = arith.constant 5.000000e-01 : f32
    %67 = vector.broadcast %cst_36 : f32 to vector<8x128xf32>
    %68 = arith.mulf %67, %66 : vector<8x128xf32>
    %69 = math.tanh %68 : vector<8x128xf32>
    %cst_37 = arith.constant 5.000000e-01 : f32
    %70 = vector.broadcast %cst_37 : f32 to vector<8x128xf32>
    %71 = arith.mulf %70, %69 : vector<8x128xf32>
    %cst_38 = arith.constant 5.000000e-01 : f32
    %72 = vector.broadcast %cst_38 : f32 to vector<8x128xf32>
    %73 = arith.addf %71, %72 : vector<8x128xf32>
    %74 = vector.extract_strided_slice %63 {offsets = [0, 128], sizes = [8, 128], strides = [1, 1]} : vector<8x384xf32> to vector<8x128xf32>
    %75 = vector.extract_strided_slice %60 {offsets = [0, 128], sizes = [8, 128], strides = [1, 1]} : vector<8x384xf32> to vector<8x128xf32>
    %76 = arith.addf %74, %75 : vector<8x128xf32>
    %cst_39 = arith.constant 5.000000e-01 : f32
    %77 = vector.broadcast %cst_39 : f32 to vector<8x128xf32>
    %78 = arith.mulf %77, %76 : vector<8x128xf32>
    %79 = math.tanh %78 : vector<8x128xf32>
    %cst_40 = arith.constant 5.000000e-01 : f32
    %80 = vector.broadcast %cst_40 : f32 to vector<8x128xf32>
    %81 = arith.mulf %80, %79 : vector<8x128xf32>
    %cst_41 = arith.constant 5.000000e-01 : f32
    %82 = vector.broadcast %cst_41 : f32 to vector<8x128xf32>
    %83 = arith.addf %81, %82 : vector<8x128xf32>
    %84 = vector.extract_strided_slice %63 {offsets = [0, 256], sizes = [8, 128], strides = [1, 1]} : vector<8x384xf32> to vector<8x128xf32>
    %85 = vector.extract_strided_slice %60 {offsets = [0, 256], sizes = [8, 128], strides = [1, 1]} : vector<8x384xf32> to vector<8x128xf32>
    %86 = vector.broadcast %17 : vector<1x128xf32> to vector<8x128xf32>
    %87 = arith.addf %85, %86 : vector<8x128xf32>
    %88 = arith.mulf %73, %87 : vector<8x128xf32>
    %89 = arith.addf %84, %88 : vector<8x128xf32>
    %90 = math.tanh %89 : vector<8x128xf32>
    %cst_42 = arith.constant 1.000000e+00 : f32
    %91 = vector.broadcast %cst_42 : f32 to vector<8x128xf32>
    %92 = arith.subf %91, %83 : vector<8x128xf32>
    %93 = arith.mulf %92, %90 : vector<8x128xf32>
    %94 = arith.mulf %83, %55 : vector<8x128xf32>
    %95 = arith.addf %93, %94 : vector<8x128xf32>
    %96 = arith.index_cast %c1_i32 : i32 to index
    %c0_43 = arith.constant 0 : index
    %c0_44 = arith.constant 0 : index
    %97 = vector.load %arg10[%96, %c0_43, %c0_44] : memref<8x8x128xf32, #tpu.memory_space<vmem>>, vector<1x8x128xf32>
    %98 = vector.shape_cast %97 : vector<1x8x128xf32> to vector<8x128xf32>
    %99 = vector.shape_cast %95 : vector<8x128xf32> to vector<1x8x128xf32>
    tpu.vector_store %arg10[%96, %c0_43, %c0_44], %99 {strides = array<i32>} : memref<8x8x128xf32, #tpu.memory_space<vmem>>, vector<1x8x128xf32>,
    %c2_i32 = arith.constant 2 : i32
    %cst_45 = arith.constant dense<0.000000e+00> : vector<8x384xf32>
    %100 = tpu.matmul %95, %15, %cst_45 {dimension_numbers = #tpu.dot_dimension_numbers<[1], [0], [0], [1], [0, 0, 1, 1], [], []>} : vector<8x128xf32>, vector<128x384xf32>, vector<8x384xf32> -> vector<8x384xf32>
    %101 = arith.index_cast %c2_i32 : i32 to index
    %c0_46 = arith.constant 0 : index
    %c0_47 = arith.constant 0 : index
    %102 = vector.load %arg11[%101, %c0_46, %c0_47] : memref<8x8x384xf32, #tpu.memory_space<vmem>>, vector<1x8x384xf32>
    %103 = vector.shape_cast %102 : vector<1x8x384xf32> to vector<8x384xf32>
    %104 = vector.extract_strided_slice %103 {offsets = [0, 0], sizes = [8, 128], strides = [1, 1]} : vector<8x384xf32> to vector<8x128xf32>
    %105 = vector.extract_strided_slice %100 {offsets = [0, 0], sizes = [8, 128], strides = [1, 1]} : vector<8x384xf32> to vector<8x128xf32>
    %106 = arith.addf %104, %105 : vector<8x128xf32>
    %cst_48 = arith.constant 5.000000e-01 : f32
    %107 = vector.broadcast %cst_48 : f32 to vector<8x128xf32>
    %108 = arith.mulf %107, %106 : vector<8x128xf32>
    %109 = math.tanh %108 : vector<8x128xf32>
    %cst_49 = arith.constant 5.000000e-01 : f32
    %110 = vector.broadcast %cst_49 : f32 to vector<8x128xf32>
    %111 = arith.mulf %110, %109 : vector<8x128xf32>
    %cst_50 = arith.constant 5.000000e-01 : f32
    %112 = vector.broadcast %cst_50 : f32 to vector<8x128xf32>
    %113 = arith.addf %111, %112 : vector<8x128xf32>
    %114 = vector.extract_strided_slice %103 {offsets = [0, 128], sizes = [8, 128], strides = [1, 1]} : vector<8x384xf32> to vector<8x128xf32>
    %115 = vector.extract_strided_slice %100 {offsets = [0, 128], sizes = [8, 128], strides = [1, 1]} : vector<8x384xf32> to vector<8x128xf32>
    %116 = arith.addf %114, %115 : vector<8x128xf32>
    %cst_51 = arith.constant 5.000000e-01 : f32
    %117 = vector.broadcast %cst_51 : f32 to vector<8x128xf32>
    %118 = arith.mulf %117, %116 : vector<8x128xf32>
    %119 = math.tanh %118 : vector<8x128xf32>
    %cst_52 = arith.constant 5.000000e-01 : f32
    %120 = vector.broadcast %cst_52 : f32 to vector<8x128xf32>
    %121 = arith.mulf %120, %119 : vector<8x128xf32>
    %cst_53 = arith.constant 5.000000e-01 : f32
    %122 = vector.broadcast %cst_53 : f32 to vector<8x128xf32>
    %123 = arith.addf %121, %122 : vector<8x128xf32>
    %124 = vector.extract_strided_slice %103 {offsets = [0, 256], sizes = [8, 128], strides = [1, 1]} : vector<8x384xf32> to vector<8x128xf32>
    %125 = vector.extract_strided_slice %100 {offsets = [0, 256], sizes = [8, 128], strides = [1, 1]} : vector<8x384xf32> to vector<8x128xf32>
    %126 = vector.broadcast %17 : vector<1x128xf32> to vector<8x128xf32>
    %127 = arith.addf %125, %126 : vector<8x128xf32>
    %128 = arith.mulf %113, %127 : vector<8x128xf32>
    %129 = arith.addf %124, %128 : vector<8x128xf32>
    %130 = math.tanh %129 : vector<8x128xf32>
    %cst_54 = arith.constant 1.000000e+00 : f32
    %131 = vector.broadcast %cst_54 : f32 to vector<8x128xf32>
    %132 = arith.subf %131, %123 : vector<8x128xf32>
    %133 = arith.mulf %132, %130 : vector<8x128xf32>
    %134 = arith.mulf %123, %95 : vector<8x128xf32>
    %135 = arith.addf %133, %134 : vector<8x128xf32>
    %136 = arith.index_cast %c2_i32 : i32 to index
    %c0_55 = arith.constant 0 : index
    %c0_56 = arith.constant 0 : index
    %137 = vector.load %arg10[%136, %c0_55, %c0_56] : memref<8x8x128xf32, #tpu.memory_space<vmem>>, vector<1x8x128xf32>
    %138 = vector.shape_cast %137 : vector<1x8x128xf32> to vector<8x128xf32>
    %139 = vector.shape_cast %135 : vector<8x128xf32> to vector<1x8x128xf32>
    tpu.vector_store %arg10[%136, %c0_55, %c0_56], %139 {strides = array<i32>} : memref<8x8x128xf32, #tpu.memory_space<vmem>>, vector<1x8x128xf32>,
    %c3_i32 = arith.constant 3 : i32
    %cst_57 = arith.constant dense<0.000000e+00> : vector<8x384xf32>
    %140 = tpu.matmul %135, %15, %cst_57 {dimension_numbers = #tpu.dot_dimension_numbers<[1], [0], [0], [1], [0, 0, 1, 1], [], []>} : vector<8x128xf32>, vector<128x384xf32>, vector<8x384xf32> -> vector<8x384xf32>
    %141 = arith.index_cast %c3_i32 : i32 to index
    %c0_58 = arith.constant 0 : index
    %c0_59 = arith.constant 0 : index
    %142 = vector.load %arg11[%141, %c0_58, %c0_59] : memref<8x8x384xf32, #tpu.memory_space<vmem>>, vector<1x8x384xf32>
    %143 = vector.shape_cast %142 : vector<1x8x384xf32> to vector<8x384xf32>
    %144 = vector.extract_strided_slice %143 {offsets = [0, 0], sizes = [8, 128], strides = [1, 1]} : vector<8x384xf32> to vector<8x128xf32>
    %145 = vector.extract_strided_slice %140 {offsets = [0, 0], sizes = [8, 128], strides = [1, 1]} : vector<8x384xf32> to vector<8x128xf32>
    %146 = arith.addf %144, %145 : vector<8x128xf32>
    %cst_60 = arith.constant 5.000000e-01 : f32
    %147 = vector.broadcast %cst_60 : f32 to vector<8x128xf32>
    %148 = arith.mulf %147, %146 : vector<8x128xf32>
    %149 = math.tanh %148 : vector<8x128xf32>
    %cst_61 = arith.constant 5.000000e-01 : f32
    %150 = vector.broadcast %cst_61 : f32 to vector<8x128xf32>
    %151 = arith.mulf %150, %149 : vector<8x128xf32>
    %cst_62 = arith.constant 5.000000e-01 : f32
    %152 = vector.broadcast %cst_62 : f32 to vector<8x128xf32>
    %153 = arith.addf %151, %152 : vector<8x128xf32>
    %154 = vector.extract_strided_slice %143 {offsets = [0, 128], sizes = [8, 128], strides = [1, 1]} : vector<8x384xf32> to vector<8x128xf32>
    %155 = vector.extract_strided_slice %140 {offsets = [0, 128], sizes = [8, 128], strides = [1, 1]} : vector<8x384xf32> to vector<8x128xf32>
    %156 = arith.addf %154, %155 : vector<8x128xf32>
    %cst_63 = arith.constant 5.000000e-01 : f32
    %157 = vector.broadcast %cst_63 : f32 to vector<8x128xf32>
    %158 = arith.mulf %157, %156 : vector<8x128xf32>
    %159 = math.tanh %158 : vector<8x128xf32>
    %cst_64 = arith.constant 5.000000e-01 : f32
    %160 = vector.broadcast %cst_64 : f32 to vector<8x128xf32>
    %161 = arith.mulf %160, %159 : vector<8x128xf32>
    %cst_65 = arith.constant 5.000000e-01 : f32
    %162 = vector.broadcast %cst_65 : f32 to vector<8x128xf32>
    %163 = arith.addf %161, %162 : vector<8x128xf32>
    %164 = vector.extract_strided_slice %143 {offsets = [0, 256], sizes = [8, 128], strides = [1, 1]} : vector<8x384xf32> to vector<8x128xf32>
    %165 = vector.extract_strided_slice %140 {offsets = [0, 256], sizes = [8, 128], strides = [1, 1]} : vector<8x384xf32> to vector<8x128xf32>
    %166 = vector.broadcast %17 : vector<1x128xf32> to vector<8x128xf32>
    %167 = arith.addf %165, %166 : vector<8x128xf32>
    %168 = arith.mulf %153, %167 : vector<8x128xf32>
    %169 = arith.addf %164, %168 : vector<8x128xf32>
    %170 = math.tanh %169 : vector<8x128xf32>
    %cst_66 = arith.constant 1.000000e+00 : f32
    %171 = vector.broadcast %cst_66 : f32 to vector<8x128xf32>
    %172 = arith.subf %171, %163 : vector<8x128xf32>
    %173 = arith.mulf %172, %170 : vector<8x128xf32>
    %174 = arith.mulf %163, %135 : vector<8x128xf32>
    %175 = arith.addf %173, %174 : vector<8x128xf32>
    %176 = arith.index_cast %c3_i32 : i32 to index
    %c0_67 = arith.constant 0 : index
    %c0_68 = arith.constant 0 : index
    %177 = vector.load %arg10[%176, %c0_67, %c0_68] : memref<8x8x128xf32, #tpu.memory_space<vmem>>, vector<1x8x128xf32>
    %178 = vector.shape_cast %177 : vector<1x8x128xf32> to vector<8x128xf32>
    %179 = vector.shape_cast %175 : vector<8x128xf32> to vector<1x8x128xf32>
    tpu.vector_store %arg10[%176, %c0_67, %c0_68], %179 {strides = array<i32>} : memref<8x8x128xf32, #tpu.memory_space<vmem>>, vector<1x8x128xf32>,
    %c4_i32 = arith.constant 4 : i32
    %cst_69 = arith.constant dense<0.000000e+00> : vector<8x384xf32>
    %180 = tpu.matmul %175, %15, %cst_69 {dimension_numbers = #tpu.dot_dimension_numbers<[1], [0], [0], [1], [0, 0, 1, 1], [], []>} : vector<8x128xf32>, vector<128x384xf32>, vector<8x384xf32> -> vector<8x384xf32>
    %181 = arith.index_cast %c4_i32 : i32 to index
    %c0_70 = arith.constant 0 : index
    %c0_71 = arith.constant 0 : index
    %182 = vector.load %arg11[%181, %c0_70, %c0_71] : memref<8x8x384xf32, #tpu.memory_space<vmem>>, vector<1x8x384xf32>
    %183 = vector.shape_cast %182 : vector<1x8x384xf32> to vector<8x384xf32>
    %184 = vector.extract_strided_slice %183 {offsets = [0, 0], sizes = [8, 128], strides = [1, 1]} : vector<8x384xf32> to vector<8x128xf32>
    %185 = vector.extract_strided_slice %180 {offsets = [0, 0], sizes = [8, 128], strides = [1, 1]} : vector<8x384xf32> to vector<8x128xf32>
    %186 = arith.addf %184, %185 : vector<8x128xf32>
    %cst_72 = arith.constant 5.000000e-01 : f32
    %187 = vector.broadcast %cst_72 : f32 to vector<8x128xf32>
    %188 = arith.mulf %187, %186 : vector<8x128xf32>
    %189 = math.tanh %188 : vector<8x128xf32>
    %cst_73 = arith.constant 5.000000e-01 : f32
    %190 = vector.broadcast %cst_73 : f32 to vector<8x128xf32>
    %191 = arith.mulf %190, %189 : vector<8x128xf32>
    %cst_74 = arith.constant 5.000000e-01 : f32
    %192 = vector.broadcast %cst_74 : f32 to vector<8x128xf32>
    %193 = arith.addf %191, %192 : vector<8x128xf32>
    %194 = vector.extract_strided_slice %183 {offsets = [0, 128], sizes = [8, 128], strides = [1, 1]} : vector<8x384xf32> to vector<8x128xf32>
    %195 = vector.extract_strided_slice %180 {offsets = [0, 128], sizes = [8, 128], strides = [1, 1]} : vector<8x384xf32> to vector<8x128xf32>
    %196 = arith.addf %194, %195 : vector<8x128xf32>
    %cst_75 = arith.constant 5.000000e-01 : f32
    %197 = vector.broadcast %cst_75 : f32 to vector<8x128xf32>
    %198 = arith.mulf %197, %196 : vector<8x128xf32>
    %199 = math.tanh %198 : vector<8x128xf32>
    %cst_76 = arith.constant 5.000000e-01 : f32
    %200 = vector.broadcast %cst_76 : f32 to vector<8x128xf32>
    %201 = arith.mulf %200, %199 : vector<8x128xf32>
    %cst_77 = arith.constant 5.000000e-01 : f32
    %202 = vector.broadcast %cst_77 : f32 to vector<8x128xf32>
    %203 = arith.addf %201, %202 : vector<8x128xf32>
    %204 = vector.extract_strided_slice %183 {offsets = [0, 256], sizes = [8, 128], strides = [1, 1]} : vector<8x384xf32> to vector<8x128xf32>
    %205 = vector.extract_strided_slice %180 {offsets = [0, 256], sizes = [8, 128], strides = [1, 1]} : vector<8x384xf32> to vector<8x128xf32>
    %206 = vector.broadcast %17 : vector<1x128xf32> to vector<8x128xf32>
    %207 = arith.addf %205, %206 : vector<8x128xf32>
    %208 = arith.mulf %193, %207 : vector<8x128xf32>
    %209 = arith.addf %204, %208 : vector<8x128xf32>
    %210 = math.tanh %209 : vector<8x128xf32>
    %cst_78 = arith.constant 1.000000e+00 : f32
    %211 = vector.broadcast %cst_78 : f32 to vector<8x128xf32>
    %212 = arith.subf %211, %203 : vector<8x128xf32>
    %213 = arith.mulf %212, %210 : vector<8x128xf32>
    %214 = arith.mulf %203, %175 : vector<8x128xf32>
    %215 = arith.addf %213, %214 : vector<8x128xf32>
    %216 = arith.index_cast %c4_i32 : i32 to index
    %c0_79 = arith.constant 0 : index
    %c0_80 = arith.constant 0 : index
    %217 = vector.load %arg10[%216, %c0_79, %c0_80] : memref<8x8x128xf32, #tpu.memory_space<vmem>>, vector<1x8x128xf32>
    %218 = vector.shape_cast %217 : vector<1x8x128xf32> to vector<8x128xf32>
    %219 = vector.shape_cast %215 : vector<8x128xf32> to vector<1x8x128xf32>
    tpu.vector_store %arg10[%216, %c0_79, %c0_80], %219 {strides = array<i32>} : memref<8x8x128xf32, #tpu.memory_space<vmem>>, vector<1x8x128xf32>,
    %c5_i32 = arith.constant 5 : i32
    %cst_81 = arith.constant dense<0.000000e+00> : vector<8x384xf32>
    %220 = tpu.matmul %215, %15, %cst_81 {dimension_numbers = #tpu.dot_dimension_numbers<[1], [0], [0], [1], [0, 0, 1, 1], [], []>} : vector<8x128xf32>, vector<128x384xf32>, vector<8x384xf32> -> vector<8x384xf32>
    %221 = arith.index_cast %c5_i32 : i32 to index
    %c0_82 = arith.constant 0 : index
    %c0_83 = arith.constant 0 : index
    %222 = vector.load %arg11[%221, %c0_82, %c0_83] : memref<8x8x384xf32, #tpu.memory_space<vmem>>, vector<1x8x384xf32>
    %223 = vector.shape_cast %222 : vector<1x8x384xf32> to vector<8x384xf32>
    %224 = vector.extract_strided_slice %223 {offsets = [0, 0], sizes = [8, 128], strides = [1, 1]} : vector<8x384xf32> to vector<8x128xf32>
    %225 = vector.extract_strided_slice %220 {offsets = [0, 0], sizes = [8, 128], strides = [1, 1]} : vector<8x384xf32> to vector<8x128xf32>
    %226 = arith.addf %224, %225 : vector<8x128xf32>
    %cst_84 = arith.constant 5.000000e-01 : f32
    %227 = vector.broadcast %cst_84 : f32 to vector<8x128xf32>
    %228 = arith.mulf %227, %226 : vector<8x128xf32>
    %229 = math.tanh %228 : vector<8x128xf32>
    %cst_85 = arith.constant 5.000000e-01 : f32
    %230 = vector.broadcast %cst_85 : f32 to vector<8x128xf32>
    %231 = arith.mulf %230, %229 : vector<8x128xf32>
    %cst_86 = arith.constant 5.000000e-01 : f32
    %232 = vector.broadcast %cst_86 : f32 to vector<8x128xf32>
    %233 = arith.addf %231, %232 : vector<8x128xf32>
    %234 = vector.extract_strided_slice %223 {offsets = [0, 128], sizes = [8, 128], strides = [1, 1]} : vector<8x384xf32> to vector<8x128xf32>
    %235 = vector.extract_strided_slice %220 {offsets = [0, 128], sizes = [8, 128], strides = [1, 1]} : vector<8x384xf32> to vector<8x128xf32>
    %236 = arith.addf %234, %235 : vector<8x128xf32>
    %cst_87 = arith.constant 5.000000e-01 : f32
    %237 = vector.broadcast %cst_87 : f32 to vector<8x128xf32>
    %238 = arith.mulf %237, %236 : vector<8x128xf32>
    %239 = math.tanh %238 : vector<8x128xf32>
    %cst_88 = arith.constant 5.000000e-01 : f32
    %240 = vector.broadcast %cst_88 : f32 to vector<8x128xf32>
    %241 = arith.mulf %240, %239 : vector<8x128xf32>
    %cst_89 = arith.constant 5.000000e-01 : f32
    %242 = vector.broadcast %cst_89 : f32 to vector<8x128xf32>
    %243 = arith.addf %241, %242 : vector<8x128xf32>
    %244 = vector.extract_strided_slice %223 {offsets = [0, 256], sizes = [8, 128], strides = [1, 1]} : vector<8x384xf32> to vector<8x128xf32>
    %245 = vector.extract_strided_slice %220 {offsets = [0, 256], sizes = [8, 128], strides = [1, 1]} : vector<8x384xf32> to vector<8x128xf32>
    %246 = vector.broadcast %17 : vector<1x128xf32> to vector<8x128xf32>
    %247 = arith.addf %245, %246 : vector<8x128xf32>
    %248 = arith.mulf %233, %247 : vector<8x128xf32>
    %249 = arith.addf %244, %248 : vector<8x128xf32>
    %250 = math.tanh %249 : vector<8x128xf32>
    %cst_90 = arith.constant 1.000000e+00 : f32
    %251 = vector.broadcast %cst_90 : f32 to vector<8x128xf32>
    %252 = arith.subf %251, %243 : vector<8x128xf32>
    %253 = arith.mulf %252, %250 : vector<8x128xf32>
    %254 = arith.mulf %243, %215 : vector<8x128xf32>
    %255 = arith.addf %253, %254 : vector<8x128xf32>
    %256 = arith.index_cast %c5_i32 : i32 to index
    %c0_91 = arith.constant 0 : index
    %c0_92 = arith.constant 0 : index
    %257 = vector.load %arg10[%256, %c0_91, %c0_92] : memref<8x8x128xf32, #tpu.memory_space<vmem>>, vector<1x8x128xf32>
    %258 = vector.shape_cast %257 : vector<1x8x128xf32> to vector<8x128xf32>
    %259 = vector.shape_cast %255 : vector<8x128xf32> to vector<1x8x128xf32>
    tpu.vector_store %arg10[%256, %c0_91, %c0_92], %259 {strides = array<i32>} : memref<8x8x128xf32, #tpu.memory_space<vmem>>, vector<1x8x128xf32>,
    %c6_i32 = arith.constant 6 : i32
    %cst_93 = arith.constant dense<0.000000e+00> : vector<8x384xf32>
    %260 = tpu.matmul %255, %15, %cst_93 {dimension_numbers = #tpu.dot_dimension_numbers<[1], [0], [0], [1], [0, 0, 1, 1], [], []>} : vector<8x128xf32>, vector<128x384xf32>, vector<8x384xf32> -> vector<8x384xf32>
    %261 = arith.index_cast %c6_i32 : i32 to index
    %c0_94 = arith.constant 0 : index
    %c0_95 = arith.constant 0 : index
    %262 = vector.load %arg11[%261, %c0_94, %c0_95] : memref<8x8x384xf32, #tpu.memory_space<vmem>>, vector<1x8x384xf32>
    %263 = vector.shape_cast %262 : vector<1x8x384xf32> to vector<8x384xf32>
    %264 = vector.extract_strided_slice %263 {offsets = [0, 0], sizes = [8, 128], strides = [1, 1]} : vector<8x384xf32> to vector<8x128xf32>
    %265 = vector.extract_strided_slice %260 {offsets = [0, 0], sizes = [8, 128], strides = [1, 1]} : vector<8x384xf32> to vector<8x128xf32>
    %266 = arith.addf %264, %265 : vector<8x128xf32>
    %cst_96 = arith.constant 5.000000e-01 : f32
    %267 = vector.broadcast %cst_96 : f32 to vector<8x128xf32>
    %268 = arith.mulf %267, %266 : vector<8x128xf32>
    %269 = math.tanh %268 : vector<8x128xf32>
    %cst_97 = arith.constant 5.000000e-01 : f32
    %270 = vector.broadcast %cst_97 : f32 to vector<8x128xf32>
    %271 = arith.mulf %270, %269 : vector<8x128xf32>
    %cst_98 = arith.constant 5.000000e-01 : f32
    %272 = vector.broadcast %cst_98 : f32 to vector<8x128xf32>
    %273 = arith.addf %271, %272 : vector<8x128xf32>
    %274 = vector.extract_strided_slice %263 {offsets = [0, 128], sizes = [8, 128], strides = [1, 1]} : vector<8x384xf32> to vector<8x128xf32>
    %275 = vector.extract_strided_slice %260 {offsets = [0, 128], sizes = [8, 128], strides = [1, 1]} : vector<8x384xf32> to vector<8x128xf32>
    %276 = arith.addf %274, %275 : vector<8x128xf32>
    %cst_99 = arith.constant 5.000000e-01 : f32
    %277 = vector.broadcast %cst_99 : f32 to vector<8x128xf32>
    %278 = arith.mulf %277, %276 : vector<8x128xf32>
    %279 = math.tanh %278 : vector<8x128xf32>
    %cst_100 = arith.constant 5.000000e-01 : f32
    %280 = vector.broadcast %cst_100 : f32 to vector<8x128xf32>
    %281 = arith.mulf %280, %279 : vector<8x128xf32>
    %cst_101 = arith.constant 5.000000e-01 : f32
    %282 = vector.broadcast %cst_101 : f32 to vector<8x128xf32>
    %283 = arith.addf %281, %282 : vector<8x128xf32>
    %284 = vector.extract_strided_slice %263 {offsets = [0, 256], sizes = [8, 128], strides = [1, 1]} : vector<8x384xf32> to vector<8x128xf32>
    %285 = vector.extract_strided_slice %260 {offsets = [0, 256], sizes = [8, 128], strides = [1, 1]} : vector<8x384xf32> to vector<8x128xf32>
    %286 = vector.broadcast %17 : vector<1x128xf32> to vector<8x128xf32>
    %287 = arith.addf %285, %286 : vector<8x128xf32>
    %288 = arith.mulf %273, %287 : vector<8x128xf32>
    %289 = arith.addf %284, %288 : vector<8x128xf32>
    %290 = math.tanh %289 : vector<8x128xf32>
    %cst_102 = arith.constant 1.000000e+00 : f32
    %291 = vector.broadcast %cst_102 : f32 to vector<8x128xf32>
    %292 = arith.subf %291, %283 : vector<8x128xf32>
    %293 = arith.mulf %292, %290 : vector<8x128xf32>
    %294 = arith.mulf %283, %255 : vector<8x128xf32>
    %295 = arith.addf %293, %294 : vector<8x128xf32>
    %296 = arith.index_cast %c6_i32 : i32 to index
    %c0_103 = arith.constant 0 : index
    %c0_104 = arith.constant 0 : index
    %297 = vector.load %arg10[%296, %c0_103, %c0_104] : memref<8x8x128xf32, #tpu.memory_space<vmem>>, vector<1x8x128xf32>
    %298 = vector.shape_cast %297 : vector<1x8x128xf32> to vector<8x128xf32>
    %299 = vector.shape_cast %295 : vector<8x128xf32> to vector<1x8x128xf32>
    tpu.vector_store %arg10[%296, %c0_103, %c0_104], %299 {strides = array<i32>} : memref<8x8x128xf32, #tpu.memory_space<vmem>>, vector<1x8x128xf32>,
    %c7_i32 = arith.constant 7 : i32
    %cst_105 = arith.constant dense<0.000000e+00> : vector<8x384xf32>
    %300 = tpu.matmul %295, %15, %cst_105 {dimension_numbers = #tpu.dot_dimension_numbers<[1], [0], [0], [1], [0, 0, 1, 1], [], []>} : vector<8x128xf32>, vector<128x384xf32>, vector<8x384xf32> -> vector<8x384xf32>
    %301 = arith.index_cast %c7_i32 : i32 to index
    %c0_106 = arith.constant 0 : index
    %c0_107 = arith.constant 0 : index
    %302 = vector.load %arg11[%301, %c0_106, %c0_107] : memref<8x8x384xf32, #tpu.memory_space<vmem>>, vector<1x8x384xf32>
    %303 = vector.shape_cast %302 : vector<1x8x384xf32> to vector<8x384xf32>
    %304 = vector.extract_strided_slice %303 {offsets = [0, 0], sizes = [8, 128], strides = [1, 1]} : vector<8x384xf32> to vector<8x128xf32>
    %305 = vector.extract_strided_slice %300 {offsets = [0, 0], sizes = [8, 128], strides = [1, 1]} : vector<8x384xf32> to vector<8x128xf32>
    %306 = arith.addf %304, %305 : vector<8x128xf32>
    %cst_108 = arith.constant 5.000000e-01 : f32
    %307 = vector.broadcast %cst_108 : f32 to vector<8x128xf32>
    %308 = arith.mulf %307, %306 : vector<8x128xf32>
    %309 = math.tanh %308 : vector<8x128xf32>
    %cst_109 = arith.constant 5.000000e-01 : f32
    %310 = vector.broadcast %cst_109 : f32 to vector<8x128xf32>
    %311 = arith.mulf %310, %309 : vector<8x128xf32>
    %cst_110 = arith.constant 5.000000e-01 : f32
    %312 = vector.broadcast %cst_110 : f32 to vector<8x128xf32>
    %313 = arith.addf %311, %312 : vector<8x128xf32>
    %314 = vector.extract_strided_slice %303 {offsets = [0, 128], sizes = [8, 128], strides = [1, 1]} : vector<8x384xf32> to vector<8x128xf32>
    %315 = vector.extract_strided_slice %300 {offsets = [0, 128], sizes = [8, 128], strides = [1, 1]} : vector<8x384xf32> to vector<8x128xf32>
    %316 = arith.addf %314, %315 : vector<8x128xf32>
    %cst_111 = arith.constant 5.000000e-01 : f32
    %317 = vector.broadcast %cst_111 : f32 to vector<8x128xf32>
    %318 = arith.mulf %317, %316 : vector<8x128xf32>
    %319 = math.tanh %318 : vector<8x128xf32>
    %cst_112 = arith.constant 5.000000e-01 : f32
    %320 = vector.broadcast %cst_112 : f32 to vector<8x128xf32>
    %321 = arith.mulf %320, %319 : vector<8x128xf32>
    %cst_113 = arith.constant 5.000000e-01 : f32
    %322 = vector.broadcast %cst_113 : f32 to vector<8x128xf32>
    %323 = arith.addf %321, %322 : vector<8x128xf32>
    %324 = vector.extract_strided_slice %303 {offsets = [0, 256], sizes = [8, 128], strides = [1, 1]} : vector<8x384xf32> to vector<8x128xf32>
    %325 = vector.extract_strided_slice %300 {offsets = [0, 256], sizes = [8, 128], strides = [1, 1]} : vector<8x384xf32> to vector<8x128xf32>
    %326 = vector.broadcast %17 : vector<1x128xf32> to vector<8x128xf32>
    %327 = arith.addf %325, %326 : vector<8x128xf32>
    %328 = arith.mulf %313, %327 : vector<8x128xf32>
    %329 = arith.addf %324, %328 : vector<8x128xf32>
    %330 = math.tanh %329 : vector<8x128xf32>
    %cst_114 = arith.constant 1.000000e+00 : f32
    %331 = vector.broadcast %cst_114 : f32 to vector<8x128xf32>
    %332 = arith.subf %331, %323 : vector<8x128xf32>
    %333 = arith.mulf %332, %330 : vector<8x128xf32>
    %334 = arith.mulf %323, %295 : vector<8x128xf32>
    %335 = arith.addf %333, %334 : vector<8x128xf32>
    %336 = arith.index_cast %c7_i32 : i32 to index
    %c0_115 = arith.constant 0 : index
    %c0_116 = arith.constant 0 : index
    %337 = vector.load %arg10[%336, %c0_115, %c0_116] : memref<8x8x128xf32, #tpu.memory_space<vmem>>, vector<1x8x128xf32>
    %338 = vector.shape_cast %337 : vector<1x8x128xf32> to vector<8x128xf32>
    %339 = vector.shape_cast %335 : vector<8x128xf32> to vector<1x8x128xf32>
    tpu.vector_store %arg10[%336, %c0_115, %c0_116], %339 {strides = array<i32>} : memref<8x8x128xf32, #tpu.memory_space<vmem>>, vector<1x8x128xf32>,
    %c8_i32 = arith.constant 8 : i32
    %c0_117 = arith.constant 0 : index
    %c0_118 = arith.constant 0 : index
    %c0_119 = arith.constant 0 : index
    %340 = vector.load %arg9[%c0_117, %c0_118, %c0_119] : memref<2x8x128xf32, #tpu.memory_space<vmem>>, vector<1x8x128xf32>
    %341 = vector.shape_cast %340 : vector<1x8x128xf32> to vector<8x128xf32>
    %342 = vector.shape_cast %335 : vector<8x128xf32> to vector<1x8x128xf32>
    tpu.vector_store %arg9[%c0_117, %c0_118, %c0_119], %342 {strides = array<i32>} : memref<2x8x128xf32, #tpu.memory_space<vmem>>, vector<1x8x128xf32>,
    %c0_120 = arith.constant 0 : index
    %c0_121 = arith.constant 0 : index
    %c0_122 = arith.constant 0 : index
    %343 = vector.load %arg10[%c0_120, %c0_121, %c0_122] : memref<8x8x128xf32, #tpu.memory_space<vmem>>, vector<8x8x128xf32>
    %344 = vector.shape_cast %343 : vector<8x8x128xf32> to vector<64x128xf32>
    %c0_123 = arith.constant 0 : index
    %c0_124 = arith.constant 0 : index
    %c0_125 = arith.constant 0 : index
    %345 = vector.load %arg4[%c0_123, %c0_124, %c0_125] : memref<1x128x384xf32, #tpu.memory_space<vmem>>, vector<1x128x384xf32>
    %346 = vector.shape_cast %345 : vector<1x128x384xf32> to vector<128x384xf32>
    %cst_126 = arith.constant dense<0.000000e+00> : vector<64x384xf32>
    %347 = tpu.matmul %344, %346, %cst_126 {dimension_numbers = #tpu.dot_dimension_numbers<[1], [0], [0], [1], [0, 0, 1, 1], [], []>} : vector<64x128xf32>, vector<128x384xf32>, vector<64x384xf32> -> vector<64x384xf32>
    %348 = vector.shape_cast %347 : vector<64x384xf32> to vector<8x8x384xf32>
    %c1 = arith.constant 1 : index
    %c0_127 = arith.constant 0 : index
    %c0_128 = arith.constant 0 : index
    %349 = vector.load %arg6[%c1, %c0_127, %c0_128] : memref<2x1x384xf32, #tpu.memory_space<vmem>>, vector<1x1x384xf32>
    %350 = vector.shape_cast %349 : vector<1x1x384xf32> to vector<1x384xf32>
    %351 = vector.shape_cast %350 : vector<1x384xf32> to vector<1x1x384xf32>
    %352 = vector.broadcast %351 : vector<1x1x384xf32> to vector<8x8x384xf32>
    %353 = arith.addf %348, %352 : vector<8x8x384xf32>
    %c0_129 = arith.constant 0 : index
    %c0_130 = arith.constant 0 : index
    %c0_131 = arith.constant 0 : index
    %354 = vector.load %arg11[%c0_129, %c0_130, %c0_131] : memref<8x8x384xf32, #tpu.memory_space<vmem>>, vector<8x8x384xf32>
    tpu.vector_store %arg11[%c0_129, %c0_130, %c0_131], %353 {strides = array<i32>} : memref<8x8x384xf32, #tpu.memory_space<vmem>>, vector<8x8x384xf32>,
    %c1_132 = arith.constant 1 : index
    %c0_133 = arith.constant 0 : index
    %c0_134 = arith.constant 0 : index
    %355 = vector.load %arg5[%c1_132, %c0_133, %c0_134] : memref<2x128x384xf32, #tpu.memory_space<vmem>>, vector<1x128x384xf32>
    %356 = vector.shape_cast %355 : vector<1x128x384xf32> to vector<128x384xf32>
    %c1_135 = arith.constant 1 : index
    %c0_136 = arith.constant 0 : index
    %c0_137 = arith.constant 0 : index
    %357 = vector.load %arg7[%c1_135, %c0_136, %c0_137] : memref<2x1x128xf32, #tpu.memory_space<vmem>>, vector<1x1x128xf32>
    %358 = vector.shape_cast %357 : vector<1x1x128xf32> to vector<1x128xf32>
    %c1_138 = arith.constant 1 : index
    %c0_139 = arith.constant 0 : index
    %c0_140 = arith.constant 0 : index
    %359 = vector.load %arg9[%c1_138, %c0_139, %c0_140] : memref<2x8x128xf32, #tpu.memory_space<vmem>>, vector<1x8x128xf32>
    %360 = vector.shape_cast %359 : vector<1x8x128xf32> to vector<8x128xf32>
    %c0_i32_141 = arith.constant 0 : i32
    %cst_142 = arith.constant dense<0.000000e+00> : vector<8x384xf32>
    %361 = tpu.matmul %360, %356, %cst_142 {dimension_numbers = #tpu.dot_dimension_numbers<[1], [0], [0], [1], [0, 0, 1, 1], [], []>} : vector<8x128xf32>, vector<128x384xf32>, vector<8x384xf32> -> vector<8x384xf32>
    %362 = arith.index_cast %c0_i32_141 : i32 to index
    %c0_143 = arith.constant 0 : index
    %c0_144 = arith.constant 0 : index
    %363 = vector.load %arg11[%362, %c0_143, %c0_144] : memref<8x8x384xf32, #tpu.memory_space<vmem>>, vector<1x8x384xf32>
    %364 = vector.shape_cast %363 : vector<1x8x384xf32> to vector<8x384xf32>
    %365 = vector.extract_strided_slice %364 {offsets = [0, 0], sizes = [8, 128], strides = [1, 1]} : vector<8x384xf32> to vector<8x128xf32>
    %366 = vector.extract_strided_slice %361 {offsets = [0, 0], sizes = [8, 128], strides = [1, 1]} : vector<8x384xf32> to vector<8x128xf32>
    %367 = arith.addf %365, %366 : vector<8x128xf32>
    %cst_145 = arith.constant 5.000000e-01 : f32
    %368 = vector.broadcast %cst_145 : f32 to vector<8x128xf32>
    %369 = arith.mulf %368, %367 : vector<8x128xf32>
    %370 = math.tanh %369 : vector<8x128xf32>
    %cst_146 = arith.constant 5.000000e-01 : f32
    %371 = vector.broadcast %cst_146 : f32 to vector<8x128xf32>
    %372 = arith.mulf %371, %370 : vector<8x128xf32>
    %cst_147 = arith.constant 5.000000e-01 : f32
    %373 = vector.broadcast %cst_147 : f32 to vector<8x128xf32>
    %374 = arith.addf %372, %373 : vector<8x128xf32>
    %375 = vector.extract_strided_slice %364 {offsets = [0, 128], sizes = [8, 128], strides = [1, 1]} : vector<8x384xf32> to vector<8x128xf32>
    %376 = vector.extract_strided_slice %361 {offsets = [0, 128], sizes = [8, 128], strides = [1, 1]} : vector<8x384xf32> to vector<8x128xf32>
    %377 = arith.addf %375, %376 : vector<8x128xf32>
    %cst_148 = arith.constant 5.000000e-01 : f32
    %378 = vector.broadcast %cst_148 : f32 to vector<8x128xf32>
    %379 = arith.mulf %378, %377 : vector<8x128xf32>
    %380 = math.tanh %379 : vector<8x128xf32>
    %cst_149 = arith.constant 5.000000e-01 : f32
    %381 = vector.broadcast %cst_149 : f32 to vector<8x128xf32>
    %382 = arith.mulf %381, %380 : vector<8x128xf32>
    %cst_150 = arith.constant 5.000000e-01 : f32
    %383 = vector.broadcast %cst_150 : f32 to vector<8x128xf32>
    %384 = arith.addf %382, %383 : vector<8x128xf32>
    %385 = vector.extract_strided_slice %364 {offsets = [0, 256], sizes = [8, 128], strides = [1, 1]} : vector<8x384xf32> to vector<8x128xf32>
    %386 = vector.extract_strided_slice %361 {offsets = [0, 256], sizes = [8, 128], strides = [1, 1]} : vector<8x384xf32> to vector<8x128xf32>
    %387 = vector.broadcast %358 : vector<1x128xf32> to vector<8x128xf32>
    %388 = arith.addf %386, %387 : vector<8x128xf32>
    %389 = arith.mulf %374, %388 : vector<8x128xf32>
    %390 = arith.addf %385, %389 : vector<8x128xf32>
    %391 = math.tanh %390 : vector<8x128xf32>
    %cst_151 = arith.constant 1.000000e+00 : f32
    %392 = vector.broadcast %cst_151 : f32 to vector<8x128xf32>
    %393 = arith.subf %392, %384 : vector<8x128xf32>
    %394 = arith.mulf %393, %391 : vector<8x128xf32>
    %395 = arith.mulf %384, %360 : vector<8x128xf32>
    %396 = arith.addf %394, %395 : vector<8x128xf32>
    %397 = arith.index_cast %c0_i32_141 : i32 to index
    %c0_152 = arith.constant 0 : index
    %c0_153 = arith.constant 0 : index
    %398 = vector.load %arg8[%397, %c0_152, %c0_153] : memref<8x8x128xf32, #tpu.memory_space<vmem>>, vector<1x8x128xf32>
    %399 = vector.shape_cast %398 : vector<1x8x128xf32> to vector<8x128xf32>
    %400 = vector.shape_cast %396 : vector<8x128xf32> to vector<1x8x128xf32>
    tpu.vector_store %arg8[%397, %c0_152, %c0_153], %400 {strides = array<i32>} : memref<8x8x128xf32, #tpu.memory_space<vmem>>, vector<1x8x128xf32>,
    %c1_i32_154 = arith.constant 1 : i32
    %cst_155 = arith.constant dense<0.000000e+00> : vector<8x384xf32>
    %401 = tpu.matmul %396, %356, %cst_155 {dimension_numbers = #tpu.dot_dimension_numbers<[1], [0], [0], [1], [0, 0, 1, 1], [], []>} : vector<8x128xf32>, vector<128x384xf32>, vector<8x384xf32> -> vector<8x384xf32>
    %402 = arith.index_cast %c1_i32_154 : i32 to index
    %c0_156 = arith.constant 0 : index
    %c0_157 = arith.constant 0 : index
    %403 = vector.load %arg11[%402, %c0_156, %c0_157] : memref<8x8x384xf32, #tpu.memory_space<vmem>>, vector<1x8x384xf32>
    %404 = vector.shape_cast %403 : vector<1x8x384xf32> to vector<8x384xf32>
    %405 = vector.extract_strided_slice %404 {offsets = [0, 0], sizes = [8, 128], strides = [1, 1]} : vector<8x384xf32> to vector<8x128xf32>
    %406 = vector.extract_strided_slice %401 {offsets = [0, 0], sizes = [8, 128], strides = [1, 1]} : vector<8x384xf32> to vector<8x128xf32>
    %407 = arith.addf %405, %406 : vector<8x128xf32>
    %cst_158 = arith.constant 5.000000e-01 : f32
    %408 = vector.broadcast %cst_158 : f32 to vector<8x128xf32>
    %409 = arith.mulf %408, %407 : vector<8x128xf32>
    %410 = math.tanh %409 : vector<8x128xf32>
    %cst_159 = arith.constant 5.000000e-01 : f32
    %411 = vector.broadcast %cst_159 : f32 to vector<8x128xf32>
    %412 = arith.mulf %411, %410 : vector<8x128xf32>
    %cst_160 = arith.constant 5.000000e-01 : f32
    %413 = vector.broadcast %cst_160 : f32 to vector<8x128xf32>
    %414 = arith.addf %412, %413 : vector<8x128xf32>
    %415 = vector.extract_strided_slice %404 {offsets = [0, 128], sizes = [8, 128], strides = [1, 1]} : vector<8x384xf32> to vector<8x128xf32>
    %416 = vector.extract_strided_slice %401 {offsets = [0, 128], sizes = [8, 128], strides = [1, 1]} : vector<8x384xf32> to vector<8x128xf32>
    %417 = arith.addf %415, %416 : vector<8x128xf32>
    %cst_161 = arith.constant 5.000000e-01 : f32
    %418 = vector.broadcast %cst_161 : f32 to vector<8x128xf32>
    %419 = arith.mulf %418, %417 : vector<8x128xf32>
    %420 = math.tanh %419 : vector<8x128xf32>
    %cst_162 = arith.constant 5.000000e-01 : f32
    %421 = vector.broadcast %cst_162 : f32 to vector<8x128xf32>
    %422 = arith.mulf %421, %420 : vector<8x128xf32>
    %cst_163 = arith.constant 5.000000e-01 : f32
    %423 = vector.broadcast %cst_163 : f32 to vector<8x128xf32>
    %424 = arith.addf %422, %423 : vector<8x128xf32>
    %425 = vector.extract_strided_slice %404 {offsets = [0, 256], sizes = [8, 128], strides = [1, 1]} : vector<8x384xf32> to vector<8x128xf32>
    %426 = vector.extract_strided_slice %401 {offsets = [0, 256], sizes = [8, 128], strides = [1, 1]} : vector<8x384xf32> to vector<8x128xf32>
    %427 = vector.broadcast %358 : vector<1x128xf32> to vector<8x128xf32>
    %428 = arith.addf %426, %427 : vector<8x128xf32>
    %429 = arith.mulf %414, %428 : vector<8x128xf32>
    %430 = arith.addf %425, %429 : vector<8x128xf32>
    %431 = math.tanh %430 : vector<8x128xf32>
    %cst_164 = arith.constant 1.000000e+00 : f32
    %432 = vector.broadcast %cst_164 : f32 to vector<8x128xf32>
    %433 = arith.subf %432, %424 : vector<8x128xf32>
    %434 = arith.mulf %433, %431 : vector<8x128xf32>
    %435 = arith.mulf %424, %396 : vector<8x128xf32>
    %436 = arith.addf %434, %435 : vector<8x128xf32>
    %437 = arith.index_cast %c1_i32_154 : i32 to index
    %c0_165 = arith.constant 0 : index
    %c0_166 = arith.constant 0 : index
    %438 = vector.load %arg8[%437, %c0_165, %c0_166] : memref<8x8x128xf32, #tpu.memory_space<vmem>>, vector<1x8x128xf32>
    %439 = vector.shape_cast %438 : vector<1x8x128xf32> to vector<8x128xf32>
    %440 = vector.shape_cast %436 : vector<8x128xf32> to vector<1x8x128xf32>
    tpu.vector_store %arg8[%437, %c0_165, %c0_166], %440 {strides = array<i32>} : memref<8x8x128xf32, #tpu.memory_space<vmem>>, vector<1x8x128xf32>,
    %c2_i32_167 = arith.constant 2 : i32
    %cst_168 = arith.constant dense<0.000000e+00> : vector<8x384xf32>
    %441 = tpu.matmul %436, %356, %cst_168 {dimension_numbers = #tpu.dot_dimension_numbers<[1], [0], [0], [1], [0, 0, 1, 1], [], []>} : vector<8x128xf32>, vector<128x384xf32>, vector<8x384xf32> -> vector<8x384xf32>
    %442 = arith.index_cast %c2_i32_167 : i32 to index
    %c0_169 = arith.constant 0 : index
    %c0_170 = arith.constant 0 : index
    %443 = vector.load %arg11[%442, %c0_169, %c0_170] : memref<8x8x384xf32, #tpu.memory_space<vmem>>, vector<1x8x384xf32>
    %444 = vector.shape_cast %443 : vector<1x8x384xf32> to vector<8x384xf32>
    %445 = vector.extract_strided_slice %444 {offsets = [0, 0], sizes = [8, 128], strides = [1, 1]} : vector<8x384xf32> to vector<8x128xf32>
    %446 = vector.extract_strided_slice %441 {offsets = [0, 0], sizes = [8, 128], strides = [1, 1]} : vector<8x384xf32> to vector<8x128xf32>
    %447 = arith.addf %445, %446 : vector<8x128xf32>
    %cst_171 = arith.constant 5.000000e-01 : f32
    %448 = vector.broadcast %cst_171 : f32 to vector<8x128xf32>
    %449 = arith.mulf %448, %447 : vector<8x128xf32>
    %450 = math.tanh %449 : vector<8x128xf32>
    %cst_172 = arith.constant 5.000000e-01 : f32
    %451 = vector.broadcast %cst_172 : f32 to vector<8x128xf32>
    %452 = arith.mulf %451, %450 : vector<8x128xf32>
    %cst_173 = arith.constant 5.000000e-01 : f32
    %453 = vector.broadcast %cst_173 : f32 to vector<8x128xf32>
    %454 = arith.addf %452, %453 : vector<8x128xf32>
    %455 = vector.extract_strided_slice %444 {offsets = [0, 128], sizes = [8, 128], strides = [1, 1]} : vector<8x384xf32> to vector<8x128xf32>
    %456 = vector.extract_strided_slice %441 {offsets = [0, 128], sizes = [8, 128], strides = [1, 1]} : vector<8x384xf32> to vector<8x128xf32>
    %457 = arith.addf %455, %456 : vector<8x128xf32>
    %cst_174 = arith.constant 5.000000e-01 : f32
    %458 = vector.broadcast %cst_174 : f32 to vector<8x128xf32>
    %459 = arith.mulf %458, %457 : vector<8x128xf32>
    %460 = math.tanh %459 : vector<8x128xf32>
    %cst_175 = arith.constant 5.000000e-01 : f32
    %461 = vector.broadcast %cst_175 : f32 to vector<8x128xf32>
    %462 = arith.mulf %461, %460 : vector<8x128xf32>
    %cst_176 = arith.constant 5.000000e-01 : f32
    %463 = vector.broadcast %cst_176 : f32 to vector<8x128xf32>
    %464 = arith.addf %462, %463 : vector<8x128xf32>
    %465 = vector.extract_strided_slice %444 {offsets = [0, 256], sizes = [8, 128], strides = [1, 1]} : vector<8x384xf32> to vector<8x128xf32>
    %466 = vector.extract_strided_slice %441 {offsets = [0, 256], sizes = [8, 128], strides = [1, 1]} : vector<8x384xf32> to vector<8x128xf32>
    %467 = vector.broadcast %358 : vector<1x128xf32> to vector<8x128xf32>
    %468 = arith.addf %466, %467 : vector<8x128xf32>
    %469 = arith.mulf %454, %468 : vector<8x128xf32>
    %470 = arith.addf %465, %469 : vector<8x128xf32>
    %471 = math.tanh %470 : vector<8x128xf32>
    %cst_177 = arith.constant 1.000000e+00 : f32
    %472 = vector.broadcast %cst_177 : f32 to vector<8x128xf32>
    %473 = arith.subf %472, %464 : vector<8x128xf32>
    %474 = arith.mulf %473, %471 : vector<8x128xf32>
    %475 = arith.mulf %464, %436 : vector<8x128xf32>
    %476 = arith.addf %474, %475 : vector<8x128xf32>
    %477 = arith.index_cast %c2_i32_167 : i32 to index
    %c0_178 = arith.constant 0 : index
    %c0_179 = arith.constant 0 : index
    %478 = vector.load %arg8[%477, %c0_178, %c0_179] : memref<8x8x128xf32, #tpu.memory_space<vmem>>, vector<1x8x128xf32>
    %479 = vector.shape_cast %478 : vector<1x8x128xf32> to vector<8x128xf32>
    %480 = vector.shape_cast %476 : vector<8x128xf32> to vector<1x8x128xf32>
    tpu.vector_store %arg8[%477, %c0_178, %c0_179], %480 {strides = array<i32>} : memref<8x8x128xf32, #tpu.memory_space<vmem>>, vector<1x8x128xf32>,
    %c3_i32_180 = arith.constant 3 : i32
    %cst_181 = arith.constant dense<0.000000e+00> : vector<8x384xf32>
    %481 = tpu.matmul %476, %356, %cst_181 {dimension_numbers = #tpu.dot_dimension_numbers<[1], [0], [0], [1], [0, 0, 1, 1], [], []>} : vector<8x128xf32>, vector<128x384xf32>, vector<8x384xf32> -> vector<8x384xf32>
    %482 = arith.index_cast %c3_i32_180 : i32 to index
    %c0_182 = arith.constant 0 : index
    %c0_183 = arith.constant 0 : index
    %483 = vector.load %arg11[%482, %c0_182, %c0_183] : memref<8x8x384xf32, #tpu.memory_space<vmem>>, vector<1x8x384xf32>
    %484 = vector.shape_cast %483 : vector<1x8x384xf32> to vector<8x384xf32>
    %485 = vector.extract_strided_slice %484 {offsets = [0, 0], sizes = [8, 128], strides = [1, 1]} : vector<8x384xf32> to vector<8x128xf32>
    %486 = vector.extract_strided_slice %481 {offsets = [0, 0], sizes = [8, 128], strides = [1, 1]} : vector<8x384xf32> to vector<8x128xf32>
    %487 = arith.addf %485, %486 : vector<8x128xf32>
    %cst_184 = arith.constant 5.000000e-01 : f32
    %488 = vector.broadcast %cst_184 : f32 to vector<8x128xf32>
    %489 = arith.mulf %488, %487 : vector<8x128xf32>
    %490 = math.tanh %489 : vector<8x128xf32>
    %cst_185 = arith.constant 5.000000e-01 : f32
    %491 = vector.broadcast %cst_185 : f32 to vector<8x128xf32>
    %492 = arith.mulf %491, %490 : vector<8x128xf32>
    %cst_186 = arith.constant 5.000000e-01 : f32
    %493 = vector.broadcast %cst_186 : f32 to vector<8x128xf32>
    %494 = arith.addf %492, %493 : vector<8x128xf32>
    %495 = vector.extract_strided_slice %484 {offsets = [0, 128], sizes = [8, 128], strides = [1, 1]} : vector<8x384xf32> to vector<8x128xf32>
    %496 = vector.extract_strided_slice %481 {offsets = [0, 128], sizes = [8, 128], strides = [1, 1]} : vector<8x384xf32> to vector<8x128xf32>
    %497 = arith.addf %495, %496 : vector<8x128xf32>
    %cst_187 = arith.constant 5.000000e-01 : f32
    %498 = vector.broadcast %cst_187 : f32 to vector<8x128xf32>
    %499 = arith.mulf %498, %497 : vector<8x128xf32>
    %500 = math.tanh %499 : vector<8x128xf32>
    %cst_188 = arith.constant 5.000000e-01 : f32
    %501 = vector.broadcast %cst_188 : f32 to vector<8x128xf32>
    %502 = arith.mulf %501, %500 : vector<8x128xf32>
    %cst_189 = arith.constant 5.000000e-01 : f32
    %503 = vector.broadcast %cst_189 : f32 to vector<8x128xf32>
    %504 = arith.addf %502, %503 : vector<8x128xf32>
    %505 = vector.extract_strided_slice %484 {offsets = [0, 256], sizes = [8, 128], strides = [1, 1]} : vector<8x384xf32> to vector<8x128xf32>
    %506 = vector.extract_strided_slice %481 {offsets = [0, 256], sizes = [8, 128], strides = [1, 1]} : vector<8x384xf32> to vector<8x128xf32>
    %507 = vector.broadcast %358 : vector<1x128xf32> to vector<8x128xf32>
    %508 = arith.addf %506, %507 : vector<8x128xf32>
    %509 = arith.mulf %494, %508 : vector<8x128xf32>
    %510 = arith.addf %505, %509 : vector<8x128xf32>
    %511 = math.tanh %510 : vector<8x128xf32>
    %cst_190 = arith.constant 1.000000e+00 : f32
    %512 = vector.broadcast %cst_190 : f32 to vector<8x128xf32>
    %513 = arith.subf %512, %504 : vector<8x128xf32>
    %514 = arith.mulf %513, %511 : vector<8x128xf32>
    %515 = arith.mulf %504, %476 : vector<8x128xf32>
    %516 = arith.addf %514, %515 : vector<8x128xf32>
    %517 = arith.index_cast %c3_i32_180 : i32 to index
    %c0_191 = arith.constant 0 : index
    %c0_192 = arith.constant 0 : index
    %518 = vector.load %arg8[%517, %c0_191, %c0_192] : memref<8x8x128xf32, #tpu.memory_space<vmem>>, vector<1x8x128xf32>
    %519 = vector.shape_cast %518 : vector<1x8x128xf32> to vector<8x128xf32>
    %520 = vector.shape_cast %516 : vector<8x128xf32> to vector<1x8x128xf32>
    tpu.vector_store %arg8[%517, %c0_191, %c0_192], %520 {strides = array<i32>} : memref<8x8x128xf32, #tpu.memory_space<vmem>>, vector<1x8x128xf32>,
    %c4_i32_193 = arith.constant 4 : i32
    %cst_194 = arith.constant dense<0.000000e+00> : vector<8x384xf32>
    %521 = tpu.matmul %516, %356, %cst_194 {dimension_numbers = #tpu.dot_dimension_numbers<[1], [0], [0], [1], [0, 0, 1, 1], [], []>} : vector<8x128xf32>, vector<128x384xf32>, vector<8x384xf32> -> vector<8x384xf32>
    %522 = arith.index_cast %c4_i32_193 : i32 to index
    %c0_195 = arith.constant 0 : index
    %c0_196 = arith.constant 0 : index
    %523 = vector.load %arg11[%522, %c0_195, %c0_196] : memref<8x8x384xf32, #tpu.memory_space<vmem>>, vector<1x8x384xf32>
    %524 = vector.shape_cast %523 : vector<1x8x384xf32> to vector<8x384xf32>
    %525 = vector.extract_strided_slice %524 {offsets = [0, 0], sizes = [8, 128], strides = [1, 1]} : vector<8x384xf32> to vector<8x128xf32>
    %526 = vector.extract_strided_slice %521 {offsets = [0, 0], sizes = [8, 128], strides = [1, 1]} : vector<8x384xf32> to vector<8x128xf32>
    %527 = arith.addf %525, %526 : vector<8x128xf32>
    %cst_197 = arith.constant 5.000000e-01 : f32
    %528 = vector.broadcast %cst_197 : f32 to vector<8x128xf32>
    %529 = arith.mulf %528, %527 : vector<8x128xf32>
    %530 = math.tanh %529 : vector<8x128xf32>
    %cst_198 = arith.constant 5.000000e-01 : f32
    %531 = vector.broadcast %cst_198 : f32 to vector<8x128xf32>
    %532 = arith.mulf %531, %530 : vector<8x128xf32>
    %cst_199 = arith.constant 5.000000e-01 : f32
    %533 = vector.broadcast %cst_199 : f32 to vector<8x128xf32>
    %534 = arith.addf %532, %533 : vector<8x128xf32>
    %535 = vector.extract_strided_slice %524 {offsets = [0, 128], sizes = [8, 128], strides = [1, 1]} : vector<8x384xf32> to vector<8x128xf32>
    %536 = vector.extract_strided_slice %521 {offsets = [0, 128], sizes = [8, 128], strides = [1, 1]} : vector<8x384xf32> to vector<8x128xf32>
    %537 = arith.addf %535, %536 : vector<8x128xf32>
    %cst_200 = arith.constant 5.000000e-01 : f32
    %538 = vector.broadcast %cst_200 : f32 to vector<8x128xf32>
    %539 = arith.mulf %538, %537 : vector<8x128xf32>
    %540 = math.tanh %539 : vector<8x128xf32>
    %cst_201 = arith.constant 5.000000e-01 : f32
    %541 = vector.broadcast %cst_201 : f32 to vector<8x128xf32>
    %542 = arith.mulf %541, %540 : vector<8x128xf32>
    %cst_202 = arith.constant 5.000000e-01 : f32
    %543 = vector.broadcast %cst_202 : f32 to vector<8x128xf32>
    %544 = arith.addf %542, %543 : vector<8x128xf32>
    %545 = vector.extract_strided_slice %524 {offsets = [0, 256], sizes = [8, 128], strides = [1, 1]} : vector<8x384xf32> to vector<8x128xf32>
    %546 = vector.extract_strided_slice %521 {offsets = [0, 256], sizes = [8, 128], strides = [1, 1]} : vector<8x384xf32> to vector<8x128xf32>
    %547 = vector.broadcast %358 : vector<1x128xf32> to vector<8x128xf32>
    %548 = arith.addf %546, %547 : vector<8x128xf32>
    %549 = arith.mulf %534, %548 : vector<8x128xf32>
    %550 = arith.addf %545, %549 : vector<8x128xf32>
    %551 = math.tanh %550 : vector<8x128xf32>
    %cst_203 = arith.constant 1.000000e+00 : f32
    %552 = vector.broadcast %cst_203 : f32 to vector<8x128xf32>
    %553 = arith.subf %552, %544 : vector<8x128xf32>
    %554 = arith.mulf %553, %551 : vector<8x128xf32>
    %555 = arith.mulf %544, %516 : vector<8x128xf32>
    %556 = arith.addf %554, %555 : vector<8x128xf32>
    %557 = arith.index_cast %c4_i32_193 : i32 to index
    %c0_204 = arith.constant 0 : index
    %c0_205 = arith.constant 0 : index
    %558 = vector.load %arg8[%557, %c0_204, %c0_205] : memref<8x8x128xf32, #tpu.memory_space<vmem>>, vector<1x8x128xf32>
    %559 = vector.shape_cast %558 : vector<1x8x128xf32> to vector<8x128xf32>
    %560 = vector.shape_cast %556 : vector<8x128xf32> to vector<1x8x128xf32>
    tpu.vector_store %arg8[%557, %c0_204, %c0_205], %560 {strides = array<i32>} : memref<8x8x128xf32, #tpu.memory_space<vmem>>, vector<1x8x128xf32>,
    %c5_i32_206 = arith.constant 5 : i32
    %cst_207 = arith.constant dense<0.000000e+00> : vector<8x384xf32>
    %561 = tpu.matmul %556, %356, %cst_207 {dimension_numbers = #tpu.dot_dimension_numbers<[1], [0], [0], [1], [0, 0, 1, 1], [], []>} : vector<8x128xf32>, vector<128x384xf32>, vector<8x384xf32> -> vector<8x384xf32>
    %562 = arith.index_cast %c5_i32_206 : i32 to index
    %c0_208 = arith.constant 0 : index
    %c0_209 = arith.constant 0 : index
    %563 = vector.load %arg11[%562, %c0_208, %c0_209] : memref<8x8x384xf32, #tpu.memory_space<vmem>>, vector<1x8x384xf32>
    %564 = vector.shape_cast %563 : vector<1x8x384xf32> to vector<8x384xf32>
    %565 = vector.extract_strided_slice %564 {offsets = [0, 0], sizes = [8, 128], strides = [1, 1]} : vector<8x384xf32> to vector<8x128xf32>
    %566 = vector.extract_strided_slice %561 {offsets = [0, 0], sizes = [8, 128], strides = [1, 1]} : vector<8x384xf32> to vector<8x128xf32>
    %567 = arith.addf %565, %566 : vector<8x128xf32>
    %cst_210 = arith.constant 5.000000e-01 : f32
    %568 = vector.broadcast %cst_210 : f32 to vector<8x128xf32>
    %569 = arith.mulf %568, %567 : vector<8x128xf32>
    %570 = math.tanh %569 : vector<8x128xf32>
    %cst_211 = arith.constant 5.000000e-01 : f32
    %571 = vector.broadcast %cst_211 : f32 to vector<8x128xf32>
    %572 = arith.mulf %571, %570 : vector<8x128xf32>
    %cst_212 = arith.constant 5.000000e-01 : f32
    %573 = vector.broadcast %cst_212 : f32 to vector<8x128xf32>
    %574 = arith.addf %572, %573 : vector<8x128xf32>
    %575 = vector.extract_strided_slice %564 {offsets = [0, 128], sizes = [8, 128], strides = [1, 1]} : vector<8x384xf32> to vector<8x128xf32>
    %576 = vector.extract_strided_slice %561 {offsets = [0, 128], sizes = [8, 128], strides = [1, 1]} : vector<8x384xf32> to vector<8x128xf32>
    %577 = arith.addf %575, %576 : vector<8x128xf32>
    %cst_213 = arith.constant 5.000000e-01 : f32
    %578 = vector.broadcast %cst_213 : f32 to vector<8x128xf32>
    %579 = arith.mulf %578, %577 : vector<8x128xf32>
    %580 = math.tanh %579 : vector<8x128xf32>
    %cst_214 = arith.constant 5.000000e-01 : f32
    %581 = vector.broadcast %cst_214 : f32 to vector<8x128xf32>
    %582 = arith.mulf %581, %580 : vector<8x128xf32>
    %cst_215 = arith.constant 5.000000e-01 : f32
    %583 = vector.broadcast %cst_215 : f32 to vector<8x128xf32>
    %584 = arith.addf %582, %583 : vector<8x128xf32>
    %585 = vector.extract_strided_slice %564 {offsets = [0, 256], sizes = [8, 128], strides = [1, 1]} : vector<8x384xf32> to vector<8x128xf32>
    %586 = vector.extract_strided_slice %561 {offsets = [0, 256], sizes = [8, 128], strides = [1, 1]} : vector<8x384xf32> to vector<8x128xf32>
    %587 = vector.broadcast %358 : vector<1x128xf32> to vector<8x128xf32>
    %588 = arith.addf %586, %587 : vector<8x128xf32>
    %589 = arith.mulf %574, %588 : vector<8x128xf32>
    %590 = arith.addf %585, %589 : vector<8x128xf32>
    %591 = math.tanh %590 : vector<8x128xf32>
    %cst_216 = arith.constant 1.000000e+00 : f32
    %592 = vector.broadcast %cst_216 : f32 to vector<8x128xf32>
    %593 = arith.subf %592, %584 : vector<8x128xf32>
    %594 = arith.mulf %593, %591 : vector<8x128xf32>
    %595 = arith.mulf %584, %556 : vector<8x128xf32>
    %596 = arith.addf %594, %595 : vector<8x128xf32>
    %597 = arith.index_cast %c5_i32_206 : i32 to index
    %c0_217 = arith.constant 0 : index
    %c0_218 = arith.constant 0 : index
    %598 = vector.load %arg8[%597, %c0_217, %c0_218] : memref<8x8x128xf32, #tpu.memory_space<vmem>>, vector<1x8x128xf32>
    %599 = vector.shape_cast %598 : vector<1x8x128xf32> to vector<8x128xf32>
    %600 = vector.shape_cast %596 : vector<8x128xf32> to vector<1x8x128xf32>
    tpu.vector_store %arg8[%597, %c0_217, %c0_218], %600 {strides = array<i32>} : memref<8x8x128xf32, #tpu.memory_space<vmem>>, vector<1x8x128xf32>,
    %c6_i32_219 = arith.constant 6 : i32
    %cst_220 = arith.constant dense<0.000000e+00> : vector<8x384xf32>
    %601 = tpu.matmul %596, %356, %cst_220 {dimension_numbers = #tpu.dot_dimension_numbers<[1], [0], [0], [1], [0, 0, 1, 1], [], []>} : vector<8x128xf32>, vector<128x384xf32>, vector<8x384xf32> -> vector<8x384xf32>
    %602 = arith.index_cast %c6_i32_219 : i32 to index
    %c0_221 = arith.constant 0 : index
    %c0_222 = arith.constant 0 : index
    %603 = vector.load %arg11[%602, %c0_221, %c0_222] : memref<8x8x384xf32, #tpu.memory_space<vmem>>, vector<1x8x384xf32>
    %604 = vector.shape_cast %603 : vector<1x8x384xf32> to vector<8x384xf32>
    %605 = vector.extract_strided_slice %604 {offsets = [0, 0], sizes = [8, 128], strides = [1, 1]} : vector<8x384xf32> to vector<8x128xf32>
    %606 = vector.extract_strided_slice %601 {offsets = [0, 0], sizes = [8, 128], strides = [1, 1]} : vector<8x384xf32> to vector<8x128xf32>
    %607 = arith.addf %605, %606 : vector<8x128xf32>
    %cst_223 = arith.constant 5.000000e-01 : f32
    %608 = vector.broadcast %cst_223 : f32 to vector<8x128xf32>
    %609 = arith.mulf %608, %607 : vector<8x128xf32>
    %610 = math.tanh %609 : vector<8x128xf32>
    %cst_224 = arith.constant 5.000000e-01 : f32
    %611 = vector.broadcast %cst_224 : f32 to vector<8x128xf32>
    %612 = arith.mulf %611, %610 : vector<8x128xf32>
    %cst_225 = arith.constant 5.000000e-01 : f32
    %613 = vector.broadcast %cst_225 : f32 to vector<8x128xf32>
    %614 = arith.addf %612, %613 : vector<8x128xf32>
    %615 = vector.extract_strided_slice %604 {offsets = [0, 128], sizes = [8, 128], strides = [1, 1]} : vector<8x384xf32> to vector<8x128xf32>
    %616 = vector.extract_strided_slice %601 {offsets = [0, 128], sizes = [8, 128], strides = [1, 1]} : vector<8x384xf32> to vector<8x128xf32>
    %617 = arith.addf %615, %616 : vector<8x128xf32>
    %cst_226 = arith.constant 5.000000e-01 : f32
    %618 = vector.broadcast %cst_226 : f32 to vector<8x128xf32>
    %619 = arith.mulf %618, %617 : vector<8x128xf32>
    %620 = math.tanh %619 : vector<8x128xf32>
    %cst_227 = arith.constant 5.000000e-01 : f32
    %621 = vector.broadcast %cst_227 : f32 to vector<8x128xf32>
    %622 = arith.mulf %621, %620 : vector<8x128xf32>
    %cst_228 = arith.constant 5.000000e-01 : f32
    %623 = vector.broadcast %cst_228 : f32 to vector<8x128xf32>
    %624 = arith.addf %622, %623 : vector<8x128xf32>
    %625 = vector.extract_strided_slice %604 {offsets = [0, 256], sizes = [8, 128], strides = [1, 1]} : vector<8x384xf32> to vector<8x128xf32>
    %626 = vector.extract_strided_slice %601 {offsets = [0, 256], sizes = [8, 128], strides = [1, 1]} : vector<8x384xf32> to vector<8x128xf32>
    %627 = vector.broadcast %358 : vector<1x128xf32> to vector<8x128xf32>
    %628 = arith.addf %626, %627 : vector<8x128xf32>
    %629 = arith.mulf %614, %628 : vector<8x128xf32>
    %630 = arith.addf %625, %629 : vector<8x128xf32>
    %631 = math.tanh %630 : vector<8x128xf32>
    %cst_229 = arith.constant 1.000000e+00 : f32
    %632 = vector.broadcast %cst_229 : f32 to vector<8x128xf32>
    %633 = arith.subf %632, %624 : vector<8x128xf32>
    %634 = arith.mulf %633, %631 : vector<8x128xf32>
    %635 = arith.mulf %624, %596 : vector<8x128xf32>
    %636 = arith.addf %634, %635 : vector<8x128xf32>
    %637 = arith.index_cast %c6_i32_219 : i32 to index
    %c0_230 = arith.constant 0 : index
    %c0_231 = arith.constant 0 : index
    %638 = vector.load %arg8[%637, %c0_230, %c0_231] : memref<8x8x128xf32, #tpu.memory_space<vmem>>, vector<1x8x128xf32>
    %639 = vector.shape_cast %638 : vector<1x8x128xf32> to vector<8x128xf32>
    %640 = vector.shape_cast %636 : vector<8x128xf32> to vector<1x8x128xf32>
    tpu.vector_store %arg8[%637, %c0_230, %c0_231], %640 {strides = array<i32>} : memref<8x8x128xf32, #tpu.memory_space<vmem>>, vector<1x8x128xf32>,
    %c7_i32_232 = arith.constant 7 : i32
    %cst_233 = arith.constant dense<0.000000e+00> : vector<8x384xf32>
    %641 = tpu.matmul %636, %356, %cst_233 {dimension_numbers = #tpu.dot_dimension_numbers<[1], [0], [0], [1], [0, 0, 1, 1], [], []>} : vector<8x128xf32>, vector<128x384xf32>, vector<8x384xf32> -> vector<8x384xf32>
    %642 = arith.index_cast %c7_i32_232 : i32 to index
    %c0_234 = arith.constant 0 : index
    %c0_235 = arith.constant 0 : index
    %643 = vector.load %arg11[%642, %c0_234, %c0_235] : memref<8x8x384xf32, #tpu.memory_space<vmem>>, vector<1x8x384xf32>
    %644 = vector.shape_cast %643 : vector<1x8x384xf32> to vector<8x384xf32>
    %645 = vector.extract_strided_slice %644 {offsets = [0, 0], sizes = [8, 128], strides = [1, 1]} : vector<8x384xf32> to vector<8x128xf32>
    %646 = vector.extract_strided_slice %641 {offsets = [0, 0], sizes = [8, 128], strides = [1, 1]} : vector<8x384xf32> to vector<8x128xf32>
    %647 = arith.addf %645, %646 : vector<8x128xf32>
    %cst_236 = arith.constant 5.000000e-01 : f32
    %648 = vector.broadcast %cst_236 : f32 to vector<8x128xf32>
    %649 = arith.mulf %648, %647 : vector<8x128xf32>
    %650 = math.tanh %649 : vector<8x128xf32>
    %cst_237 = arith.constant 5.000000e-01 : f32
    %651 = vector.broadcast %cst_237 : f32 to vector<8x128xf32>
    %652 = arith.mulf %651, %650 : vector<8x128xf32>
    %cst_238 = arith.constant 5.000000e-01 : f32
    %653 = vector.broadcast %cst_238 : f32 to vector<8x128xf32>
    %654 = arith.addf %652, %653 : vector<8x128xf32>
    %655 = vector.extract_strided_slice %644 {offsets = [0, 128], sizes = [8, 128], strides = [1, 1]} : vector<8x384xf32> to vector<8x128xf32>
    %656 = vector.extract_strided_slice %641 {offsets = [0, 128], sizes = [8, 128], strides = [1, 1]} : vector<8x384xf32> to vector<8x128xf32>
    %657 = arith.addf %655, %656 : vector<8x128xf32>
    %cst_239 = arith.constant 5.000000e-01 : f32
    %658 = vector.broadcast %cst_239 : f32 to vector<8x128xf32>
    %659 = arith.mulf %658, %657 : vector<8x128xf32>
    %660 = math.tanh %659 : vector<8x128xf32>
    %cst_240 = arith.constant 5.000000e-01 : f32
    %661 = vector.broadcast %cst_240 : f32 to vector<8x128xf32>
    %662 = arith.mulf %661, %660 : vector<8x128xf32>
    %cst_241 = arith.constant 5.000000e-01 : f32
    %663 = vector.broadcast %cst_241 : f32 to vector<8x128xf32>
    %664 = arith.addf %662, %663 : vector<8x128xf32>
    %665 = vector.extract_strided_slice %644 {offsets = [0, 256], sizes = [8, 128], strides = [1, 1]} : vector<8x384xf32> to vector<8x128xf32>
    %666 = vector.extract_strided_slice %641 {offsets = [0, 256], sizes = [8, 128], strides = [1, 1]} : vector<8x384xf32> to vector<8x128xf32>
    %667 = vector.broadcast %358 : vector<1x128xf32> to vector<8x128xf32>
    %668 = arith.addf %666, %667 : vector<8x128xf32>
    %669 = arith.mulf %654, %668 : vector<8x128xf32>
    %670 = arith.addf %665, %669 : vector<8x128xf32>
    %671 = math.tanh %670 : vector<8x128xf32>
    %cst_242 = arith.constant 1.000000e+00 : f32
    %672 = vector.broadcast %cst_242 : f32 to vector<8x128xf32>
    %673 = arith.subf %672, %664 : vector<8x128xf32>
    %674 = arith.mulf %673, %671 : vector<8x128xf32>
    %675 = arith.mulf %664, %636 : vector<8x128xf32>
    %676 = arith.addf %674, %675 : vector<8x128xf32>
    %677 = arith.index_cast %c7_i32_232 : i32 to index
    %c0_243 = arith.constant 0 : index
    %c0_244 = arith.constant 0 : index
    %678 = vector.load %arg8[%677, %c0_243, %c0_244] : memref<8x8x128xf32, #tpu.memory_space<vmem>>, vector<1x8x128xf32>
    %679 = vector.shape_cast %678 : vector<1x8x128xf32> to vector<8x128xf32>
    %680 = vector.shape_cast %676 : vector<8x128xf32> to vector<1x8x128xf32>
    tpu.vector_store %arg8[%677, %c0_243, %c0_244], %680 {strides = array<i32>} : memref<8x8x128xf32, #tpu.memory_space<vmem>>, vector<1x8x128xf32>,
    %c8_i32_245 = arith.constant 8 : i32
    %c1_246 = arith.constant 1 : index
    %c0_247 = arith.constant 0 : index
    %c0_248 = arith.constant 0 : index
    %681 = vector.load %arg9[%c1_246, %c0_247, %c0_248] : memref<2x8x128xf32, #tpu.memory_space<vmem>>, vector<1x8x128xf32>
    %682 = vector.shape_cast %681 : vector<1x8x128xf32> to vector<8x128xf32>
    %683 = vector.shape_cast %676 : vector<8x128xf32> to vector<1x8x128xf32>
    tpu.vector_store %arg9[%c1_246, %c0_247, %c0_248], %683 {strides = array<i32>} : memref<2x8x128xf32, #tpu.memory_space<vmem>>, vector<1x8x128xf32>,
    return
  }
  func.func @transform_0(%arg0: i32, %arg1: i32) -> (i32, i32, i32) {
    %c0_i32 = arith.constant 0 : i32
    %c0_i32_0 = arith.constant 0 : i32
    return %arg1, %arg0, %c0_i32 : i32, i32, i32
  }
  func.func @transform_1(%arg0: i32, %arg1: i32) -> (i32, i32) {
    %c0_i32 = arith.constant 0 : i32
    %c0_i32_0 = arith.constant 0 : i32
    %c0_i32_1 = arith.constant 0 : i32
    return %c0_i32, %c0_i32_0 : i32, i32
  }
  func.func @transform_2(%arg0: i32, %arg1: i32) -> (i32, i32, i32) {
    %c0_i32 = arith.constant 0 : i32
    %c0_i32_0 = arith.constant 0 : i32
    %c0_i32_1 = arith.constant 0 : i32
    %c0_i32_2 = arith.constant 0 : i32
    return %c0_i32, %c0_i32_0, %c0_i32_1 : i32, i32, i32
  }
  func.func @transform_3(%arg0: i32, %arg1: i32) -> (i32, i32, i32) {
    %c0_i32 = arith.constant 0 : i32
    %c0_i32_0 = arith.constant 0 : i32
    %c0_i32_1 = arith.constant 0 : i32
    %c0_i32_2 = arith.constant 0 : i32
    return %c0_i32, %c0_i32_0, %c0_i32_1 : i32, i32, i32
  }
  func.func @transform_4(%arg0: i32, %arg1: i32) -> (i32, i32, i32) {
    %c0_i32 = arith.constant 0 : i32
    %c0_i32_0 = arith.constant 0 : i32
    %c0_i32_1 = arith.constant 0 : i32
    %c0_i32_2 = arith.constant 0 : i32
    return %c0_i32, %c0_i32_0, %c0_i32_1 : i32, i32, i32
  }
  func.func @transform_5(%arg0: i32, %arg1: i32) -> (i32, i32, i32) {
    %c0_i32 = arith.constant 0 : i32
    %c0_i32_0 = arith.constant 0 : i32
    %c0_i32_1 = arith.constant 0 : i32
    %c0_i32_2 = arith.constant 0 : i32
    return %c0_i32, %c0_i32_0, %c0_i32_1 : i32, i32, i32
  }
  func.func @transform_6(%arg0: i32, %arg1: i32) -> (i32, i32, i32) {
    %c0_i32 = arith.constant 0 : i32
    %c0_i32_0 = arith.constant 0 : i32
    return %arg1, %arg0, %c0_i32 : i32, i32, i32
  }
}

</mosaic_0001>

<llo_original>
// kernel: tpu_custom_call.1
$region0: #{tpu_custom_call.1}
  #allocation0 [shape = 'u32[]', space=smem, size = 0x4, offset = 0x4, fixed_abs, tag = 'smem constant byte address 0x4 - core index']
  #allocation1 [shape = 'u32[144,128]{1,0:T(1,128)}', space=vmem, size = 0x12000, scoped, tag = 'internal scratch']
  #allocation2 [shape = 'f32[2,8,128]{2,1,0:T(8,128)}', space=vmem, size = 0x2000, scoped, tag = 'scratch operand']
  #allocation3 [shape = 'f32[8,8,128]{2,1,0:T(8,128)}', space=vmem, size = 0x8000, scoped, tag = 'scratch operand']
  #allocation4 [shape = 'f32[8,8,384]{2,1,0:T(8,128)}', space=vmem, size = 0x18000, scoped, tag = 'scratch operand']
  %s0 = inlined_call_operand.hbm [shape: f32[8,8,8], index: 0, kind: input, shape index: {}]
  %s1 = inlined_call_operand.hbm [shape: f32[8,384], index: 1, kind: input, shape index: {}]
  %s2 = inlined_call_operand.hbm [shape: f32[1,128,384], index: 2, kind: input, shape index: {}]
  %s3 = inlined_call_operand.hbm [shape: f32[2,128,384], index: 3, kind: input, shape index: {}]
  %s4 = inlined_call_operand.vmem [shape: f32[2,1,384], index: 4, kind: input, shape index: {}]
  %s5 = inlined_call_operand.vmem [shape: f32[2,1,128], index: 5, kind: input, shape index: {}]
  %s6 = inlined_call_operand.hbm [shape: f32[8,8,128], index: 6, kind: output, shape index: {}]
  %s7 = sld [smem:[#allocation0]]
  $region54: #{tpu_custom_call.1} parent=0
    _
  %s9 = ssub.s32 1, %s7
  %s10 = scalar_select 0, %s9, %s7
  $region1: #{tpu_custom_call.1} parent=0
    #allocation5 [shape = 'u8[32768]{0}', space=vmem, size = 0x8000, scoped, tag = 'input window, operand 0, single buffered']
    #allocation6 [shape = 's32[1]{0}', space=sflag, size = 0x4, scoped, tag = 'scoped memory for tpu_custom_call.1']
    #allocation7 [shape = 's32[1]{0}', space=sflag, size = 0x4, scoped, tag = 'scoped memory for tpu_custom_call.1']
    #allocation8 [shape = 'u8[12288]{0}', space=vmem, size = 0x3000, scoped, tag = 'input window, operand 1, single buffered']
    #allocation9 [shape = 's32[1]{0}', space=sflag, size = 0x4, scoped, tag = 'scoped memory for tpu_custom_call.1']
    #allocation10 [shape = 'u8[196608]{0}', space=vmem, size = 0x30000, scoped, tag = 'input window, operand 2, single buffered']
    #allocation11 [shape = 'u8[393216]{0}', space=vmem, size = 0x60000, scoped, tag = 'input window, operand 3, single buffered']
    #allocation12 [shape = 's32[1]{0}', space=sflag, size = 0x4, scoped, tag = 'scoped memory for tpu_custom_call.1']
    #allocation13 [shape = 'u8[32768]{0}', space=vmem, size = 0x8000, scoped, tag = 'output window, operand 0, single buffered']
    %11 = vsyncpa [#allocation6], 0
    %12 = vsyncpa [#allocation9], 0
    %13 = vsyncpa [#allocation12], 0
    %14 = vsyncpa [#allocation7], 0
    // Predicated region
    $region2: #{tpu_custom_call.1} parent=1 // pred_check
      _
    $region3: #{tpu_custom_call.1} parent=1 // pred_check_branch
      %16 = sbr.rel (0) target = $region5
    $region4: #{tpu_custom_call.1} parent=1 // pred_region
      %s18 = ssub.s32 1024, 1024
      %19 = vsyncadd [#allocation6], %s18
      %s20 = sshll.u32 [#allocation5], 4
      %s21 = int_to_ptr.vmem [resolvable:$true] %s20
      %26 = dma.hbm_to_vmem [thread:$0]  %s0, 1024, %s21, [#allocation6], 128, 128, 8
    $region5: #{tpu_custom_call.1} parent=1 // pred_fallthru
      _
    // Predicated region
    $region6: #{tpu_custom_call.1} parent=1 // pred_check
      _
    $region7: #{tpu_custom_call.1} parent=1 // pred_check_branch
      %28 = sbr.rel (0) target = $region9
    $region8: #{tpu_custom_call.1} parent=1 // pred_region
      %s30 = ssub.s32 384, 384
      %31 = vsyncadd [#allocation9], %s30
      %s33 = sshll.u32 [#allocation8], 4
      %s34 = int_to_ptr.vmem [resolvable:$true] %s33
      %36 = dma.hbm_to_vmem [thread:$0]  %s1, 384, %s34, [#allocation9]
    $region9: #{tpu_custom_call.1} parent=1 // pred_fallthru
      _
    // Predicated region
    $region10: #{tpu_custom_call.1} parent=1 // pred_check
      _
    $region11: #{tpu_custom_call.1} parent=1 // pred_check_branch
      %38 = sbr.rel (0) target = $region13
    $region12: #{tpu_custom_call.1} parent=1 // pred_region
      %s40 = ssub.s32 6144, 6144
      %41 = vsyncadd [#allocation9], %s40
      %s42 = sshll.u32 [#allocation10], 4
      %s43 = int_to_ptr.vmem [resolvable:$true] %s42
      %48 = dma.hbm_to_vmem [thread:$0]  %s2, 6144, %s43, [#allocation9], 384, 384, 24
    $region13: #{tpu_custom_call.1} parent=1 // pred_fallthru
      _
    // Predicated region
    $region14: #{tpu_custom_call.1} parent=1 // pred_check
      _
    $region15: #{tpu_custom_call.1} parent=1 // pred_check_branch
      %50 = sbr.rel (0) target = $region17
    $region16: #{tpu_custom_call.1} parent=1 // pred_region
      %s52 = ssub.s32 12288, 12288
      %53 = vsyncadd [#allocation12], %s52
      %s54 = sshll.u32 [#allocation11], 4
      %s55 = int_to_ptr.vmem [resolvable:$true] %s54
      %60 = dma.hbm_to_vmem [thread:$0]  %s3, 12288, %s55, [#allocation12], 384, 384, 24
    $region17: #{tpu_custom_call.1} parent=1 // pred_fallthru
      _
    // Predicated region
    $region18: #{tpu_custom_call.1} parent=1 // pred_check
      _
    $region19: #{tpu_custom_call.1} parent=1 // pred_check_branch
      %62 = sbr.rel (0) target = $region21
    $region20: #{tpu_custom_call.1} parent=1 // pred_region
      _
    $region21: #{tpu_custom_call.1} parent=1 // pred_fallthru
      _
    // Predicated region
    $region22: #{tpu_custom_call.1} parent=1 // pred_check
      _
    $region23: #{tpu_custom_call.1} parent=1 // pred_check_branch
      %64 = sbr.rel (0) target = $region25
    $region24: #{tpu_custom_call.1} parent=1 // pred_region
      _
    $region25: #{tpu_custom_call.1} parent=1 // pred_fallthru
      _
    // Predicated region
    $region26: #{tpu_custom_call.1} parent=1 // pred_check
      _
    $region27: #{tpu_custom_call.1} parent=1 // pred_check_branch
      %66 = sbr.rel (0) target = $region29
    $region28: #{tpu_custom_call.1} parent=1 // pred_region
      %67 = dma.done [#allocation6], 1024
    $region29: #{tpu_custom_call.1} parent=1 // pred_fallthru
      _
    // Predicated region
    $region30: #{tpu_custom_call.1} parent=1 // pred_check
      _
    $region31: #{tpu_custom_call.1} parent=1 // pred_check_branch
      %69 = sbr.rel (0) target = $region33
    $region32: #{tpu_custom_call.1} parent=1 // pred_region
      %70 = dma.done [#allocation9], 384
    $region33: #{tpu_custom_call.1} parent=1 // pred_fallthru
      _
    // Predicated region
    $region34: #{tpu_custom_call.1} parent=1 // pred_check
      _
    $region35: #{tpu_custom_call.1} parent=1 // pred_check_branch
      %72 = sbr.rel (0) target = $region37
    $region36: #{tpu_custom_call.1} parent=1 // pred_region
      %73 = dma.done [#allocation9], 6144
    $region37: #{tpu_custom_call.1} parent=1 // pred_fallthru
      _
    // Predicated region
    $region38: #{tpu_custom_call.1} parent=1 // pred_check
      _
    $region39: #{tpu_custom_call.1} parent=1 // pred_check_branch
      %75 = sbr.rel (0) target = $region41
    $region40: #{tpu_custom_call.1} parent=1 // pred_region
      %76 = dma.done [#allocation12], 12288
    $region41: #{tpu_custom_call.1} parent=1 // pred_fallthru
      _
    %p77 = scmp.eq.s32.totalorder 0, 0
    // Predicated region
    $region42: #{tpu_custom_call.1} parent=1 // pred_check
      %p78 = pneg %p77
    $region43: #{tpu_custom_call.1} parent=1 // pred_check_branch
      %80 = sbr.rel (%p78) target = $region45
    $region44: #{tpu_custom_call.1} parent=1 // pred_region
      %81 = vst [vmem:[#allocation2] sm:$0xff] 0.0
      %82 = vst [vmem:[#allocation2 + $0x8] sm:$0xff] 0.0
    $region45: #{tpu_custom_call.1} parent=1 // pred_fallthru
      _
    %v83 = vld [vmem:[#allocation5] sm:$0xff]
    %v84 = vld [vmem:[#allocation5 + $0x8] sm:$0xff]
    %v85 = vld [vmem:[#allocation5 + $0x10] sm:$0xff]
    %v86 = vld [vmem:[#allocation5 + $0x18] sm:$0xff]
    %v87 = vld [vmem:[#allocation5 + $0x20] sm:$0xff]
    %v88 = vld [vmem:[#allocation5 + $0x28] sm:$0xff]
    %v89 = vld [vmem:[#allocation5 + $0x30] sm:$0xff]
    %v90 = vld [vmem:[#allocation5 + $0x38] sm:$0xff]
    %v91 = vld [vmem:[#allocation8] sm:$0xff]
    %v92 = vld [vmem:[#allocation8 + $0x8] sm:$0xff]
    %v93 = vld [vmem:[#allocation8 + $0x10] sm:$0xff]
    %vm94 = vcmask 64512
    %v96 = vsel %vm94, %v83, 0
    %v99 = vsel %vm94, %v84, 0
    %v102 = vsel %vm94, %v85, 0
    %v105 = vsel %vm94, %v86, 0
    %v108 = vsel %vm94, %v87, 0
    %v111 = vsel %vm94, %v88, 0
    %v114 = vsel %vm94, %v89, 0
    %v117 = vsel %vm94, %v90, 0
    %119 = vmatprep.subr.mxu0 %v92
    %120 = vmatpush1.msra.mxu0 %v91
    %121 = vmatprep.subr.mxu0 0.0
    %122 = vmatpush1.msra.mxu0 0.0
    %123 = vmatprep.subr.mxu0 0.0
    %124 = vmatpush1.msra.mxu0 0.0
    %125 = vmatprep.subr.mxu0 0.0
    %126 = vmatpush1.msra.mxu0 0.0
    %127 = vmatprep.subr.mxu0 0.0
    %128 = vmatpush1.msra.mxu0 0.0
    %129 = vmatprep.subr.mxu0 0.0
    %130 = vmatpush1.msra.mxu0 0.0
    %131 = vmatprep.subr.mxu0 0.0
    %132 = vmatpush1.msra.mxu0 0.0
    %133 = vmatprep.subr.mxu0 0.0
    %134 = vmatpush1.msra.mxu0 0.0
    %135 = vmatprep.subr.mxu0 0.0
    %136 = vmatpush1.msra.mxu0 0.0
    %137 = vmatprep.subr.mxu0 0.0
    %138 = vmatpush1.msra.mxu0 0.0
    %139 = vmatprep.subr.mxu0 0.0
    %140 = vmatpush1.msra.mxu0 0.0
    %141 = vmatprep.subr.mxu0 0.0
    %142 = vmatpush1.msra.mxu0 0.0
    %143 = vmatprep.subr.mxu0 0.0
    %144 = vmatpush1.msra.mxu0 0.0
    %145 = vmatprep.subr.mxu0 0.0
    %146 = vmatpush1.msra.mxu0 0.0
    %147 = vmatprep.subr.mxu0 0.0
    %148 = vmatpush1.msra.mxu0 0.0
    %149 = vmatprep.subr.mxu0 0.0
    %150 = vmatpush1.msra.mxu0 0.0
    %151 = vmatprep.subr.mxu0 0.0
    %152 = vmatpush1.msra.mxu0 0.0
    %153 = vmatprep.subr.mxu0 0.0
    %154 = vmatpush1.msra.mxu0 0.0
    %155 = vmatprep.subr.mxu0 0.0
    %156 = vmatpush1.msra.mxu0 0.0
    %157 = vmatprep.subr.mxu0 0.0
    %158 = vmatpush1.msra.mxu0 0.0
    %159 = vmatprep.subr.mxu0 0.0
    %160 = vmatpush1.msra.mxu0 0.0
    %161 = vmatprep.subr.mxu0 0.0
    %162 = vmatpush1.msra.mxu0 0.0
    %163 = vmatprep.subr.mxu0 0.0
    %164 = vmatpush1.msra.mxu0 0.0
    %165 = vmatprep.subr.mxu0 0.0
    %166 = vmatpush1.msra.mxu0 0.0
    %167 = vmatprep.subr.mxu0 0.0
    %168 = vmatpush1.msra.mxu0 0.0
    %169 = vmatprep.subr.mxu0 0.0
    %170 = vmatpush1.msra.mxu0 0.0
    %171 = vmatprep.subr.mxu0 0.0
    %172 = vmatpush1.msra.mxu0 0.0
    %173 = vmatprep.subr.mxu0 0.0
    %174 = vmatpush1.msra.mxu0 0.0
    %175 = vmatprep.subr.mxu0 0.0
    %176 = vmatpush1.msra.mxu0 0.0
    %177 = vmatprep.subr.mxu0 0.0
    %178 = vmatpush1.msra.mxu0 0.0
    %179 = vmatprep.subr.mxu0 0.0
    %180 = vmatpush1.msra.mxu0 0.0
    %181 = vmatprep.subr.mxu0 0.0
    %182 = vmatpush1.msra.mxu0 0.0
    %183 = vmatprep.mubr.f32.mxu0 0.0
    %184 = vmatmul.mubr.f32.gmra.mrb[0].mxu0 %v96
    %v185 = vpop.f32.mrb[0].mxu0
    %v186 = vadd.f32 0.0, %v185
    %v187 = vpop.f32.mrb[0].mxu0
    %v188 = vadd.f32 0.0, %v187
    %189 = vmatprep.mubr.f32.mxu0 0.0
    %190 = vmatmul.mubr.f32.gmra.mrb[0].mxu0 %v99
    %v191 = vpop.f32.mrb[0].mxu0
    %v192 = vadd.f32 0.0, %v191
    %v193 = vpop.f32.mrb[0].mxu0
    %v194 = vadd.f32 0.0, %v193
    %195 = vmatprep.mubr.f32.mxu0 0.0
    %196 = vmatmul.mubr.f32.gmra.mrb[0].mxu0 %v102
    %v197 = vpop.f32.mrb[0].mxu0
    %v198 = vadd.f32 0.0, %v197
    %v199 = vpop.f32.mrb[0].mxu0
    %v200 = vadd.f32 0.0, %v199
    %201 = vmatprep.mubr.f32.mxu0 0.0
    %202 = vmatmul.mubr.f32.gmra.mrb[0].mxu0 %v105
    %v203 = vpop.f32.mrb[0].mxu0
    %v204 = vadd.f32 0.0, %v203
    %v205 = vpop.f32.mrb[0].mxu0
    %v206 = vadd.f32 0.0, %v205
    %207 = vmatprep.mubr.f32.mxu0 0.0
    %208 = vmatmul.mubr.f32.gmra.mrb[0].mxu0 %v108
    %v209 = vpop.f32.mrb[0].mxu0
    %v210 = vadd.f32 0.0, %v209
    %v211 = vpop.f32.mrb[0].mxu0
    %v212 = vadd.f32 0.0, %v211
    %213 = vmatprep.mubr.f32.mxu0 0.0
    %214 = vmatmul.mubr.f32.gmra.mrb[0].mxu0 %v111
    %v215 = vpop.f32.mrb[0].mxu0
    %v216 = vadd.f32 0.0, %v215
    %v217 = vpop.f32.mrb[0].mxu0
    %v218 = vadd.f32 0.0, %v217
    %219 = vmatprep.mubr.f32.mxu0 0.0
    %220 = vmatmul.mubr.f32.gmra.mrb[0].mxu0 %v114
    %v221 = vpop.f32.mrb[0].mxu0
    %v222 = vadd.f32 0.0, %v221
    %v223 = vpop.f32.mrb[0].mxu0
    %v224 = vadd.f32 0.0, %v223
    %225 = vmatprep.mubr.f32.mxu0 0.0
    %226 = vmatmul.mubr.f32.gmra.mrb[0].mxu0 %v117
    %v227 = vpop.f32.mrb[0].mxu0
    %v228 = vadd.f32 0.0, %v227
    %v229 = vpop.f32.mrb[0].mxu0
    %v230 = vadd.f32 0.0, %v229
    %231 = vdwg.mxu0
    %232 = vmatprep.subr.mxu0 0.0
    %233 = vmatpush1.msra.mxu0 %v93
    %234 = vmatprep.subr.mxu0 0.0
    %235 = vmatpush1.msra.mxu0 0.0
    %236 = vmatprep.subr.mxu0 0.0
    %237 = vmatpush1.msra.mxu0 0.0
    %238 = vmatprep.subr.mxu0 0.0
    %239 = vmatpush1.msra.mxu0 0.0
    %240 = vmatprep.subr.mxu0 0.0
    %241 = vmatpush1.msra.mxu0 0.0
    %242 = vmatprep.subr.mxu0 0.0
    %243 = vmatpush1.msra.mxu0 0.0
    %244 = vmatprep.subr.mxu0 0.0
    %245 = vmatpush1.msra.mxu0 0.0
    %246 = vmatprep.subr.mxu0 0.0
    %247 = vmatpush1.msra.mxu0 0.0
    %248 = vmatprep.subr.mxu0 0.0
    %249 = vmatpush1.msra.mxu0 0.0
    %250 = vmatprep.subr.mxu0 0.0
    %251 = vmatpush1.msra.mxu0 0.0
    %252 = vmatprep.subr.mxu0 0.0
    %253 = vmatpush1.msra.mxu0 0.0
    %254 = vmatprep.subr.mxu0 0.0
    %255 = vmatpush1.msra.mxu0 0.0
    %256 = vmatprep.subr.mxu0 0.0
    %257 = vmatpush1.msra.mxu0 0.0
    %258 = vmatprep.subr.mxu0 0.0
    %259 = vmatpush1.msra.mxu0 0.0
    %260 = vmatprep.subr.mxu0 0.0
    %261 = vmatpush1.msra.mxu0 0.0
    %262 = vmatprep.subr.mxu0 0.0
    %263 = vmatpush1.msra.mxu0 0.0
    %264 = vmatprep.subr.mxu0 0.0
    %265 = vmatpush1.msra.mxu0 0.0
    %266 = vmatprep.subr.mxu0 0.0
    %267 = vmatpush1.msra.mxu0 0.0
    %268 = vmatprep.subr.mxu0 0.0
    %269 = vmatpush1.msra.mxu0 0.0
    %270 = vmatprep.subr.mxu0 0.0
    %271 = vmatpush1.msra.mxu0 0.0
    %272 = vmatprep.subr.mxu0 0.0
    %273 = vmatpush1.msra.mxu0 0.0
    %274 = vmatprep.subr.mxu0 0.0
    %275 = vmatpush1.msra.mxu0 0.0
    %276 = vmatprep.subr.mxu0 0.0
    %277 = vmatpush1.msra.mxu0 0.0
    %278 = vmatprep.subr.mxu0 0.0
    %279 = vmatpush1.msra.mxu0 0.0
    %280 = vmatprep.subr.mxu0 0.0
    %281 = vmatpush1.msra.mxu0 0.0
    %282 = vmatprep.subr.mxu0 0.0
    %283 = vmatpush1.msra.mxu0 0.0
    %284 = vmatprep.subr.mxu0 0.0
    %285 = vmatpush1.msra.mxu0 0.0
    %286 = vmatprep.subr.mxu0 0.0
    %287 = vmatpush1.msra.mxu0 0.0
    %288 = vmatprep.subr.mxu0 0.0
    %289 = vmatpush1.msra.mxu0 0.0
    %290 = vmatprep.subr.mxu0 0.0
    %291 = vmatpush1.msra.mxu0 0.0
    %292 = vmatprep.subr.mxu0 0.0
    %293 = vmatpush1.msra.mxu0 0.0
    %294 = vmatprep.subr.mxu0 0.0
    %295 = vmatpush1.msra.mxu0 0.0
    %296 = vmatprep.mubr.f32.mxu0 0.0
    %297 = vmatmul.mubr.f32.gmra.mrb[0].mxu0 %v96
    %v298 = vpop.f32.mrb[0].mxu0
    %v299 = vadd.f32 0.0, %v298
    %v300 = vpop.f32.mrb[0].mxu0
    %301 = vmatprep.mubr.f32.mxu0 0.0
    %302 = vmatmul.mubr.f32.gmra.mrb[0].mxu0 %v99
    %v303 = vpop.f32.mrb[0].mxu0
    %v304 = vadd.f32 0.0, %v303
    %v305 = vpop.f32.mrb[0].mxu0
    %306 = vmatprep.mubr.f32.mxu0 0.0
    %307 = vmatmul.mubr.f32.gmra.mrb[0].mxu0 %v102
    %v308 = vpop.f32.mrb[0].mxu0
    %v309 = vadd.f32 0.0, %v308
    %v310 = vpop.f32.mrb[0].mxu0
    %311 = vmatprep.mubr.f32.mxu0 0.0
    %312 = vmatmul.mubr.f32.gmra.mrb[0].mxu0 %v105
    %v313 = vpop.f32.mrb[0].mxu0
    %v314 = vadd.f32 0.0, %v313
    %v315 = vpop.f32.mrb[0].mxu0
    %316 = vmatprep.mubr.f32.mxu0 0.0
    %317 = vmatmul.mubr.f32.gmra.mrb[0].mxu0 %v108
    %v318 = vpop.f32.mrb[0].mxu0
    %v319 = vadd.f32 0.0, %v318
    %v320 = vpop.f32.mrb[0].mxu0
    %321 = vmatprep.mubr.f32.mxu0 0.0
    %322 = vmatmul.mubr.f32.gmra.mrb[0].mxu0 %v111
    %v323 = vpop.f32.mrb[0].mxu0
    %v324 = vadd.f32 0.0, %v323
    %v325 = vpop.f32.mrb[0].mxu0
    %326 = vmatprep.mubr.f32.mxu0 0.0
    %327 = vmatmul.mubr.f32.gmra.mrb[0].mxu0 %v114
    %v328 = vpop.f32.mrb[0].mxu0
    %v329 = vadd.f32 0.0, %v328
    %v330 = vpop.f32.mrb[0].mxu0
    %331 = vmatprep.mubr.f32.mxu0 0.0
    %332 = vmatmul.mubr.f32.gmra.mrb[0].mxu0 %v117
    %v333 = vpop.f32.mrb[0].mxu0
    %v334 = vadd.f32 0.0, %v333
    %v335 = vpop.f32.mrb[0].mxu0
    %336 = vdwg.mxu0
    %v337 = vld [vmem:[%s4] sm:$0x7]
    %v339 = vlaneseq
    %v340 = vshrl.u32 %v339, 7
    %v341 = vsub.s32 0, %v340
    %v342 = vrot.slane %v337, %v341
    %v343 = vlaneseq
    %v344 = vshrl.u32 %v343, 7
    %v345 = vsub.s32 1, %v344
    %v346 = vrot.slane %v337, %v345
    %v347 = vlaneseq
    %v348 = vshrl.u32 %v347, 7
    %v349 = vsub.s32 2, %v348
    %v350 = vrot.slane %v337, %v349
    %v354 = vadd.f32 %v186, %v342
    %v355 = vadd.f32 %v188, %v346
    %v356 = vadd.f32 %v299, %v350
    %v357 = vadd.f32 %v192, %v342
    %v358 = vadd.f32 %v194, %v346
    %v359 = vadd.f32 %v304, %v350
    %v360 = vadd.f32 %v198, %v342
    %v361 = vadd.f32 %v200, %v346
    %v362 = vadd.f32 %v309, %v350
    %v363 = vadd.f32 %v204, %v342
    %v364 = vadd.f32 %v206, %v346
    %v365 = vadd.f32 %v314, %v350
    %v366 = vadd.f32 %v210, %v342
    %v367 = vadd.f32 %v212, %v346
    %v368 = vadd.f32 %v319, %v350
    %v369 = vadd.f32 %v216, %v342
    %v370 = vadd.f32 %v218, %v346
    %v371 = vadd.f32 %v324, %v350
    %v372 = vadd.f32 %v222, %v342
    %v373 = vadd.f32 %v224, %v346
    %v374 = vadd.f32 %v329, %v350
    %v375 = vadd.f32 %v228, %v342
    %v376 = vadd.f32 %v230, %v346
    %v377 = vadd.f32 %v334, %v350
    %378 = vst [vmem:[#allocation4] sm:$0xff] %v354
    %379 = vst [vmem:[#allocation4 + $0x8] sm:$0xff] %v355
    %380 = vst [vmem:[#allocation4 + $0x10] sm:$0xff] %v356
    %381 = vst [vmem:[#allocation4 + $0x18] sm:$0xff] %v357
    %382 = vst [vmem:[#allocation4 + $0x20] sm:$0xff] %v358
    %383 = vst [vmem:[#allocation4 + $0x28] sm:$0xff] %v359
    %384 = vst [vmem:[#allocation4 + $0x30] sm:$0xff] %v360
    %385 = vst [vmem:[#allocation4 + $0x38] sm:$0xff] %v361
    %386 = vst [vmem:[#allocation4 + $0x40] sm:$0xff] %v362
    %387 = vst [vmem:[#allocation4 + $0x48] sm:$0xff] %v363
    %388 = vst [vmem:[#allocation4 + $0x50] sm:$0xff] %v364
    %389 = vst [vmem:[#allocation4 + $0x58] sm:$0xff] %v365
    %390 = vst [vmem:[#allocation4 + $0x60] sm:$0xff] %v366
    %391 = vst [vmem:[#allocation4 + $0x68] sm:$0xff] %v367
    %392 = vst [vmem:[#allocation4 + $0x70] sm:$0xff] %v368
    %393 = vst [vmem:[#allocation4 + $0x78] sm:$0xff] %v369
    %394 = vst [vmem:[#allocation4 + $0x80] sm:$0xff] %v370
    %395 = vst [vmem:[#allocation4 + $0x88] sm:$0xff] %v371
    %396 = vst [vmem:[#allocation4 + $0x90] sm:$0xff] %v372
    %397 = vst [vmem:[#allocation4 + $0x98] sm:$0xff] %v373
    %398 = vst [vmem:[#allocation4 + $0xa0] sm:$0xff] %v374
    %399 = vst [vmem:[#allocation4 + $0xa8] sm:$0xff] %v375
    %400 = vst [vmem:[#allocation4 + $0xb0] sm:$0xff] %v376
    %401 = vst [vmem:[#allocation4 + $0xb8] sm:$0xff] %v377
    %v402 = vld [vmem:[#allocation11] sm:$0xff]
    %v403 = vld [vmem:[#allocation11 + $0x8] sm:$0xff]
    %v404 = vld [vmem:[#allocation11 + $0x10] sm:$0xff]
    %v405 = vld [vmem:[#allocation11 + $0x18] sm:$0xff]
    %v406 = vld [vmem:[#allocation11 + $0x20] sm:$0xff]
    %v407 = vld [vmem:[#allocation11 + $0x28] sm:$0xff]
    %v408 = vld [vmem:[#allocation11 + $0x30] sm:$0xff]
    %v409 = vld [vmem:[#allocation11 + $0x38] sm:$0xff]
    %v410 = vld [vmem:[#allocation11 + $0x40] sm:$0xff]
    %v411 = vld [vmem:[#allocation11 + $0x48] sm:$0xff]
    %v412 = vld [vmem:[#allocation11 + $0x50] sm:$0xff]
    %v413 = vld [vmem:[#allocation11 + $0x58] sm:$0xff]
    %v414 = vld [vmem:[#allocation11 + $0x60] sm:$0xff]
    %v415 = vld [vmem:[#allocation11 + $0x68] sm:$0xff]
    %v416 = vld [vmem:[#allocation11 + $0x70] sm:$0xff]
    %v417 = vld [vmem:[#allocation11 + $0x78] sm:$0xff]
    %v418 = vld [vmem:[#allocation11 + $0x80] sm:$0xff]
    %v419 = vld [vmem:[#allocation11 + $0x88] sm:$0xff]
    %v420 = vld [vmem:[#allocation11 + $0x90] sm:$0xff]
    %v421 = vld [vmem:[#allocation11 + $0x98] sm:$0xff]
    %v422 = vld [vmem:[#allocation11 + $0xa0] sm:$0xff]
    %v423 = vld [vmem:[#allocation11 + $0xa8] sm:$0xff]
    %v424 = vld [vmem:[#allocation11 + $0xb0] sm:$0xff]
    %v425 = vld [vmem:[#allocation11 + $0xb8] sm:$0xff]
    %v426 = vld [vmem:[#allocation11 + $0xc0] sm:$0xff]
    %v427 = vld [vmem:[#allocation11 + $0xc8] sm:$0xff]
    %v428 = vld [vmem:[#allocation11 + $0xd0] sm:$0xff]
    %v429 = vld [vmem:[#allocation11 + $0xd8] sm:$0xff]
    %v430 = vld [vmem:[#allocation11 + $0xe0] sm:$0xff]
    %v431 = vld [vmem:[#allocation11 + $0xe8] sm:$0xff]
    %v432 = vld [vmem:[#allocation11 + $0xf0] sm:$0xff]
    %v433 = vld [vmem:[#allocation11 + $0xf8] sm:$0xff]
    %v434 = vld [vmem:[#allocation11 + $0x100] sm:$0xff]
    %v435 = vld [vmem:[#allocation11 + $0x108] sm:$0xff]
    %v436 = vld [vmem:[#allocation11 + $0x110] sm:$0xff]
    %v437 = vld [vmem:[#allocation11 + $0x118] sm:$0xff]
    %v438 = vld [vmem:[#allocation11 + $0x120] sm:$0xff]
    %v439 = vld [vmem:[#allocation11 + $0x128] sm:$0xff]
    %v440 = vld [vmem:[#allocation11 + $0x130] sm:$0xff]
    %v441 = vld [vmem:[#allocation11 + $0x138] sm:$0xff]
    %v442 = vld [vmem:[#allocation11 + $0x140] sm:$0xff]
    %v443 = vld [vmem:[#allocation11 + $0x148] sm:$0xff]
    %v444 = vld [vmem:[#allocation11 + $0x150] sm:$0xff]
    %v445 = vld [vmem:[#allocation11 + $0x158] sm:$0xff]
    %v446 = vld [vmem:[#allocation11 + $0x160] sm:$0xff]
    %v447 = vld [vmem:[#allocation11 + $0x168] sm:$0xff]
    %v448 = vld [vmem:[#allocation11 + $0x170] sm:$0xff]
    %v449 = vld [vmem:[#allocation11 + $0x178] sm:$0xff]
    %v450 = vld [vmem:[%s5] sm:$0x1]
    %v451 = vld [vmem:[#allocation2] sm:$0xff]
    %452 = vmatprep.subr.mxu0 %v403
    %453 = vmatpush1.msra.mxu0 %v402
    %454 = vmatprep.subr.mxu0 %v406
    %455 = vmatpush1.msra.mxu0 %v405
    %456 = vmatprep.subr.mxu0 %v409
    %457 = vmatpush1.msra.mxu0 %v408
    %458 = vmatprep.subr.mxu0 %v412
    %459 = vmatpush1.msra.mxu0 %v411
    %460 = vmatprep.subr.mxu0 %v415
    %461 = vmatpush1.msra.mxu0 %v414
    %462 = vmatprep.subr.mxu0 %v418
    %463 = vmatpush1.msra.mxu0 %v417
    %464 = vmatprep.subr.mxu0 %v421
    %465 = vmatpush1.msra.mxu0 %v420
    %466 = vmatprep.subr.mxu0 %v424
    %467 = vmatpush1.msra.mxu0 %v423
    %468 = vmatprep.subr.mxu0 %v427
    %469 = vmatpush1.msra.mxu0 %v426
    %470 = vmatprep.subr.mxu0 %v430
    %471 = vmatpush1.msra.mxu0 %v429
    %472 = vmatprep.subr.mxu0 %v433
    %473 = vmatpush1.msra.mxu0 %v432
    %474 = vmatprep.subr.mxu0 %v436
    %475 = vmatpush1.msra.mxu0 %v435
    %476 = vmatprep.subr.mxu0 %v439
    %477 = vmatpush1.msra.mxu0 %v438
    %478 = vmatprep.subr.mxu0 %v442
    %479 = vmatpush1.msra.mxu0 %v441
    %480 = vmatprep.subr.mxu0 %v445
    %481 = vmatpush1.msra.mxu0 %v444
    %482 = vmatprep.subr.mxu0 %v448
    %483 = vmatpush1.msra.mxu0 %v447
    %484 = vmatprep.subr.mxu0 0.0
    %485 = vmatpush1.msra.mxu0 0.0
    %486 = vmatprep.subr.mxu0 0.0
    %487 = vmatpush1.msra.mxu0 0.0
    %488 = vmatprep.subr.mxu0 0.0
    %489 = vmatpush1.msra.mxu0 0.0
    %490 = vmatprep.subr.mxu0 0.0
    %491 = vmatpush1.msra.mxu0 0.0
    %492 = vmatprep.subr.mxu0 0.0
    %493 = vmatpush1.msra.mxu0 0.0
    %494 = vmatprep.subr.mxu0 0.0
    %495 = vmatpush1.msra.mxu0 0.0
    %496 = vmatprep.subr.mxu0 0.0
    %497 = vmatpush1.msra.mxu0 0.0
    %498 = vmatprep.subr.mxu0 0.0
    %499 = vmatpush1.msra.mxu0 0.0
    %500 = vmatprep.subr.mxu0 0.0
    %501 = vmatpush1.msra.mxu0 0.0
    %502 = vmatprep.subr.mxu0 0.0
    %503 = vmatpush1.msra.mxu0 0.0
    %504 = vmatprep.subr.mxu0 0.0
    %505 = vmatpush1.msra.mxu0 0.0
    %506 = vmatprep.subr.mxu0 0.0
    %507 = vmatpush1.msra.mxu0 0.0
    %508 = vmatprep.subr.mxu0 0.0
    %509 = vmatpush1.msra.mxu0 0.0
    %510 = vmatprep.subr.mxu0 0.0
    %511 = vmatpush1.msra.mxu0 0.0
    %512 = vmatprep.subr.mxu0 0.0
    %513 = vmatpush1.msra.mxu0 0.0
    %514 = vmatprep.subr.mxu0 0.0
    %515 = vmatpush1.msra.mxu0 0.0
    %516 = vmatprep.mubr.f32.mxu0 0.0
    %517 = vmatmul.mubr.f32.gmra.mrb[0].mxu0 %v451
    %v518 = vpop.f32.mrb[0].mxu0
    %v519 = vadd.f32 0.0, %v518
    %v520 = vpop.f32.mrb[0].mxu0
    %v521 = vadd.f32 0.0, %v520
    %522 = vdwg.mxu0
    %523 = vmatprep.subr.mxu0 0.0
    %524 = vmatpush1.msra.mxu0 %v404
    %525 = vmatprep.subr.mxu0 0.0
    %526 = vmatpush1.msra.mxu0 %v407
    %527 = vmatprep.subr.mxu0 0.0
    %528 = vmatpush1.msra.mxu0 %v410
    %529 = vmatprep.subr.mxu0 0.0
    %530 = vmatpush1.msra.mxu0 %v413
    %531 = vmatprep.subr.mxu0 0.0
    %532 = vmatpush1.msra.mxu0 %v416
    %533 = vmatprep.subr.mxu0 0.0
    %534 = vmatpush1.msra.mxu0 %v419
    %535 = vmatprep.subr.mxu0 0.0
    %536 = vmatpush1.msra.mxu0 %v422
    %537 = vmatprep.subr.mxu0 0.0
    %538 = vmatpush1.msra.mxu0 %v425
    %539 = vmatprep.subr.mxu0 0.0
    %540 = vmatpush1.msra.mxu0 %v428
    %541 = vmatprep.subr.mxu0 0.0
    %542 = vmatpush1.msra.mxu0 %v431
    %543 = vmatprep.subr.mxu0 0.0
    %544 = vmatpush1.msra.mxu0 %v434
    %545 = vmatprep.subr.mxu0 0.0
    %546 = vmatpush1.msra.mxu0 %v437
    %547 = vmatprep.subr.mxu0 0.0
    %548 = vmatpush1.msra.mxu0 %v440
    %549 = vmatprep.subr.mxu0 0.0
    %550 = vmatpush1.msra.mxu0 %v443
    %551 = vmatprep.subr.mxu0 0.0
    %552 = vmatpush1.msra.mxu0 %v446
    %553 = vmatprep.subr.mxu0 0.0
    %554 = vmatpush1.msra.mxu0 %v449
    %555 = vmatprep.subr.mxu0 0.0
    %556 = vmatpush1.msra.mxu0 0.0
    %557 = vmatprep.subr.mxu0 0.0
    %558 = vmatpush1.msra.mxu0 0.0
    %559 = vmatprep.subr.mxu0 0.0
    %560 = vmatpush1.msra.mxu0 0.0
    %561 = vmatprep.subr.mxu0 0.0
    %562 = vmatpush1.msra.mxu0 0.0
    %563 = vmatprep.subr.mxu0 0.0
    %564 = vmatpush1.msra.mxu0 0.0
    %565 = vmatprep.subr.mxu0 0.0
    %566 = vmatpush1.msra.mxu0 0.0
    %567 = vmatprep.subr.mxu0 0.0
    %568 = vmatpush1.msra.mxu0 0.0
    %569 = vmatprep.subr.mxu0 0.0
    %570 = vmatpush1.msra.mxu0 0.0
    %571 = vmatprep.subr.mxu0 0.0
    %572 = vmatpush1.msra.mxu0 0.0
    %573 = vmatprep.subr.mxu0 0.0
    %574 = vmatpush1.msra.mxu0 0.0
    %575 = vmatprep.subr.mxu0 0.0
    %576 = vmatpush1.msra.mxu0 0.0
    %577 = vmatprep.subr.mxu0 0.0
    %578 = vmatpush1.msra.mxu0 0.0
    %579 = vmatprep.subr.mxu0 0.0
    %580 = vmatpush1.msra.mxu0 0.0
    %581 = vmatprep.subr.mxu0 0.0
    %582 = vmatpush1.msra.mxu0 0.0
    %583 = vmatprep.subr.mxu0 0.0
    %584 = vmatpush1.msra.mxu0 0.0
    %585 = vmatprep.subr.mxu0 0.0
    %586 = vmatpush1.msra.mxu0 0.0
    %587 = vmatprep.mubr.f32.mxu0 0.0
    %588 = vmatmul.mubr.f32.gmra.mrb[0].mxu0 %v451
    %v589 = vpop.f32.mrb[0].mxu0
    %v590 = vadd.f32 0.0, %v589
    %v591 = vpop.f32.mrb[0].mxu0
    %592 = vdwg.mxu0
    %v593 = vld [vmem:[#allocation4] sm:$0xff]
    %v594 = vld [vmem:[#allocation4 + $0x8] sm:$0xff]
    %v595 = vld [vmem:[#allocation4 + $0x10] sm:$0xff]
    %v596 = vadd.f32 %v593, %v519
    %v597 = vmul.f32 %v596, 0.5
    %v598 = vtanh.pop %v597
    %v599 = vmul.f32 %v598, 0.5
    %v600 = vadd.f32 %v599, 0.5
    %v601 = vadd.f32 %v594, %v521
    %v602 = vmul.f32 %v601, 0.5
    %v603 = vtanh.pop %v602
    %v604 = vmul.f32 %v603, 0.5
    %v605 = vadd.f32 %v604, 0.5
    %v607 = vlaneseq
    %v608 = vshrl.u32 %v607, 7
    %v609 = vsub.s32 0, %v608
    %v610 = vrot.slane %v450, %v609
    %v612 = vadd.f32 %v590, %v610
    %v613 = vmul.f32 %v600, %v612
    %v614 = vadd.f32 %v595, %v613
    %v615 = vtanh.pop %v614
    %v616 = vsub.f32 1.0, %v605
    %v617 = vmul.f32 %v616, %v615
    %v618 = vmul.f32 %v605, %v451
    %v619 = vadd.f32 %v617, %v618
    %620 = vst [vmem:[#allocation3] sm:$0xff] %v619
    %621 = vmatprep.subr.mxu0 %v403
    %622 = vmatpush1.msra.mxu0 %v402
    %623 = vmatprep.subr.mxu0 %v406
    %624 = vmatpush1.msra.mxu0 %v405
    %625 = vmatprep.subr.mxu0 %v409
    %626 = vmatpush1.msra.mxu0 %v408
    %627 = vmatprep.subr.mxu0 %v412
    %628 = vmatpush1.msra.mxu0 %v411
    %629 = vmatprep.subr.mxu0 %v415
    %630 = vmatpush1.msra.mxu0 %v414
    %631 = vmatprep.subr.mxu0 %v418
    %632 = vmatpush1.msra.mxu0 %v417
    %633 = vmatprep.subr.mxu0 %v421
    %634 = vmatpush1.msra.mxu0 %v420
    %635 = vmatprep.subr.mxu0 %v424
    %636 = vmatpush1.msra.mxu0 %v423
    %637 = vmatprep.subr.mxu0 %v427
    %638 = vmatpush1.msra.mxu0 %v426
    %639 = vmatprep.subr.mxu0 %v430
    %640 = vmatpush1.msra.mxu0 %v429
    %641 = vmatprep.subr.mxu0 %v433
    %642 = vmatpush1.msra.mxu0 %v432
    %643 = vmatprep.subr.mxu0 %v436
    %644 = vmatpush1.msra.mxu0 %v435
    %645 = vmatprep.subr.mxu0 %v439
    %646 = vmatpush1.msra.mxu0 %v438
    %647 = vmatprep.subr.mxu0 %v442
    %648 = vmatpush1.msra.mxu0 %v441
    %649 = vmatprep.subr.mxu0 %v445
    %650 = vmatpush1.msra.mxu0 %v444
    %651 = vmatprep.subr.mxu0 %v448
    %652 = vmatpush1.msra.mxu0 %v447
    %653 = vmatprep.subr.mxu0 0.0
    %654 = vmatpush1.msra.mxu0 0.0
    %655 = vmatprep.subr.mxu0 0.0
    %656 = vmatpush1.msra.mxu0 0.0
    %657 = vmatprep.subr.mxu0 0.0
    %658 = vmatpush1.msra.mxu0 0.0
    %659 = vmatprep.subr.mxu0 0.0
    %660 = vmatpush1.msra.mxu0 0.0
    %661 = vmatprep.subr.mxu0 0.0
    %662 = vmatpush1.msra.mxu0 0.0
    %663 = vmatprep.subr.mxu0 0.0
    %664 = vmatpush1.msra.mxu0 0.0
    %665 = vmatprep.subr.mxu0 0.0
    %666 = vmatpush1.msra.mxu0 0.0
    %667 = vmatprep.subr.mxu0 0.0
    %668 = vmatpush1.msra.mxu0 0.0
    %669 = vmatprep.subr.mxu0 0.0
    %670 = vmatpush1.msra.mxu0 0.0
    %671 = vmatprep.subr.mxu0 0.0
    %672 = vmatpush1.msra.mxu0 0.0
    %673 = vmatprep.subr.mxu0 0.0
    %674 = vmatpush1.msra.mxu0 0.0
    %675 = vmatprep.subr.mxu0 0.0
    %676 = vmatpush1.msra.mxu0 0.0
    %677 = vmatprep.subr.mxu0 0.0
    %678 = vmatpush1.msra.mxu0 0.0
    %679 = vmatprep.subr.mxu0 0.0
    %680 = vmatpush1.msra.mxu0 0.0
    %681 = vmatprep.subr.mxu0 0.0
    %682 = vmatpush1.msra.mxu0 0.0
    %683 = vmatprep.subr.mxu0 0.0
    %684 = vmatpush1.msra.mxu0 0.0
    %685 = vmatprep.mubr.f32.mxu0 0.0
    %686 = vmatmul.mubr.f32.gmra.mrb[0].mxu0 %v619
    %v687 = vpop.f32.mrb[0].mxu0
    %v688 = vadd.f32 0.0, %v687
    %v689 = vpop.f32.mrb[0].mxu0
    %v690 = vadd.f32 0.0, %v689
    %691 = vdwg.mxu0
    %692 = vmatprep.subr.mxu0 0.0
    %693 = vmatpush1.msra.mxu0 %v404
    %694 = vmatprep.subr.mxu0 0.0
    %695 = vmatpush1.msra.mxu0 %v407
    %696 = vmatprep.subr.mxu0 0.0
    %697 = vmatpush1.msra.mxu0 %v410
    %698 = vmatprep.subr.mxu0 0.0
    %699 = vmatpush1.msra.mxu0 %v413
    %700 = vmatprep.subr.mxu0 0.0
    %701 = vmatpush1.msra.mxu0 %v416
    %702 = vmatprep.subr.mxu0 0.0
    %703 = vmatpush1.msra.mxu0 %v419
    %704 = vmatprep.subr.mxu0 0.0
    %705 = vmatpush1.msra.mxu0 %v422
    %706 = vmatprep.subr.mxu0 0.0
    %707 = vmatpush1.msra.mxu0 %v425
    %708 = vmatprep.subr.mxu0 0.0
    %709 = vmatpush1.msra.mxu0 %v428
    %710 = vmatprep.subr.mxu0 0.0
    %711 = vmatpush1.msra.mxu0 %v431
    %712 = vmatprep.subr.mxu0 0.0
    %713 = vmatpush1.msra.mxu0 %v434
    %714 = vmatprep.subr.mxu0 0.0
    %715 = vmatpush1.msra.mxu0 %v437
    %716 = vmatprep.subr.mxu0 0.0
    %717 = vmatpush1.msra.mxu0 %v440
    %718 = vmatprep.subr.mxu0 0.0
    %719 = vmatpush1.msra.mxu0 %v443
    %720 = vmatprep.subr.mxu0 0.0
    %721 = vmatpush1.msra.mxu0 %v446
    %722 = vmatprep.subr.mxu0 0.0
    %723 = vmatpush1.msra.mxu0 %v449
    %724 = vmatprep.subr.mxu0 0.0
    %725 = vmatpush1.msra.mxu0 0.0
    %726 = vmatprep.subr.mxu0 0.0
    %727 = vmatpush1.msra.mxu0 0.0
    %728 = vmatprep.subr.mxu0 0.0
    %729 = vmatpush1.msra.mxu0 0.0
    %730 = vmatprep.subr.mxu0 0.0
    %731 = vmatpush1.msra.mxu0 0.0
    %732 = vmatprep.subr.mxu0 0.0
    %733 = vmatpush1.msra.mxu0 0.0
    %734 = vmatprep.subr.mxu0 0.0
    %735 = vmatpush1.msra.mxu0 0.0
    %736 = vmatprep.subr.mxu0 0.0
    %737 = vmatpush1.msra.mxu0 0.0
    %738 = vmatprep.subr.mxu0 0.0
    %739 = vmatpush1.msra.mxu0 0.0
    %740 = vmatprep.subr.mxu0 0.0
    %741 = vmatpush1.msra.mxu0 0.0
    %742 = vmatprep.subr.mxu0 0.0
    %743 = vmatpush1.msra.mxu0 0.0
    %744 = vmatprep.subr.mxu0 0.0
    %745 = vmatpush1.msra.mxu0 0.0
    %746 = vmatprep.subr.mxu0 0.0
    %747 = vmatpush1.msra.mxu0 0.0
    %748 = vmatprep.subr.mxu0 0.0
    %749 = vmatpush1.msra.mxu0 0.0
    %750 = vmatprep.subr.mxu0 0.0
    %751 = vmatpush1.msra.mxu0 0.0
    %752 = vmatprep.subr.mxu0 0.0
    %753 = vmatpush1.msra.mxu0 0.0
    %754 = vmatprep.subr.mxu0 0.0
    %755 = vmatpush1.msra.mxu0 0.0
    %756 = vmatprep.mubr.f32.mxu0 0.0
    %757 = vmatmul.mubr.f32.gmra.mrb[0].mxu0 %v619
    %v758 = vpop.f32.mrb[0].mxu0
    %v759 = vadd.f32 0.0, %v758
    %v760 = vpop.f32.mrb[0].mxu0
    %761 = vdwg.mxu0
    %s762 = scalar_lea.vmem [#allocation4], 24
    %v763 = vld [vmem:[%s762] sm:$0xff]
    %v764 = vld [vmem:[%s762 + $0x8] sm:$0xff]
    %v765 = vld [vmem:[%s762 + $0x10] sm:$0xff]
    %v766 = vadd.f32 %v763, %v688
    %v767 = vmul.f32 %v766, 0.5
    %v768 = vtanh.pop %v767
    %v769 = vmul.f32 %v768, 0.5
    %v770 = vadd.f32 %v769, 0.5
    %v771 = vadd.f32 %v764, %v690
    %v772 = vmul.f32 %v771, 0.5
    %v773 = vtanh.pop %v772
    %v774 = vmul.f32 %v773, 0.5
    %v775 = vadd.f32 %v774, 0.5
    %v776 = vadd.f32 %v759, %v610
    %v777 = vmul.f32 %v770, %v776
    %v778 = vadd.f32 %v765, %v777
    %v779 = vtanh.pop %v778
    %v780 = vsub.f32 1.0, %v775
    %v781 = vmul.f32 %v780, %v779
    %v782 = vmul.f32 %v775, %v619
    %v783 = vadd.f32 %v781, %v782
    %s784 = scalar_lea.vmem [#allocation3], 8
    %785 = vst [vmem:[%s784] sm:$0xff] %v783
    %786 = vmatprep.subr.mxu0 %v403
    %787 = vmatpush1.msra.mxu0 %v402
    %788 = vmatprep.subr.mxu0 %v406
    %789 = vmatpush1.msra.mxu0 %v405
    %790 = vmatprep.subr.mxu0 %v409
    %791 = vmatpush1.msra.mxu0 %v408
    %792 = vmatprep.subr.mxu0 %v412
    %793 = vmatpush1.msra.mxu0 %v411
    %794 = vmatprep.subr.mxu0 %v415
    %795 = vmatpush1.msra.mxu0 %v414
    %796 = vmatprep.subr.mxu0 %v418
    %797 = vmatpush1.msra.mxu0 %v417
    %798 = vmatprep.subr.mxu0 %v421
    %799 = vmatpush1.msra.mxu0 %v420
    %800 = vmatprep.subr.mxu0 %v424
    %801 = vmatpush1.msra.mxu0 %v423
    %802 = vmatprep.subr.mxu0 %v427
    %803 = vmatpush1.msra.mxu0 %v426
    %804 = vmatprep.subr.mxu0 %v430
    %805 = vmatpush1.msra.mxu0 %v429
    %806 = vmatprep.subr.mxu0 %v433
    %807 = vmatpush1.msra.mxu0 %v432
    %808 = vmatprep.subr.mxu0 %v436
    %809 = vmatpush1.msra.mxu0 %v435
    %810 = vmatprep.subr.mxu0 %v439
    %811 = vmatpush1.msra.mxu0 %v438
    %812 = vmatprep.subr.mxu0 %v442
    %813 = vmatpush1.msra.mxu0 %v441
    %814 = vmatprep.subr.mxu0 %v445
    %815 = vmatpush1.msra.mxu0 %v444
    %816 = vmatprep.subr.mxu0 %v448
    %817 = vmatpush1.msra.mxu0 %v447
    %818 = vmatprep.subr.mxu0 0.0
    %819 = vmatpush1.msra.mxu0 0.0
    %820 = vmatprep.subr.mxu0 0.0
    %821 = vmatpush1.msra.mxu0 0.0
    %822 = vmatprep.subr.mxu0 0.0
    %823 = vmatpush1.msra.mxu0 0.0
    %824 = vmatprep.subr.mxu0 0.0
    %825 = vmatpush1.msra.mxu0 0.0
    %826 = vmatprep.subr.mxu0 0.0
    %827 = vmatpush1.msra.mxu0 0.0
    %828 = vmatprep.subr.mxu0 0.0
    %829 = vmatpush1.msra.mxu0 0.0
    %830 = vmatprep.subr.mxu0 0.0
    %831 = vmatpush1.msra.mxu0 0.0
    %832 = vmatprep.subr.mxu0 0.0
    %833 = vmatpush1.msra.mxu0 0.0
    %834 = vmatprep.subr.mxu0 0.0
    %835 = vmatpush1.msra.mxu0 0.0
    %836 = vmatprep.subr.mxu0 0.0
    %837 = vmatpush1.msra.mxu0 0.0
    %838 = vmatprep.subr.mxu0 0.0
    %839 = vmatpush1.msra.mxu0 0.0
    %840 = vmatprep.subr.mxu0 0.0
    %841 = vmatpush1.msra.mxu0 0.0
    %842 = vmatprep.subr.mxu0 0.0
    %843 = vmatpush1.msra.mxu0 0.0
    %844 = vmatprep.subr.mxu0 0.0
    %845 = vmatpush1.msra.mxu0 0.0
    %846 = vmatprep.subr.mxu0 0.0
    %847 = vmatpush1.msra.mxu0 0.0
    %848 = vmatprep.subr.mxu0 0.0
    %849 = vmatpush1.msra.mxu0 0.0
    %850 = vmatprep.mubr.f32.mxu0 0.0
    %851 = vmatmul.mubr.f32.gmra.mrb[0].mxu0 %v783
    %v852 = vpop.f32.mrb[0].mxu0
    %v853 = vadd.f32 0.0, %v852
    %v854 = vpop.f32.mrb[0].mxu0
    %v855 = vadd.f32 0.0, %v854
    %856 = vdwg.mxu0
    %857 = vmatprep.subr.mxu0 0.0
    %858 = vmatpush1.msra.mxu0 %v404
    %859 = vmatprep.subr.mxu0 0.0
    %860 = vmatpush1.msra.mxu0 %v407
    %861 = vmatprep.subr.mxu0 0.0
    %862 = vmatpush1.msra.mxu0 %v410
    %863 = vmatprep.subr.mxu0 0.0
    %864 = vmatpush1.msra.mxu0 %v413
    %865 = vmatprep.subr.mxu0 0.0
    %866 = vmatpush1.msra.mxu0 %v416
    %867 = vmatprep.subr.mxu0 0.0
    %868 = vmatpush1.msra.mxu0 %v419
    %869 = vmatprep.subr.mxu0 0.0
    %870 = vmatpush1.msra.mxu0 %v422
    %871 = vmatprep.subr.mxu0 0.0
    %872 = vmatpush1.msra.mxu0 %v425
    %873 = vmatprep.subr.mxu0 0.0
    %874 = vmatpush1.msra.mxu0 %v428
    %875 = vmatprep.subr.mxu0 0.0
    %876 = vmatpush1.msra.mxu0 %v431
    %877 = vmatprep.subr.mxu0 0.0
    %878 = vmatpush1.msra.mxu0 %v434
    %879 = vmatprep.subr.mxu0 0.0
    %880 = vmatpush1.msra.mxu0 %v437
    %881 = vmatprep.subr.mxu0 0.0
    %882 = vmatpush1.msra.mxu0 %v440
    %883 = vmatprep.subr.mxu0 0.0
    %884 = vmatpush1.msra.mxu0 %v443
    %885 = vmatprep.subr.mxu0 0.0
    %886 = vmatpush1.msra.mxu0 %v446
    %887 = vmatprep.subr.mxu0 0.0
    %888 = vmatpush1.msra.mxu0 %v449
    %889 = vmatprep.subr.mxu0 0.0
    %890 = vmatpush1.msra.mxu0 0.0
    %891 = vmatprep.subr.mxu0 0.0
    %892 = vmatpush1.msra.mxu0 0.0
    %893 = vmatprep.subr.mxu0 0.0
    %894 = vmatpush1.msra.mxu0 0.0
    %895 = vmatprep.subr.mxu0 0.0
    %896 = vmatpush1.msra.mxu0 0.0
    %897 = vmatprep.subr.mxu0 0.0
    %898 = vmatpush1.msra.mxu0 0.0
    %899 = vmatprep.subr.mxu0 0.0
    %900 = vmatpush1.msra.mxu0 0.0
    %901 = vmatprep.subr.mxu0 0.0
    %902 = vmatpush1.msra.mxu0 0.0
    %903 = vmatprep.subr.mxu0 0.0
    %904 = vmatpush1.msra.mxu0 0.0
    %905 = vmatprep.subr.mxu0 0.0
    %906 = vmatpush1.msra.mxu0 0.0
    %907 = vmatprep.subr.mxu0 0.0
    %908 = vmatpush1.msra.mxu0 0.0
    %909 = vmatprep.subr.mxu0 0.0
    %910 = vmatpush1.msra.mxu0 0.0
    %911 = vmatprep.subr.mxu0 0.0
    %912 = vmatpush1.msra.mxu0 0.0
    %913 = vmatprep.subr.mxu0 0.0
    %914 = vmatpush1.msra.mxu0 0.0
    %915 = vmatprep.subr.mxu0 0.0
    %916 = vmatpush1.msra.mxu0 0.0
    %917 = vmatprep.subr.mxu0 0.0
    %918 = vmatpush1.msra.mxu0 0.0
    %919 = vmatprep.subr.mxu0 0.0
    %920 = vmatpush1.msra.mxu0 0.0
    %921 = vmatprep.mubr.f32.mxu0 0.0
    %922 = vmatmul.mubr.f32.gmra.mrb[0].mxu0 %v783
    %v923 = vpop.f32.mrb[0].mxu0
    %v924 = vadd.f32 0.0, %v923
    %v925 = vpop.f32.mrb[0].mxu0
    %926 = vdwg.mxu0
    %s927 = scalar_lea.vmem [#allocation4], 48
    %v928 = vld [vmem:[%s927] sm:$0xff]
    %v929 = vld [vmem:[%s927 + $0x8] sm:$0xff]
    %v930 = vld [vmem:[%s927 + $0x10] sm:$0xff]
    %v931 = vadd.f32 %v928, %v853
    %v932 = vmul.f32 %v931, 0.5
    %v933 = vtanh.pop %v932
    %v934 = vmul.f32 %v933, 0.5
    %v935 = vadd.f32 %v934, 0.5
    %v936 = vadd.f32 %v929, %v855
    %v937 = vmul.f32 %v936, 0.5
    %v938 = vtanh.pop %v937
    %v939 = vmul.f32 %v938, 0.5
    %v940 = vadd.f32 %v939, 0.5
    %v941 = vadd.f32 %v924, %v610
    %v942 = vmul.f32 %v935, %v941
    %v943 = vadd.f32 %v930, %v942
    %v944 = vtanh.pop %v943
    %v945 = vsub.f32 1.0, %v940
    %v946 = vmul.f32 %v945, %v944
    %v947 = vmul.f32 %v940, %v783
    %v948 = vadd.f32 %v946, %v947
    %s949 = scalar_lea.vmem [#allocation3], 16
    %950 = vst [vmem:[%s949] sm:$0xff] %v948
    %951 = vmatprep.subr.mxu0 %v403
    %952 = vmatpush1.msra.mxu0 %v402
    %953 = vmatprep.subr.mxu0 %v406
    %954 = vmatpush1.msra.mxu0 %v405
    %955 = vmatprep.subr.mxu0 %v409
    %956 = vmatpush1.msra.mxu0 %v408
    %957 = vmatprep.subr.mxu0 %v412
    %958 = vmatpush1.msra.mxu0 %v411
    %959 = vmatprep.subr.mxu0 %v415
    %960 = vmatpush1.msra.mxu0 %v414
    %961 = vmatprep.subr.mxu0 %v418
    %962 = vmatpush1.msra.mxu0 %v417
    %963 = vmatprep.subr.mxu0 %v421
    %964 = vmatpush1.msra.mxu0 %v420
    %965 = vmatprep.subr.mxu0 %v424
    %966 = vmatpush1.msra.mxu0 %v423
    %967 = vmatprep.subr.mxu0 %v427
    %968 = vmatpush1.msra.mxu0 %v426
    %969 = vmatprep.subr.mxu0 %v430
    %970 = vmatpush1.msra.mxu0 %v429
    %971 = vmatprep.subr.mxu0 %v433
    %972 = vmatpush1.msra.mxu0 %v432
    %973 = vmatprep.subr.mxu0 %v436
    %974 = vmatpush1.msra.mxu0 %v435
    %975 = vmatprep.subr.mxu0 %v439
    %976 = vmatpush1.msra.mxu0 %v438
    %977 = vmatprep.subr.mxu0 %v442
    %978 = vmatpush1.msra.mxu0 %v441
    %979 = vmatprep.subr.mxu0 %v445
    %980 = vmatpush1.msra.mxu0 %v444
    %981 = vmatprep.subr.mxu0 %v448
    %982 = vmatpush1.msra.mxu0 %v447
    %983 = vmatprep.subr.mxu0 0.0
    %984 = vmatpush1.msra.mxu0 0.0
    %985 = vmatprep.subr.mxu0 0.0
    %986 = vmatpush1.msra.mxu0 0.0
    %987 = vmatprep.subr.mxu0 0.0
    %988 = vmatpush1.msra.mxu0 0.0
    %989 = vmatprep.subr.mxu0 0.0
    %990 = vmatpush1.msra.mxu0 0.0
    %991 = vmatprep.subr.mxu0 0.0
    %992 = vmatpush1.msra.mxu0 0.0
    %993 = vmatprep.subr.mxu0 0.0
    %994 = vmatpush1.msra.mxu0 0.0
    %995 = vmatprep.subr.mxu0 0.0
    %996 = vmatpush1.msra.mxu0 0.0
    %997 = vmatprep.subr.mxu0 0.0
    %998 = vmatpush1.msra.mxu0 0.0
    %999 = vmatprep.subr.mxu0 0.0
    %1000 = vmatpush1.msra.mxu0 0.0
    %1001 = vmatprep.subr.mxu0 0.0
    %1002 = vmatpush1.msra.mxu0 0.0
    %1003 = vmatprep.subr.mxu0 0.0
    %1004 = vmatpush1.msra.mxu0 0.0
    %1005 = vmatprep.subr.mxu0 0.0
    %1006 = vmatpush1.msra.mxu0 0.0
    %1007 = vmatprep.subr.mxu0 0.0
    %1008 = vmatpush1.msra.mxu0 0.0
    %1009 = vmatprep.subr.mxu0 0.0
    %1010 = vmatpush1.msra.mxu0 0.0
    %1011 = vmatprep.subr.mxu0 0.0
    %1012 = vmatpush1.msra.mxu0 0.0
    %1013 = vmatprep.subr.mxu0 0.0
    %1014 = vmatpush1.msra.mxu0 0.0
    %1015 = vmatprep.mubr.f32.mxu0 0.0
    %1016 = vmatmul.mubr.f32.gmra.mrb[0].mxu0 %v948
    %v1017 = vpop.f32.mrb[0].mxu0
    %v1018 = vadd.f32 0.0, %v1017
    %v1019 = vpop.f32.mrb[0].mxu0
    %v1020 = vadd.f32 0.0, %v1019
    %1021 = vdwg.mxu0
    %1022 = vmatprep.subr.mxu0 0.0
    %1023 = vmatpush1.msra.mxu0 %v404
    %1024 = vmatprep.subr.mxu0 0.0
    %1025 = vmatpush1.msra.mxu0 %v407
    %1026 = vmatprep.subr.mxu0 0.0
    %1027 = vmatpush1.msra.mxu0 %v410
    %1028 = vmatprep.subr.mxu0 0.0
    %1029 = vmatpush1.msra.mxu0 %v413
    %1030 = vmatprep.subr.mxu0 0.0
    %1031 = vmatpush1.msra.mxu0 %v416
    %1032 = vmatprep.subr.mxu0 0.0
    %1033 = vmatpush1.msra.mxu0 %v419
    %1034 = vmatprep.subr.mxu0 0.0
    %1035 = vmatpush1.msra.mxu0 %v422
    %1036 = vmatprep.subr.mxu0 0.0
    %1037 = vmatpush1.msra.mxu0 %v425
    %1038 = vmatprep.subr.mxu0 0.0
    %1039 = vmatpush1.msra.mxu0 %v428
    %1040 = vmatprep.subr.mxu0 0.0
    %1041 = vmatpush1.msra.mxu0 %v431
    %1042 = vmatprep.subr.mxu0 0.0
    %1043 = vmatpush1.msra.mxu0 %v434
    %1044 = vmatprep.subr.mxu0 0.0
    %1045 = vmatpush1.msra.mxu0 %v437
    %1046 = vmatprep.subr.mxu0 0.0
    %1047 = vmatpush1.msra.mxu0 %v440
    %1048 = vmatprep.subr.mxu0 0.0
    %1049 = vmatpush1.msra.mxu0 %v443
    %1050 = vmatprep.subr.mxu0 0.0
    %1051 = vmatpush1.msra.mxu0 %v446
    %1052 = vmatprep.subr.mxu0 0.0
    %1053 = vmatpush1.msra.mxu0 %v449
    %1054 = vmatprep.subr.mxu0 0.0
    %1055 = vmatpush1.msra.mxu0 0.0
    %1056 = vmatprep.subr.mxu0 0.0
    %1057 = vmatpush1.msra.mxu0 0.0
    %1058 = vmatprep.subr.mxu0 0.0
    %1059 = vmatpush1.msra.mxu0 0.0
    %1060 = vmatprep.subr.mxu0 0.0
    %1061 = vmatpush1.msra.mxu0 0.0
    %1062 = vmatprep.subr.mxu0 0.0
    %1063 = vmatpush1.msra.mxu0 0.0
    %1064 = vmatprep.subr.mxu0 0.0
    %1065 = vmatpush1.msra.mxu0 0.0
    %1066 = vmatprep.subr.mxu0 0.0
    %1067 = vmatpush1.msra.mxu0 0.0
    %1068 = vmatprep.subr.mxu0 0.0
    %1069 = vmatpush1.msra.mxu0 0.0
    %1070 = vmatprep.subr.mxu0 0.0
    %1071 = vmatpush1.msra.mxu0 0.0
    %1072 = vmatprep.subr.mxu0 0.0
    %1073 = vmatpush1.msra.mxu0 0.0
    %1074 = vmatprep.subr.mxu0 0.0
    %1075 = vmatpush1.msra.mxu0 0.0
    %1076 = vmatprep.subr.mxu0 0.0
    %1077 = vmatpush1.msra.mxu0 0.0
    %1078 = vmatprep.subr.mxu0 0.0
    %1079 = vmatpush1.msra.mxu0 0.0
    %1080 = vmatprep.subr.mxu0 0.0
    %1081 = vmatpush1.msra.mxu0 0.0
    %1082 = vmatprep.subr.mxu0 0.0
    %1083 = vmatpush1.msra.mxu0 0.0
    %1084 = vmatprep.subr.mxu0 0.0
    %1085 = vmatpush1.msra.mxu0 0.0
    %1086 = vmatprep.mubr.f32.mxu0 0.0
    %1087 = vmatmul.mubr.f32.gmra.mrb[0].mxu0 %v948
    %v1088 = vpop.f32.mrb[0].mxu0
    %v1089 = vadd.f32 0.0, %v1088
    %v1090 = vpop.f32.mrb[0].mxu0
    %1091 = vdwg.mxu0
    %s1092 = scalar_lea.vmem [#allocation4], 72
    %v1093 = vld [vmem:[%s1092] sm:$0xff]
    %v1094 = vld [vmem:[%s1092 + $0x8] sm:$0xff]
    %v1095 = vld [vmem:[%s1092 + $0x10] sm:$0xff]
    %v1096 = vadd.f32 %v1093, %v1018
    %v1097 = vmul.f32 %v1096, 0.5
    %v1098 = vtanh.pop %v1097
    %v1099 = vmul.f32 %v1098, 0.5
    %v1100 = vadd.f32 %v1099, 0.5
    %v1101 = vadd.f32 %v1094, %v1020
    %v1102 = vmul.f32 %v1101, 0.5
    %v1103 = vtanh.pop %v1102
    %v1104 = vmul.f32 %v1103, 0.5
    %v1105 = vadd.f32 %v1104, 0.5
    %v1106 = vadd.f32 %v1089, %v610
    %v1107 = vmul.f32 %v1100, %v1106
    %v1108 = vadd.f32 %v1095, %v1107
    %v1109 = vtanh.pop %v1108
    %v1110 = vsub.f32 1.0, %v1105
    %v1111 = vmul.f32 %v1110, %v1109
    %v1112 = vmul.f32 %v1105, %v948
    %v1113 = vadd.f32 %v1111, %v1112
    %s1114 = scalar_lea.vmem [#allocation3], 24
    %1115 = vst [vmem:[%s1114] sm:$0xff] %v1113
    %1116 = vmatprep.subr.mxu0 %v403
    %1117 = vmatpush1.msra.mxu0 %v402
    %1118 = vmatprep.subr.mxu0 %v406
    %1119 = vmatpush1.msra.mxu0 %v405
    %1120 = vmatprep.subr.mxu0 %v409
    %1121 = vmatpush1.msra.mxu0 %v408
    %1122 = vmatprep.subr.mxu0 %v412
    %1123 = vmatpush1.msra.mxu0 %v411
    %1124 = vmatprep.subr.mxu0 %v415
    %1125 = vmatpush1.msra.mxu0 %v414
    %1126 = vmatprep.subr.mxu0 %v418
    %1127 = vmatpush1.msra.mxu0 %v417
    %1128 = vmatprep.subr.mxu0 %v421
    %1129 = vmatpush1.msra.mxu0 %v420
    %1130 = vmatprep.subr.mxu0 %v424
    %1131 = vmatpush1.msra.mxu0 %v423
    %1132 = vmatprep.subr.mxu0 %v427
    %1133 = vmatpush1.msra.mxu0 %v426
    %1134 = vmatprep.subr.mxu0 %v430
    %1135 = vmatpush1.msra.mxu0 %v429
    %1136 = vmatprep.subr.mxu0 %v433
    %1137 = vmatpush1.msra.mxu0 %v432
    %1138 = vmatprep.subr.mxu0 %v436
    %1139 = vmatpush1.msra.mxu0 %v435
    %1140 = vmatprep.subr.mxu0 %v439
    %1141 = vmatpush1.msra.mxu0 %v438
    %1142 = vmatprep.subr.mxu0 %v442
    %1143 = vmatpush1.msra.mxu0 %v441
    %1144 = vmatprep.subr.mxu0 %v445
    %1145 = vmatpush1.msra.mxu0 %v444
    %1146 = vmatprep.subr.mxu0 %v448
    %1147 = vmatpush1.msra.mxu0 %v447
    %1148 = vmatprep.subr.mxu0 0.0
    %1149 = vmatpush1.msra.mxu0 0.0
    %1150 = vmatprep.subr.mxu0 0.0
    %1151 = vmatpush1.msra.mxu0 0.0
    %1152 = vmatprep.subr.mxu0 0.0
    %1153 = vmatpush1.msra.mxu0 0.0
    %1154 = vmatprep.subr.mxu0 0.0
    %1155 = vmatpush1.msra.mxu0 0.0
    %1156 = vmatprep.subr.mxu0 0.0
    %1157 = vmatpush1.msra.mxu0 0.0
    %1158 = vmatprep.subr.mxu0 0.0
    %1159 = vmatpush1.msra.mxu0 0.0
    %1160 = vmatprep.subr.mxu0 0.0
    %1161 = vmatpush1.msra.mxu0 0.0
    %1162 = vmatprep.subr.mxu0 0.0
    %1163 = vmatpush1.msra.mxu0 0.0
    %1164 = vmatprep.subr.mxu0 0.0
    %1165 = vmatpush1.msra.mxu0 0.0
    %1166 = vmatprep.subr.mxu0 0.0
    %1167 = vmatpush1.msra.mxu0 0.0
    %1168 = vmatprep.subr.mxu0 0.0
    %1169 = vmatpush1.msra.mxu0 0.0
    %1170 = vmatprep.subr.mxu0 0.0
    %1171 = vmatpush1.msra.mxu0 0.0
    %1172 = vmatprep.subr.mxu0 0.0
    %1173 = vmatpush1.msra.mxu0 0.0
    %1174 = vmatprep.subr.mxu0 0.0
    %1175 = vmatpush1.msra.mxu0 0.0
    %1176 = vmatprep.subr.mxu0 0.0
    %1177 = vmatpush1.msra.mxu0 0.0
    %1178 = vmatprep.subr.mxu0 0.0
    %1179 = vmatpush1.msra.mxu0 0.0
    %1180 = vmatprep.mubr.f32.mxu0 0.0
    %1181 = vmatmul.mubr.f32.gmra.mrb[0].mxu0 %v1113
    %v1182 = vpop.f32.mrb[0].mxu0
    %v1183 = vadd.f32 0.0, %v1182
    %v1184 = vpop.f32.mrb[0].mxu0
    %v1185 = vadd.f32 0.0, %v1184
    %1186 = vdwg.mxu0
    %1187 = vmatprep.subr.mxu0 0.0
    %1188 = vmatpush1.msra.mxu0 %v404
    %1189 = vmatprep.subr.mxu0 0.0
    %1190 = vmatpush1.msra.mxu0 %v407
    %1191 = vmatprep.subr.mxu0 0.0
    %1192 = vmatpush1.msra.mxu0 %v410
    %1193 = vmatprep.subr.mxu0 0.0
    %1194 = vmatpush1.msra.mxu0 %v413
    %1195 = vmatprep.subr.mxu0 0.0
    %1196 = vmatpush1.msra.mxu0 %v416
    %1197 = vmatprep.subr.mxu0 0.0
    %1198 = vmatpush1.msra.mxu0 %v419
    %1199 = vmatprep.subr.mxu0 0.0
    %1200 = vmatpush1.msra.mxu0 %v422
    %1201 = vmatprep.subr.mxu0 0.0
    %1202 = vmatpush1.msra.mxu0 %v425
    %1203 = vmatprep.subr.mxu0 0.0
    %1204 = vmatpush1.msra.mxu0 %v428
    %1205 = vmatprep.subr.mxu0 0.0
    %1206 = vmatpush1.msra.mxu0 %v431
    %1207 = vmatprep.subr.mxu0 0.0
    %1208 = vmatpush1.msra.mxu0 %v434
    %1209 = vmatprep.subr.mxu0 0.0
    %1210 = vmatpush1.msra.mxu0 %v437
    %1211 = vmatprep.subr.mxu0 0.0
    %1212 = vmatpush1.msra.mxu0 %v440
    %1213 = vmatprep.subr.mxu0 0.0
    %1214 = vmatpush1.msra.mxu0 %v443
    %1215 = vmatprep.subr.mxu0 0.0
    %1216 = vmatpush1.msra.mxu0 %v446
    %1217 = vmatprep.subr.mxu0 0.0
    %1218 = vmatpush1.msra.mxu0 %v449
    %1219 = vmatprep.subr.mxu0 0.0
    %1220 = vmatpush1.msra.mxu0 0.0
    %1221 = vmatprep.subr.mxu0 0.0
    %1222 = vmatpush1.msra.mxu0 0.0
    %1223 = vmatprep.subr.mxu0 0.0
    %1224 = vmatpush1.msra.mxu0 0.0
    %1225 = vmatprep.subr.mxu0 0.0
    %1226 = vmatpush1.msra.mxu0 0.0
    %1227 = vmatprep.subr.mxu0 0.0
    %1228 = vmatpush1.msra.mxu0 0.0
    %1229 = vmatprep.subr.mxu0 0.0
    %1230 = vmatpush1.msra.mxu0 0.0
    %1231 = vmatprep.subr.mxu0 0.0
    %1232 = vmatpush1.msra.mxu0 0.0
    %1233 = vmatprep.subr.mxu0 0.0
    %1234 = vmatpush1.msra.mxu0 0.0
    %1235 = vmatprep.subr.mxu0 0.0
    %1236 = vmatpush1.msra.mxu0 0.0
    %1237 = vmatprep.subr.mxu0 0.0
    %1238 = vmatpush1.msra.mxu0 0.0
    %1239 = vmatprep.subr.mxu0 0.0
    %1240 = vmatpush1.msra.mxu0 0.0
    %1241 = vmatprep.subr.mxu0 0.0
    %1242 = vmatpush1.msra.mxu0 0.0
    %1243 = vmatprep.subr.mxu0 0.0
    %1244 = vmatpush1.msra.mxu0 0.0
    %1245 = vmatprep.subr.mxu0 0.0
    %1246 = vmatpush1.msra.mxu0 0.0
    %1247 = vmatprep.subr.mxu0 0.0
    %1248 = vmatpush1.msra.mxu0 0.0
    %1249 = vmatprep.subr.mxu0 0.0
    %1250 = vmatpush1.msra.mxu0 0.0
    %1251 = vmatprep.mubr.f32.mxu0 0.0
    %1252 = vmatmul.mubr.f32.gmra.mrb[0].mxu0 %v1113
    %v1253 = vpop.f32.mrb[0].mxu0
    %v1254 = vadd.f32 0.0, %v1253
    %v1255 = vpop.f32.mrb[0].mxu0
    %1256 = vdwg.mxu0
    %s1257 = scalar_lea.vmem [#allocation4], 96
    %v1258 = vld [vmem:[%s1257] sm:$0xff]
    %v1259 = vld [vmem:[%s1257 + $0x8] sm:$0xff]
    %v1260 = vld [vmem:[%s1257 + $0x10] sm:$0xff]
    %v1261 = vadd.f32 %v1258, %v1183
    %v1262 = vmul.f32 %v1261, 0.5
    %v1263 = vtanh.pop %v1262
    %v1264 = vmul.f32 %v1263, 0.5
    %v1265 = vadd.f32 %v1264, 0.5
    %v1266 = vadd.f32 %v1259, %v1185
    %v1267 = vmul.f32 %v1266, 0.5
    %v1268 = vtanh.pop %v1267
    %v1269 = vmul.f32 %v1268, 0.5
    %v1270 = vadd.f32 %v1269, 0.5
    %v1271 = vadd.f32 %v1254, %v610
    %v1272 = vmul.f32 %v1265, %v1271
    %v1273 = vadd.f32 %v1260, %v1272
    %v1274 = vtanh.pop %v1273
    %v1275 = vsub.f32 1.0, %v1270
    %v1276 = vmul.f32 %v1275, %v1274
    %v1277 = vmul.f32 %v1270, %v1113
    %v1278 = vadd.f32 %v1276, %v1277
    %s1279 = scalar_lea.vmem [#allocation3], 32
    %1280 = vst [vmem:[%s1279] sm:$0xff] %v1278
    %1281 = vmatprep.subr.mxu0 %v403
    %1282 = vmatpush1.msra.mxu0 %v402
    %1283 = vmatprep.subr.mxu0 %v406
    %1284 = vmatpush1.msra.mxu0 %v405
    %1285 = vmatprep.subr.mxu0 %v409
    %1286 = vmatpush1.msra.mxu0 %v408
    %1287 = vmatprep.subr.mxu0 %v412
    %1288 = vmatpush1.msra.mxu0 %v411
    %1289 = vmatprep.subr.mxu0 %v415
    %1290 = vmatpush1.msra.mxu0 %v414
    %1291 = vmatprep.subr.mxu0 %v418
    %1292 = vmatpush1.msra.mxu0 %v417
    %1293 = vmatprep.subr.mxu0 %v421
    %1294 = vmatpush1.msra.mxu0 %v420
    %1295 = vmatprep.subr.mxu0 %v424
    %1296 = vmatpush1.msra.mxu0 %v423
    %1297 = vmatprep.subr.mxu0 %v427
    %1298 = vmatpush1.msra.mxu0 %v426
    %1299 = vmatprep.subr.mxu0 %v430
    %1300 = vmatpush1.msra.mxu0 %v429
    %1301 = vmatprep.subr.mxu0 %v433
    %1302 = vmatpush1.msra.mxu0 %v432
    %1303 = vmatprep.subr.mxu0 %v436
    %1304 = vmatpush1.msra.mxu0 %v435
    %1305 = vmatprep.subr.mxu0 %v439
    %1306 = vmatpush1.msra.mxu0 %v438
    %1307 = vmatprep.subr.mxu0 %v442
    %1308 = vmatpush1.msra.mxu0 %v441
    %1309 = vmatprep.subr.mxu0 %v445
    %1310 = vmatpush1.msra.mxu0 %v444
    %1311 = vmatprep.subr.mxu0 %v448
    %1312 = vmatpush1.msra.mxu0 %v447
    %1313 = vmatprep.subr.mxu0 0.0
    %1314 = vmatpush1.msra.mxu0 0.0
    %1315 = vmatprep.subr.mxu0 0.0
    %1316 = vmatpush1.msra.mxu0 0.0
    %1317 = vmatprep.subr.mxu0 0.0
    %1318 = vmatpush1.msra.mxu0 0.0
    %1319 = vmatprep.subr.mxu0 0.0
    %1320 = vmatpush1.msra.mxu0 0.0
    %1321 = vmatprep.subr.mxu0 0.0
    %1322 = vmatpush1.msra.mxu0 0.0
    %1323 = vmatprep.subr.mxu0 0.0
    %1324 = vmatpush1.msra.mxu0 0.0
    %1325 = vmatprep.subr.mxu0 0.0
    %1326 = vmatpush1.msra.mxu0 0.0
    %1327 = vmatprep.subr.mxu0 0.0
    %1328 = vmatpush1.msra.mxu0 0.0
    %1329 = vmatprep.subr.mxu0 0.0
    %1330 = vmatpush1.msra.mxu0 0.0
    %1331 = vmatprep.subr.mxu0 0.0
    %1332 = vmatpush1.msra.mxu0 0.0
    %1333 = vmatprep.subr.mxu0 0.0
    %1334 = vmatpush1.msra.mxu0 0.0
    %1335 = vmatprep.subr.mxu0 0.0
    %1336 = vmatpush1.msra.mxu0 0.0
    %1337 = vmatprep.subr.mxu0 0.0
    %1338 = vmatpush1.msra.mxu0 0.0
    %1339 = vmatprep.subr.mxu0 0.0
    %1340 = vmatpush1.msra.mxu0 0.0
    %1341 = vmatprep.subr.mxu0 0.0
    %1342 = vmatpush1.msra.mxu0 0.0
    %1343 = vmatprep.subr.mxu0 0.0
    %1344 = vmatpush1.msra.mxu0 0.0
    %1345 = vmatprep.mubr.f32.mxu0 0.0
    %1346 = vmatmul.mubr.f32.gmra.mrb[0].mxu0 %v1278
    %v1347 = vpop.f32.mrb[0].mxu0
    %v1348 = vadd.f32 0.0, %v1347
    %v1349 = vpop.f32.mrb[0].mxu0
    %v1350 = vadd.f32 0.0, %v1349
    %1351 = vdwg.mxu0
    %1352 = vmatprep.subr.mxu0 0.0
    %1353 = vmatpush1.msra.mxu0 %v404
    %1354 = vmatprep.subr.mxu0 0.0
    %1355 = vmatpush1.msra.mxu0 %v407
    %1356 = vmatprep.subr.mxu0 0.0
    %1357 = vmatpush1.msra.mxu0 %v410
    %1358 = vmatprep.subr.mxu0 0.0
    %1359 = vmatpush1.msra.mxu0 %v413
    %1360 = vmatprep.subr.mxu0 0.0
    %1361 = vmatpush1.msra.mxu0 %v416
    %1362 = vmatprep.subr.mxu0 0.0
    %1363 = vmatpush1.msra.mxu0 %v419
    %1364 = vmatprep.subr.mxu0 0.0
    %1365 = vmatpush1.msra.mxu0 %v422
    %1366 = vmatprep.subr.mxu0 0.0
    %1367 = vmatpush1.msra.mxu0 %v425
    %1368 = vmatprep.subr.mxu0 0.0
    %1369 = vmatpush1.msra.mxu0 %v428
    %1370 = vmatprep.subr.mxu0 0.0
    %1371 = vmatpush1.msra.mxu0 %v431
    %1372 = vmatprep.subr.mxu0 0.0
    %1373 = vmatpush1.msra.mxu0 %v434
    %1374 = vmatprep.subr.mxu0 0.0
    %1375 = vmatpush1.msra.mxu0 %v437
    %1376 = vmatprep.subr.mxu0 0.0
    %1377 = vmatpush1.msra.mxu0 %v440
    %1378 = vmatprep.subr.mxu0 0.0
    %1379 = vmatpush1.msra.mxu0 %v443
    %1380 = vmatprep.subr.mxu0 0.0
    %1381 = vmatpush1.msra.mxu0 %v446
    %1382 = vmatprep.subr.mxu0 0.0
    %1383 = vmatpush1.msra.mxu0 %v449
    %1384 = vmatprep.subr.mxu0 0.0
    %1385 = vmatpush1.msra.mxu0 0.0
    %1386 = vmatprep.subr.mxu0 0.0
    %1387 = vmatpush1.msra.mxu0 0.0
    %1388 = vmatprep.subr.mxu0 0.0
    %1389 = vmatpush1.msra.mxu0 0.0
    %1390 = vmatprep.subr.mxu0 0.0
    %1391 = vmatpush1.msra.mxu0 0.0
    %1392 = vmatprep.subr.mxu0 0.0
    %1393 = vmatpush1.msra.mxu0 0.0
    %1394 = vmatprep.subr.mxu0 0.0
    %1395 = vmatpush1.msra.mxu0 0.0
    %1396 = vmatprep.subr.mxu0 0.0
    %1397 = vmatpush1.msra.mxu0 0.0
    %1398 = vmatprep.subr.mxu0 0.0
    %1399 = vmatpush1.msra.mxu0 0.0
    %1400 = vmatprep.subr.mxu0 0.0
    %1401 = vmatpush1.msra.mxu0 0.0
    %1402 = vmatprep.subr.mxu0 0.0
    %1403 = vmatpush1.msra.mxu0 0.0
    %1404 = vmatprep.subr.mxu0 0.0
    %1405 = vmatpush1.msra.mxu0 0.0
    %1406 = vmatprep.subr.mxu0 0.0
    %1407 = vmatpush1.msra.mxu0 0.0
    %1408 = vmatprep.subr.mxu0 0.0
    %1409 = vmatpush1.msra.mxu0 0.0
    %1410 = vmatprep.subr.mxu0 0.0
    %1411 = vmatpush1.msra.mxu0 0.0
    %1412 = vmatprep.subr.mxu0 0.0
    %1413 = vmatpush1.msra.mxu0 0.0
    %1414 = vmatprep.subr.mxu0 0.0
    %1415 = vmatpush1.msra.mxu0 0.0
    %1416 = vmatprep.mubr.f32.mxu0 0.0
    %1417 = vmatmul.mubr.f32.gmra.mrb[0].mxu0 %v1278
    %v1418 = vpop.f32.mrb[0].mxu0
    %v1419 = vadd.f32 0.0, %v1418
    %v1420 = vpop.f32.mrb[0].mxu0
    %1421 = vdwg.mxu0
    %s1422 = scalar_lea.vmem [#allocation4], 120
    %v1423 = vld [vmem:[%s1422] sm:$0xff]
    %v1424 = vld [vmem:[%s1422 + $0x8] sm:$0xff]
    %v1425 = vld [vmem:[%s1422 + $0x10] sm:$0xff]
    %v1426 = vadd.f32 %v1423, %v1348
    %v1427 = vmul.f32 %v1426, 0.5
    %v1428 = vtanh.pop %v1427
    %v1429 = vmul.f32 %v1428, 0.5
    %v1430 = vadd.f32 %v1429, 0.5
    %v1431 = vadd.f32 %v1424, %v1350
    %v1432 = vmul.f32 %v1431, 0.5
    %v1433 = vtanh.pop %v1432
    %v1434 = vmul.f32 %v1433, 0.5
    %v1435 = vadd.f32 %v1434, 0.5
    %v1436 = vadd.f32 %v1419, %v610
    %v1437 = vmul.f32 %v1430, %v1436
    %v1438 = vadd.f32 %v1425, %v1437
    %v1439 = vtanh.pop %v1438
    %v1440 = vsub.f32 1.0, %v1435
    %v1441 = vmul.f32 %v1440, %v1439
    %v1442 = vmul.f32 %v1435, %v1278
    %v1443 = vadd.f32 %v1441, %v1442
    %s1444 = scalar_lea.vmem [#allocation3], 40
    %1445 = vst [vmem:[%s1444] sm:$0xff] %v1443
    %1446 = vmatprep.subr.mxu0 %v403
    %1447 = vmatpush1.msra.mxu0 %v402
    %1448 = vmatprep.subr.mxu0 %v406
    %1449 = vmatpush1.msra.mxu0 %v405
    %1450 = vmatprep.subr.mxu0 %v409
    %1451 = vmatpush1.msra.mxu0 %v408
    %1452 = vmatprep.subr.mxu0 %v412
    %1453 = vmatpush1.msra.mxu0 %v411
    %1454 = vmatprep.subr.mxu0 %v415
    %1455 = vmatpush1.msra.mxu0 %v414
    %1456 = vmatprep.subr.mxu0 %v418
    %1457 = vmatpush1.msra.mxu0 %v417
    %1458 = vmatprep.subr.mxu0 %v421
    %1459 = vmatpush1.msra.mxu0 %v420
    %1460 = vmatprep.subr.mxu0 %v424
    %1461 = vmatpush1.msra.mxu0 %v423
    %1462 = vmatprep.subr.mxu0 %v427
    %1463 = vmatpush1.msra.mxu0 %v426
    %1464 = vmatprep.subr.mxu0 %v430
    %1465 = vmatpush1.msra.mxu0 %v429
    %1466 = vmatprep.subr.mxu0 %v433
    %1467 = vmatpush1.msra.mxu0 %v432
    %1468 = vmatprep.subr.mxu0 %v436
    %1469 = vmatpush1.msra.mxu0 %v435
    %1470 = vmatprep.subr.mxu0 %v439
    %1471 = vmatpush1.msra.mxu0 %v438
    %1472 = vmatprep.subr.mxu0 %v442
    %1473 = vmatpush1.msra.mxu0 %v441
    %1474 = vmatprep.subr.mxu0 %v445
    %1475 = vmatpush1.msra.mxu0 %v444
    %1476 = vmatprep.subr.mxu0 %v448
    %1477 = vmatpush1.msra.mxu0 %v447
    %1478 = vmatprep.subr.mxu0 0.0
    %1479 = vmatpush1.msra.mxu0 0.0
    %1480 = vmatprep.subr.mxu0 0.0
    %1481 = vmatpush1.msra.mxu0 0.0
    %1482 = vmatprep.subr.mxu0 0.0
    %1483 = vmatpush1.msra.mxu0 0.0
    %1484 = vmatprep.subr.mxu0 0.0
    %1485 = vmatpush1.msra.mxu0 0.0
    %1486 = vmatprep.subr.mxu0 0.0
    %1487 = vmatpush1.msra.mxu0 0.0
    %1488 = vmatprep.subr.mxu0 0.0
    %1489 = vmatpush1.msra.mxu0 0.0
    %1490 = vmatprep.subr.mxu0 0.0
    %1491 = vmatpush1.msra.mxu0 0.0
    %1492 = vmatprep.subr.mxu0 0.0
    %1493 = vmatpush1.msra.mxu0 0.0
    %1494 = vmatprep.subr.mxu0 0.0
    %1495 = vmatpush1.msra.mxu0 0.0
    %1496 = vmatprep.subr.mxu0 0.0
    %1497 = vmatpush1.msra.mxu0 0.0
    %1498 = vmatprep.subr.mxu0 0.0
    %1499 = vmatpush1.msra.mxu0 0.0
    %1500 = vmatprep.subr.mxu0 0.0
    %1501 = vmatpush1.msra.mxu0 0.0
    %1502 = vmatprep.subr.mxu0 0.0
    %1503 = vmatpush1.msra.mxu0 0.0
    %1504 = vmatprep.subr.mxu0 0.0
    %1505 = vmatpush1.msra.mxu0 0.0
    %1506 = vmatprep.subr.mxu0 0.0
    %1507 = vmatpush1.msra.mxu0 0.0
    %1508 = vmatprep.subr.mxu0 0.0
    %1509 = vmatpush1.msra.mxu0 0.0
    %1510 = vmatprep.mubr.f32.mxu0 0.0
    %1511 = vmatmul.mubr.f32.gmra.mrb[0].mxu0 %v1443
    %v1512 = vpop.f32.mrb[0].mxu0
    %v1513 = vadd.f32 0.0, %v1512
    %v1514 = vpop.f32.mrb[0].mxu0
    %v1515 = vadd.f32 0.0, %v1514
    %1516 = vdwg.mxu0
    %1517 = vmatprep.subr.mxu0 0.0
    %1518 = vmatpush1.msra.mxu0 %v404
    %1519 = vmatprep.subr.mxu0 0.0
    %1520 = vmatpush1.msra.mxu0 %v407
    %1521 = vmatprep.subr.mxu0 0.0
    %1522 = vmatpush1.msra.mxu0 %v410
    %1523 = vmatprep.subr.mxu0 0.0
    %1524 = vmatpush1.msra.mxu0 %v413
    %1525 = vmatprep.subr.mxu0 0.0
    %1526 = vmatpush1.msra.mxu0 %v416
    %1527 = vmatprep.subr.mxu0 0.0
    %1528 = vmatpush1.msra.mxu0 %v419
    %1529 = vmatprep.subr.mxu0 0.0
    %1530 = vmatpush1.msra.mxu0 %v422
    %1531 = vmatprep.subr.mxu0 0.0
    %1532 = vmatpush1.msra.mxu0 %v425
    %1533 = vmatprep.subr.mxu0 0.0
    %1534 = vmatpush1.msra.mxu0 %v428
    %1535 = vmatprep.subr.mxu0 0.0
    %1536 = vmatpush1.msra.mxu0 %v431
    %1537 = vmatprep.subr.mxu0 0.0
    %1538 = vmatpush1.msra.mxu0 %v434
    %1539 = vmatprep.subr.mxu0 0.0
    %1540 = vmatpush1.msra.mxu0 %v437
    %1541 = vmatprep.subr.mxu0 0.0
    %1542 = vmatpush1.msra.mxu0 %v440
    %1543 = vmatprep.subr.mxu0 0.0
    %1544 = vmatpush1.msra.mxu0 %v443
    %1545 = vmatprep.subr.mxu0 0.0
    %1546 = vmatpush1.msra.mxu0 %v446
    %1547 = vmatprep.subr.mxu0 0.0
    %1548 = vmatpush1.msra.mxu0 %v449
    %1549 = vmatprep.subr.mxu0 0.0
    %1550 = vmatpush1.msra.mxu0 0.0
    %1551 = vmatprep.subr.mxu0 0.0
    %1552 = vmatpush1.msra.mxu0 0.0
    %1553 = vmatprep.subr.mxu0 0.0
    %1554 = vmatpush1.msra.mxu0 0.0
    %1555 = vmatprep.subr.mxu0 0.0
    %1556 = vmatpush1.msra.mxu0 0.0
    %1557 = vmatprep.subr.mxu0 0.0
    %1558 = vmatpush1.msra.mxu0 0.0
    %1559 = vmatprep.subr.mxu0 0.0
    %1560 = vmatpush1.msra.mxu0 0.0
    %1561 = vmatprep.subr.mxu0 0.0
    %1562 = vmatpush1.msra.mxu0 0.0
    %1563 = vmatprep.subr.mxu0 0.0
    %1564 = vmatpush1.msra.mxu0 0.0
    %1565 = vmatprep.subr.mxu0 0.0
    %1566 = vmatpush1.msra.mxu0 0.0
    %1567 = vmatprep.subr.mxu0 0.0
    %1568 = vmatpush1.msra.mxu0 0.0
    %1569 = vmatprep.subr.mxu0 0.0
    %1570 = vmatpush1.msra.mxu0 0.0
    %1571 = vmatprep.subr.mxu0 0.0
    %1572 = vmatpush1.msra.mxu0 0.0
    %1573 = vmatprep.subr.mxu0 0.0
    %1574 = vmatpush1.msra.mxu0 0.0
    %1575 = vmatprep.subr.mxu0 0.0
    %1576 = vmatpush1.msra.mxu0 0.0
    %1577 = vmatprep.subr.mxu0 0.0
    %1578 = vmatpush1.msra.mxu0 0.0
    %1579 = vmatprep.subr.mxu0 0.0
    %1580 = vmatpush1.msra.mxu0 0.0
    %1581 = vmatprep.mubr.f32.mxu0 0.0
    %1582 = vmatmul.mubr.f32.gmra.mrb[0].mxu0 %v1443
    %v1583 = vpop.f32.mrb[0].mxu0
    %v1584 = vadd.f32 0.0, %v1583
    %v1585 = vpop.f32.mrb[0].mxu0
    %1586 = vdwg.mxu0
    %s1587 = scalar_lea.vmem [#allocation4], 144
    %v1588 = vld [vmem:[%s1587] sm:$0xff]
    %v1589 = vld [vmem:[%s1587 + $0x8] sm:$0xff]
    %v1590 = vld [vmem:[%s1587 + $0x10] sm:$0xff]
    %v1591 = vadd.f32 %v1588, %v1513
    %v1592 = vmul.f32 %v1591, 0.5
    %v1593 = vtanh.pop %v1592
    %v1594 = vmul.f32 %v1593, 0.5
    %v1595 = vadd.f32 %v1594, 0.5
    %v1596 = vadd.f32 %v1589, %v1515
    %v1597 = vmul.f32 %v1596, 0.5
    %v1598 = vtanh.pop %v1597
    %v1599 = vmul.f32 %v1598, 0.5
    %v1600 = vadd.f32 %v1599, 0.5
    %v1601 = vadd.f32 %v1584, %v610
    %v1602 = vmul.f32 %v1595, %v1601
    %v1603 = vadd.f32 %v1590, %v1602
    %v1604 = vtanh.pop %v1603
    %v1605 = vsub.f32 1.0, %v1600
    %v1606 = vmul.f32 %v1605, %v1604
    %v1607 = vmul.f32 %v1600, %v1443
    %v1608 = vadd.f32 %v1606, %v1607
    %s1609 = scalar_lea.vmem [#allocation3], 48
    %1610 = vst [vmem:[%s1609] sm:$0xff] %v1608
    %1611 = vmatprep.subr.mxu0 %v403
    %1612 = vmatpush1.msra.mxu0 %v402
    %1613 = vmatprep.subr.mxu0 %v406
    %1614 = vmatpush1.msra.mxu0 %v405
    %1615 = vmatprep.subr.mxu0 %v409
    %1616 = vmatpush1.msra.mxu0 %v408
    %1617 = vmatprep.subr.mxu0 %v412
    %1618 = vmatpush1.msra.mxu0 %v411
    %1619 = vmatprep.subr.mxu0 %v415
    %1620 = vmatpush1.msra.mxu0 %v414
    %1621 = vmatprep.subr.mxu0 %v418
    %1622 = vmatpush1.msra.mxu0 %v417
    %1623 = vmatprep.subr.mxu0 %v421
    %1624 = vmatpush1.msra.mxu0 %v420
    %1625 = vmatprep.subr.mxu0 %v424
    %1626 = vmatpush1.msra.mxu0 %v423
    %1627 = vmatprep.subr.mxu0 %v427
    %1628 = vmatpush1.msra.mxu0 %v426
    %1629 = vmatprep.subr.mxu0 %v430
    %1630 = vmatpush1.msra.mxu0 %v429
    %1631 = vmatprep.subr.mxu0 %v433
    %1632 = vmatpush1.msra.mxu0 %v432
    %1633 = vmatprep.subr.mxu0 %v436
    %1634 = vmatpush1.msra.mxu0 %v435
    %1635 = vmatprep.subr.mxu0 %v439
    %1636 = vmatpush1.msra.mxu0 %v438
    %1637 = vmatprep.subr.mxu0 %v442
    %1638 = vmatpush1.msra.mxu0 %v441
    %1639 = vmatprep.subr.mxu0 %v445
    %1640 = vmatpush1.msra.mxu0 %v444
    %1641 = vmatprep.subr.mxu0 %v448
    %1642 = vmatpush1.msra.mxu0 %v447
    %1643 = vmatprep.subr.mxu0 0.0
    %1644 = vmatpush1.msra.mxu0 0.0
    %1645 = vmatprep.subr.mxu0 0.0
    %1646 = vmatpush1.msra.mxu0 0.0
    %1647 = vmatprep.subr.mxu0 0.0
    %1648 = vmatpush1.msra.mxu0 0.0
    %1649 = vmatprep.subr.mxu0 0.0
    %1650 = vmatpush1.msra.mxu0 0.0
    %1651 = vmatprep.subr.mxu0 0.0
    %1652 = vmatpush1.msra.mxu0 0.0
    %1653 = vmatprep.subr.mxu0 0.0
    %1654 = vmatpush1.msra.mxu0 0.0
    %1655 = vmatprep.subr.mxu0 0.0
    %1656 = vmatpush1.msra.mxu0 0.0
    %1657 = vmatprep.subr.mxu0 0.0
    %1658 = vmatpush1.msra.mxu0 0.0
    %1659 = vmatprep.subr.mxu0 0.0
    %1660 = vmatpush1.msra.mxu0 0.0
    %1661 = vmatprep.subr.mxu0 0.0
    %1662 = vmatpush1.msra.mxu0 0.0
    %1663 = vmatprep.subr.mxu0 0.0
    %1664 = vmatpush1.msra.mxu0 0.0
    %1665 = vmatprep.subr.mxu0 0.0
    %1666 = vmatpush1.msra.mxu0 0.0
    %1667 = vmatprep.subr.mxu0 0.0
    %1668 = vmatpush1.msra.mxu0 0.0
    %1669 = vmatprep.subr.mxu0 0.0
    %1670 = vmatpush1.msra.mxu0 0.0
    %1671 = vmatprep.subr.mxu0 0.0
    %1672 = vmatpush1.msra.mxu0 0.0
    %1673 = vmatprep.subr.mxu0 0.0
    %1674 = vmatpush1.msra.mxu0 0.0
    %1675 = vmatprep.mubr.f32.mxu0 0.0
    %1676 = vmatmul.mubr.f32.gmra.mrb[0].mxu0 %v1608
    %v1677 = vpop.f32.mrb[0].mxu0
    %v1678 = vadd.f32 0.0, %v1677
    %v1679 = vpop.f32.mrb[0].mxu0
    %v1680 = vadd.f32 0.0, %v1679
    %1681 = vdwg.mxu0
    %1682 = vmatprep.subr.mxu0 0.0
    %1683 = vmatpush1.msra.mxu0 %v404
    %1684 = vmatprep.subr.mxu0 0.0
    %1685 = vmatpush1.msra.mxu0 %v407
    %1686 = vmatprep.subr.mxu0 0.0
    %1687 = vmatpush1.msra.mxu0 %v410
    %1688 = vmatprep.subr.mxu0 0.0
    %1689 = vmatpush1.msra.mxu0 %v413
    %1690 = vmatprep.subr.mxu0 0.0
    %1691 = vmatpush1.msra.mxu0 %v416
    %1692 = vmatprep.subr.mxu0 0.0
    %1693 = vmatpush1.msra.mxu0 %v419
    %1694 = vmatprep.subr.mxu0 0.0
    %1695 = vmatpush1.msra.mxu0 %v422
    %1696 = vmatprep.subr.mxu0 0.0
    %1697 = vmatpush1.msra.mxu0 %v425
    %1698 = vmatprep.subr.mxu0 0.0
    %1699 = vmatpush1.msra.mxu0 %v428
    %1700 = vmatprep.subr.mxu0 0.0
    %1701 = vmatpush1.msra.mxu0 %v431
    %1702 = vmatprep.subr.mxu0 0.0
    %1703 = vmatpush1.msra.mxu0 %v434
    %1704 = vmatprep.subr.mxu0 0.0
    %1705 = vmatpush1.msra.mxu0 %v437
    %1706 = vmatprep.subr.mxu0 0.0
    %1707 = vmatpush1.msra.mxu0 %v440
    %1708 = vmatprep.subr.mxu0 0.0
    %1709 = vmatpush1.msra.mxu0 %v443
    %1710 = vmatprep.subr.mxu0 0.0
    %1711 = vmatpush1.msra.mxu0 %v446
    %1712 = vmatprep.subr.mxu0 0.0
    %1713 = vmatpush1.msra.mxu0 %v449
    %1714 = vmatprep.subr.mxu0 0.0
    %1715 = vmatpush1.msra.mxu0 0.0
    %1716 = vmatprep.subr.mxu0 0.0
    %1717 = vmatpush1.msra.mxu0 0.0
    %1718 = vmatprep.subr.mxu0 0.0
    %1719 = vmatpush1.msra.mxu0 0.0
    %1720 = vmatprep.subr.mxu0 0.0
    %1721 = vmatpush1.msra.mxu0 0.0
    %1722 = vmatprep.subr.mxu0 0.0
    %1723 = vmatpush1.msra.mxu0 0.0
    %1724 = vmatprep.subr.mxu0 0.0
    %1725 = vmatpush1.msra.mxu0 0.0
    %1726 = vmatprep.subr.mxu0 0.0
    %1727 = vmatpush1.msra.mxu0 0.0
    %1728 = vmatprep.subr.mxu0 0.0
    %1729 = vmatpush1.msra.mxu0 0.0
    %1730 = vmatprep.subr.mxu0 0.0
    %1731 = vmatpush1.msra.mxu0 0.0
    %1732 = vmatprep.subr.mxu0 0.0
    %1733 = vmatpush1.msra.mxu0 0.0
    %1734 = vmatprep.subr.mxu0 0.0
    %1735 = vmatpush1.msra.mxu0 0.0
    %1736 = vmatprep.subr.mxu0 0.0
    %1737 = vmatpush1.msra.mxu0 0.0
    %1738 = vmatprep.subr.mxu0 0.0
    %1739 = vmatpush1.msra.mxu0 0.0
    %1740 = vmatprep.subr.mxu0 0.0
    %1741 = vmatpush1.msra.mxu0 0.0
    %1742 = vmatprep.subr.mxu0 0.0
    %1743 = vmatpush1.msra.mxu0 0.0
    %1744 = vmatprep.subr.mxu0 0.0
    %1745 = vmatpush1.msra.mxu0 0.0
    %1746 = vmatprep.mubr.f32.mxu0 0.0
    %1747 = vmatmul.mubr.f32.gmra.mrb[0].mxu0 %v1608
    %v1748 = vpop.f32.mrb[0].mxu0
    %v1749 = vadd.f32 0.0, %v1748
    %v1750 = vpop.f32.mrb[0].mxu0
    %1751 = vdwg.mxu0
    %s1752 = scalar_lea.vmem [#allocation4], 168
    %v1753 = vld [vmem:[%s1752] sm:$0xff]
    %v1754 = vld [vmem:[%s1752 + $0x8] sm:$0xff]
    %v1755 = vld [vmem:[%s1752 + $0x10] sm:$0xff]
    %v1756 = vadd.f32 %v1753, %v1678
    %v1757 = vmul.f32 %v1756, 0.5
    %v1758 = vtanh.pop %v1757
    %v1759 = vmul.f32 %v1758, 0.5
    %v1760 = vadd.f32 %v1759, 0.5
    %v1761 = vadd.f32 %v1754, %v1680
    %v1762 = vmul.f32 %v1761, 0.5
    %v1763 = vtanh.pop %v1762
    %v1764 = vmul.f32 %v1763, 0.5
    %v1765 = vadd.f32 %v1764, 0.5
    %v1766 = vadd.f32 %v1749, %v610
    %v1767 = vmul.f32 %v1760, %v1766
    %v1768 = vadd.f32 %v1755, %v1767
    %v1769 = vtanh.pop %v1768
    %v1770 = vsub.f32 1.0, %v1765
    %v1771 = vmul.f32 %v1770, %v1769
    %v1772 = vmul.f32 %v1765, %v1608
    %v1773 = vadd.f32 %v1771, %v1772
    %s1774 = scalar_lea.vmem [#allocation3], 56
    %1775 = vst [vmem:[%s1774] sm:$0xff] %v1773
    %1776 = vst [vmem:[#allocation2] sm:$0xff] %v1773
    %v1777 = vld [vmem:[#allocation3] sm:$0xff]
    %v1778 = vld [vmem:[#allocation3 + $0x8] sm:$0xff]
    %v1779 = vld [vmem:[#allocation3 + $0x10] sm:$0xff]
    %v1780 = vld [vmem:[#allocation3 + $0x18] sm:$0xff]
    %v1781 = vld [vmem:[#allocation3 + $0x20] sm:$0xff]
    %v1782 = vld [vmem:[#allocation3 + $0x28] sm:$0xff]
    %v1783 = vld [vmem:[#allocation3 + $0x30] sm:$0xff]
    %v1784 = vld [vmem:[#allocation3 + $0x38] sm:$0xff]
    %v1785 = vld [vmem:[#allocation10] sm:$0xff]
    %v1786 = vld [vmem:[#allocation10 + $0x8] sm:$0xff]
    %v1787 = vld [vmem:[#allocation10 + $0x10] sm:$0xff]
    %v1788 = vld [vmem:[#allocation10 + $0x18] sm:$0xff]
    %v1789 = vld [vmem:[#allocation10 + $0x20] sm:$0xff]
    %v1790 = vld [vmem:[#allocation10 + $0x28] sm:$0xff]
    %v1791 = vld [vmem:[#allocation10 + $0x30] sm:$0xff]
    %v1792 = vld [vmem:[#allocation10 + $0x38] sm:$0xff]
    %v1793 = vld [vmem:[#allocation10 + $0x40] sm:$0xff]
    %v1794 = vld [vmem:[#allocation10 + $0x48] sm:$0xff]
    %v1795 = vld [vmem:[#allocation10 + $0x50] sm:$0xff]
    %v1796 = vld [vmem:[#allocation10 + $0x58] sm:$0xff]
    %v1797 = vld [vmem:[#allocation10 + $0x60] sm:$0xff]
    %v1798 = vld [vmem:[#allocation10 + $0x68] sm:$0xff]
    %v1799 = vld [vmem:[#allocation10 + $0x70] sm:$0xff]
    %v1800 = vld [vmem:[#allocation10 + $0x78] sm:$0xff]
    %v1801 = vld [vmem:[#allocation10 + $0x80] sm:$0xff]
    %v1802 = vld [vmem:[#allocation10 + $0x88] sm:$0xff]
    %v1803 = vld [vmem:[#allocation10 + $0x90] sm:$0xff]
    %v1804 = vld [vmem:[#allocation10 + $0x98] sm:$0xff]
    %v1805 = vld [vmem:[#allocation10 + $0xa0] sm:$0xff]
    %v1806 = vld [vmem:[#allocation10 + $0xa8] sm:$0xff]
    %v1807 = vld [vmem:[#allocation10 + $0xb0] sm:$0xff]
    %v1808 = vld [vmem:[#allocation10 + $0xb8] sm:$0xff]
    %v1809 = vld [vmem:[#allocation10 + $0xc0] sm:$0xff]
    %v1810 = vld [vmem:[#allocation10 + $0xc8] sm:$0xff]
    %v1811 = vld [vmem:[#allocation10 + $0xd0] sm:$0xff]
    %v1812 = vld [vmem:[#allocation10 + $0xd8] sm:$0xff]
    %v1813 = vld [vmem:[#allocation10 + $0xe0] sm:$0xff]
    %v1814 = vld [vmem:[#allocation10 + $0xe8] sm:$0xff]
    %v1815 = vld [vmem:[#allocation10 + $0xf0] sm:$0xff]
    %v1816 = vld [vmem:[#allocation10 + $0xf8] sm:$0xff]
    %v1817 = vld [vmem:[#allocation10 + $0x100] sm:$0xff]
    %v1818 = vld [vmem:[#allocation10 + $0x108] sm:$0xff]
    %v1819 = vld [vmem:[#allocation10 + $0x110] sm:$0xff]
    %v1820 = vld [vmem:[#allocation10 + $0x118] sm:$0xff]
    %v1821 = vld [vmem:[#allocation10 + $0x120] sm:$0xff]
    %v1822 = vld [vmem:[#allocation10 + $0x128] sm:$0xff]
    %v1823 = vld [vmem:[#allocation10 + $0x130] sm:$0xff]
    %v1824 = vld [vmem:[#allocation10 + $0x138] sm:$0xff]
    %v1825 = vld [vmem:[#allocation10 + $0x140] sm:$0xff]
    %v1826 = vld [vmem:[#allocation10 + $0x148] sm:$0xff]
    %v1827 = vld [vmem:[#allocation10 + $0x150] sm:$0xff]
    %v1828 = vld [vmem:[#allocation10 + $0x158] sm:$0xff]
    %v1829 = vld [vmem:[#allocation10 + $0x160] sm:$0xff]
    %v1830 = vld [vmem:[#allocation10 + $0x168] sm:$0xff]
    %v1831 = vld [vmem:[#allocation10 + $0x170] sm:$0xff]
    %v1832 = vld [vmem:[#allocation10 + $0x178] sm:$0xff]
    %1833 = vmatprep.subr.mxu0 %v1786
    %1834 = vmatpush1.msra.mxu0 %v1785
    %1835 = vmatprep.subr.mxu0 %v1789
    %1836 = vmatpush1.msra.mxu0 %v1788
    %1837 = vmatprep.subr.mxu0 %v1792
    %1838 = vmatpush1.msra.mxu0 %v1791
    %1839 = vmatprep.subr.mxu0 %v1795
    %1840 = vmatpush1.msra.mxu0 %v1794
    %1841 = vmatprep.subr.mxu0 %v1798
    %1842 = vmatpush1.msra.mxu0 %v1797
    %1843 = vmatprep.subr.mxu0 %v1801
    %1844 = vmatpush1.msra.mxu0 %v1800
    %1845 = vmatprep.subr.mxu0 %v1804
    %1846 = vmatpush1.msra.mxu0 %v1803
    %1847 = vmatprep.subr.mxu0 %v1807
    %1848 = vmatpush1.msra.mxu0 %v1806
    %1849 = vmatprep.subr.mxu0 %v1810
    %1850 = vmatpush1.msra.mxu0 %v1809
    %1851 = vmatprep.subr.mxu0 %v1813
    %1852 = vmatpush1.msra.mxu0 %v1812
    %1853 = vmatprep.subr.mxu0 %v1816
    %1854 = vmatpush1.msra.mxu0 %v1815
    %1855 = vmatprep.subr.mxu0 %v1819
    %1856 = vmatpush1.msra.mxu0 %v1818
    %1857 = vmatprep.subr.mxu0 %v1822
    %1858 = vmatpush1.msra.mxu0 %v1821
    %1859 = vmatprep.subr.mxu0 %v1825
    %1860 = vmatpush1.msra.mxu0 %v1824
    %1861 = vmatprep.subr.mxu0 %v1828
    %1862 = vmatpush1.msra.mxu0 %v1827
    %1863 = vmatprep.subr.mxu0 %v1831
    %1864 = vmatpush1.msra.mxu0 %v1830
    %1865 = vmatprep.subr.mxu0 0.0
    %1866 = vmatpush1.msra.mxu0 0.0
    %1867 = vmatprep.subr.mxu0 0.0
    %1868 = vmatpush1.msra.mxu0 0.0
    %1869 = vmatprep.subr.mxu0 0.0
    %1870 = vmatpush1.msra.mxu0 0.0
    %1871 = vmatprep.subr.mxu0 0.0
    %1872 = vmatpush1.msra.mxu0 0.0
    %1873 = vmatprep.subr.mxu0 0.0
    %1874 = vmatpush1.msra.mxu0 0.0
    %1875 = vmatprep.subr.mxu0 0.0
    %1876 = vmatpush1.msra.mxu0 0.0
    %1877 = vmatprep.subr.mxu0 0.0
    %1878 = vmatpush1.msra.mxu0 0.0
    %1879 = vmatprep.subr.mxu0 0.0
    %1880 = vmatpush1.msra.mxu0 0.0
    %1881 = vmatprep.subr.mxu0 0.0
    %1882 = vmatpush1.msra.mxu0 0.0
    %1883 = vmatprep.subr.mxu0 0.0
    %1884 = vmatpush1.msra.mxu0 0.0
    %1885 = vmatprep.subr.mxu0 0.0
    %1886 = vmatpush1.msra.mxu0 0.0
    %1887 = vmatprep.subr.mxu0 0.0
    %1888 = vmatpush1.msra.mxu0 0.0
    %1889 = vmatprep.subr.mxu0 0.0
    %1890 = vmatpush1.msra.mxu0 0.0
    %1891 = vmatprep.subr.mxu0 0.0
    %1892 = vmatpush1.msra.mxu0 0.0
    %1893 = vmatprep.subr.mxu0 0.0
    %1894 = vmatpush1.msra.mxu0 0.0
    %1895 = vmatprep.subr.mxu0 0.0
    %1896 = vmatpush1.msra.mxu0 0.0
    %1897 = vmatprep.mubr.f32.mxu0 0.0
    %1898 = vmatmul.mubr.f32.gmra.mrb[0].mxu0 %v1777
    %v1899 = vpop.f32.mrb[0].mxu0
    %v1900 = vadd.f32 0.0, %v1899
    %v1901 = vpop.f32.mrb[0].mxu0
    %v1902 = vadd.f32 0.0, %v1901
    %1903 = vmatprep.mubr.f32.mxu0 0.0
    %1904 = vmatmul.mubr.f32.gmra.mrb[0].mxu0 %v1778
    %v1905 = vpop.f32.mrb[0].mxu0
    %v1906 = vadd.f32 0.0, %v1905
    %v1907 = vpop.f32.mrb[0].mxu0
    %v1908 = vadd.f32 0.0, %v1907
    %1909 = vmatprep.mubr.f32.mxu0 0.0
    %1910 = vmatmul.mubr.f32.gmra.mrb[0].mxu0 %v1779
    %v1911 = vpop.f32.mrb[0].mxu0
    %v1912 = vadd.f32 0.0, %v1911
    %v1913 = vpop.f32.mrb[0].mxu0
    %v1914 = vadd.f32 0.0, %v1913
    %1915 = vmatprep.mubr.f32.mxu0 0.0
    %1916 = vmatmul.mubr.f32.gmra.mrb[0].mxu0 %v1780
    %v1917 = vpop.f32.mrb[0].mxu0
    %v1918 = vadd.f32 0.0, %v1917
    %v1919 = vpop.f32.mrb[0].mxu0
    %v1920 = vadd.f32 0.0, %v1919
    %1921 = vmatprep.mubr.f32.mxu0 0.0
    %1922 = vmatmul.mubr.f32.gmra.mrb[0].mxu0 %v1781
    %v1923 = vpop.f32.mrb[0].mxu0
    %v1924 = vadd.f32 0.0, %v1923
    %v1925 = vpop.f32.mrb[0].mxu0
    %v1926 = vadd.f32 0.0, %v1925
    %1927 = vmatprep.mubr.f32.mxu0 0.0
    %1928 = vmatmul.mubr.f32.gmra.mrb[0].mxu0 %v1782
    %v1929 = vpop.f32.mrb[0].mxu0
    %v1930 = vadd.f32 0.0, %v1929
    %v1931 = vpop.f32.mrb[0].mxu0
    %v1932 = vadd.f32 0.0, %v1931
    %1933 = vmatprep.mubr.f32.mxu0 0.0
    %1934 = vmatmul.mubr.f32.gmra.mrb[0].mxu0 %v1783
    %v1935 = vpop.f32.mrb[0].mxu0
    %v1936 = vadd.f32 0.0, %v1935
    %v1937 = vpop.f32.mrb[0].mxu0
    %v1938 = vadd.f32 0.0, %v1937
    %1939 = vmatprep.mubr.f32.mxu0 0.0
    %1940 = vmatmul.mubr.f32.gmra.mrb[0].mxu0 %v1784
    %v1941 = vpop.f32.mrb[0].mxu0
    %v1942 = vadd.f32 0.0, %v1941
    %v1943 = vpop.f32.mrb[0].mxu0
    %v1944 = vadd.f32 0.0, %v1943
    %1945 = vdwg.mxu0
    %1946 = vmatprep.subr.mxu0 0.0
    %1947 = vmatpush1.msra.mxu0 %v1787
    %1948 = vmatprep.subr.mxu0 0.0
    %1949 = vmatpush1.msra.mxu0 %v1790
    %1950 = vmatprep.subr.mxu0 0.0
    %1951 = vmatpush1.msra.mxu0 %v1793
    %1952 = vmatprep.subr.mxu0 0.0
    %1953 = vmatpush1.msra.mxu0 %v1796
    %1954 = vmatprep.subr.mxu0 0.0
    %1955 = vmatpush1.msra.mxu0 %v1799
    %1956 = vmatprep.subr.mxu0 0.0
    %1957 = vmatpush1.msra.mxu0 %v1802
    %1958 = vmatprep.subr.mxu0 0.0
    %1959 = vmatpush1.msra.mxu0 %v1805
    %1960 = vmatprep.subr.mxu0 0.0
    %1961 = vmatpush1.msra.mxu0 %v1808
    %1962 = vmatprep.subr.mxu0 0.0
    %1963 = vmatpush1.msra.mxu0 %v1811
    %1964 = vmatprep.subr.mxu0 0.0
    %1965 = vmatpush1.msra.mxu0 %v1814
    %1966 = vmatprep.subr.mxu0 0.0
    %1967 = vmatpush1.msra.mxu0 %v1817
    %1968 = vmatprep.subr.mxu0 0.0
    %1969 = vmatpush1.msra.mxu0 %v1820
    %1970 = vmatprep.subr.mxu0 0.0
    %1971 = vmatpush1.msra.mxu0 %v1823
    %1972 = vmatprep.subr.mxu0 0.0
    %1973 = vmatpush1.msra.mxu0 %v1826
    %1974 = vmatprep.subr.mxu0 0.0
    %1975 = vmatpush1.msra.mxu0 %v1829
    %1976 = vmatprep.subr.mxu0 0.0
    %1977 = vmatpush1.msra.mxu0 %v1832
    %1978 = vmatprep.subr.mxu0 0.0
    %1979 = vmatpush1.msra.mxu0 0.0
    %1980 = vmatprep.subr.mxu0 0.0
    %1981 = vmatpush1.msra.mxu0 0.0
    %1982 = vmatprep.subr.mxu0 0.0
    %1983 = vmatpush1.msra.mxu0 0.0
    %1984 = vmatprep.subr.mxu0 0.0
    %1985 = vmatpush1.msra.mxu0 0.0
    %1986 = vmatprep.subr.mxu0 0.0
    %1987 = vmatpush1.msra.mxu0 0.0
    %1988 = vmatprep.subr.mxu0 0.0
    %1989 = vmatpush1.msra.mxu0 0.0
    %1990 = vmatprep.subr.mxu0 0.0
    %1991 = vmatpush1.msra.mxu0 0.0
    %1992 = vmatprep.subr.mxu0 0.0
    %1993 = vmatpush1.msra.mxu0 0.0
    %1994 = vmatprep.subr.mxu0 0.0
    %1995 = vmatpush1.msra.mxu0 0.0
    %1996 = vmatprep.subr.mxu0 0.0
    %1997 = vmatpush1.msra.mxu0 0.0
    %1998 = vmatprep.subr.mxu0 0.0
    %1999 = vmatpush1.msra.mxu0 0.0
    %2000 = vmatprep.subr.mxu0 0.0
    %2001 = vmatpush1.msra.mxu0 0.0
    %2002 = vmatprep.subr.mxu0 0.0
    %2003 = vmatpush1.msra.mxu0 0.0
    %2004 = vmatprep.subr.mxu0 0.0
    %2005 = vmatpush1.msra.mxu0 0.0
    %2006 = vmatprep.subr.mxu0 0.0
    %2007 = vmatpush1.msra.mxu0 0.0
    %2008 = vmatprep.subr.mxu0 0.0
    %2009 = vmatpush1.msra.mxu0 0.0
    %2010 = vmatprep.mubr.f32.mxu0 0.0
    %2011 = vmatmul.mubr.f32.gmra.mrb[0].mxu0 %v1777
    %v2012 = vpop.f32.mrb[0].mxu0
    %v2013 = vadd.f32 0.0, %v2012
    %v2014 = vpop.f32.mrb[0].mxu0
    %2015 = vmatprep.mubr.f32.mxu0 0.0
    %2016 = vmatmul.mubr.f32.gmra.mrb[0].mxu0 %v1778
    %v2017 = vpop.f32.mrb[0].mxu0
    %v2018 = vadd.f32 0.0, %v2017
    %v2019 = vpop.f32.mrb[0].mxu0
    %2020 = vmatprep.mubr.f32.mxu0 0.0
    %2021 = vmatmul.mubr.f32.gmra.mrb[0].mxu0 %v1779
    %v2022 = vpop.f32.mrb[0].mxu0
    %v2023 = vadd.f32 0.0, %v2022
    %v2024 = vpop.f32.mrb[0].mxu0
    %2025 = vmatprep.mubr.f32.mxu0 0.0
    %2026 = vmatmul.mubr.f32.gmra.mrb[0].mxu0 %v1780
    %v2027 = vpop.f32.mrb[0].mxu0
    %v2028 = vadd.f32 0.0, %v2027
    %v2029 = vpop.f32.mrb[0].mxu0
    %2030 = vmatprep.mubr.f32.mxu0 0.0
    %2031 = vmatmul.mubr.f32.gmra.mrb[0].mxu0 %v1781
    %v2032 = vpop.f32.mrb[0].mxu0
    %v2033 = vadd.f32 0.0, %v2032
    %v2034 = vpop.f32.mrb[0].mxu0
    %2035 = vmatprep.mubr.f32.mxu0 0.0
    %2036 = vmatmul.mubr.f32.gmra.mrb[0].mxu0 %v1782
    %v2037 = vpop.f32.mrb[0].mxu0
    %v2038 = vadd.f32 0.0, %v2037
    %v2039 = vpop.f32.mrb[0].mxu0
    %2040 = vmatprep.mubr.f32.mxu0 0.0
    %2041 = vmatmul.mubr.f32.gmra.mrb[0].mxu0 %v1783
    %v2042 = vpop.f32.mrb[0].mxu0
    %v2043 = vadd.f32 0.0, %v2042
    %v2044 = vpop.f32.mrb[0].mxu0
    %2045 = vmatprep.mubr.f32.mxu0 0.0
    %2046 = vmatmul.mubr.f32.gmra.mrb[0].mxu0 %v1784
    %v2047 = vpop.f32.mrb[0].mxu0
    %v2048 = vadd.f32 0.0, %v2047
    %v2049 = vpop.f32.mrb[0].mxu0
    %2050 = vdwg.mxu0
    %s2051 = scalar_lea.vmem %s4, 3
    %v2052 = vld [vmem:[%s2051] sm:$0x7]
    %v2054 = vlaneseq
    %v2055 = vshrl.u32 %v2054, 7
    %v2056 = vsub.s32 0, %v2055
    %v2057 = vrot.slane %v2052, %v2056
    %v2058 = vlaneseq
    %v2059 = vshrl.u32 %v2058, 7
    %v2060 = vsub.s32 1, %v2059
    %v2061 = vrot.slane %v2052, %v2060
    %v2062 = vlaneseq
    %v2063 = vshrl.u32 %v2062, 7
    %v2064 = vsub.s32 2, %v2063
    %v2065 = vrot.slane %v2052, %v2064
    %v2069 = vadd.f32 %v1900, %v2057
    %v2070 = vadd.f32 %v1902, %v2061
    %v2071 = vadd.f32 %v2013, %v2065
    %v2072 = vadd.f32 %v1906, %v2057
    %v2073 = vadd.f32 %v1908, %v2061
    %v2074 = vadd.f32 %v2018, %v2065
    %v2075 = vadd.f32 %v1912, %v2057
    %v2076 = vadd.f32 %v1914, %v2061
    %v2077 = vadd.f32 %v2023, %v2065
    %v2078 = vadd.f32 %v1918, %v2057
    %v2079 = vadd.f32 %v1920, %v2061
    %v2080 = vadd.f32 %v2028, %v2065
    %v2081 = vadd.f32 %v1924, %v2057
    %v2082 = vadd.f32 %v1926, %v2061
    %v2083 = vadd.f32 %v2033, %v2065
    %v2084 = vadd.f32 %v1930, %v2057
    %v2085 = vadd.f32 %v1932, %v2061
    %v2086 = vadd.f32 %v2038, %v2065
    %v2087 = vadd.f32 %v1936, %v2057
    %v2088 = vadd.f32 %v1938, %v2061
    %v2089 = vadd.f32 %v2043, %v2065
    %v2090 = vadd.f32 %v1942, %v2057
    %v2091 = vadd.f32 %v1944, %v2061
    %v2092 = vadd.f32 %v2048, %v2065
    %2093 = vst [vmem:[#allocation4] sm:$0xff] %v2069
    %2094 = vst [vmem:[#allocation4 + $0x8] sm:$0xff] %v2070
    %2095 = vst [vmem:[#allocation4 + $0x10] sm:$0xff] %v2071
    %2096 = vst [vmem:[#allocation4 + $0x18] sm:$0xff] %v2072
    %2097 = vst [vmem:[#allocation4 + $0x20] sm:$0xff] %v2073
    %2098 = vst [vmem:[#allocation4 + $0x28] sm:$0xff] %v2074
    %2099 = vst [vmem:[#allocation4 + $0x30] sm:$0xff] %v2075
    %2100 = vst [vmem:[#allocation4 + $0x38] sm:$0xff] %v2076
    %2101 = vst [vmem:[#allocation4 + $0x40] sm:$0xff] %v2077
    %2102 = vst [vmem:[#allocation4 + $0x48] sm:$0xff] %v2078
    %2103 = vst [vmem:[#allocation4 + $0x50] sm:$0xff] %v2079
    %2104 = vst [vmem:[#allocation4 + $0x58] sm:$0xff] %v2080
    %2105 = vst [vmem:[#allocation4 + $0x60] sm:$0xff] %v2081
    %2106 = vst [vmem:[#allocation4 + $0x68] sm:$0xff] %v2082
    %2107 = vst [vmem:[#allocation4 + $0x70] sm:$0xff] %v2083
    %2108 = vst [vmem:[#allocation4 + $0x78] sm:$0xff] %v2084
    %2109 = vst [vmem:[#allocation4 + $0x80] sm:$0xff] %v2085
    %2110 = vst [vmem:[#allocation4 + $0x88] sm:$0xff] %v2086
    %2111 = vst [vmem:[#allocation4 + $0x90] sm:$0xff] %v2087
    %2112 = vst [vmem:[#allocation4 + $0x98] sm:$0xff] %v2088
    %2113 = vst [vmem:[#allocation4 + $0xa0] sm:$0xff] %v2089
    %2114 = vst [vmem:[#allocation4 + $0xa8] sm:$0xff] %v2090
    %2115 = vst [vmem:[#allocation4 + $0xb0] sm:$0xff] %v2091
    %2116 = vst [vmem:[#allocation4 + $0xb8] sm:$0xff] %v2092
    %s2117 = scalar_lea.vmem [#allocation11], 384
    %v2118 = vld [vmem:[%s2117] sm:$0xff]
    %v2119 = vld [vmem:[%s2117 + $0x8] sm:$0xff]
    %v2120 = vld [vmem:[%s2117 + $0x10] sm:$0xff]
    %v2121 = vld [vmem:[%s2117 + $0x18] sm:$0xff]
    %v2122 = vld [vmem:[%s2117 + $0x20] sm:$0xff]
    %v2123 = vld [vmem:[%s2117 + $0x28] sm:$0xff]
    %v2124 = vld [vmem:[%s2117 + $0x30] sm:$0xff]
    %v2125 = vld [vmem:[%s2117 + $0x38] sm:$0xff]
    %v2126 = vld [vmem:[%s2117 + $0x40] sm:$0xff]
    %v2127 = vld [vmem:[%s2117 + $0x48] sm:$0xff]
    %v2128 = vld [vmem:[%s2117 + $0x50] sm:$0xff]
    %v2129 = vld [vmem:[%s2117 + $0x58] sm:$0xff]
    %v2130 = vld [vmem:[%s2117 + $0x60] sm:$0xff]
    %v2131 = vld [vmem:[%s2117 + $0x68] sm:$0xff]
    %v2132 = vld [vmem:[%s2117 + $0x70] sm:$0xff]
    %v2133 = vld [vmem:[%s2117 + $0x78] sm:$0xff]
    %v2134 = vld [vmem:[%s2117 + $0x80] sm:$0xff]
    %v2135 = vld [vmem:[%s2117 + $0x88] sm:$0xff]
    %v2136 = vld [vmem:[%s2117 + $0x90] sm:$0xff]
    %v2137 = vld [vmem:[%s2117 + $0x98] sm:$0xff]
    %v2138 = vld [vmem:[%s2117 + $0xa0] sm:$0xff]
    %v2139 = vld [vmem:[%s2117 + $0xa8] sm:$0xff]
    %v2140 = vld [vmem:[%s2117 + $0xb0] sm:$0xff]
    %v2141 = vld [vmem:[%s2117 + $0xb8] sm:$0xff]
    %v2142 = vld [vmem:[%s2117 + $0xc0] sm:$0xff]
    %v2143 = vld [vmem:[%s2117 + $0xc8] sm:$0xff]
    %v2144 = vld [vmem:[%s2117 + $0xd0] sm:$0xff]
    %v2145 = vld [vmem:[%s2117 + $0xd8] sm:$0xff]
    %v2146 = vld [vmem:[%s2117 + $0xe0] sm:$0xff]
    %v2147 = vld [vmem:[%s2117 + $0xe8] sm:$0xff]
    %v2148 = vld [vmem:[%s2117 + $0xf0] sm:$0xff]
    %v2149 = vld [vmem:[%s2117 + $0xf8] sm:$0xff]
    %v2150 = vld [vmem:[%s2117 + $0x100] sm:$0xff]
    %v2151 = vld [vmem:[%s2117 + $0x108] sm:$0xff]
    %v2152 = vld [vmem:[%s2117 + $0x110] sm:$0xff]
    %v2153 = vld [vmem:[%s2117 + $0x118] sm:$0xff]
    %v2154 = vld [vmem:[%s2117 + $0x120] sm:$0xff]
    %v2155 = vld [vmem:[%s2117 + $0x128] sm:$0xff]
    %v2156 = vld [vmem:[%s2117 + $0x130] sm:$0xff]
    %v2157 = vld [vmem:[%s2117 + $0x138] sm:$0xff]
    %v2158 = vld [vmem:[%s2117 + $0x140] sm:$0xff]
    %v2159 = vld [vmem:[%s2117 + $0x148] sm:$0xff]
    %v2160 = vld [vmem:[%s2117 + $0x150] sm:$0xff]
    %v2161 = vld [vmem:[%s2117 + $0x158] sm:$0xff]
    %v2162 = vld [vmem:[%s2117 + $0x160] sm:$0xff]
    %v2163 = vld [vmem:[%s2117 + $0x168] sm:$0xff]
    %v2164 = vld [vmem:[%s2117 + $0x170] sm:$0xff]
    %v2165 = vld [vmem:[%s2117 + $0x178] sm:$0xff]
    %s2166 = scalar_lea.vmem %s5, 1
    %v2167 = vld [vmem:[%s2166] sm:$0x1]
    %s2168 = scalar_lea.vmem [#allocation2], 8
    %v2169 = vld [vmem:[%s2168] sm:$0xff]
    %2170 = vmatprep.subr.mxu0 %v2119
    %2171 = vmatpush1.msra.mxu0 %v2118
    %2172 = vmatprep.subr.mxu0 %v2122
    %2173 = vmatpush1.msra.mxu0 %v2121
    %2174 = vmatprep.subr.mxu0 %v2125
    %2175 = vmatpush1.msra.mxu0 %v2124
    %2176 = vmatprep.subr.mxu0 %v2128
    %2177 = vmatpush1.msra.mxu0 %v2127
    %2178 = vmatprep.subr.mxu0 %v2131
    %2179 = vmatpush1.msra.mxu0 %v2130
    %2180 = vmatprep.subr.mxu0 %v2134
    %2181 = vmatpush1.msra.mxu0 %v2133
    %2182 = vmatprep.subr.mxu0 %v2137
    %2183 = vmatpush1.msra.mxu0 %v2136
    %2184 = vmatprep.subr.mxu0 %v2140
    %2185 = vmatpush1.msra.mxu0 %v2139
    %2186 = vmatprep.subr.mxu0 %v2143
    %2187 = vmatpush1.msra.mxu0 %v2142
    %2188 = vmatprep.subr.mxu0 %v2146
    %2189 = vmatpush1.msra.mxu0 %v2145
    %2190 = vmatprep.subr.mxu0 %v2149
    %2191 = vmatpush1.msra.mxu0 %v2148
    %2192 = vmatprep.subr.mxu0 %v2152
    %2193 = vmatpush1.msra.mxu0 %v2151
    %2194 = vmatprep.subr.mxu0 %v2155
    %2195 = vmatpush1.msra.mxu0 %v2154
    %2196 = vmatprep.subr.mxu0 %v2158
    %2197 = vmatpush1.msra.mxu0 %v2157
    %2198 = vmatprep.subr.mxu0 %v2161
    %2199 = vmatpush1.msra.mxu0 %v2160
    %2200 = vmatprep.subr.mxu0 %v2164
    %2201 = vmatpush1.msra.mxu0 %v2163
    %2202 = vmatprep.subr.mxu0 0.0
    %2203 = vmatpush1.msra.mxu0 0.0
    %2204 = vmatprep.subr.mxu0 0.0
    %2205 = vmatpush1.msra.mxu0 0.0
    %2206 = vmatprep.subr.mxu0 0.0
    %2207 = vmatpush1.msra.mxu0 0.0
    %2208 = vmatprep.subr.mxu0 0.0
    %2209 = vmatpush1.msra.mxu0 0.0
    %2210 = vmatprep.subr.mxu0 0.0
    %2211 = vmatpush1.msra.mxu0 0.0
    %2212 = vmatprep.subr.mxu0 0.0
    %2213 = vmatpush1.msra.mxu0 0.0
    %2214 = vmatprep.subr.mxu0 0.0
    %2215 = vmatpush1.msra.mxu0 0.0
    %2216 = vmatprep.subr.mxu0 0.0
    %2217 = vmatpush1.msra.mxu0 0.0
    %2218 = vmatprep.subr.mxu0 0.0
    %2219 = vmatpush1.msra.mxu0 0.0
    %2220 = vmatprep.subr.mxu0 0.0
    %2221 = vmatpush1.msra.mxu0 0.0
    %2222 = vmatprep.subr.mxu0 0.0
    %2223 = vmatpush1.msra.mxu0 0.0
    %2224 = vmatprep.subr.mxu0 0.0
    %2225 = vmatpush1.msra.mxu0 0.0
    %2226 = vmatprep.subr.mxu0 0.0
    %2227 = vmatpush1.msra.mxu0 0.0
    %2228 = vmatprep.subr.mxu0 0.0
    %2229 = vmatpush1.msra.mxu0 0.0
    %2230 = vmatprep.subr.mxu0 0.0
    %2231 = vmatpush1.msra.mxu0 0.0
    %2232 = vmatprep.subr.mxu0 0.0
    %2233 = vmatpush1.msra.mxu0 0.0
    %2234 = vmatprep.mubr.f32.mxu0 0.0
    %2235 = vmatmul.mubr.f32.gmra.mrb[0].mxu0 %v2169
    %v2236 = vpop.f32.mrb[0].mxu0
    %v2237 = vadd.f32 0.0, %v2236
    %v2238 = vpop.f32.mrb[0].mxu0
    %v2239 = vadd.f32 0.0, %v2238
    %2240 = vdwg.mxu0
    %2241 = vmatprep.subr.mxu0 0.0
    %2242 = vmatpush1.msra.mxu0 %v2120
    %2243 = vmatprep.subr.mxu0 0.0
    %2244 = vmatpush1.msra.mxu0 %v2123
    %2245 = vmatprep.subr.mxu0 0.0
    %2246 = vmatpush1.msra.mxu0 %v2126
    %2247 = vmatprep.subr.mxu0 0.0
    %2248 = vmatpush1.msra.mxu0 %v2129
    %2249 = vmatprep.subr.mxu0 0.0
    %2250 = vmatpush1.msra.mxu0 %v2132
    %2251 = vmatprep.subr.mxu0 0.0
    %2252 = vmatpush1.msra.mxu0 %v2135
    %2253 = vmatprep.subr.mxu0 0.0
    %2254 = vmatpush1.msra.mxu0 %v2138
    %2255 = vmatprep.subr.mxu0 0.0
    %2256 = vmatpush1.msra.mxu0 %v2141
    %2257 = vmatprep.subr.mxu0 0.0
    %2258 = vmatpush1.msra.mxu0 %v2144
    %2259 = vmatprep.subr.mxu0 0.0
    %2260 = vmatpush1.msra.mxu0 %v2147
    %2261 = vmatprep.subr.mxu0 0.0
    %2262 = vmatpush1.msra.mxu0 %v2150
    %2263 = vmatprep.subr.mxu0 0.0
    %2264 = vmatpush1.msra.mxu0 %v2153
    %2265 = vmatprep.subr.mxu0 0.0
    %2266 = vmatpush1.msra.mxu0 %v2156
    %2267 = vmatprep.subr.mxu0 0.0
    %2268 = vmatpush1.msra.mxu0 %v2159
    %2269 = vmatprep.subr.mxu0 0.0
    %2270 = vmatpush1.msra.mxu0 %v2162
    %2271 = vmatprep.subr.mxu0 0.0
    %2272 = vmatpush1.msra.mxu0 %v2165
    %2273 = vmatprep.subr.mxu0 0.0
    %2274 = vmatpush1.msra.mxu0 0.0
    %2275 = vmatprep.subr.mxu0 0.0
    %2276 = vmatpush1.msra.mxu0 0.0
    %2277 = vmatprep.subr.mxu0 0.0
    %2278 = vmatpush1.msra.mxu0 0.0
    %2279 = vmatprep.subr.mxu0 0.0
    %2280 = vmatpush1.msra.mxu0 0.0
    %2281 = vmatprep.subr.mxu0 0.0
    %2282 = vmatpush1.msra.mxu0 0.0
    %2283 = vmatprep.subr.mxu0 0.0
    %2284 = vmatpush1.msra.mxu0 0.0
    %2285 = vmatprep.subr.mxu0 0.0
    %2286 = vmatpush1.msra.mxu0 0.0
    %2287 = vmatprep.subr.mxu0 0.0
    %2288 = vmatpush1.msra.mxu0 0.0
    %2289 = vmatprep.subr.mxu0 0.0
    %2290 = vmatpush1.msra.mxu0 0.0
    %2291 = vmatprep.subr.mxu0 0.0
    %2292 = vmatpush1.msra.mxu0 0.0
    %2293 = vmatprep.subr.mxu0 0.0
    %2294 = vmatpush1.msra.mxu0 0.0
    %2295 = vmatprep.subr.mxu0 0.0
    %2296 = vmatpush1.msra.mxu0 0.0
    %2297 = vmatprep.subr.mxu0 0.0
    %2298 = vmatpush1.msra.mxu0 0.0
    %2299 = vmatprep.subr.mxu0 0.0
    %2300 = vmatpush1.msra.mxu0 0.0
    %2301 = vmatprep.subr.mxu0 0.0
    %2302 = vmatpush1.msra.mxu0 0.0
    %2303 = vmatprep.subr.mxu0 0.0
    %2304 = vmatpush1.msra.mxu0 0.0
    %2305 = vmatprep.mubr.f32.mxu0 0.0
    %2306 = vmatmul.mubr.f32.gmra.mrb[0].mxu0 %v2169
    %v2307 = vpop.f32.mrb[0].mxu0
    %v2308 = vadd.f32 0.0, %v2307
    %v2309 = vpop.f32.mrb[0].mxu0
    %2310 = vdwg.mxu0
    %v2311 = vld [vmem:[#allocation4] sm:$0xff]
    %v2312 = vld [vmem:[#allocation4 + $0x8] sm:$0xff]
    %v2313 = vld [vmem:[#allocation4 + $0x10] sm:$0xff]
    %v2314 = vadd.f32 %v2311, %v2237
    %v2315 = vmul.f32 %v2314, 0.5
    %v2316 = vtanh.pop %v2315
    %v2317 = vmul.f32 %v2316, 0.5
    %v2318 = vadd.f32 %v2317, 0.5
    %v2319 = vadd.f32 %v2312, %v2239
    %v2320 = vmul.f32 %v2319, 0.5
    %v2321 = vtanh.pop %v2320
    %v2322 = vmul.f32 %v2321, 0.5
    %v2323 = vadd.f32 %v2322, 0.5
    %v2325 = vlaneseq
    %v2326 = vshrl.u32 %v2325, 7
    %v2327 = vsub.s32 0, %v2326
    %v2328 = vrot.slane %v2167, %v2327
    %v2330 = vadd.f32 %v2308, %v2328
    %v2331 = vmul.f32 %v2318, %v2330
    %v2332 = vadd.f32 %v2313, %v2331
    %v2333 = vtanh.pop %v2332
    %v2334 = vsub.f32 1.0, %v2323
    %v2335 = vmul.f32 %v2334, %v2333
    %v2336 = vmul.f32 %v2323, %v2169
    %v2337 = vadd.f32 %v2335, %v2336
    %2338 = vst [vmem:[#allocation13] sm:$0xff] %v2337
    %2339 = vmatprep.subr.mxu0 %v2119
    %2340 = vmatpush1.msra.mxu0 %v2118
    %2341 = vmatprep.subr.mxu0 %v2122
    %2342 = vmatpush1.msra.mxu0 %v2121
    %2343 = vmatprep.subr.mxu0 %v2125
    %2344 = vmatpush1.msra.mxu0 %v2124
    %2345 = vmatprep.subr.mxu0 %v2128
    %2346 = vmatpush1.msra.mxu0 %v2127
    %2347 = vmatprep.subr.mxu0 %v2131
    %2348 = vmatpush1.msra.mxu0 %v2130
    %2349 = vmatprep.subr.mxu0 %v2134
    %2350 = vmatpush1.msra.mxu0 %v2133
    %2351 = vmatprep.subr.mxu0 %v2137
    %2352 = vmatpush1.msra.mxu0 %v2136
    %2353 = vmatprep.subr.mxu0 %v2140
    %2354 = vmatpush1.msra.mxu0 %v2139
    %2355 = vmatprep.subr.mxu0 %v2143
    %2356 = vmatpush1.msra.mxu0 %v2142
    %2357 = vmatprep.subr.mxu0 %v2146
    %2358 = vmatpush1.msra.mxu0 %v2145
    %2359 = vmatprep.subr.mxu0 %v2149
    %2360 = vmatpush1.msra.mxu0 %v2148
    %2361 = vmatprep.subr.mxu0 %v2152
    %2362 = vmatpush1.msra.mxu0 %v2151
    %2363 = vmatprep.subr.mxu0 %v2155
    %2364 = vmatpush1.msra.mxu0 %v2154
    %2365 = vmatprep.subr.mxu0 %v2158
    %2366 = vmatpush1.msra.mxu0 %v2157
    %2367 = vmatprep.subr.mxu0 %v2161
    %2368 = vmatpush1.msra.mxu0 %v2160
    %2369 = vmatprep.subr.mxu0 %v2164
    %2370 = vmatpush1.msra.mxu0 %v2163
    %2371 = vmatprep.subr.mxu0 0.0
    %2372 = vmatpush1.msra.mxu0 0.0
    %2373 = vmatprep.subr.mxu0 0.0
    %2374 = vmatpush1.msra.mxu0 0.0
    %2375 = vmatprep.subr.mxu0 0.0
    %2376 = vmatpush1.msra.mxu0 0.0
    %2377 = vmatprep.subr.mxu0 0.0
    %2378 = vmatpush1.msra.mxu0 0.0
    %2379 = vmatprep.subr.mxu0 0.0
    %2380 = vmatpush1.msra.mxu0 0.0
    %2381 = vmatprep.subr.mxu0 0.0
    %2382 = vmatpush1.msra.mxu0 0.0
    %2383 = vmatprep.subr.mxu0 0.0
    %2384 = vmatpush1.msra.mxu0 0.0
    %2385 = vmatprep.subr.mxu0 0.0
    %2386 = vmatpush1.msra.mxu0 0.0
    %2387 = vmatprep.subr.mxu0 0.0
    %2388 = vmatpush1.msra.mxu0 0.0
    %2389 = vmatprep.subr.mxu0 0.0
    %2390 = vmatpush1.msra.mxu0 0.0
    %2391 = vmatprep.subr.mxu0 0.0
    %2392 = vmatpush1.msra.mxu0 0.0
    %2393 = vmatprep.subr.mxu0 0.0
    %2394 = vmatpush1.msra.mxu0 0.0
    %2395 = vmatprep.subr.mxu0 0.0
    %2396 = vmatpush1.msra.mxu0 0.0
    %2397 = vmatprep.subr.mxu0 0.0
    %2398 = vmatpush1.msra.mxu0 0.0
    %2399 = vmatprep.subr.mxu0 0.0
    %2400 = vmatpush1.msra.mxu0 0.0
    %2401 = vmatprep.subr.mxu0 0.0
    %2402 = vmatpush1.msra.mxu0 0.0
    %2403 = vmatprep.mubr.f32.mxu0 0.0
    %2404 = vmatmul.mubr.f32.gmra.mrb[0].mxu0 %v2337
    %v2405 = vpop.f32.mrb[0].mxu0
    %v2406 = vadd.f32 0.0, %v2405
    %v2407 = vpop.f32.mrb[0].mxu0
    %v2408 = vadd.f32 0.0, %v2407
    %2409 = vdwg.mxu0
    %2410 = vmatprep.subr.mxu0 0.0
    %2411 = vmatpush1.msra.mxu0 %v2120
    %2412 = vmatprep.subr.mxu0 0.0
    %2413 = vmatpush1.msra.mxu0 %v2123
    %2414 = vmatprep.subr.mxu0 0.0
    %2415 = vmatpush1.msra.mxu0 %v2126
    %2416 = vmatprep.subr.mxu0 0.0
    %2417 = vmatpush1.msra.mxu0 %v2129
    %2418 = vmatprep.subr.mxu0 0.0
    %2419 = vmatpush1.msra.mxu0 %v2132
    %2420 = vmatprep.subr.mxu0 0.0
    %2421 = vmatpush1.msra.mxu0 %v2135
    %2422 = vmatprep.subr.mxu0 0.0
    %2423 = vmatpush1.msra.mxu0 %v2138
    %2424 = vmatprep.subr.mxu0 0.0
    %2425 = vmatpush1.msra.mxu0 %v2141
    %2426 = vmatprep.subr.mxu0 0.0
    %2427 = vmatpush1.msra.mxu0 %v2144
    %2428 = vmatprep.subr.mxu0 0.0
    %2429 = vmatpush1.msra.mxu0 %v2147
    %2430 = vmatprep.subr.mxu0 0.0
    %2431 = vmatpush1.msra.mxu0 %v2150
    %2432 = vmatprep.subr.mxu0 0.0
    %2433 = vmatpush1.msra.mxu0 %v2153
    %2434 = vmatprep.subr.mxu0 0.0
    %2435 = vmatpush1.msra.mxu0 %v2156
    %2436 = vmatprep.subr.mxu0 0.0
    %2437 = vmatpush1.msra.mxu0 %v2159
    %2438 = vmatprep.subr.mxu0 0.0
    %2439 = vmatpush1.msra.mxu0 %v2162
    %2440 = vmatprep.subr.mxu0 0.0
    %2441 = vmatpush1.msra.mxu0 %v2165
    %2442 = vmatprep.subr.mxu0 0.0
    %2443 = vmatpush1.msra.mxu0 0.0
    %2444 = vmatprep.subr.mxu0 0.0
    %2445 = vmatpush1.msra.mxu0 0.0
    %2446 = vmatprep.subr.mxu0 0.0
    %2447 = vmatpush1.msra.mxu0 0.0
    %2448 = vmatprep.subr.mxu0 0.0
    %2449 = vmatpush1.msra.mxu0 0.0
    %2450 = vmatprep.subr.mxu0 0.0
    %2451 = vmatpush1.msra.mxu0 0.0
    %2452 = vmatprep.subr.mxu0 0.0
    %2453 = vmatpush1.msra.mxu0 0.0
    %2454 = vmatprep.subr.mxu0 0.0
    %2455 = vmatpush1.msra.mxu0 0.0
    %2456 = vmatprep.subr.mxu0 0.0
    %2457 = vmatpush1.msra.mxu0 0.0
    %2458 = vmatprep.subr.mxu0 0.0
    %2459 = vmatpush1.msra.mxu0 0.0
    %2460 = vmatprep.subr.mxu0 0.0
    %2461 = vmatpush1.msra.mxu0 0.0
    %2462 = vmatprep.subr.mxu0 0.0
    %2463 = vmatpush1.msra.mxu0 0.0
    %2464 = vmatprep.subr.mxu0 0.0
    %2465 = vmatpush1.msra.mxu0 0.0
    %2466 = vmatprep.subr.mxu0 0.0
    %2467 = vmatpush1.msra.mxu0 0.0
    %2468 = vmatprep.subr.mxu0 0.0
    %2469 = vmatpush1.msra.mxu0 0.0
    %2470 = vmatprep.subr.mxu0 0.0
    %2471 = vmatpush1.msra.mxu0 0.0
    %2472 = vmatprep.subr.mxu0 0.0
    %2473 = vmatpush1.msra.mxu0 0.0
    %2474 = vmatprep.mubr.f32.mxu0 0.0
    %2475 = vmatmul.mubr.f32.gmra.mrb[0].mxu0 %v2337
    %v2476 = vpop.f32.mrb[0].mxu0
    %v2477 = vadd.f32 0.0, %v2476
    %v2478 = vpop.f32.mrb[0].mxu0
    %2479 = vdwg.mxu0
    %v2480 = vld [vmem:[%s762] sm:$0xff]
    %v2481 = vld [vmem:[%s762 + $0x8] sm:$0xff]
    %v2482 = vld [vmem:[%s762 + $0x10] sm:$0xff]
    %v2483 = vadd.f32 %v2480, %v2406
    %v2484 = vmul.f32 %v2483, 0.5
    %v2485 = vtanh.pop %v2484
    %v2486 = vmul.f32 %v2485, 0.5
    %v2487 = vadd.f32 %v2486, 0.5
    %v2488 = vadd.f32 %v2481, %v2408
    %v2489 = vmul.f32 %v2488, 0.5
    %v2490 = vtanh.pop %v2489
    %v2491 = vmul.f32 %v2490, 0.5
    %v2492 = vadd.f32 %v2491, 0.5
    %v2493 = vadd.f32 %v2477, %v2328
    %v2494 = vmul.f32 %v2487, %v2493
    %v2495 = vadd.f32 %v2482, %v2494
    %v2496 = vtanh.pop %v2495
    %v2497 = vsub.f32 1.0, %v2492
    %v2498 = vmul.f32 %v2497, %v2496
    %v2499 = vmul.f32 %v2492, %v2337
    %v2500 = vadd.f32 %v2498, %v2499
    %s2501 = scalar_lea.vmem [#allocation13], 8
    %2502 = vst [vmem:[%s2501] sm:$0xff] %v2500
    %2503 = vmatprep.subr.mxu0 %v2119
    %2504 = vmatpush1.msra.mxu0 %v2118
    %2505 = vmatprep.subr.mxu0 %v2122
    %2506 = vmatpush1.msra.mxu0 %v2121
    %2507 = vmatprep.subr.mxu0 %v2125
    %2508 = vmatpush1.msra.mxu0 %v2124
    %2509 = vmatprep.subr.mxu0 %v2128
    %2510 = vmatpush1.msra.mxu0 %v2127
    %2511 = vmatprep.subr.mxu0 %v2131
    %2512 = vmatpush1.msra.mxu0 %v2130
    %2513 = vmatprep.subr.mxu0 %v2134
    %2514 = vmatpush1.msra.mxu0 %v2133
    %2515 = vmatprep.subr.mxu0 %v2137
    %2516 = vmatpush1.msra.mxu0 %v2136
    %2517 = vmatprep.subr.mxu0 %v2140
    %2518 = vmatpush1.msra.mxu0 %v2139
    %2519 = vmatprep.subr.mxu0 %v2143
    %2520 = vmatpush1.msra.mxu0 %v2142
    %2521 = vmatprep.subr.mxu0 %v2146
    %2522 = vmatpush1.msra.mxu0 %v2145
    %2523 = vmatprep.subr.mxu0 %v2149
    %2524 = vmatpush1.msra.mxu0 %v2148
    %2525 = vmatprep.subr.mxu0 %v2152
    %2526 = vmatpush1.msra.mxu0 %v2151
    %2527 = vmatprep.subr.mxu0 %v2155
    %2528 = vmatpush1.msra.mxu0 %v2154
    %2529 = vmatprep.subr.mxu0 %v2158
    %2530 = vmatpush1.msra.mxu0 %v2157
    %2531 = vmatprep.subr.mxu0 %v2161
    %2532 = vmatpush1.msra.mxu0 %v2160
    %2533 = vmatprep.subr.mxu0 %v2164
    %2534 = vmatpush1.msra.mxu0 %v2163
    %2535 = vmatprep.subr.mxu0 0.0
    %2536 = vmatpush1.msra.mxu0 0.0
    %2537 = vmatprep.subr.mxu0 0.0
    %2538 = vmatpush1.msra.mxu0 0.0
    %2539 = vmatprep.subr.mxu0 0.0
    %2540 = vmatpush1.msra.mxu0 0.0
    %2541 = vmatprep.subr.mxu0 0.0
    %2542 = vmatpush1.msra.mxu0 0.0
    %2543 = vmatprep.subr.mxu0 0.0
    %2544 = vmatpush1.msra.mxu0 0.0
    %2545 = vmatprep.subr.mxu0 0.0
    %2546 = vmatpush1.msra.mxu0 0.0
    %2547 = vmatprep.subr.mxu0 0.0
    %2548 = vmatpush1.msra.mxu0 0.0
    %2549 = vmatprep.subr.mxu0 0.0
    %2550 = vmatpush1.msra.mxu0 0.0
    %2551 = vmatprep.subr.mxu0 0.0
    %2552 = vmatpush1.msra.mxu0 0.0
    %2553 = vmatprep.subr.mxu0 0.0
    %2554 = vmatpush1.msra.mxu0 0.0
    %2555 = vmatprep.subr.mxu0 0.0
    %2556 = vmatpush1.msra.mxu0 0.0
    %2557 = vmatprep.subr.mxu0 0.0
    %2558 = vmatpush1.msra.mxu0 0.0
    %2559 = vmatprep.subr.mxu0 0.0
    %2560 = vmatpush1.msra.mxu0 0.0
    %2561 = vmatprep.subr.mxu0 0.0
    %2562 = vmatpush1.msra.mxu0 0.0
    %2563 = vmatprep.subr.mxu0 0.0
    %2564 = vmatpush1.msra.mxu0 0.0
    %2565 = vmatprep.subr.mxu0 0.0
    %2566 = vmatpush1.msra.mxu0 0.0
    %2567 = vmatprep.mubr.f32.mxu0 0.0
    %2568 = vmatmul.mubr.f32.gmra.mrb[0].mxu0 %v2500
    %v2569 = vpop.f32.mrb[0].mxu0
    %v2570 = vadd.f32 0.0, %v2569
    %v2571 = vpop.f32.mrb[0].mxu0
    %v2572 = vadd.f32 0.0, %v2571
    %2573 = vdwg.mxu0
    %2574 = vmatprep.subr.mxu0 0.0
    %2575 = vmatpush1.msra.mxu0 %v2120
    %2576 = vmatprep.subr.mxu0 0.0
    %2577 = vmatpush1.msra.mxu0 %v2123
    %2578 = vmatprep.subr.mxu0 0.0
    %2579 = vmatpush1.msra.mxu0 %v2126
    %2580 = vmatprep.subr.mxu0 0.0
    %2581 = vmatpush1.msra.mxu0 %v2129
    %2582 = vmatprep.subr.mxu0 0.0
    %2583 = vmatpush1.msra.mxu0 %v2132
    %2584 = vmatprep.subr.mxu0 0.0
    %2585 = vmatpush1.msra.mxu0 %v2135
    %2586 = vmatprep.subr.mxu0 0.0
    %2587 = vmatpush1.msra.mxu0 %v2138
    %2588 = vmatprep.subr.mxu0 0.0
    %2589 = vmatpush1.msra.mxu0 %v2141
    %2590 = vmatprep.subr.mxu0 0.0
    %2591 = vmatpush1.msra.mxu0 %v2144
    %2592 = vmatprep.subr.mxu0 0.0
    %2593 = vmatpush1.msra.mxu0 %v2147
    %2594 = vmatprep.subr.mxu0 0.0
    %2595 = vmatpush1.msra.mxu0 %v2150
    %2596 = vmatprep.subr.mxu0 0.0
    %2597 = vmatpush1.msra.mxu0 %v2153
    %2598 = vmatprep.subr.mxu0 0.0
    %2599 = vmatpush1.msra.mxu0 %v2156
    %2600 = vmatprep.subr.mxu0 0.0
    %2601 = vmatpush1.msra.mxu0 %v2159
    %2602 = vmatprep.subr.mxu0 0.0
    %2603 = vmatpush1.msra.mxu0 %v2162
    %2604 = vmatprep.subr.mxu0 0.0
    %2605 = vmatpush1.msra.mxu0 %v2165
    %2606 = vmatprep.subr.mxu0 0.0
    %2607 = vmatpush1.msra.mxu0 0.0
    %2608 = vmatprep.subr.mxu0 0.0
    %2609 = vmatpush1.msra.mxu0 0.0
    %2610 = vmatprep.subr.mxu0 0.0
    %2611 = vmatpush1.msra.mxu0 0.0
    %2612 = vmatprep.subr.mxu0 0.0
    %2613 = vmatpush1.msra.mxu0 0.0
    %2614 = vmatprep.subr.mxu0 0.0
    %2615 = vmatpush1.msra.mxu0 0.0
    %2616 = vmatprep.subr.mxu0 0.0
    %2617 = vmatpush1.msra.mxu0 0.0
    %2618 = vmatprep.subr.mxu0 0.0
    %2619 = vmatpush1.msra.mxu0 0.0
    %2620 = vmatprep.subr.mxu0 0.0
    %2621 = vmatpush1.msra.mxu0 0.0
    %2622 = vmatprep.subr.mxu0 0.0
    %2623 = vmatpush1.msra.mxu0 0.0
    %2624 = vmatprep.subr.mxu0 0.0
    %2625 = vmatpush1.msra.mxu0 0.0
    %2626 = vmatprep.subr.mxu0 0.0
    %2627 = vmatpush1.msra.mxu0 0.0
    %2628 = vmatprep.subr.mxu0 0.0
    %2629 = vmatpush1.msra.mxu0 0.0
    %2630 = vmatprep.subr.mxu0 0.0
    %2631 = vmatpush1.msra.mxu0 0.0
    %2632 = vmatprep.subr.mxu0 0.0
    %2633 = vmatpush1.msra.mxu0 0.0
    %2634 = vmatprep.subr.mxu0 0.0
    %2635 = vmatpush1.msra.mxu0 0.0
    %2636 = vmatprep.subr.mxu0 0.0
    %2637 = vmatpush1.msra.mxu0 0.0
    %2638 = vmatprep.mubr.f32.mxu0 0.0
    %2639 = vmatmul.mubr.f32.gmra.mrb[0].mxu0 %v2500
    %v2640 = vpop.f32.mrb[0].mxu0
    %v2641 = vadd.f32 0.0, %v2640
    %v2642 = vpop.f32.mrb[0].mxu0
    %2643 = vdwg.mxu0
    %v2644 = vld [vmem:[%s927] sm:$0xff]
    %v2645 = vld [vmem:[%s927 + $0x8] sm:$0xff]
    %v2646 = vld [vmem:[%s927 + $0x10] sm:$0xff]
    %v2647 = vadd.f32 %v2644, %v2570
    %v2648 = vmul.f32 %v2647, 0.5
    %v2649 = vtanh.pop %v2648
    %v2650 = vmul.f32 %v2649, 0.5
    %v2651 = vadd.f32 %v2650, 0.5
    %v2652 = vadd.f32 %v2645, %v2572
    %v2653 = vmul.f32 %v2652, 0.5
    %v2654 = vtanh.pop %v2653
    %v2655 = vmul.f32 %v2654, 0.5
    %v2656 = vadd.f32 %v2655, 0.5
    %v2657 = vadd.f32 %v2641, %v2328
    %v2658 = vmul.f32 %v2651, %v2657
    %v2659 = vadd.f32 %v2646, %v2658
    %v2660 = vtanh.pop %v2659
    %v2661 = vsub.f32 1.0, %v2656
    %v2662 = vmul.f32 %v2661, %v2660
    %v2663 = vmul.f32 %v2656, %v2500
    %v2664 = vadd.f32 %v2662, %v2663
    %s2665 = scalar_lea.vmem [#allocation13], 16
    %2666 = vst [vmem:[%s2665] sm:$0xff] %v2664
    %2667 = vmatprep.subr.mxu0 %v2119
    %2668 = vmatpush1.msra.mxu0 %v2118
    %2669 = vmatprep.subr.mxu0 %v2122
    %2670 = vmatpush1.msra.mxu0 %v2121
    %2671 = vmatprep.subr.mxu0 %v2125
    %2672 = vmatpush1.msra.mxu0 %v2124
    %2673 = vmatprep.subr.mxu0 %v2128
    %2674 = vmatpush1.msra.mxu0 %v2127
    %2675 = vmatprep.subr.mxu0 %v2131
    %2676 = vmatpush1.msra.mxu0 %v2130
    %2677 = vmatprep.subr.mxu0 %v2134
    %2678 = vmatpush1.msra.mxu0 %v2133
    %2679 = vmatprep.subr.mxu0 %v2137
    %2680 = vmatpush1.msra.mxu0 %v2136
    %2681 = vmatprep.subr.mxu0 %v2140
    %2682 = vmatpush1.msra.mxu0 %v2139
    %2683 = vmatprep.subr.mxu0 %v2143
    %2684 = vmatpush1.msra.mxu0 %v2142
    %2685 = vmatprep.subr.mxu0 %v2146
    %2686 = vmatpush1.msra.mxu0 %v2145
    %2687 = vmatprep.subr.mxu0 %v2149
    %2688 = vmatpush1.msra.mxu0 %v2148
    %2689 = vmatprep.subr.mxu0 %v2152
    %2690 = vmatpush1.msra.mxu0 %v2151
    %2691 = vmatprep.subr.mxu0 %v2155
    %2692 = vmatpush1.msra.mxu0 %v2154
    %2693 = vmatprep.subr.mxu0 %v2158
    %2694 = vmatpush1.msra.mxu0 %v2157
    %2695 = vmatprep.subr.mxu0 %v2161
    %2696 = vmatpush1.msra.mxu0 %v2160
    %2697 = vmatprep.subr.mxu0 %v2164
    %2698 = vmatpush1.msra.mxu0 %v2163
    %2699 = vmatprep.subr.mxu0 0.0
    %2700 = vmatpush1.msra.mxu0 0.0
    %2701 = vmatprep.subr.mxu0 0.0
    %2702 = vmatpush1.msra.mxu0 0.0
    %2703 = vmatprep.subr.mxu0 0.0
    %2704 = vmatpush1.msra.mxu0 0.0
    %2705 = vmatprep.subr.mxu0 0.0
    %2706 = vmatpush1.msra.mxu0 0.0
    %2707 = vmatprep.subr.mxu0 0.0
    %2708 = vmatpush1.msra.mxu0 0.0
    %2709 = vmatprep.subr.mxu0 0.0
    %2710 = vmatpush1.msra.mxu0 0.0
    %2711 = vmatprep.subr.mxu0 0.0
    %2712 = vmatpush1.msra.mxu0 0.0
    %2713 = vmatprep.subr.mxu0 0.0
    %2714 = vmatpush1.msra.mxu0 0.0
    %2715 = vmatprep.subr.mxu0 0.0
    %2716 = vmatpush1.msra.mxu0 0.0
    %2717 = vmatprep.subr.mxu0 0.0
    %2718 = vmatpush1.msra.mxu0 0.0
    %2719 = vmatprep.subr.mxu0 0.0
    %2720 = vmatpush1.msra.mxu0 0.0
    %2721 = vmatprep.subr.mxu0 0.0
    %2722 = vmatpush1.msra.mxu0 0.0
    %2723 = vmatprep.subr.mxu0 0.0
    %2724 = vmatpush1.msra.mxu0 0.0
    %2725 = vmatprep.subr.mxu0 0.0
    %2726 = vmatpush1.msra.mxu0 0.0
    %2727 = vmatprep.subr.mxu0 0.0
    %2728 = vmatpush1.msra.mxu0 0.0
    %2729 = vmatprep.subr.mxu0 0.0
    %2730 = vmatpush1.msra.mxu0 0.0
    %2731 = vmatprep.mubr.f32.mxu0 0.0
    %2732 = vmatmul.mubr.f32.gmra.mrb[0].mxu0 %v2664
    %v2733 = vpop.f32.mrb[0].mxu0
    %v2734 = vadd.f32 0.0, %v2733
    %v2735 = vpop.f32.mrb[0].mxu0
    %v2736 = vadd.f32 0.0, %v2735
    %2737 = vdwg.mxu0
    %2738 = vmatprep.subr.mxu0 0.0
    %2739 = vmatpush1.msra.mxu0 %v2120
    %2740 = vmatprep.subr.mxu0 0.0
    %2741 = vmatpush1.msra.mxu0 %v2123
    %2742 = vmatprep.subr.mxu0 0.0
    %2743 = vmatpush1.msra.mxu0 %v2126
    %2744 = vmatprep.subr.mxu0 0.0
    %2745 = vmatpush1.msra.mxu0 %v2129
    %2746 = vmatprep.subr.mxu0 0.0
    %2747 = vmatpush1.msra.mxu0 %v2132
    %2748 = vmatprep.subr.mxu0 0.0
    %2749 = vmatpush1.msra.mxu0 %v2135
    %2750 = vmatprep.subr.mxu0 0.0
    %2751 = vmatpush1.msra.mxu0 %v2138
    %2752 = vmatprep.subr.mxu0 0.0
    %2753 = vmatpush1.msra.mxu0 %v2141
    %2754 = vmatprep.subr.mxu0 0.0
    %2755 = vmatpush1.msra.mxu0 %v2144
    %2756 = vmatprep.subr.mxu0 0.0
    %2757 = vmatpush1.msra.mxu0 %v2147
    %2758 = vmatprep.subr.mxu0 0.0
    %2759 = vmatpush1.msra.mxu0 %v2150
    %2760 = vmatprep.subr.mxu0 0.0
    %2761 = vmatpush1.msra.mxu0 %v2153
    %2762 = vmatprep.subr.mxu0 0.0
    %2763 = vmatpush1.msra.mxu0 %v2156
    %2764 = vmatprep.subr.mxu0 0.0
    %2765 = vmatpush1.msra.mxu0 %v2159
    %2766 = vmatprep.subr.mxu0 0.0
    %2767 = vmatpush1.msra.mxu0 %v2162
    %2768 = vmatprep.subr.mxu0 0.0
    %2769 = vmatpush1.msra.mxu0 %v2165
    %2770 = vmatprep.subr.mxu0 0.0
    %2771 = vmatpush1.msra.mxu0 0.0
    %2772 = vmatprep.subr.mxu0 0.0
    %2773 = vmatpush1.msra.mxu0 0.0
    %2774 = vmatprep.subr.mxu0 0.0
    %2775 = vmatpush1.msra.mxu0 0.0
    %2776 = vmatprep.subr.mxu0 0.0
    %2777 = vmatpush1.msra.mxu0 0.0
    %2778 = vmatprep.subr.mxu0 0.0
    %2779 = vmatpush1.msra.mxu0 0.0
    %2780 = vmatprep.subr.mxu0 0.0
    %2781 = vmatpush1.msra.mxu0 0.0
    %2782 = vmatprep.subr.mxu0 0.0
    %2783 = vmatpush1.msra.mxu0 0.0
    %2784 = vmatprep.subr.mxu0 0.0
    %2785 = vmatpush1.msra.mxu0 0.0
    %2786 = vmatprep.subr.mxu0 0.0
    %2787 = vmatpush1.msra.mxu0 0.0
    %2788 = vmatprep.subr.mxu0 0.0
    %2789 = vmatpush1.msra.mxu0 0.0
    %2790 = vmatprep.subr.mxu0 0.0
    %2791 = vmatpush1.msra.mxu0 0.0
    %2792 = vmatprep.subr.mxu0 0.0
    %2793 = vmatpush1.msra.mxu0 0.0
    %2794 = vmatprep.subr.mxu0 0.0
    %2795 = vmatpush1.msra.mxu0 0.0
    %2796 = vmatprep.subr.mxu0 0.0
    %2797 = vmatpush1.msra.mxu0 0.0
    %2798 = vmatprep.subr.mxu0 0.0
    %2799 = vmatpush1.msra.mxu0 0.0
    %2800 = vmatprep.subr.mxu0 0.0
    %2801 = vmatpush1.msra.mxu0 0.0
    %2802 = vmatprep.mubr.f32.mxu0 0.0
    %2803 = vmatmul.mubr.f32.gmra.mrb[0].mxu0 %v2664
    %v2804 = vpop.f32.mrb[0].mxu0
    %v2805 = vadd.f32 0.0, %v2804
    %v2806 = vpop.f32.mrb[0].mxu0
    %2807 = vdwg.mxu0
    %v2808 = vld [vmem:[%s1092] sm:$0xff]
    %v2809 = vld [vmem:[%s1092 + $0x8] sm:$0xff]
    %v2810 = vld [vmem:[%s1092 + $0x10] sm:$0xff]
    %v2811 = vadd.f32 %v2808, %v2734
    %v2812 = vmul.f32 %v2811, 0.5
    %v2813 = vtanh.pop %v2812
    %v2814 = vmul.f32 %v2813, 0.5
    %v2815 = vadd.f32 %v2814, 0.5
    %v2816 = vadd.f32 %v2809, %v2736
    %v2817 = vmul.f32 %v2816, 0.5
    %v2818 = vtanh.pop %v2817
    %v2819 = vmul.f32 %v2818, 0.5
    %v2820 = vadd.f32 %v2819, 0.5
    %v2821 = vadd.f32 %v2805, %v2328
    %v2822 = vmul.f32 %v2815, %v2821
    %v2823 = vadd.f32 %v2810, %v2822
    %v2824 = vtanh.pop %v2823
    %v2825 = vsub.f32 1.0, %v2820
    %v2826 = vmul.f32 %v2825, %v2824
    %v2827 = vmul.f32 %v2820, %v2664
    %v2828 = vadd.f32 %v2826, %v2827
    %s2829 = scalar_lea.vmem [#allocation13], 24
    %2830 = vst [vmem:[%s2829] sm:$0xff] %v2828
    %2831 = vmatprep.subr.mxu0 %v2119
    %2832 = vmatpush1.msra.mxu0 %v2118
    %2833 = vmatprep.subr.mxu0 %v2122
    %2834 = vmatpush1.msra.mxu0 %v2121
    %2835 = vmatprep.subr.mxu0 %v2125
    %2836 = vmatpush1.msra.mxu0 %v2124
    %2837 = vmatprep.subr.mxu0 %v2128
    %2838 = vmatpush1.msra.mxu0 %v2127
    %2839 = vmatprep.subr.mxu0 %v2131
    %2840 = vmatpush1.msra.mxu0 %v2130
    %2841 = vmatprep.subr.mxu0 %v2134
    %2842 = vmatpush1.msra.mxu0 %v2133
    %2843 = vmatprep.subr.mxu0 %v2137
    %2844 = vmatpush1.msra.mxu0 %v2136
    %2845 = vmatprep.subr.mxu0 %v2140
    %2846 = vmatpush1.msra.mxu0 %v2139
    %2847 = vmatprep.subr.mxu0 %v2143
    %2848 = vmatpush1.msra.mxu0 %v2142
    %2849 = vmatprep.subr.mxu0 %v2146
    %2850 = vmatpush1.msra.mxu0 %v2145
    %2851 = vmatprep.subr.mxu0 %v2149
    %2852 = vmatpush1.msra.mxu0 %v2148
    %2853 = vmatprep.subr.mxu0 %v2152
    %2854 = vmatpush1.msra.mxu0 %v2151
    %2855 = vmatprep.subr.mxu0 %v2155
    %2856 = vmatpush1.msra.mxu0 %v2154
    %2857 = vmatprep.subr.mxu0 %v2158
    %2858 = vmatpush1.msra.mxu0 %v2157
    %2859 = vmatprep.subr.mxu0 %v2161
    %2860 = vmatpush1.msra.mxu0 %v2160
    %2861 = vmatprep.subr.mxu0 %v2164
    %2862 = vmatpush1.msra.mxu0 %v2163
    %2863 = vmatprep.subr.mxu0 0.0
    %2864 = vmatpush1.msra.mxu0 0.0
    %2865 = vmatprep.subr.mxu0 0.0
    %2866 = vmatpush1.msra.mxu0 0.0
    %2867 = vmatprep.subr.mxu0 0.0
    %2868 = vmatpush1.msra.mxu0 0.0
    %2869 = vmatprep.subr.mxu0 0.0
    %2870 = vmatpush1.msra.mxu0 0.0
    %2871 = vmatprep.subr.mxu0 0.0
    %2872 = vmatpush1.msra.mxu0 0.0
    %2873 = vmatprep.subr.mxu0 0.0
    %2874 = vmatpush1.msra.mxu0 0.0
    %2875 = vmatprep.subr.mxu0 0.0
    %2876 = vmatpush1.msra.mxu0 0.0
    %2877 = vmatprep.subr.mxu0 0.0
    %2878 = vmatpush1.msra.mxu0 0.0
    %2879 = vmatprep.subr.mxu0 0.0
    %2880 = vmatpush1.msra.mxu0 0.0
    %2881 = vmatprep.subr.mxu0 0.0
    %2882 = vmatpush1.msra.mxu0 0.0
    %2883 = vmatprep.subr.mxu0 0.0
    %2884 = vmatpush1.msra.mxu0 0.0
    %2885 = vmatprep.subr.mxu0 0.0
    %2886 = vmatpush1.msra.mxu0 0.0
    %2887 = vmatprep.subr.mxu0 0.0
    %2888 = vmatpush1.msra.mxu0 0.0
    %2889 = vmatprep.subr.mxu0 0.0
    %2890 = vmatpush1.msra.mxu0 0.0
    %2891 = vmatprep.subr.mxu0 0.0
    %2892 = vmatpush1.msra.mxu0 0.0
    %2893 = vmatprep.subr.mxu0 0.0
    %2894 = vmatpush1.msra.mxu0 0.0
    %2895 = vmatprep.mubr.f32.mxu0 0.0
    %2896 = vmatmul.mubr.f32.gmra.mrb[0].mxu0 %v2828
    %v2897 = vpop.f32.mrb[0].mxu0
    %v2898 = vadd.f32 0.0, %v2897
    %v2899 = vpop.f32.mrb[0].mxu0
    %v2900 = vadd.f32 0.0, %v2899
    %2901 = vdwg.mxu0
    %2902 = vmatprep.subr.mxu0 0.0
    %2903 = vmatpush1.msra.mxu0 %v2120
    %2904 = vmatprep.subr.mxu0 0.0
    %2905 = vmatpush1.msra.mxu0 %v2123
    %2906 = vmatprep.subr.mxu0 0.0
    %2907 = vmatpush1.msra.mxu0 %v2126
    %2908 = vmatprep.subr.mxu0 0.0
    %2909 = vmatpush1.msra.mxu0 %v2129
    %2910 = vmatprep.subr.mxu0 0.0
    %2911 = vmatpush1.msra.mxu0 %v2132
    %2912 = vmatprep.subr.mxu0 0.0
    %2913 = vmatpush1.msra.mxu0 %v2135
    %2914 = vmatprep.subr.mxu0 0.0
    %2915 = vmatpush1.msra.mxu0 %v2138
    %2916 = vmatprep.subr.mxu0 0.0
    %2917 = vmatpush1.msra.mxu0 %v2141
    %2918 = vmatprep.subr.mxu0 0.0
    %2919 = vmatpush1.msra.mxu0 %v2144
    %2920 = vmatprep.subr.mxu0 0.0
    %2921 = vmatpush1.msra.mxu0 %v2147
    %2922 = vmatprep.subr.mxu0 0.0
    %2923 = vmatpush1.msra.mxu0 %v2150
    %2924 = vmatprep.subr.mxu0 0.0
    %2925 = vmatpush1.msra.mxu0 %v2153
    %2926 = vmatprep.subr.mxu0 0.0
    %2927 = vmatpush1.msra.mxu0 %v2156
    %2928 = vmatprep.subr.mxu0 0.0
    %2929 = vmatpush1.msra.mxu0 %v2159
    %2930 = vmatprep.subr.mxu0 0.0
    %2931 = vmatpush1.msra.mxu0 %v2162
    %2932 = vmatprep.subr.mxu0 0.0
    %2933 = vmatpush1.msra.mxu0 %v2165
    %2934 = vmatprep.subr.mxu0 0.0
    %2935 = vmatpush1.msra.mxu0 0.0
    %2936 = vmatprep.subr.mxu0 0.0
    %2937 = vmatpush1.msra.mxu0 0.0
    %2938 = vmatprep.subr.mxu0 0.0
    %2939 = vmatpush1.msra.mxu0 0.0
    %2940 = vmatprep.subr.mxu0 0.0
    %2941 = vmatpush1.msra.mxu0 0.0
    %2942 = vmatprep.subr.mxu0 0.0
    %2943 = vmatpush1.msra.mxu0 0.0
    %2944 = vmatprep.subr.mxu0 0.0
    %2945 = vmatpush1.msra.mxu0 0.0
    %2946 = vmatprep.subr.mxu0 0.0
    %2947 = vmatpush1.msra.mxu0 0.0
    %2948 = vmatprep.subr.mxu0 0.0
    %2949 = vmatpush1.msra.mxu0 0.0
    %2950 = vmatprep.subr.mxu0 0.0
    %2951 = vmatpush1.msra.mxu0 0.0
    %2952 = vmatprep.subr.mxu0 0.0
    %2953 = vmatpush1.msra.mxu0 0.0
    %2954 = vmatprep.subr.mxu0 0.0
    %2955 = vmatpush1.msra.mxu0 0.0
    %2956 = vmatprep.subr.mxu0 0.0
    %2957 = vmatpush1.msra.mxu0 0.0
    %2958 = vmatprep.subr.mxu0 0.0
    %2959 = vmatpush1.msra.mxu0 0.0
    %2960 = vmatprep.subr.mxu0 0.0
    %2961 = vmatpush1.msra.mxu0 0.0
    %2962 = vmatprep.subr.mxu0 0.0
    %2963 = vmatpush1.msra.mxu0 0.0
    %2964 = vmatprep.subr.mxu0 0.0
    %2965 = vmatpush1.msra.mxu0 0.0
    %2966 = vmatprep.mubr.f32.mxu0 0.0
    %2967 = vmatmul.mubr.f32.gmra.mrb[0].mxu0 %v2828
    %v2968 = vpop.f32.mrb[0].mxu0
    %v2969 = vadd.f32 0.0, %v2968
    %v2970 = vpop.f32.mrb[0].mxu0
    %2971 = vdwg.mxu0
    %v2972 = vld [vmem:[%s1257] sm:$0xff]
    %v2973 = vld [vmem:[%s1257 + $0x8] sm:$0xff]
    %v2974 = vld [vmem:[%s1257 + $0x10] sm:$0xff]
    %v2975 = vadd.f32 %v2972, %v2898
    %v2976 = vmul.f32 %v2975, 0.5
    %v2977 = vtanh.pop %v2976
    %v2978 = vmul.f32 %v2977, 0.5
    %v2979 = vadd.f32 %v2978, 0.5
    %v2980 = vadd.f32 %v2973, %v2900
    %v2981 = vmul.f32 %v2980, 0.5
    %v2982 = vtanh.pop %v2981
    %v2983 = vmul.f32 %v2982, 0.5
    %v2984 = vadd.f32 %v2983, 0.5
    %v2985 = vadd.f32 %v2969, %v2328
    %v2986 = vmul.f32 %v2979, %v2985
    %v2987 = vadd.f32 %v2974, %v2986
    %v2988 = vtanh.pop %v2987
    %v2989 = vsub.f32 1.0, %v2984
    %v2990 = vmul.f32 %v2989, %v2988
    %v2991 = vmul.f32 %v2984, %v2828
    %v2992 = vadd.f32 %v2990, %v2991
    %s2993 = scalar_lea.vmem [#allocation13], 32
    %2994 = vst [vmem:[%s2993] sm:$0xff] %v2992
    %2995 = vmatprep.subr.mxu0 %v2119
    %2996 = vmatpush1.msra.mxu0 %v2118
    %2997 = vmatprep.subr.mxu0 %v2122
    %2998 = vmatpush1.msra.mxu0 %v2121
    %2999 = vmatprep.subr.mxu0 %v2125
    %3000 = vmatpush1.msra.mxu0 %v2124
    %3001 = vmatprep.subr.mxu0 %v2128
    %3002 = vmatpush1.msra.mxu0 %v2127
    %3003 = vmatprep.subr.mxu0 %v2131
    %3004 = vmatpush1.msra.mxu0 %v2130
    %3005 = vmatprep.subr.mxu0 %v2134
    %3006 = vmatpush1.msra.mxu0 %v2133
    %3007 = vmatprep.subr.mxu0 %v2137
    %3008 = vmatpush1.msra.mxu0 %v2136
    %3009 = vmatprep.subr.mxu0 %v2140
    %3010 = vmatpush1.msra.mxu0 %v2139
    %3011 = vmatprep.subr.mxu0 %v2143
    %3012 = vmatpush1.msra.mxu0 %v2142
    %3013 = vmatprep.subr.mxu0 %v2146
    %3014 = vmatpush1.msra.mxu0 %v2145
    %3015 = vmatprep.subr.mxu0 %v2149
    %3016 = vmatpush1.msra.mxu0 %v2148
    %3017 = vmatprep.subr.mxu0 %v2152
    %3018 = vmatpush1.msra.mxu0 %v2151
    %3019 = vmatprep.subr.mxu0 %v2155
    %3020 = vmatpush1.msra.mxu0 %v2154
    %3021 = vmatprep.subr.mxu0 %v2158
    %3022 = vmatpush1.msra.mxu0 %v2157
    %3023 = vmatprep.subr.mxu0 %v2161
    %3024 = vmatpush1.msra.mxu0 %v2160
    %3025 = vmatprep.subr.mxu0 %v2164
    %3026 = vmatpush1.msra.mxu0 %v2163
    %3027 = vmatprep.subr.mxu0 0.0
    %3028 = vmatpush1.msra.mxu0 0.0
    %3029 = vmatprep.subr.mxu0 0.0
    %3030 = vmatpush1.msra.mxu0 0.0
    %3031 = vmatprep.subr.mxu0 0.0
    %3032 = vmatpush1.msra.mxu0 0.0
    %3033 = vmatprep.subr.mxu0 0.0
    %3034 = vmatpush1.msra.mxu0 0.0
    %3035 = vmatprep.subr.mxu0 0.0
    %3036 = vmatpush1.msra.mxu0 0.0
    %3037 = vmatprep.subr.mxu0 0.0
    %3038 = vmatpush1.msra.mxu0 0.0
    %3039 = vmatprep.subr.mxu0 0.0
    %3040 = vmatpush1.msra.mxu0 0.0
    %3041 = vmatprep.subr.mxu0 0.0
    %3042 = vmatpush1.msra.mxu0 0.0
    %3043 = vmatprep.subr.mxu0 0.0
    %3044 = vmatpush1.msra.mxu0 0.0
    %3045 = vmatprep.subr.mxu0 0.0
    %3046 = vmatpush1.msra.mxu0 0.0
    %3047 = vmatprep.subr.mxu0 0.0
    %3048 = vmatpush1.msra.mxu0 0.0
    %3049 = vmatprep.subr.mxu0 0.0
    %3050 = vmatpush1.msra.mxu0 0.0
    %3051 = vmatprep.subr.mxu0 0.0
    %3052 = vmatpush1.msra.mxu0 0.0
    %3053 = vmatprep.subr.mxu0 0.0
    %3054 = vmatpush1.msra.mxu0 0.0
    %3055 = vmatprep.subr.mxu0 0.0
    %3056 = vmatpush1.msra.mxu0 0.0
    %3057 = vmatprep.subr.mxu0 0.0
    %3058 = vmatpush1.msra.mxu0 0.0
    %3059 = vmatprep.mubr.f32.mxu0 0.0
    %3060 = vmatmul.mubr.f32.gmra.mrb[0].mxu0 %v2992
    %v3061 = vpop.f32.mrb[0].mxu0
    %v3062 = vadd.f32 0.0, %v3061
    %v3063 = vpop.f32.mrb[0].mxu0
    %v3064 = vadd.f32 0.0, %v3063
    %3065 = vdwg.mxu0
    %3066 = vmatprep.subr.mxu0 0.0
    %3067 = vmatpush1.msra.mxu0 %v2120
    %3068 = vmatprep.subr.mxu0 0.0
    %3069 = vmatpush1.msra.mxu0 %v2123
    %3070 = vmatprep.subr.mxu0 0.0
    %3071 = vmatpush1.msra.mxu0 %v2126
    %3072 = vmatprep.subr.mxu0 0.0
    %3073 = vmatpush1.msra.mxu0 %v2129
    %3074 = vmatprep.subr.mxu0 0.0
    %3075 = vmatpush1.msra.mxu0 %v2132
    %3076 = vmatprep.subr.mxu0 0.0
    %3077 = vmatpush1.msra.mxu0 %v2135
    %3078 = vmatprep.subr.mxu0 0.0
    %3079 = vmatpush1.msra.mxu0 %v2138
    %3080 = vmatprep.subr.mxu0 0.0
    %3081 = vmatpush1.msra.mxu0 %v2141
    %3082 = vmatprep.subr.mxu0 0.0
    %3083 = vmatpush1.msra.mxu0 %v2144
    %3084 = vmatprep.subr.mxu0 0.0
    %3085 = vmatpush1.msra.mxu0 %v2147
    %3086 = vmatprep.subr.mxu0 0.0
    %3087 = vmatpush1.msra.mxu0 %v2150
    %3088 = vmatprep.subr.mxu0 0.0
    %3089 = vmatpush1.msra.mxu0 %v2153
    %3090 = vmatprep.subr.mxu0 0.0
    %3091 = vmatpush1.msra.mxu0 %v2156
    %3092 = vmatprep.subr.mxu0 0.0
    %3093 = vmatpush1.msra.mxu0 %v2159
    %3094 = vmatprep.subr.mxu0 0.0
    %3095 = vmatpush1.msra.mxu0 %v2162
    %3096 = vmatprep.subr.mxu0 0.0
    %3097 = vmatpush1.msra.mxu0 %v2165
    %3098 = vmatprep.subr.mxu0 0.0
    %3099 = vmatpush1.msra.mxu0 0.0
    %3100 = vmatprep.subr.mxu0 0.0
    %3101 = vmatpush1.msra.mxu0 0.0
    %3102 = vmatprep.subr.mxu0 0.0
    %3103 = vmatpush1.msra.mxu0 0.0
    %3104 = vmatprep.subr.mxu0 0.0
    %3105 = vmatpush1.msra.mxu0 0.0
    %3106 = vmatprep.subr.mxu0 0.0
    %3107 = vmatpush1.msra.mxu0 0.0
    %3108 = vmatprep.subr.mxu0 0.0
    %3109 = vmatpush1.msra.mxu0 0.0
    %3110 = vmatprep.subr.mxu0 0.0
    %3111 = vmatpush1.msra.mxu0 0.0
    %3112 = vmatprep.subr.mxu0 0.0
    %3113 = vmatpush1.msra.mxu0 0.0
    %3114 = vmatprep.subr.mxu0 0.0
    %3115 = vmatpush1.msra.mxu0 0.0
    %3116 = vmatprep.subr.mxu0 0.0
    %3117 = vmatpush1.msra.mxu0 0.0
    %3118 = vmatprep.subr.mxu0 0.0
    %3119 = vmatpush1.msra.mxu0 0.0
    %3120 = vmatprep.subr.mxu0 0.0
    %3121 = vmatpush1.msra.mxu0 0.0
    %3122 = vmatprep.subr.mxu0 0.0
    %3123 = vmatpush1.msra.mxu0 0.0
    %3124 = vmatprep.subr.mxu0 0.0
    %3125 = vmatpush1.msra.mxu0 0.0
    %3126 = vmatprep.subr.mxu0 0.0
    %3127 = vmatpush1.msra.mxu0 0.0
    %3128 = vmatprep.subr.mxu0 0.0
    %3129 = vmatpush1.msra.mxu0 0.0
    %3130 = vmatprep.mubr.f32.mxu0 0.0
    %3131 = vmatmul.mubr.f32.gmra.mrb[0].mxu0 %v2992
    %v3132 = vpop.f32.mrb[0].mxu0
    %v3133 = vadd.f32 0.0, %v3132
    %v3134 = vpop.f32.mrb[0].mxu0
    %3135 = vdwg.mxu0
    %v3136 = vld [vmem:[%s1422] sm:$0xff]
    %v3137 = vld [vmem:[%s1422 + $0x8] sm:$0xff]
    %v3138 = vld [vmem:[%s1422 + $0x10] sm:$0xff]
    %v3139 = vadd.f32 %v3136, %v3062
    %v3140 = vmul.f32 %v3139, 0.5
    %v3141 = vtanh.pop %v3140
    %v3142 = vmul.f32 %v3141, 0.5
    %v3143 = vadd.f32 %v3142, 0.5
    %v3144 = vadd.f32 %v3137, %v3064
    %v3145 = vmul.f32 %v3144, 0.5
    %v3146 = vtanh.pop %v3145
    %v3147 = vmul.f32 %v3146, 0.5
    %v3148 = vadd.f32 %v3147, 0.5
    %v3149 = vadd.f32 %v3133, %v2328
    %v3150 = vmul.f32 %v3143, %v3149
    %v3151 = vadd.f32 %v3138, %v3150
    %v3152 = vtanh.pop %v3151
    %v3153 = vsub.f32 1.0, %v3148
    %v3154 = vmul.f32 %v3153, %v3152
    %v3155 = vmul.f32 %v3148, %v2992
    %v3156 = vadd.f32 %v3154, %v3155
    %s3157 = scalar_lea.vmem [#allocation13], 40
    %3158 = vst [vmem:[%s3157] sm:$0xff] %v3156
    %3159 = vmatprep.subr.mxu0 %v2119
    %3160 = vmatpush1.msra.mxu0 %v2118
    %3161 = vmatprep.subr.mxu0 %v2122
    %3162 = vmatpush1.msra.mxu0 %v2121
    %3163 = vmatprep.subr.mxu0 %v2125
    %3164 = vmatpush1.msra.mxu0 %v2124
    %3165 = vmatprep.subr.mxu0 %v2128
    %3166 = vmatpush1.msra.mxu0 %v2127
    %3167 = vmatprep.subr.mxu0 %v2131
    %3168 = vmatpush1.msra.mxu0 %v2130
    %3169 = vmatprep.subr.mxu0 %v2134
    %3170 = vmatpush1.msra.mxu0 %v2133
    %3171 = vmatprep.subr.mxu0 %v2137
    %3172 = vmatpush1.msra.mxu0 %v2136
    %3173 = vmatprep.subr.mxu0 %v2140
    %3174 = vmatpush1.msra.mxu0 %v2139
    %3175 = vmatprep.subr.mxu0 %v2143
    %3176 = vmatpush1.msra.mxu0 %v2142
    %3177 = vmatprep.subr.mxu0 %v2146
    %3178 = vmatpush1.msra.mxu0 %v2145
    %3179 = vmatprep.subr.mxu0 %v2149
    %3180 = vmatpush1.msra.mxu0 %v2148
    %3181 = vmatprep.subr.mxu0 %v2152
    %3182 = vmatpush1.msra.mxu0 %v2151
    %3183 = vmatprep.subr.mxu0 %v2155
    %3184 = vmatpush1.msra.mxu0 %v2154
    %3185 = vmatprep.subr.mxu0 %v2158
    %3186 = vmatpush1.msra.mxu0 %v2157
    %3187 = vmatprep.subr.mxu0 %v2161
    %3188 = vmatpush1.msra.mxu0 %v2160
    %3189 = vmatprep.subr.mxu0 %v2164
    %3190 = vmatpush1.msra.mxu0 %v2163
    %3191 = vmatprep.subr.mxu0 0.0
    %3192 = vmatpush1.msra.mxu0 0.0
    %3193 = vmatprep.subr.mxu0 0.0
    %3194 = vmatpush1.msra.mxu0 0.0
    %3195 = vmatprep.subr.mxu0 0.0
    %3196 = vmatpush1.msra.mxu0 0.0
    %3197 = vmatprep.subr.mxu0 0.0
    %3198 = vmatpush1.msra.mxu0 0.0
    %3199 = vmatprep.subr.mxu0 0.0
    %3200 = vmatpush1.msra.mxu0 0.0
    %3201 = vmatprep.subr.mxu0 0.0
    %3202 = vmatpush1.msra.mxu0 0.0
    %3203 = vmatprep.subr.mxu0 0.0
    %3204 = vmatpush1.msra.mxu0 0.0
    %3205 = vmatprep.subr.mxu0 0.0
    %3206 = vmatpush1.msra.mxu0 0.0
    %3207 = vmatprep.subr.mxu0 0.0
    %3208 = vmatpush1.msra.mxu0 0.0
    %3209 = vmatprep.subr.mxu0 0.0
    %3210 = vmatpush1.msra.mxu0 0.0
    %3211 = vmatprep.subr.mxu0 0.0
    %3212 = vmatpush1.msra.mxu0 0.0
    %3213 = vmatprep.subr.mxu0 0.0
    %3214 = vmatpush1.msra.mxu0 0.0
    %3215 = vmatprep.subr.mxu0 0.0
    %3216 = vmatpush1.msra.mxu0 0.0
    %3217 = vmatprep.subr.mxu0 0.0
    %3218 = vmatpush1.msra.mxu0 0.0
    %3219 = vmatprep.subr.mxu0 0.0
    %3220 = vmatpush1.msra.mxu0 0.0
    %3221 = vmatprep.subr.mxu0 0.0
    %3222 = vmatpush1.msra.mxu0 0.0
    %3223 = vmatprep.mubr.f32.mxu0 0.0
    %3224 = vmatmul.mubr.f32.gmra.mrb[0].mxu0 %v3156
    %v3225 = vpop.f32.mrb[0].mxu0
    %v3226 = vadd.f32 0.0, %v3225
    %v3227 = vpop.f32.mrb[0].mxu0
    %v3228 = vadd.f32 0.0, %v3227
    %3229 = vdwg.mxu0
    %3230 = vmatprep.subr.mxu0 0.0
    %3231 = vmatpush1.msra.mxu0 %v2120
    %3232 = vmatprep.subr.mxu0 0.0
    %3233 = vmatpush1.msra.mxu0 %v2123
    %3234 = vmatprep.subr.mxu0 0.0
    %3235 = vmatpush1.msra.mxu0 %v2126
    %3236 = vmatprep.subr.mxu0 0.0
    %3237 = vmatpush1.msra.mxu0 %v2129
    %3238 = vmatprep.subr.mxu0 0.0
    %3239 = vmatpush1.msra.mxu0 %v2132
    %3240 = vmatprep.subr.mxu0 0.0
    %3241 = vmatpush1.msra.mxu0 %v2135
    %3242 = vmatprep.subr.mxu0 0.0
    %3243 = vmatpush1.msra.mxu0 %v2138
    %3244 = vmatprep.subr.mxu0 0.0
    %3245 = vmatpush1.msra.mxu0 %v2141
    %3246 = vmatprep.subr.mxu0 0.0
    %3247 = vmatpush1.msra.mxu0 %v2144
    %3248 = vmatprep.subr.mxu0 0.0
    %3249 = vmatpush1.msra.mxu0 %v2147
    %3250 = vmatprep.subr.mxu0 0.0
    %3251 = vmatpush1.msra.mxu0 %v2150
    %3252 = vmatprep.subr.mxu0 0.0
    %3253 = vmatpush1.msra.mxu0 %v2153
    %3254 = vmatprep.subr.mxu0 0.0
    %3255 = vmatpush1.msra.mxu0 %v2156
    %3256 = vmatprep.subr.mxu0 0.0
    %3257 = vmatpush1.msra.mxu0 %v2159
    %3258 = vmatprep.subr.mxu0 0.0
    %3259 = vmatpush1.msra.mxu0 %v2162
    %3260 = vmatprep.subr.mxu0 0.0
    %3261 = vmatpush1.msra.mxu0 %v2165
    %3262 = vmatprep.subr.mxu0 0.0
    %3263 = vmatpush1.msra.mxu0 0.0
    %3264 = vmatprep.subr.mxu0 0.0
    %3265 = vmatpush1.msra.mxu0 0.0
    %3266 = vmatprep.subr.mxu0 0.0
    %3267 = vmatpush1.msra.mxu0 0.0
    %3268 = vmatprep.subr.mxu0 0.0
    %3269 = vmatpush1.msra.mxu0 0.0
    %3270 = vmatprep.subr.mxu0 0.0
    %3271 = vmatpush1.msra.mxu0 0.0
    %3272 = vmatprep.subr.mxu0 0.0
    %3273 = vmatpush1.msra.mxu0 0.0
    %3274 = vmatprep.subr.mxu0 0.0
    %3275 = vmatpush1.msra.mxu0 0.0
    %3276 = vmatprep.subr.mxu0 0.0
    %3277 = vmatpush1.msra.mxu0 0.0
    %3278 = vmatprep.subr.mxu0 0.0
    %3279 = vmatpush1.msra.mxu0 0.0
    %3280 = vmatprep.subr.mxu0 0.0
    %3281 = vmatpush1.msra.mxu0 0.0
    %3282 = vmatprep.subr.mxu0 0.0
    %3283 = vmatpush1.msra.mxu0 0.0
    %3284 = vmatprep.subr.mxu0 0.0
    %3285 = vmatpush1.msra.mxu0 0.0
    %3286 = vmatprep.subr.mxu0 0.0
    %3287 = vmatpush1.msra.mxu0 0.0
    %3288 = vmatprep.subr.mxu0 0.0
    %3289 = vmatpush1.msra.mxu0 0.0
    %3290 = vmatprep.subr.mxu0 0.0
    %3291 = vmatpush1.msra.mxu0 0.0
    %3292 = vmatprep.subr.mxu0 0.0
    %3293 = vmatpush1.msra.mxu0 0.0
    %3294 = vmatprep.mubr.f32.mxu0 0.0
    %3295 = vmatmul.mubr.f32.gmra.mrb[0].mxu0 %v3156
    %v3296 = vpop.f32.mrb[0].mxu0
    %v3297 = vadd.f32 0.0, %v3296
    %v3298 = vpop.f32.mrb[0].mxu0
    %3299 = vdwg.mxu0
    %v3300 = vld [vmem:[%s1587] sm:$0xff]
    %v3301 = vld [vmem:[%s1587 + $0x8] sm:$0xff]
    %v3302 = vld [vmem:[%s1587 + $0x10] sm:$0xff]
    %v3303 = vadd.f32 %v3300, %v3226
    %v3304 = vmul.f32 %v3303, 0.5
    %v3305 = vtanh.pop %v3304
    %v3306 = vmul.f32 %v3305, 0.5
    %v3307 = vadd.f32 %v3306, 0.5
    %v3308 = vadd.f32 %v3301, %v3228
    %v3309 = vmul.f32 %v3308, 0.5
    %v3310 = vtanh.pop %v3309
    %v3311 = vmul.f32 %v3310, 0.5
    %v3312 = vadd.f32 %v3311, 0.5
    %v3313 = vadd.f32 %v3297, %v2328
    %v3314 = vmul.f32 %v3307, %v3313
    %v3315 = vadd.f32 %v3302, %v3314
    %v3316 = vtanh.pop %v3315
    %v3317 = vsub.f32 1.0, %v3312
    %v3318 = vmul.f32 %v3317, %v3316
    %v3319 = vmul.f32 %v3312, %v3156
    %v3320 = vadd.f32 %v3318, %v3319
    %s3321 = scalar_lea.vmem [#allocation13], 48
    %3322 = vst [vmem:[%s3321] sm:$0xff] %v3320
    %3323 = vmatprep.subr.mxu0 %v2119
    %3324 = vmatpush1.msra.mxu0 %v2118
    %3325 = vmatprep.subr.mxu0 %v2122
    %3326 = vmatpush1.msra.mxu0 %v2121
    %3327 = vmatprep.subr.mxu0 %v2125
    %3328 = vmatpush1.msra.mxu0 %v2124
    %3329 = vmatprep.subr.mxu0 %v2128
    %3330 = vmatpush1.msra.mxu0 %v2127
    %3331 = vmatprep.subr.mxu0 %v2131
    %3332 = vmatpush1.msra.mxu0 %v2130
    %3333 = vmatprep.subr.mxu0 %v2134
    %3334 = vmatpush1.msra.mxu0 %v2133
    %3335 = vmatprep.subr.mxu0 %v2137
    %3336 = vmatpush1.msra.mxu0 %v2136
    %3337 = vmatprep.subr.mxu0 %v2140
    %3338 = vmatpush1.msra.mxu0 %v2139
    %3339 = vmatprep.subr.mxu0 %v2143
    %3340 = vmatpush1.msra.mxu0 %v2142
    %3341 = vmatprep.subr.mxu0 %v2146
    %3342 = vmatpush1.msra.mxu0 %v2145
    %3343 = vmatprep.subr.mxu0 %v2149
    %3344 = vmatpush1.msra.mxu0 %v2148
    %3345 = vmatprep.subr.mxu0 %v2152
    %3346 = vmatpush1.msra.mxu0 %v2151
    %3347 = vmatprep.subr.mxu0 %v2155
    %3348 = vmatpush1.msra.mxu0 %v2154
    %3349 = vmatprep.subr.mxu0 %v2158
    %3350 = vmatpush1.msra.mxu0 %v2157
    %3351 = vmatprep.subr.mxu0 %v2161
    %3352 = vmatpush1.msra.mxu0 %v2160
    %3353 = vmatprep.subr.mxu0 %v2164
    %3354 = vmatpush1.msra.mxu0 %v2163
    %3355 = vmatprep.subr.mxu0 0.0
    %3356 = vmatpush1.msra.mxu0 0.0
    %3357 = vmatprep.subr.mxu0 0.0
    %3358 = vmatpush1.msra.mxu0 0.0
    %3359 = vmatprep.subr.mxu0 0.0
    %3360 = vmatpush1.msra.mxu0 0.0
    %3361 = vmatprep.subr.mxu0 0.0
    %3362 = vmatpush1.msra.mxu0 0.0
    %3363 = vmatprep.subr.mxu0 0.0
    %3364 = vmatpush1.msra.mxu0 0.0
    %3365 = vmatprep.subr.mxu0 0.0
    %3366 = vmatpush1.msra.mxu0 0.0
    %3367 = vmatprep.subr.mxu0 0.0
    %3368 = vmatpush1.msra.mxu0 0.0
    %3369 = vmatprep.subr.mxu0 0.0
    %3370 = vmatpush1.msra.mxu0 0.0
    %3371 = vmatprep.subr.mxu0 0.0
    %3372 = vmatpush1.msra.mxu0 0.0
    %3373 = vmatprep.subr.mxu0 0.0
    %3374 = vmatpush1.msra.mxu0 0.0
    %3375 = vmatprep.subr.mxu0 0.0
    %3376 = vmatpush1.msra.mxu0 0.0
    %3377 = vmatprep.subr.mxu0 0.0
    %3378 = vmatpush1.msra.mxu0 0.0
    %3379 = vmatprep.subr.mxu0 0.0
    %3380 = vmatpush1.msra.mxu0 0.0
    %3381 = vmatprep.subr.mxu0 0.0
    %3382 = vmatpush1.msra.mxu0 0.0
    %3383 = vmatprep.subr.mxu0 0.0
    %3384 = vmatpush1.msra.mxu0 0.0
    %3385 = vmatprep.subr.mxu0 0.0
    %3386 = vmatpush1.msra.mxu0 0.0
    %3387 = vmatprep.mubr.f32.mxu0 0.0
    %3388 = vmatmul.mubr.f32.gmra.mrb[0].mxu0 %v3320
    %v3389 = vpop.f32.mrb[0].mxu0
    %v3390 = vadd.f32 0.0, %v3389
    %v3391 = vpop.f32.mrb[0].mxu0
    %v3392 = vadd.f32 0.0, %v3391
    %3393 = vdwg.mxu0
    %3394 = vmatprep.subr.mxu0 0.0
    %3395 = vmatpush1.msra.mxu0 %v2120
    %3396 = vmatprep.subr.mxu0 0.0
    %3397 = vmatpush1.msra.mxu0 %v2123
    %3398 = vmatprep.subr.mxu0 0.0
    %3399 = vmatpush1.msra.mxu0 %v2126
    %3400 = vmatprep.subr.mxu0 0.0
    %3401 = vmatpush1.msra.mxu0 %v2129
    %3402 = vmatprep.subr.mxu0 0.0
    %3403 = vmatpush1.msra.mxu0 %v2132
    %3404 = vmatprep.subr.mxu0 0.0
    %3405 = vmatpush1.msra.mxu0 %v2135
    %3406 = vmatprep.subr.mxu0 0.0
    %3407 = vmatpush1.msra.mxu0 %v2138
    %3408 = vmatprep.subr.mxu0 0.0
    %3409 = vmatpush1.msra.mxu0 %v2141
    %3410 = vmatprep.subr.mxu0 0.0
    %3411 = vmatpush1.msra.mxu0 %v2144
    %3412 = vmatprep.subr.mxu0 0.0
    %3413 = vmatpush1.msra.mxu0 %v2147
    %3414 = vmatprep.subr.mxu0 0.0
    %3415 = vmatpush1.msra.mxu0 %v2150
    %3416 = vmatprep.subr.mxu0 0.0
    %3417 = vmatpush1.msra.mxu0 %v2153
    %3418 = vmatprep.subr.mxu0 0.0
    %3419 = vmatpush1.msra.mxu0 %v2156
    %3420 = vmatprep.subr.mxu0 0.0
    %3421 = vmatpush1.msra.mxu0 %v2159
    %3422 = vmatprep.subr.mxu0 0.0
    %3423 = vmatpush1.msra.mxu0 %v2162
    %3424 = vmatprep.subr.mxu0 0.0
    %3425 = vmatpush1.msra.mxu0 %v2165
    %3426 = vmatprep.subr.mxu0 0.0
    %3427 = vmatpush1.msra.mxu0 0.0
    %3428 = vmatprep.subr.mxu0 0.0
    %3429 = vmatpush1.msra.mxu0 0.0
    %3430 = vmatprep.subr.mxu0 0.0
    %3431 = vmatpush1.msra.mxu0 0.0
    %3432 = vmatprep.subr.mxu0 0.0
    %3433 = vmatpush1.msra.mxu0 0.0
    %3434 = vmatprep.subr.mxu0 0.0
    %3435 = vmatpush1.msra.mxu0 0.0
    %3436 = vmatprep.subr.mxu0 0.0
    %3437 = vmatpush1.msra.mxu0 0.0
    %3438 = vmatprep.subr.mxu0 0.0
    %3439 = vmatpush1.msra.mxu0 0.0
    %3440 = vmatprep.subr.mxu0 0.0
    %3441 = vmatpush1.msra.mxu0 0.0
    %3442 = vmatprep.subr.mxu0 0.0
    %3443 = vmatpush1.msra.mxu0 0.0
    %3444 = vmatprep.subr.mxu0 0.0
    %3445 = vmatpush1.msra.mxu0 0.0
    %3446 = vmatprep.subr.mxu0 0.0
    %3447 = vmatpush1.msra.mxu0 0.0
    %3448 = vmatprep.subr.mxu0 0.0
    %3449 = vmatpush1.msra.mxu0 0.0
    %3450 = vmatprep.subr.mxu0 0.0
    %3451 = vmatpush1.msra.mxu0 0.0
    %3452 = vmatprep.subr.mxu0 0.0
    %3453 = vmatpush1.msra.mxu0 0.0
    %3454 = vmatprep.subr.mxu0 0.0
    %3455 = vmatpush1.msra.mxu0 0.0
    %3456 = vmatprep.subr.mxu0 0.0
    %3457 = vmatpush1.msra.mxu0 0.0
    %3458 = vmatprep.mubr.f32.mxu0 0.0
    %3459 = vmatmul.mubr.f32.gmra.mrb[0].mxu0 %v3320
    %v3460 = vpop.f32.mrb[0].mxu0
    %v3461 = vadd.f32 0.0, %v3460
    %v3462 = vpop.f32.mrb[0].mxu0
    %3463 = vdwg.mxu0
    %v3464 = vld [vmem:[%s1752] sm:$0xff]
    %v3465 = vld [vmem:[%s1752 + $0x8] sm:$0xff]
    %v3466 = vld [vmem:[%s1752 + $0x10] sm:$0xff]
    %v3467 = vadd.f32 %v3464, %v3390
    %v3468 = vmul.f32 %v3467, 0.5
    %v3469 = vtanh.pop %v3468
    %v3470 = vmul.f32 %v3469, 0.5
    %v3471 = vadd.f32 %v3470, 0.5
    %v3472 = vadd.f32 %v3465, %v3392
    %v3473 = vmul.f32 %v3472, 0.5
    %v3474 = vtanh.pop %v3473
    %v3475 = vmul.f32 %v3474, 0.5
    %v3476 = vadd.f32 %v3475, 0.5
    %v3477 = vadd.f32 %v3461, %v2328
    %v3478 = vmul.f32 %v3471, %v3477
    %v3479 = vadd.f32 %v3466, %v3478
    %v3480 = vtanh.pop %v3479
    %v3481 = vsub.f32 1.0, %v3476
    %v3482 = vmul.f32 %v3481, %v3480
    %v3483 = vmul.f32 %v3476, %v3320
    %v3484 = vadd.f32 %v3482, %v3483
    %s3485 = scalar_lea.vmem [#allocation13], 56
    %3486 = vst [vmem:[%s3485] sm:$0xff] %v3484
    %3487 = vst [vmem:[%s2168] sm:$0xff] %v3484
    // Predicated region
    $region46: #{tpu_custom_call.1} parent=1 // pred_check
      _
    $region47: #{tpu_custom_call.1} parent=1 // pred_check_branch
      %3489 = sbr.rel (0) target = $region49
    $region48: #{tpu_custom_call.1} parent=1 // pred_region
      %s3491 = ssub.s32 1024, 1024
      %3492 = vsyncadd [#allocation7], %s3491
      %s3493 = sshll.u32 [#allocation13], 4
      %s3494 = int_to_ptr.vmem [resolvable:$true] %s3493
      %3499 = dma.vmem_to_hbm [thread:$0]  %s3494, 1024, %s6, [#allocation7], 128, 128, 8
    $region49: #{tpu_custom_call.1} parent=1 // pred_fallthru
      _
    // Predicated region
    $region50: #{tpu_custom_call.1} parent=1 // pred_check
      _
    $region51: #{tpu_custom_call.1} parent=1 // pred_check_branch
      %3501 = sbr.rel (0) target = $region53
    $region52: #{tpu_custom_call.1} parent=1 // pred_region
      %3502 = dma.done [#allocation7], 1024
    $region53: #{tpu_custom_call.1} parent=1 // pred_fallthru
      _
    %3503 = vsyncpa [#allocation6], 1
    %3504 = vsyncpa [#allocation9], 1
    %3505 = vsyncpa [#allocation12], 1
    %3506 = vsyncpa [#allocation7], 1

// kernel: tpu_custom_call.1
$region0: #{tpu_custom_call.1}
  #allocation0 [shape = 'u32[]', space=smem, size = 0x4, offset = 0x4, fixed_abs, tag = 'smem constant byte address 0x4 - core index']
  #allocation1 [shape = 'u32[144,128]{1,0:T(1,128)}', space=vmem, size = 0x12000, scoped, tag = 'internal scratch']
  #allocation2 [shape = 'f32[2,8,128]{2,1,0:T(8,128)}', space=vmem, size = 0x2000, scoped, tag = 'scratch operand']
  #allocation3 [shape = 'f32[8,8,128]{2,1,0:T(8,128)}', space=vmem, size = 0x8000, scoped, tag = 'scratch operand']
  #allocation4 [shape = 'f32[8,8,384]{2,1,0:T(8,128)}', space=vmem, size = 0x18000, scoped, tag = 'scratch operand']
  %s0 = inlined_call_operand.hbm [shape: f32[8,8,8], index: 0, kind: input, shape index: {}]
  %s1 = inlined_call_operand.hbm [shape: f32[8,384], index: 1, kind: input, shape index: {}]
  %s2 = inlined_call_operand.hbm [shape: f32[1,128,384], index: 2, kind: input, shape index: {}]
  %s3 = inlined_call_operand.hbm [shape: f32[2,128,384], index: 3, kind: input, shape index: {}]
  %s4 = inlined_call_operand.vmem [shape: f32[2,1,384], index: 4, kind: input, shape index: {}]
  %s5 = inlined_call_operand.vmem [shape: f32[2,1,128], index: 5, kind: input, shape index: {}]
  %s6 = inlined_call_operand.hbm [shape: f32[8,8,128], index: 6, kind: output, shape index: {}]
  %s7 = sld [smem:[#allocation0]]
  $region54: #{tpu_custom_call.1} parent=0
    _
  %s9 = ssub.s32 1, %s7
  %s10 = scalar_select 0, %s9, %s7
  $region1: #{tpu_custom_call.1} parent=0
    #allocation5 [shape = 'u8[32768]{0}', space=vmem, size = 0x8000, scoped, tag = 'input window, operand 0, single buffered']
    #allocation6 [shape = 's32[1]{0}', space=sflag, size = 0x4, scoped, tag = 'scoped memory for tpu_custom_call.1']
    #allocation7 [shape = 's32[1]{0}', space=sflag, size = 0x4, scoped, tag = 'scoped memory for tpu_custom_call.1']
    #allocation8 [shape = 'u8[12288]{0}', space=vmem, size = 0x3000, scoped, tag = 'input window, operand 1, single buffered']
    #allocation9 [shape = 's32[1]{0}', space=sflag, size = 0x4, scoped, tag = 'scoped memory for tpu_custom_call.1']
    #allocation10 [shape = 'u8[196608]{0}', space=vmem, size = 0x30000, scoped, tag = 'input window, operand 2, single buffered']
    #allocation11 [shape = 'u8[393216]{0}', space=vmem, size = 0x60000, scoped, tag = 'input window, operand 3, single buffered']
    #allocation12 [shape = 's32[1]{0}', space=sflag, size = 0x4, scoped, tag = 'scoped memory for tpu_custom_call.1']
    #allocation13 [shape = 'u8[32768]{0}', space=vmem, size = 0x8000, scoped, tag = 'output window, operand 0, single buffered']
    %11 = vsyncpa [#allocation6], 0
    %12 = vsyncpa [#allocation9], 0
    %13 = vsyncpa [#allocation12], 0
    %14 = vsyncpa [#allocation7], 0
    // Predicated region
    $region2: #{tpu_custom_call.1} parent=1 // pred_check
      _
    $region3: #{tpu_custom_call.1} parent=1 // pred_check_branch
      %16 = sbr.rel (0) target = $region5
    $region4: #{tpu_custom_call.1} parent=1 // pred_region
      %s18 = ssub.s32 1024, 1024
      %19 = vsyncadd [#allocation6], %s18
      %s20 = sshll.u32 [#allocation5], 4
      %s21 = int_to_ptr.vmem [resolvable:$true] %s20
      %26 = dma.hbm_to_vmem [thread:$0]  %s0, 1024, %s21, [#allocation6], 128, 128, 8
    $region5: #{tpu_custom_call.1} parent=1 // pred_fallthru
      _
    // Predicated region
    $region6: #{tpu_custom_call.1} parent=1 // pred_check
      _
    $region7: #{tpu_custom_call.1} parent=1 // pred_check_branch
      %28 = sbr.rel (0) target = $region9
    $region8: #{tpu_custom_call.1} parent=1 // pred_region
      %s30 = ssub.s32 384, 384
      %31 = vsyncadd [#allocation9], %s30
      %s33 = sshll.u32 [#allocation8], 4
      %s34 = int_to_ptr.vmem [resolvable:$true] %s33
      %36 = dma.hbm_to_vmem [thread:$0]  %s1, 384, %s34, [#allocation9]
    $region9: #{tpu_custom_call.1} parent=1 // pred_fallthru
      _
    // Predicated region
    $region10: #{tpu_custom_call.1} parent=1 // pred_check
      _
    $region11: #{tpu_custom_call.1} parent=1 // pred_check_branch
      %38 = sbr.rel (0) target = $region13
    $region12: #{tpu_custom_call.1} parent=1 // pred_region
      %s40 = ssub.s32 6144, 6144
      %41 = vsyncadd [#allocation9], %s40
      %s42 = sshll.u32 [#allocation10], 4
      %s43 = int_to_ptr.vmem [resolvable:$true] %s42
      %48 = dma.hbm_to_vmem [thread:$0]  %s2, 6144, %s43, [#allocation9], 384, 384, 24
    $region13: #{tpu_custom_call.1} parent=1 // pred_fallthru
      _
    // Predicated region
    $region14: #{tpu_custom_call.1} parent=1 // pred_check
      _
    $region15: #{tpu_custom_call.1} parent=1 // pred_check_branch
      %50 = sbr.rel (0) target = $region17
    $region16: #{tpu_custom_call.1} parent=1 // pred_region
      %s52 = ssub.s32 12288, 12288
      %53 = vsyncadd [#allocation12], %s52
      %s54 = sshll.u32 [#allocation11], 4
      %s55 = int_to_ptr.vmem [resolvable:$true] %s54
      %60 = dma.hbm_to_vmem [thread:$0]  %s3, 12288, %s55, [#allocation12], 384, 384, 24
    $region17: #{tpu_custom_call.1} parent=1 // pred_fallthru
      _
    // Predicated region
    $region18: #{tpu_custom_call.1} parent=1 // pred_check
      _
    $region19: #{tpu_custom_call.1} parent=1 // pred_check_branch
      %62 = sbr.rel (0) target = $region21
    $region20: #{tpu_custom_call.1} parent=1 // pred_region
      _
    $region21: #{tpu_custom_call.1} parent=1 // pred_fallthru
      _
    // Predicated region
    $region22: #{tpu_custom_call.1} parent=1 // pred_check
      _
    $region23: #{tpu_custom_call.1} parent=1 // pred_check_branch
      %64 = sbr.rel (0) target = $region25
    $region24: #{tpu_custom_call.1} parent=1 // pred_region
      _
    $region25: #{tpu_custom_call.1} parent=1 // pred_fallthru
      _
    // Predicated region
    $region26: #{tpu_custom_call.1} parent=1 // pred_check
      _
    $region27: #{tpu_custom_call.1} parent=1 // pred_check_branch
      %66 = sbr.rel (0) target = $region29
    $region28: #{tpu_custom_call.1} parent=1 // pred_region
      %67 = dma.done [#allocation6], 1024
    $region29: #{tpu_custom_call.1} parent=1 // pred_fallthru
      _
    // Predicated region
    $region30: #{tpu_custom_call.1} parent=1 // pred_check
      _
    $region31: #{tpu_custom_call.1} parent=1 // pred_check_branch
      %69 = sbr.rel (0) target = $region33
    $region32: #{tpu_custom_call.1} parent=1 // pred_region
      %70 = dma.done [#allocation9], 384
    $region33: #{tpu_custom_call.1} parent=1 // pred_fallthru
      _
    // Predicated region
    $region34: #{tpu_custom_call.1} parent=1 // pred_check
      _
    $region35: #{tpu_custom_call.1} parent=1 // pred_check_branch
      %72 = sbr.rel (0) target = $region37
    $region36: #{tpu_custom_call.1} parent=1 // pred_region
      %73 = dma.done [#allocation9], 6144
    $region37: #{tpu_custom_call.1} parent=1 // pred_fallthru
      _
    // Predicated region
    $region38: #{tpu_custom_call.1} parent=1 // pred_check
      _
    $region39: #{tpu_custom_call.1} parent=1 // pred_check_branch
      %75 = sbr.rel (0) target = $region41
    $region40: #{tpu_custom_call.1} parent=1 // pred_region
      %76 = dma.done [#allocation12], 12288
    $region41: #{tpu_custom_call.1} parent=1 // pred_fallthru
      _
    %p77 = scmp.eq.s32.totalorder 0, 0
    // Predicated region
    $region42: #{tpu_custom_call.1} parent=1 // pred_check
      %p78 = pneg %p77
    $region43: #{tpu_custom_call.1} parent=1 // pred_check_branch
      %80 = sbr.rel (%p78) target = $region45
    $region44: #{tpu_custom_call.1} parent=1 // pred_region
      %81 = vst [vmem:[#allocation2] sm:$0xff] 0.0
      %82 = vst [vmem:[#allocation2 + $0x8] sm:$0xff] 0.0
    $region45: #{tpu_custom_call.1} parent=1 // pred_fallthru
      _
    %v83 = vld [vmem:[#allocation5] sm:$0xff]
    %v84 = vld [vmem:[#allocation5 + $0x8] sm:$0xff]
    %v85 = vld [vmem:[#allocation5 + $0x10] sm:$0xff]
    %v86 = vld [vmem:[#allocation5 + $0x18] sm:$0xff]
    %v87 = vld [vmem:[#allocation5 + $0x20] sm:$0xff]
    %v88 = vld [vmem:[#allocation5 + $0x28] sm:$0xff]
    %v89 = vld [vmem:[#allocation5 + $0x30] sm:$0xff]
    %v90 = vld [vmem:[#allocation5 + $0x38] sm:$0xff]
    %v91 = vld [vmem:[#allocation8] sm:$0xff]
    %v92 = vld [vmem:[#allocation8 + $0x8] sm:$0xff]
    %v93 = vld [vmem:[#allocation8 + $0x10] sm:$0xff]
    %vm94 = vcmask 64512
    %v96 = vsel %vm94, %v83, 0
    %v99 = vsel %vm94, %v84, 0
    %v102 = vsel %vm94, %v85, 0
    %v105 = vsel %vm94, %v86, 0
    %v108 = vsel %vm94, %v87, 0
    %v111 = vsel %vm94, %v88, 0
    %v114 = vsel %vm94, %v89, 0
    %v117 = vsel %vm94, %v90, 0
    %119 = vmatprep.subr.mxu0 %v92
    %120 = vmatpush1.msra.mxu0 %v91
    %121 = vmatprep.subr.mxu0 0.0
    %122 = vmatpush1.msra.mxu0 0.0
    %123 = vmatprep.subr.mxu0 0.0
    %124 = vmatpush1.msra.mxu0 0.0
    %125 = vmatprep.subr.mxu0 0.0
    %126 = vmatpush1.msra.mxu0 0.0
    %127 = vmatprep.subr.mxu0 0.0
    %128 = vmatpush1.msra.mxu0 0.0
    %129 = vmatprep.subr.mxu0 0.0
    %130 = vmatpush1.msra.mxu0 0.0
    %131 = vmatprep.subr.mxu0 0.0
    %132 = vmatpush1.msra.mxu0 0.0
    %133 = vmatprep.subr.mxu0 0.0
    %134 = vmatpush1.msra.mxu0 0.0
    %135 = vmatprep.subr.mxu0 0.0
    %136 = vmatpush1.msra.mxu0 0.0
    %137 = vmatprep.subr.mxu0 0.0
    %138 = vmatpush1.msra.mxu0 0.0
    %139 = vmatprep.subr.mxu0 0.0
    %140 = vmatpush1.msra.mxu0 0.0
    %141 = vmatprep.subr.mxu0 0.0
    %142 = vmatpush1.msra.mxu0 0.0
    %143 = vmatprep.subr.mxu0 0.0
    %144 = vmatpush1.msra.mxu0 0.0
    %145 = vmatprep.subr.mxu0 0.0
    %146 = vmatpush1.msra.mxu0 0.0
    %147 = vmatprep.subr.mxu0 0.0
    %148 = vmatpush1.msra.mxu0 0.0
    %149 = vmatprep.subr.mxu0 0.0
    %150 = vmatpush1.msra.mxu0 0.0
    %151 = vmatprep.subr.mxu0 0.0
    %152 = vmatpush1.msra.mxu0 0.0
    %153 = vmatprep.subr.mxu0 0.0
    %154 = vmatpush1.msra.mxu0 0.0
    %155 = vmatprep.subr.mxu0 0.0
    %156 = vmatpush1.msra.mxu0 0.0
    %157 = vmatprep.subr.mxu0 0.0
    %158 = vmatpush1.msra.mxu0 0.0
    %159 = vmatprep.subr.mxu0 0.0
    %160 = vmatpush1.msra.mxu0 0.0
    %161 = vmatprep.subr.mxu0 0.0
    %162 = vmatpush1.msra.mxu0 0.0
    %163 = vmatprep.subr.mxu0 0.0
    %164 = vmatpush1.msra.mxu0 0.0
    %165 = vmatprep.subr.mxu0 0.0
    %166 = vmatpush1.msra.mxu0 0.0
    %167 = vmatprep.subr.mxu0 0.0
    %168 = vmatpush1.msra.mxu0 0.0
    %169 = vmatprep.subr.mxu0 0.0
    %170 = vmatpush1.msra.mxu0 0.0
    %171 = vmatprep.subr.mxu0 0.0
    %172 = vmatpush1.msra.mxu0 0.0
    %173 = vmatprep.subr.mxu0 0.0
    %174 = vmatpush1.msra.mxu0 0.0
    %175 = vmatprep.subr.mxu0 0.0
    %176 = vmatpush1.msra.mxu0 0.0
    %177 = vmatprep.subr.mxu0 0.0
    %178 = vmatpush1.msra.mxu0 0.0
    %179 = vmatprep.subr.mxu0 0.0
    %180 = vmatpush1.msra.mxu0 0.0
    %181 = vmatprep.subr.mxu0 0.0
    %182 = vmatpush1.msra.mxu0 0.0
    %183 = vmatprep.mubr.f32.mxu0 0.0
    %184 = vmatmul.mubr.f32.gmra.mrb[0].mxu0 %v96
    %v185 = vpop.f32.mrb[0].mxu0
    %v186 = vadd.f32 0.0, %v185
    %v187 = vpop.f32.mrb[0].mxu0
    %v188 = vadd.f32 0.0, %v187
    %189 = vmatprep.mubr.f32.mxu0 0.0
    %190 = vmatmul.mubr.f32.gmra.mrb[0].mxu0 %v99
    %v191 = vpop.f32.mrb[0].mxu0
    %v192 = vadd.f32 0.0, %v191
    %v193 = vpop.f32.mrb[0].mxu0
    %v194 = vadd.f32 0.0, %v193
    %195 = vmatprep.mubr.f32.mxu0 0.0
    %196 = vmatmul.mubr.f32.gmra.mrb[0].mxu0 %v102
    %v197 = vpop.f32.mrb[0].mxu0
    %v198 = vadd.f32 0.0, %v197
    %v199 = vpop.f32.mrb[0].mxu0
    %v200 = vadd.f32 0.0, %v199
    %201 = vmatprep.mubr.f32.mxu0 0.0
    %202 = vmatmul.mubr.f32.gmra.mrb[0].mxu0 %v105
    %v203 = vpop.f32.mrb[0].mxu0
    %v204 = vadd.f32 0.0, %v203
    %v205 = vpop.f32.mrb[0].mxu0
    %v206 = vadd.f32 0.0, %v205
    %207 = vmatprep.mubr.f32.mxu0 0.0
    %208 = vmatmul.mubr.f32.gmra.mrb[0].mxu0 %v108
    %v209 = vpop.f32.mrb[0].mxu0
    %v210 = vadd.f32 0.0, %v209
    %v211 = vpop.f32.mrb[0].mxu0
    %v212 = vadd.f32 0.0, %v211
    %213 = vmatprep.mubr.f32.mxu0 0.0
    %214 = vmatmul.mubr.f32.gmra.mrb[0].mxu0 %v111
    %v215 = vpop.f32.mrb[0].mxu0
    %v216 = vadd.f32 0.0, %v215
    %v217 = vpop.f32.mrb[0].mxu0
    %v218 = vadd.f32 0.0, %v217
    %219 = vmatprep.mubr.f32.mxu0 0.0
    %220 = vmatmul.mubr.f32.gmra.mrb[0].mxu0 %v114
    %v221 = vpop.f32.mrb[0].mxu0
    %v222 = vadd.f32 0.0, %v221
    %v223 = vpop.f32.mrb[0].mxu0
    %v224 = vadd.f32 0.0, %v223
    %225 = vmatprep.mubr.f32.mxu0 0.0
    %226 = vmatmul.mubr.f32.gmra.mrb[0].mxu0 %v117
    %v227 = vpop.f32.mrb[0].mxu0
    %v228 = vadd.f32 0.0, %v227
    %v229 = vpop.f32.mrb[0].mxu0
    %v230 = vadd.f32 0.0, %v229
    %231 = vdwg.mxu0
    %232 = vmatprep.subr.mxu0 0.0
    %233 = vmatpush1.msra.mxu0 %v93
    %234 = vmatprep.subr.mxu0 0.0
    %235 = vmatpush1.msra.mxu0 0.0
    %236 = vmatprep.subr.mxu0 0.0
    %237 = vmatpush1.msra.mxu0 0.0
    %238 = vmatprep.subr.mxu0 0.0
    %239 = vmatpush1.msra.mxu0 0.0
    %240 = vmatprep.subr.mxu0 0.0
    %241 = vmatpush1.msra.mxu0 0.0
    %242 = vmatprep.subr.mxu0 0.0
    %243 = vmatpush1.msra.mxu0 0.0
    %244 = vmatprep.subr.mxu0 0.0
    %245 = vmatpush1.msra.mxu0 0.0
    %246 = vmatprep.subr.mxu0 0.0
    %247 = vmatpush1.msra.mxu0 0.0
    %248 = vmatprep.subr.mxu0 0.0
    %249 = vmatpush1.msra.mxu0 0.0
    %250 = vmatprep.subr.mxu0 0.0
    %251 = vmatpush1.msra.mxu0 0.0
    %252 = vmatprep.subr.mxu0 0.0
    %253 = vmatpush1.msra.mxu0 0.0
    %254 = vmatprep.subr.mxu0 0.0
    %255 = vmatpush1.msra.mxu0 0.0
    %256 = vmatprep.subr.mxu0 0.0
    %257 = vmatpush1.msra.mxu0 0.0
    %258 = vmatprep.subr.mxu0 0.0
    %259 = vmatpush1.msra.mxu0 0.0
    %260 = vmatprep.subr.mxu0 0.0
    %261 = vmatpush1.msra.mxu0 0.0
    %262 = vmatprep.subr.mxu0 0.0
    %263 = vmatpush1.msra.mxu0 0.0
    %264 = vmatprep.subr.mxu0 0.0
    %265 = vmatpush1.msra.mxu0 0.0
    %266 = vmatprep.subr.mxu0 0.0
    %267 = vmatpush1.msra.mxu0 0.0
    %268 = vmatprep.subr.mxu0 0.0
    %269 = vmatpush1.msra.mxu0 0.0
    %270 = vmatprep.subr.mxu0 0.0
    %271 = vmatpush1.msra.mxu0 0.0
    %272 = vmatprep.subr.mxu0 0.0
    %273 = vmatpush1.msra.mxu0 0.0
    %274 = vmatprep.subr.mxu0 0.0
    %275 = vmatpush1.msra.mxu0 0.0
    %276 = vmatprep.subr.mxu0 0.0
    %277 = vmatpush1.msra.mxu0 0.0
    %278 = vmatprep.subr.mxu0 0.0
    %279 = vmatpush1.msra.mxu0 0.0
    %280 = vmatprep.subr.mxu0 0.0
    %281 = vmatpush1.msra.mxu0 0.0
    %282 = vmatprep.subr.mxu0 0.0
    %283 = vmatpush1.msra.mxu0 0.0
    %284 = vmatprep.subr.mxu0 0.0
    %285 = vmatpush1.msra.mxu0 0.0
    %286 = vmatprep.subr.mxu0 0.0
    %287 = vmatpush1.msra.mxu0 0.0
    %288 = vmatprep.subr.mxu0 0.0
    %289 = vmatpush1.msra.mxu0 0.0
    %290 = vmatprep.subr.mxu0 0.0
    %291 = vmatpush1.msra.mxu0 0.0
    %292 = vmatprep.subr.mxu0 0.0
    %293 = vmatpush1.msra.mxu0 0.0
    %294 = vmatprep.subr.mxu0 0.0
    %295 = vmatpush1.msra.mxu0 0.0
    %296 = vmatprep.mubr.f32.mxu0 0.0
    %297 = vmatmul.mubr.f32.gmra.mrb[0].mxu0 %v96
    %v298 = vpop.f32.mrb[0].mxu0
    %v299 = vadd.f32 0.0, %v298
    %v300 = vpop.f32.mrb[0].mxu0
    %301 = vmatprep.mubr.f32.mxu0 0.0
    %302 = vmatmul.mubr.f32.gmra.mrb[0].mxu0 %v99
    %v303 = vpop.f32.mrb[0].mxu0
    %v304 = vadd.f32 0.0, %v303
    %v305 = vpop.f32.mrb[0].mxu0
    %306 = vmatprep.mubr.f32.mxu0 0.0
    %307 = vmatmul.mubr.f32.gmra.mrb[0].mxu0 %v102
    %v308 = vpop.f32.mrb[0].mxu0
    %v309 = vadd.f32 0.0, %v308
    %v310 = vpop.f32.mrb[0].mxu0
    %311 = vmatprep.mubr.f32.mxu0 0.0
    %312 = vmatmul.mubr.f32.gmra.mrb[0].mxu0 %v105
    %v313 = vpop.f32.mrb[0].mxu0
    %v314 = vadd.f32 0.0, %v313
    %v315 = vpop.f32.mrb[0].mxu0
    %316 = vmatprep.mubr.f32.mxu0 0.0
    %317 = vmatmul.mubr.f32.gmra.mrb[0].mxu0 %v108
    %v318 = vpop.f32.mrb[0].mxu0
    %v319 = vadd.f32 0.0, %v318
    %v320 = vpop.f32.mrb[0].mxu0
    %321 = vmatprep.mubr.f32.mxu0 0.0
    %322 = vmatmul.mubr.f32.gmra.mrb[0].mxu0 %v111
    %v323 = vpop.f32.mrb[0].mxu0
    %v324 = vadd.f32 0.0, %v323
    %v325 = vpop.f32.mrb[0].mxu0
    %326 = vmatprep.mubr.f32.mxu0 0.0
    %327 = vmatmul.mubr.f32.gmra.mrb[0].mxu0 %v114
    %v328 = vpop.f32.mrb[0].mxu0
    %v329 = vadd.f32 0.0, %v328
    %v330 = vpop.f32.mrb[0].mxu0
    %331 = vmatprep.mubr.f32.mxu0 0.0
    %332 = vmatmul.mubr.f32.gmra.mrb[0].mxu0 %v117
    %v333 = vpop.f32.mrb[0].mxu0
    %v334 = vadd.f32 0.0, %v333
    %v335 = vpop.f32.mrb[0].mxu0
    %336 = vdwg.mxu0
    %v337 = vld [vmem:[%s4] sm:$0x7]
    %v339 = vlaneseq
    %v340 = vshrl.u32 %v339, 7
    %v341 = vsub.s32 0, %v340
    %v342 = vrot.slane %v337, %v341
    %v343 = vlaneseq
    %v344 = vshrl.u32 %v343, 7
    %v345 = vsub.s32 1, %v344
    %v346 = vrot.slane %v337, %v345
    %v347 = vlaneseq
    %v348 = vshrl.u32 %v347, 7
    %v349 = vsub.s32 2, %v348
    %v350 = vrot.slane %v337, %v349
    %v354 = vadd.f32 %v186, %v342
    %v355 = vadd.f32 %v188, %v346
    %v356 = vadd.f32 %v299, %v350
    %v357 = vadd.f32 %v192, %v342
    %v358 = vadd.f32 %v194, %v346
    %v359 = vadd.f32 %v304, %v350
    %v360 = vadd.f32 %v198, %v342
    %v361 = vadd.f32 %v200, %v346
    %v362 = vadd.f32 %v309, %v350
    %v363 = vadd.f32 %v204, %v342
    %v364 = vadd.f32 %v206, %v346
    %v365 = vadd.f32 %v314, %v350
    %v366 = vadd.f32 %v210, %v342
    %v367 = vadd.f32 %v212, %v346
    %v368 = vadd.f32 %v319, %v350
    %v369 = vadd.f32 %v216, %v342
    %v370 = vadd.f32 %v218, %v346
    %v371 = vadd.f32 %v324, %v350
    %v372 = vadd.f32 %v222, %v342
    %v373 = vadd.f32 %v224, %v346
    %v374 = vadd.f32 %v329, %v350
    %v375 = vadd.f32 %v228, %v342
    %v376 = vadd.f32 %v230, %v346
    %v377 = vadd.f32 %v334, %v350
    %378 = vst [vmem:[#allocation4] sm:$0xff] %v354
    %379 = vst [vmem:[#allocation4 + $0x8] sm:$0xff] %v355
    %380 = vst [vmem:[#allocation4 + $0x10] sm:$0xff] %v356
    %381 = vst [vmem:[#allocation4 + $0x18] sm:$0xff] %v357
    %382 = vst [vmem:[#allocation4 + $0x20] sm:$0xff] %v358
    %383 = vst [vmem:[#allocation4 + $0x28] sm:$0xff] %v359
    %384 = vst [vmem:[#allocation4 + $0x30] sm:$0xff] %v360
    %385 = vst [vmem:[#allocation4 + $0x38] sm:$0xff] %v361
    %386 = vst [vmem:[#allocation4 + $0x40] sm:$0xff] %v362
    %387 = vst [vmem:[#allocation4 + $0x48] sm:$0xff] %v363
    %388 = vst [vmem:[#allocation4 + $0x50] sm:$0xff] %v364
    %389 = vst [vmem:[#allocation4 + $0x58] sm:$0xff] %v365
    %390 = vst [vmem:[#allocation4 + $0x60] sm:$0xff] %v366
    %391 = vst [vmem:[#allocation4 + $0x68] sm:$0xff] %v367
    %392 = vst [vmem:[#allocation4 + $0x70] sm:$0xff] %v368
    %393 = vst [vmem:[#allocation4 + $0x78] sm:$0xff] %v369
    %394 = vst [vmem:[#allocation4 + $0x80] sm:$0xff] %v370
    %395 = vst [vmem:[#allocation4 + $0x88] sm:$0xff] %v371
    %396 = vst [vmem:[#allocation4 + $0x90] sm:$0xff] %v372
    %397 = vst [vmem:[#allocation4 + $0x98] sm:$0xff] %v373
    %398 = vst [vmem:[#allocation4 + $0xa0] sm:$0xff] %v374
    %399 = vst [vmem:[#allocation4 + $0xa8] sm:$0xff] %v375
    %400 = vst [vmem:[#allocation4 + $0xb0] sm:$0xff] %v376
    %401 = vst [vmem:[#allocation4 + $0xb8] sm:$0xff] %v377
    %v402 = vld [vmem:[#allocation11] sm:$0xff]
    %v403 = vld [vmem:[#allocation11 + $0x8] sm:$0xff]
    %v404 = vld [vmem:[#allocation11 + $0x10] sm:$0xff]
    %v405 = vld [vmem:[#allocation11 + $0x18] sm:$0xff]
    %v406 = vld [vmem:[#allocation11 + $0x20] sm:$0xff]
    %v407 = vld [vmem:[#allocation11 + $0x28] sm:$0xff]
    %v408 = vld [vmem:[#allocation11 + $0x30] sm:$0xff]
    %v409 = vld [vmem:[#allocation11 + $0x38] sm:$0xff]
    %v410 = vld [vmem:[#allocation11 + $0x40] sm:$0xff]
    %v411 = vld [vmem:[#allocation11 + $0x48] sm:$0xff]
    %v412 = vld [vmem:[#allocation11 + $0x50] sm:$0xff]
    %v413 = vld [vmem:[#allocation11 + $0x58] sm:$0xff]
    %v414 = vld [vmem:[#allocation11 + $0x60] sm:$0xff]
    %v415 = vld [vmem:[#allocation11 + $0x68] sm:$0xff]
    %v416 = vld [vmem:[#allocation11 + $0x70] sm:$0xff]
    %v417 = vld [vmem:[#allocation11 + $0x78] sm:$0xff]
    %v418 = vld [vmem:[#allocation11 + $0x80] sm:$0xff]
    %v419 = vld [vmem:[#allocation11 + $0x88] sm:$0xff]
    %v420 = vld [vmem:[#allocation11 + $0x90] sm:$0xff]
    %v421 = vld [vmem:[#allocation11 + $0x98] sm:$0xff]
    %v422 = vld [vmem:[#allocation11 + $0xa0] sm:$0xff]
    %v423 = vld [vmem:[#allocation11 + $0xa8] sm:$0xff]
    %v424 = vld [vmem:[#allocation11 + $0xb0] sm:$0xff]
    %v425 = vld [vmem:[#allocation11 + $0xb8] sm:$0xff]
    %v426 = vld [vmem:[#allocation11 + $0xc0] sm:$0xff]
    %v427 = vld [vmem:[#allocation11 + $0xc8] sm:$0xff]
    %v428 = vld [vmem:[#allocation11 + $0xd0] sm:$0xff]
    %v429 = vld [vmem:[#allocation11 + $0xd8] sm:$0xff]
    %v430 = vld [vmem:[#allocation11 + $0xe0] sm:$0xff]
    %v431 = vld [vmem:[#allocation11 + $0xe8] sm:$0xff]
    %v432 = vld [vmem:[#allocation11 + $0xf0] sm:$0xff]
    %v433 = vld [vmem:[#allocation11 + $0xf8] sm:$0xff]
    %v434 = vld [vmem:[#allocation11 + $0x100] sm:$0xff]
    %v435 = vld [vmem:[#allocation11 + $0x108] sm:$0xff]
    %v436 = vld [vmem:[#allocation11 + $0x110] sm:$0xff]
    %v437 = vld [vmem:[#allocation11 + $0x118] sm:$0xff]
    %v438 = vld [vmem:[#allocation11 + $0x120] sm:$0xff]
    %v439 = vld [vmem:[#allocation11 + $0x128] sm:$0xff]
    %v440 = vld [vmem:[#allocation11 + $0x130] sm:$0xff]
    %v441 = vld [vmem:[#allocation11 + $0x138] sm:$0xff]
    %v442 = vld [vmem:[#allocation11 + $0x140] sm:$0xff]
    %v443 = vld [vmem:[#allocation11 + $0x148] sm:$0xff]
    %v444 = vld [vmem:[#allocation11 + $0x150] sm:$0xff]
    %v445 = vld [vmem:[#allocation11 + $0x158] sm:$0xff]
    %v446 = vld [vmem:[#allocation11 + $0x160] sm:$0xff]
    %v447 = vld [vmem:[#allocation11 + $0x168] sm:$0xff]
    %v448 = vld [vmem:[#allocation11 + $0x170] sm:$0xff]
    %v449 = vld [vmem:[#allocation11 + $0x178] sm:$0xff]
    %v450 = vld [vmem:[%s5] sm:$0x1]
    %v451 = vld [vmem:[#allocation2] sm:$0xff]
    %452 = vmatprep.subr.mxu0 %v403
    %453 = vmatpush1.msra.mxu0 %v402
    %454 = vmatprep.subr.mxu0 %v406
    %455 = vmatpush1.msra.mxu0 %v405
    %456 = vmatprep.subr.mxu0 %v409
    %457 = vmatpush1.msra.mxu0 %v408
    %458 = vmatprep.subr.mxu0 %v412
    %459 = vmatpush1.msra.mxu0 %v411
    %460 = vmatprep.subr.mxu0 %v415
    %461 = vmatpush1.msra.mxu0 %v414
    %462 = vmatprep.subr.mxu0 %v418
    %463 = vmatpush1.msra.mxu0 %v417
    %464 = vmatprep.subr.mxu0 %v421
    %465 = vmatpush1.msra.mxu0 %v420
    %466 = vmatprep.subr.mxu0 %v424
    %467 = vmatpush1.msra.mxu0 %v423
    %468 = vmatprep.subr.mxu0 %v427
    %469 = vmatpush1.msra.mxu0 %v426
    %470 = vmatprep.subr.mxu0 %v430
    %471 = vmatpush1.msra.mxu0 %v429
    %472 = vmatprep.subr.mxu0 %v433
    %473 = vmatpush1.msra.mxu0 %v432
    %474 = vmatprep.subr.mxu0 %v436
    %475 = vmatpush1.msra.mxu0 %v435
    %476 = vmatprep.subr.mxu0 %v439
    %477 = vmatpush1.msra.mxu0 %v438
    %478 = vmatprep.subr.mxu0 %v442
    %479 = vmatpush1.msra.mxu0 %v441
    %480 = vmatprep.subr.mxu0 %v445
    %481 = vmatpush1.msra.mxu0 %v444
    %482 = vmatprep.subr.mxu0 %v448
    %483 = vmatpush1.msra.mxu0 %v447
    %484 = vmatprep.subr.mxu0 0.0
    %485 = vmatpush1.msra.mxu0 0.0
    %486 = vmatprep.subr.mxu0 0.0
    %487 = vmatpush1.msra.mxu0 0.0
    %488 = vmatprep.subr.mxu0 0.0
    %489 = vmatpush1.msra.mxu0 0.0
    %490 = vmatprep.subr.mxu0 0.0
    %491 = vmatpush1.msra.mxu0 0.0
    %492 = vmatprep.subr.mxu0 0.0
    %493 = vmatpush1.msra.mxu0 0.0
    %494 = vmatprep.subr.mxu0 0.0
    %495 = vmatpush1.msra.mxu0 0.0
    %496 = vmatprep.subr.mxu0 0.0
    %497 = vmatpush1.msra.mxu0 0.0
    %498 = vmatprep.subr.mxu0 0.0
    %499 = vmatpush1.msra.mxu0 0.0
    %500 = vmatprep.subr.mxu0 0.0
    %501 = vmatpush1.msra.mxu0 0.0
    %502 = vmatprep.subr.mxu0 0.0
    %503 = vmatpush1.msra.mxu0 0.0
    %504 = vmatprep.subr.mxu0 0.0
    %505 = vmatpush1.msra.mxu0 0.0
    %506 = vmatprep.subr.mxu0 0.0
    %507 = vmatpush1.msra.mxu0 0.0
    %508 = vmatprep.subr.mxu0 0.0
    %509 = vmatpush1.msra.mxu0 0.0
    %510 = vmatprep.subr.mxu0 0.0
    %511 = vmatpush1.msra.mxu0 0.0
    %512 = vmatprep.subr.mxu0 0.0
    %513 = vmatpush1.msra.mxu0 0.0
    %514 = vmatprep.subr.mxu0 0.0
    %515 = vmatpush1.msra.mxu0 0.0
    %516 = vmatprep.mubr.f32.mxu0 0.0
    %517 = vmatmul.mubr.f32.gmra.mrb[0].mxu0 %v451
    %v518 = vpop.f32.mrb[0].mxu0
    %v519 = vadd.f32 0.0, %v518
    %v520 = vpop.f32.mrb[0].mxu0
    %v521 = vadd.f32 0.0, %v520
    %522 = vdwg.mxu0
    %523 = vmatprep.subr.mxu0 0.0
    %524 = vmatpush1.msra.mxu0 %v404
    %525 = vmatprep.subr.mxu0 0.0
    %526 = vmatpush1.msra.mxu0 %v407
    %527 = vmatprep.subr.mxu0 0.0
    %528 = vmatpush1.msra.mxu0 %v410
    %529 = vmatprep.subr.mxu0 0.0
    %530 = vmatpush1.msra.mxu0 %v413
    %531 = vmatprep.subr.mxu0 0.0
    %532 = vmatpush1.msra.mxu0 %v416
    %533 = vmatprep.subr.mxu0 0.0
    %534 = vmatpush1.msra.mxu0 %v419
    %535 = vmatprep.subr.mxu0 0.0
    %536 = vmatpush1.msra.mxu0 %v422
    %537 = vmatprep.subr.mxu0 0.0
    %538 = vmatpush1.msra.mxu0 %v425
    %539 = vmatprep.subr.mxu0 0.0
    %540 = vmatpush1.msra.mxu0 %v428
    %541 = vmatprep.subr.mxu0 0.0
    %542 = vmatpush1.msra.mxu0 %v431
    %543 = vmatprep.subr.mxu0 0.0
    %544 = vmatpush1.msra.mxu0 %v434
    %545 = vmatprep.subr.mxu0 0.0
    %546 = vmatpush1.msra.mxu0 %v437
    %547 = vmatprep.subr.mxu0 0.0
    %548 = vmatpush1.msra.mxu0 %v440
    %549 = vmatprep.subr.mxu0 0.0
    %550 = vmatpush1.msra.mxu0 %v443
    %551 = vmatprep.subr.mxu0 0.0
    %552 = vmatpush1.msra.mxu0 %v446
    %553 = vmatprep.subr.mxu0 0.0
    %554 = vmatpush1.msra.mxu0 %v449
    %555 = vmatprep.subr.mxu0 0.0
    %556 = vmatpush1.msra.mxu0 0.0
    %557 = vmatprep.subr.mxu0 0.0
    %558 = vmatpush1.msra.mxu0 0.0
    %559 = vmatprep.subr.mxu0 0.0
    %560 = vmatpush1.msra.mxu0 0.0
    %561 = vmatprep.subr.mxu0 0.0
    %562 = vmatpush1.msra.mxu0 0.0
    %563 = vmatprep.subr.mxu0 0.0
    %564 = vmatpush1.msra.mxu0 0.0
    %565 = vmatprep.subr.mxu0 0.0
    %566 = vmatpush1.msra.mxu0 0.0
    %567 = vmatprep.subr.mxu0 0.0
    %568 = vmatpush1.msra.mxu0 0.0
    %569 = vmatprep.subr.mxu0 0.0
    %570 = vmatpush1.msra.mxu0 0.0
    %571 = vmatprep.subr.mxu0 0.0
    %572 = vmatpush1.msra.mxu0 0.0
    %573 = vmatprep.subr.mxu0 0.0
    %574 = vmatpush1.msra.mxu0 0.0
    %575 = vmatprep.subr.mxu0 0.0
    %576 = vmatpush1.msra.mxu0 0.0
    %577 = vmatprep.subr.mxu0 0.0
    %578 = vmatpush1.msra.mxu0 0.0
    %579 = vmatprep.subr.mxu0 0.0
    %580 = vmatpush1.msra.mxu0 0.0
    %581 = vmatprep.subr.mxu0 0.0
    %582 = vmatpush1.msra.mxu0 0.0
    %583 = vmatprep.subr.mxu0 0.0
    %584 = vmatpush1.msra.mxu0 0.0
    %585 = vmatprep.subr.mxu0 0.0
    %586 = vmatpush1.msra.mxu0 0.0
    %587 = vmatprep.mubr.f32.mxu0 0.0
    %588 = vmatmul.mubr.f32.gmra.mrb[0].mxu0 %v451
    %v589 = vpop.f32.mrb[0].mxu0
    %v590 = vadd.f32 0.0, %v589
    %v591 = vpop.f32.mrb[0].mxu0
    %592 = vdwg.mxu0
    %v593 = vld [vmem:[#allocation4] sm:$0xff]
    %v594 = vld [vmem:[#allocation4 + $0x8] sm:$0xff]
    %v595 = vld [vmem:[#allocation4 + $0x10] sm:$0xff]
    %v596 = vadd.f32 %v593, %v519
    %v597 = vmul.f32 %v596, 0.5
    %v598 = vtanh.pop %v597
    %v599 = vmul.f32 %v598, 0.5
    %v600 = vadd.f32 %v599, 0.5
    %v601 = vadd.f32 %v594, %v521
    %v602 = vmul.f32 %v601, 0.5
    %v603 = vtanh.pop %v602
    %v604 = vmul.f32 %v603, 0.5
    %v605 = vadd.f32 %v604, 0.5
    %v607 = vlaneseq
    %v608 = vshrl.u32 %v607, 7
    %v609 = vsub.s32 0, %v608
    %v610 = vrot.slane %v450, %v609
    %v612 = vadd.f32 %v590, %v610
    %v613 = vmul.f32 %v600, %v612
    %v614 = vadd.f32 %v595, %v613
    %v615 = vtanh.pop %v614
    %v616 = vsub.f32 1.0, %v605
    %v617 = vmul.f32 %v616, %v615
    %v618 = vmul.f32 %v605, %v451
    %v619 = vadd.f32 %v617, %v618
    %620 = vst [vmem:[#allocation3] sm:$0xff] %v619
    %621 = vmatprep.subr.mxu0 %v403
    %622 = vmatpush1.msra.mxu0 %v402
    %623 = vmatprep.subr.mxu0 %v406
    %624 = vmatpush1.msra.mxu0 %v405
    %625 = vmatprep.subr.mxu0 %v409
    %626 = vmatpush1.msra.mxu0 %v408
    %627 = vmatprep.subr.mxu0 %v412
    %628 = vmatpush1.msra.mxu0 %v411
    %629 = vmatprep.subr.mxu0 %v415
    %630 = vmatpush1.msra.mxu0 %v414
    %631 = vmatprep.subr.mxu0 %v418
    %632 = vmatpush1.msra.mxu0 %v417
    %633 = vmatprep.subr.mxu0 %v421
    %634 = vmatpush1.msra.mxu0 %v420
    %635 = vmatprep.subr.mxu0 %v424
    %636 = vmatpush1.msra.mxu0 %v423
    %637 = vmatprep.subr.mxu0 %v427
    %638 = vmatpush1.msra.mxu0 %v426
    %639 = vmatprep.subr.mxu0 %v430
    %640 = vmatpush1.msra.mxu0 %v429
    %641 = vmatprep.subr.mxu0 %v433
    %642 = vmatpush1.msra.mxu0 %v432
    %643 = vmatprep.subr.mxu0 %v436
    %644 = vmatpush1.msra.mxu0 %v435
    %645 = vmatprep.subr.mxu0 %v439
    %646 = vmatpush1.msra.mxu0 %v438
    %647 = vmatprep.subr.mxu0 %v442
    %648 = vmatpush1.msra.mxu0 %v441
    %649 = vmatprep.subr.mxu0 %v445
    %650 = vmatpush1.msra.mxu0 %v444
    %651 = vmatprep.subr.mxu0 %v448
    %652 = vmatpush1.msra.mxu0 %v447
    %653 = vmatprep.subr.mxu0 0.0
    %654 = vmatpush1.msra.mxu0 0.0
    %655 = vmatprep.subr.mxu0 0.0
    %656 = vmatpush1.msra.mxu0 0.0
    %657 = vmatprep.subr.mxu0 0.0
    %658 = vmatpush1.msra.mxu0 0.0
    %659 = vmatprep.subr.mxu0 0.0
    %660 = vmatpush1.msra.mxu0 0.0
    %661 = vmatprep.subr.mxu0 0.0
    %662 = vmatpush1.msra.mxu0 0.0
    %663 = vmatprep.subr.mxu0 0.0
    %664 = vmatpush1.msra.mxu0 0.0
    %665 = vmatprep.subr.mxu0 0.0
    %666 = vmatpush1.msra.mxu0 0.0
    %667 = vmatprep.subr.mxu0 0.0
    %668 = vmatpush1.msra.mxu0 0.0
    %669 = vmatprep.subr.mxu0 0.0
    %670 = vmatpush1.msra.mxu0 0.0
    %671 = vmatprep.subr.mxu0 0.0
    %672 = vmatpush1.msra.mxu0 0.0
    %673 = vmatprep.subr.mxu0 0.0
    %674 = vmatpush1.msra.mxu0 0.0
    %675 = vmatprep.subr.mxu0 0.0
    %676 = vmatpush1.msra.mxu0 0.0
    %677 = vmatprep.subr.mxu0 0.0
    %678 = vmatpush1.msra.mxu0 0.0
    %679 = vmatprep.subr.mxu0 0.0
    %680 = vmatpush1.msra.mxu0 0.0
    %681 = vmatprep.subr.mxu0 0.0
    %682 = vmatpush1.msra.mxu0 0.0
    %683 = vmatprep.subr.mxu0 0.0
    %684 = vmatpush1.msra.mxu0 0.0
    %685 = vmatprep.mubr.f32.mxu0 0.0
    %686 = vmatmul.mubr.f32.gmra.mrb[0].mxu0 %v619
    %v687 = vpop.f32.mrb[0].mxu0
    %v688 = vadd.f32 0.0, %v687
    %v689 = vpop.f32.mrb[0].mxu0
    %v690 = vadd.f32 0.0, %v689
    %691 = vdwg.mxu0
    %692 = vmatprep.subr.mxu0 0.0
    %693 = vmatpush1.msra.mxu0 %v404
    %694 = vmatprep.subr.mxu0 0.0
    %695 = vmatpush1.msra.mxu0 %v407
    %696 = vmatprep.subr.mxu0 0.0
    %697 = vmatpush1.msra.mxu0 %v410
    %698 = vmatprep.subr.mxu0 0.0
    %699 = vmatpush1.msra.mxu0 %v413
    %700 = vmatprep.subr.mxu0 0.0
    %701 = vmatpush1.msra.mxu0 %v416
    %702 = vmatprep.subr.mxu0 0.0
    %703 = vmatpush1.msra.mxu0 %v419
    %704 = vmatprep.subr.mxu0 0.0
    %705 = vmatpush1.msra.mxu0 %v422
    %706 = vmatprep.subr.mxu0 0.0
    %707 = vmatpush1.msra.mxu0 %v425
    %708 = vmatprep.subr.mxu0 0.0
    %709 = vmatpush1.msra.mxu0 %v428
    %710 = vmatprep.subr.mxu0 0.0
    %711 = vmatpush1.msra.mxu0 %v431
    %712 = vmatprep.subr.mxu0 0.0
    %713 = vmatpush1.msra.mxu0 %v434
    %714 = vmatprep.subr.mxu0 0.0
    %715 = vmatpush1.msra.mxu0 %v437
    %716 = vmatprep.subr.mxu0 0.0
    %717 = vmatpush1.msra.mxu0 %v440
    %718 = vmatprep.subr.mxu0 0.0
    %719 = vmatpush1.msra.mxu0 %v443
    %720 = vmatprep.subr.mxu0 0.0
    %721 = vmatpush1.msra.mxu0 %v446
    %722 = vmatprep.subr.mxu0 0.0
    %723 = vmatpush1.msra.mxu0 %v449
    %724 = vmatprep.subr.mxu0 0.0
    %725 = vmatpush1.msra.mxu0 0.0
    %726 = vmatprep.subr.mxu0 0.0
    %727 = vmatpush1.msra.mxu0 0.0
    %728 = vmatprep.subr.mxu0 0.0
    %729 = vmatpush1.msra.mxu0 0.0
    %730 = vmatprep.subr.mxu0 0.0
    %731 = vmatpush1.msra.mxu0 0.0
    %732 = vmatprep.subr.mxu0 0.0
    %733 = vmatpush1.msra.mxu0 0.0
    %734 = vmatprep.subr.mxu0 0.0
    %735 = vmatpush1.msra.mxu0 0.0
    %736 = vmatprep.subr.mxu0 0.0
    %737 = vmatpush1.msra.mxu0 0.0
    %738 = vmatprep.subr.mxu0 0.0
    %739 = vmatpush1.msra.mxu0 0.0
    %740 = vmatprep.subr.mxu0 0.0
    %741 = vmatpush1.msra.mxu0 0.0
    %742 = vmatprep.subr.mxu0 0.0
    %743 = vmatpush1.msra.mxu0 0.0
    %744 = vmatprep.subr.mxu0 0.0
    %745 = vmatpush1.msra.mxu0 0.0
    %746 = vmatprep.subr.mxu0 0.0
    %747 = vmatpush1.msra.mxu0 0.0
    %748 = vmatprep.subr.mxu0 0.0
    %749 = vmatpush1.msra.mxu0 0.0
    %750 = vmatprep.subr.mxu0 0.0
    %751 = vmatpush1.msra.mxu0 0.0
    %752 = vmatprep.subr.mxu0 0.0
    %753 = vmatpush1.msra.mxu0 0.0
    %754 = vmatprep.subr.mxu0 0.0
    %755 = vmatpush1.msra.mxu0 0.0
    %756 = vmatprep.mubr.f32.mxu0 0.0
    %757 = vmatmul.mubr.f32.gmra.mrb[0].mxu0 %v619
    %v758 = vpop.f32.mrb[0].mxu0
    %v759 = vadd.f32 0.0, %v758
    %v760 = vpop.f32.mrb[0].mxu0
    %761 = vdwg.mxu0
    %s762 = scalar_lea.vmem [#allocation4], 24
    %v763 = vld [vmem:[%s762] sm:$0xff]
    %v764 = vld [vmem:[%s762 + $0x8] sm:$0xff]
    %v765 = vld [vmem:[%s762 + $0x10] sm:$0xff]
    %v766 = vadd.f32 %v763, %v688
    %v767 = vmul.f32 %v766, 0.5
    %v768 = vtanh.pop %v767
    %v769 = vmul.f32 %v768, 0.5
    %v770 = vadd.f32 %v769, 0.5
    %v771 = vadd.f32 %v764, %v690
    %v772 = vmul.f32 %v771, 0.5
    %v773 = vtanh.pop %v772
    %v774 = vmul.f32 %v773, 0.5
    %v775 = vadd.f32 %v774, 0.5
    %v776 = vadd.f32 %v759, %v610
    %v777 = vmul.f32 %v770, %v776
    %v778 = vadd.f32 %v765, %v777
    %v779 = vtanh.pop %v778
    %v780 = vsub.f32 1.0, %v775
    %v781 = vmul.f32 %v780, %v779
    %v782 = vmul.f32 %v775, %v619
    %v783 = vadd.f32 %v781, %v782
    %s784 = scalar_lea.vmem [#allocation3], 8
    %785 = vst [vmem:[%s784] sm:$0xff] %v783
    %786 = vmatprep.subr.mxu0 %v403
    %787 = vmatpush1.msra.mxu0 %v402
    %788 = vmatprep.subr.mxu0 %v406
    %789 = vmatpush1.msra.mxu0 %v405
    %790 = vmatprep.subr.mxu0 %v409
    %791 = vmatpush1.msra.mxu0 %v408
    %792 = vmatprep.subr.mxu0 %v412
    %793 = vmatpush1.msra.mxu0 %v411
    %794 = vmatprep.subr.mxu0 %v415
    %795 = vmatpush1.msra.mxu0 %v414
    %796 = vmatprep.subr.mxu0 %v418
    %797 = vmatpush1.msra.mxu0 %v417
    %798 = vmatprep.subr.mxu0 %v421
    %799 = vmatpush1.msra.mxu0 %v420
    %800 = vmatprep.subr.mxu0 %v424
    %801 = vmatpush1.msra.mxu0 %v423
    %802 = vmatprep.subr.mxu0 %v427
    %803 = vmatpush1.msra.mxu0 %v426
    %804 = vmatprep.subr.mxu0 %v430
    %805 = vmatpush1.msra.mxu0 %v429
    %806 = vmatprep.subr.mxu0 %v433
    %807 = vmatpush1.msra.mxu0 %v432
    %808 = vmatprep.subr.mxu0 %v436
    %809 = vmatpush1.msra.mxu0 %v435
    %810 = vmatprep.subr.mxu0 %v439
    %811 = vmatpush1.msra.mxu0 %v438
    %812 = vmatprep.subr.mxu0 %v442
    %813 = vmatpush1.msra.mxu0 %v441
    %814 = vmatprep.subr.mxu0 %v445
    %815 = vmatpush1.msra.mxu0 %v444
    %816 = vmatprep.subr.mxu0 %v448
    %817 = vmatpush1.msra.mxu0 %v447
    %818 = vmatprep.subr.mxu0 0.0
    %819 = vmatpush1.msra.mxu0 0.0
    %820 = vmatprep.subr.mxu0 0.0
    %821 = vmatpush1.msra.mxu0 0.0
    %822 = vmatprep.subr.mxu0 0.0
    %823 = vmatpush1.msra.mxu0 0.0
    %824 = vmatprep.subr.mxu0 0.0
    %825 = vmatpush1.msra.mxu0 0.0
    %826 = vmatprep.subr.mxu0 0.0
    %827 = vmatpush1.msra.mxu0 0.0
    %828 = vmatprep.subr.mxu0 0.0
    %829 = vmatpush1.msra.mxu0 0.0
    %830 = vmatprep.subr.mxu0 0.0
    %831 = vmatpush1.msra.mxu0 0.0
    %832 = vmatprep.subr.mxu0 0.0
    %833 = vmatpush1.msra.mxu0 0.0
    %834 = vmatprep.subr.mxu0 0.0
    %835 = vmatpush1.msra.mxu0 0.0
    %836 = vmatprep.subr.mxu0 0.0
    %837 = vmatpush1.msra.mxu0 0.0
    %838 = vmatprep.subr.mxu0 0.0
    %839 = vmatpush1.msra.mxu0 0.0
    %840 = vmatprep.subr.mxu0 0.0
    %841 = vmatpush1.msra.mxu0 0.0
    %842 = vmatprep.subr.mxu0 0.0
    %843 = vmatpush1.msra.mxu0 0.0
    %844 = vmatprep.subr.mxu0 0.0
    %845 = vmatpush1.msra.mxu0 0.0
    %846 = vmatprep.subr.mxu0 0.0
    %847 = vmatpush1.msra.mxu0 0.0
    %848 = vmatprep.subr.mxu0 0.0
    %849 = vmatpush1.msra.mxu0 0.0
    %850 = vmatprep.mubr.f32.mxu0 0.0
    %851 = vmatmul.mubr.f32.gmra.mrb[0].mxu0 %v783
    %v852 = vpop.f32.mrb[0].mxu0
    %v853 = vadd.f32 0.0, %v852
    %v854 = vpop.f32.mrb[0].mxu0
    %v855 = vadd.f32 0.0, %v854
    %856 = vdwg.mxu0
    %857 = vmatprep.subr.mxu0 0.0
    %858 = vmatpush1.msra.mxu0 %v404
    %859 = vmatprep.subr.mxu0 0.0
    %860 = vmatpush1.msra.mxu0 %v407
    %861 = vmatprep.subr.mxu0 0.0
    %862 = vmatpush1.msra.mxu0 %v410
    %863 = vmatprep.subr.mxu0 0.0
    %864 = vmatpush1.msra.mxu0 %v413
    %865 = vmatprep.subr.mxu0 0.0
    %866 = vmatpush1.msra.mxu0 %v416
    %867 = vmatprep.subr.mxu0 0.0
    %868 = vmatpush1.msra.mxu0 %v419
    %869 = vmatprep.subr.mxu0 0.0
    %870 = vmatpush1.msra.mxu0 %v422
    %871 = vmatprep.subr.mxu0 0.0
    %872 = vmatpush1.msra.mxu0 %v425
    %873 = vmatprep.subr.mxu0 0.0
    %874 = vmatpush1.msra.mxu0 %v428
    %875 = vmatprep.subr.mxu0 0.0
    %876 = vmatpush1.msra.mxu0 %v431
    %877 = vmatprep.subr.mxu0 0.0
    %878 = vmatpush1.msra.mxu0 %v434
    %879 = vmatprep.subr.mxu0 0.0
    %880 = vmatpush1.msra.mxu0 %v437
    %881 = vmatprep.subr.mxu0 0.0
    %882 = vmatpush1.msra.mxu0 %v440
    %883 = vmatprep.subr.mxu0 0.0
    %884 = vmatpush1.msra.mxu0 %v443
    %885 = vmatprep.subr.mxu0 0.0
    %886 = vmatpush1.msra.mxu0 %v446
    %887 = vmatprep.subr.mxu0 0.0
    %888 = vmatpush1.msra.mxu0 %v449
    %889 = vmatprep.subr.mxu0 0.0
    %890 = vmatpush1.msra.mxu0 0.0
    %891 = vmatprep.subr.mxu0 0.0
    %892 = vmatpush1.msra.mxu0 0.0
    %893 = vmatprep.subr.mxu0 0.0
    %894 = vmatpush1.msra.mxu0 0.0
    %895 = vmatprep.subr.mxu0 0.0
    %896 = vmatpush1.msra.mxu0 0.0
    %897 = vmatprep.subr.mxu0 0.0
    %898 = vmatpush1.msra.mxu0 0.0
    %899 = vmatprep.subr.mxu0 0.0
    %900 = vmatpush1.msra.mxu0 0.0
    %901 = vmatprep.subr.mxu0 0.0
    %902 = vmatpush1.msra.mxu0 0.0
    %903 = vmatprep.subr.mxu0 0.0
    %904 = vmatpush1.msra.mxu0 0.0
    %905 = vmatprep.subr.mxu0 0.0
    %906 = vmatpush1.msra.mxu0 0.0
    %907 = vmatprep.subr.mxu0 0.0
    %908 = vmatpush1.msra.mxu0 0.0
    %909 = vmatprep.subr.mxu0 0.0
    %910 = vmatpush1.msra.mxu0 0.0
    %911 = vmatprep.subr.mxu0 0.0
    %912 = vmatpush1.msra.mxu0 0.0
    %913 = vmatprep.subr.mxu0 0.0
    %914 = vmatpush1.msra.mxu0 0.0
    %915 = vmatprep.subr.mxu0 0.0
    %916 = vmatpush1.msra.mxu0 0.0
    %917 = vmatprep.subr.mxu0 0.0
    %918 = vmatpush1.msra.mxu0 0.0
    %919 = vmatprep.subr.mxu0 0.0
    %920 = vmatpush1.msra.mxu0 0.0
    %921 = vmatprep.mubr.f32.mxu0 0.0
    %922 = vmatmul.mubr.f32.gmra.mrb[0].mxu0 %v783
    %v923 = vpop.f32.mrb[0].mxu0
    %v924 = vadd.f32 0.0, %v923
    %v925 = vpop.f32.mrb[0].mxu0
    %926 = vdwg.mxu0
    %s927 = scalar_lea.vmem [#allocation4], 48
    %v928 = vld [vmem:[%s927] sm:$0xff]
    %v929 = vld [vmem:[%s927 + $0x8] sm:$0xff]
    %v930 = vld [vmem:[%s927 + $0x10] sm:$0xff]
    %v931 = vadd.f32 %v928, %v853
    %v932 = vmul.f32 %v931, 0.5
    %v933 = vtanh.pop %v932
    %v934 = vmul.f32 %v933, 0.5
    %v935 = vadd.f32 %v934, 0.5
    %v936 = vadd.f32 %v929, %v855
    %v937 = vmul.f32 %v936, 0.5
    %v938 = vtanh.pop %v937
    %v939 = vmul.f32 %v938, 0.5
    %v940 = vadd.f32 %v939, 0.5
    %v941 = vadd.f32 %v924, %v610
    %v942 = vmul.f32 %v935, %v941
    %v943 = vadd.f32 %v930, %v942
    %v944 = vtanh.pop %v943
    %v945 = vsub.f32 1.0, %v940
    %v946 = vmul.f32 %v945, %v944
    %v947 = vmul.f32 %v940, %v783
    %v948 = vadd.f32 %v946, %v947
    %s949 = scalar_lea.vmem [#allocation3], 16
    %950 = vst [vmem:[%s949] sm:$0xff] %v948
    %951 = vmatprep.subr.mxu0 %v403
    %952 = vmatpush1.msra.mxu0 %v402
    %953 = vmatprep.subr.mxu0 %v406
    %954 = vmatpush1.msra.mxu0 %v405
    %955 = vmatprep.subr.mxu0 %v409
    %956 = vmatpush1.msra.mxu0 %v408
    %957 = vmatprep.subr.mxu0 %v412
    %958 = vmatpush1.msra.mxu0 %v411
    %959 = vmatprep.subr.mxu0 %v415
    %960 = vmatpush1.msra.mxu0 %v414
    %961 = vmatprep.subr.mxu0 %v418
    %962 = vmatpush1.msra.mxu0 %v417
    %963 = vmatprep.subr.mxu0 %v421
    %964 = vmatpush1.msra.mxu0 %v420
    %965 = vmatprep.subr.mxu0 %v424
    %966 = vmatpush1.msra.mxu0 %v423
    %967 = vmatprep.subr.mxu0 %v427
    %968 = vmatpush1.msra.mxu0 %v426
    %969 = vmatprep.subr.mxu0 %v430
    %970 = vmatpush1.msra.mxu0 %v429
    %971 = vmatprep.subr.mxu0 %v433
    %972 = vmatpush1.msra.mxu0 %v432
    %973 = vmatprep.subr.mxu0 %v436
    %974 = vmatpush1.msra.mxu0 %v435
    %975 = vmatprep.subr.mxu0 %v439
    %976 = vmatpush1.msra.mxu0 %v438
    %977 = vmatprep.subr.mxu0 %v442
    %978 = vmatpush1.msra.mxu0 %v441
    %979 = vmatprep.subr.mxu0 %v445
    %980 = vmatpush1.msra.mxu0 %v444
    %981 = vmatprep.subr.mxu0 %v448
    %982 = vmatpush1.msra.mxu0 %v447
    %983 = vmatprep.subr.mxu0 0.0
    %984 = vmatpush1.msra.mxu0 0.0
    %985 = vmatprep.subr.mxu0 0.0
    %986 = vmatpush1.msra.mxu0 0.0
    %987 = vmatprep.subr.mxu0 0.0
    %988 = vmatpush1.msra.mxu0 0.0
    %989 = vmatprep.subr.mxu0 0.0
    %990 = vmatpush1.msra.mxu0 0.0
    %991 = vmatprep.subr.mxu0 0.0
    %992 = vmatpush1.msra.mxu0 0.0
    %993 = vmatprep.subr.mxu0 0.0
    %994 = vmatpush1.msra.mxu0 0.0
    %995 = vmatprep.subr.mxu0 0.0
    %996 = vmatpush1.msra.mxu0 0.0
    %997 = vmatprep.subr.mxu0 0.0
    %998 = vmatpush1.msra.mxu0 0.0
    %999 = vmatprep.subr.mxu0 0.0
    %1000 = vmatpush1.msra.mxu0 0.0
    %1001 = vmatprep.subr.mxu0 0.0
    %1002 = vmatpush1.msra.mxu0 0.0
    %1003 = vmatprep.subr.mxu0 0.0
    %1004 = vmatpush1.msra.mxu0 0.0
    %1005 = vmatprep.subr.mxu0 0.0
    %1006 = vmatpush1.msra.mxu0 0.0
    %1007 = vmatprep.subr.mxu0 0.0
    %1008 = vmatpush1.msra.mxu0 0.0
    %1009 = vmatprep.subr.mxu0 0.0
    %1010 = vmatpush1.msra.mxu0 0.0
    %1011 = vmatprep.subr.mxu0 0.0
    %1012 = vmatpush1.msra.mxu0 0.0
    %1013 = vmatprep.subr.mxu0 0.0
    %1014 = vmatpush1.msra.mxu0 0.0
    %1015 = vmatprep.mubr.f32.mxu0 0.0
    %1016 = vmatmul.mubr.f32.gmra.mrb[0].mxu0 %v948
    %v1017 = vpop.f32.mrb[0].mxu0
    %v1018 = vadd.f32 0.0, %v1017
    %v1019 = vpop.f32.mrb[0].mxu0
    %v1020 = vadd.f32 0.0, %v1019
    %1021 = vdwg.mxu0
    %1022 = vmatprep.subr.mxu0 0.0
    %1023 = vmatpush1.msra.mxu0 %v404
    %1024 = vmatprep.subr.mxu0 0.0
    %1025 = vmatpush1.msra.mxu0 %v407
    %1026 = vmatprep.subr.mxu0 0.0
    %1027 = vmatpush1.msra.mxu0 %v410
    %1028 = vmatprep.subr.mxu0 0.0
    %1029 = vmatpush1.msra.mxu0 %v413
    %1030 = vmatprep.subr.mxu0 0.0
    %1031 = vmatpush1.msra.mxu0 %v416
    %1032 = vmatprep.subr.mxu0 0.0
    %1033 = vmatpush1.msra.mxu0 %v419
    %1034 = vmatprep.subr.mxu0 0.0
    %1035 = vmatpush1.msra.mxu0 %v422
    %1036 = vmatprep.subr.mxu0 0.0
    %1037 = vmatpush1.msra.mxu0 %v425
    %1038 = vmatprep.subr.mxu0 0.0
    %1039 = vmatpush1.msra.mxu0 %v428
    %1040 = vmatprep.subr.mxu0 0.0
    %1041 = vmatpush1.msra.mxu0 %v431
    %1042 = vmatprep.subr.mxu0 0.0
    %1043 = vmatpush1.msra.mxu0 %v434
    %1044 = vmatprep.subr.mxu0 0.0
    %1045 = vmatpush1.msra.mxu0 %v437
    %1046 = vmatprep.subr.mxu0 0.0
    %1047 = vmatpush1.msra.mxu0 %v440
    %1048 = vmatprep.subr.mxu0 0.0
    %1049 = vmatpush1.msra.mxu0 %v443
    %1050 = vmatprep.subr.mxu0 0.0
    %1051 = vmatpush1.msra.mxu0 %v446
    %1052 = vmatprep.subr.mxu0 0.0
    %1053 = vmatpush1.msra.mxu0 %v449
    %1054 = vmatprep.subr.mxu0 0.0
    %1055 = vmatpush1.msra.mxu0 0.0
    %1056 = vmatprep.subr.mxu0 0.0
    %1057 = vmatpush1.msra.mxu0 0.0
    %1058 = vmatprep.subr.mxu0 0.0
    %1059 = vmatpush1.msra.mxu0 0.0
    %1060 = vmatprep.subr.mxu0 0.0
    %1061 = vmatpush1.msra.mxu0 0.0
    %1062 = vmatprep.subr.mxu0 0.0
    %1063 = vmatpush1.msra.mxu0 0.0
    %1064 = vmatprep.subr.mxu0 0.0
    %1065 = vmatpush1.msra.mxu0 0.0
    %1066 = vmatprep.subr.mxu0 0.0
    %1067 = vmatpush1.msra.mxu0 0.0
    %1068 = vmatprep.subr.mxu0 0.0
    %1069 = vmatpush1.msra.mxu0 0.0
    %1070 = vmatprep.subr.mxu0 0.0
    %1071 = vmatpush1.msra.mxu0 0.0
    %1072 = vmatprep.subr.mxu0 0.0
    %1073 = vmatpush1.msra.mxu0 0.0
    %1074 = vmatprep.subr.mxu0 0.0
    %1075 = vmatpush1.msra.mxu0 0.0
    %1076 = vmatprep.subr.mxu0 0.0
    %1077 = vmatpush1.msra.mxu0 0.0
    %1078 = vmatprep.subr.mxu0 0.0
    %1079 = vmatpush1.msra.mxu0 0.0
    %1080 = vmatprep.subr.mxu0 0.0
    %1081 = vmatpush1.msra.mxu0 0.0
    %1082 = vmatprep.subr.mxu0 0.0
    %1083 = vmatpush1.msra.mxu0 0.0
    %1084 = vmatprep.subr.mxu0 0.0
    %1085 = vmatpush1.msra.mxu0 0.0
    %1086 = vmatprep.mubr.f32.mxu0 0.0
    %1087 = vmatmul.mubr.f32.gmra.mrb[0].mxu0 %v948
    %v1088 = vpop.f32.mrb[0].mxu0
    %v1089 = vadd.f32 0.0, %v1088
    %v1090 = vpop.f32.mrb[0].mxu0
    %1091 = vdwg.mxu0
    %s1092 = scalar_lea.vmem [#allocation4], 72
    %v1093 = vld [vmem:[%s1092] sm:$0xff]
    %v1094 = vld [vmem:[%s1092 + $0x8] sm:$0xff]
    %v1095 = vld [vmem:[%s1092 + $0x10] sm:$0xff]
    %v1096 = vadd.f32 %v1093, %v1018
    %v1097 = vmul.f32 %v1096, 0.5
    %v1098 = vtanh.pop %v1097
    %v1099 = vmul.f32 %v1098, 0.5
    %v1100 = vadd.f32 %v1099, 0.5
    %v1101 = vadd.f32 %v1094, %v1020
    %v1102 = vmul.f32 %v1101, 0.5
    %v1103 = vtanh.pop %v1102
    %v1104 = vmul.f32 %v1103, 0.5
    %v1105 = vadd.f32 %v1104, 0.5
    %v1106 = vadd.f32 %v1089, %v610
    %v1107 = vmul.f32 %v1100, %v1106
    %v1108 = vadd.f32 %v1095, %v1107
    %v1109 = vtanh.pop %v1108
    %v1110 = vsub.f32 1.0, %v1105
    %v1111 = vmul.f32 %v1110, %v1109
    %v1112 = vmul.f32 %v1105, %v948
    %v1113 = vadd.f32 %v1111, %v1112
    %s1114 = scalar_lea.vmem [#allocation3], 24
    %1115 = vst [vmem:[%s1114] sm:$0xff] %v1113
    %1116 = vmatprep.subr.mxu0 %v403
    %1117 = vmatpush1.msra.mxu0 %v402
    %1118 = vmatprep.subr.mxu0 %v406
    %1119 = vmatpush1.msra.mxu0 %v405
    %1120 = vmatprep.subr.mxu0 %v409
    %1121 = vmatpush1.msra.mxu0 %v408
    %1122 = vmatprep.subr.mxu0 %v412
    %1123 = vmatpush1.msra.mxu0 %v411
    %1124 = vmatprep.subr.mxu0 %v415
    %1125 = vmatpush1.msra.mxu0 %v414
    %1126 = vmatprep.subr.mxu0 %v418
    %1127 = vmatpush1.msra.mxu0 %v417
    %1128 = vmatprep.subr.mxu0 %v421
    %1129 = vmatpush1.msra.mxu0 %v420
    %1130 = vmatprep.subr.mxu0 %v424
    %1131 = vmatpush1.msra.mxu0 %v423
    %1132 = vmatprep.subr.mxu0 %v427
    %1133 = vmatpush1.msra.mxu0 %v426
    %1134 = vmatprep.subr.mxu0 %v430
    %1135 = vmatpush1.msra.mxu0 %v429
    %1136 = vmatprep.subr.mxu0 %v433
    %1137 = vmatpush1.msra.mxu0 %v432
    %1138 = vmatprep.subr.mxu0 %v436
    %1139 = vmatpush1.msra.mxu0 %v435
    %1140 = vmatprep.subr.mxu0 %v439
    %1141 = vmatpush1.msra.mxu0 %v438
    %1142 = vmatprep.subr.mxu0 %v442
    %1143 = vmatpush1.msra.mxu0 %v441
    %1144 = vmatprep.subr.mxu0 %v445
    %1145 = vmatpush1.msra.mxu0 %v444
    %1146 = vmatprep.subr.mxu0 %v448
    %1147 = vmatpush1.msra.mxu0 %v447
    %1148 = vmatprep.subr.mxu0 0.0
    %1149 = vmatpush1.msra.mxu0 0.0
    %1150 = vmatprep.subr.mxu0 0.0
    %1151 = vmatpush1.msra.mxu0 0.0
    %1152 = vmatprep.subr.mxu0 0.0
    %1153 = vmatpush1.msra.mxu0 0.0
    %1154 = vmatprep.subr.mxu0 0.0
    %1155 = vmatpush1.msra.mxu0 0.0
    %1156 = vmatprep.subr.mxu0 0.0
    %1157 = vmatpush1.msra.mxu0 0.0
    %1158 = vmatprep.subr.mxu0 0.0
    %1159 = vmatpush1.msra.mxu0 0.0
    %1160 = vmatprep.subr.mxu0 0.0
    %1161 = vmatpush1.msra.mxu0 0.0
    %1162 = vmatprep.subr.mxu0 0.0
    %1163 = vmatpush1.msra.mxu0 0.0
    %1164 = vmatprep.subr.mxu0 0.0
    %1165 = vmatpush1.msra.mxu0 0.0
    %1166 = vmatprep.subr.mxu0 0.0
    %1167 = vmatpush1.msra.mxu0 0.0
    %1168 = vmatprep.subr.mxu0 0.0
    %1169 = vmatpush1.msra.mxu0 0.0
    %1170 = vmatprep.subr.mxu0 0.0
    %1171 = vmatpush1.msra.mxu0 0.0
    %1172 = vmatprep.subr.mxu0 0.0
    %1173 = vmatpush1.msra.mxu0 0.0
    %1174 = vmatprep.subr.mxu0 0.0
    %1175 = vmatpush1.msra.mxu0 0.0
    %1176 = vmatprep.subr.mxu0 0.0
    %1177 = vmatpush1.msra.mxu0 0.0
    %1178 = vmatprep.subr.mxu0 0.0
    %1179 = vmatpush1.msra.mxu0 0.0
    %1180 = vmatprep.mubr.f32.mxu0 0.0
    %1181 = vmatmul.mubr.f32.gmra.mrb[0].mxu0 %v1113
    %v1182 = vpop.f32.mrb[0].mxu0
    %v1183 = vadd.f32 0.0, %v1182
    %v1184 = vpop.f32.mrb[0].mxu0
    %v1185 = vadd.f32 0.0, %v1184
    %1186 = vdwg.mxu0
    %1187 = vmatprep.subr.mxu0 0.0
    %1188 = vmatpush1.msra.mxu0 %v404
    %1189 = vmatprep.subr.mxu0 0.0
    %1190 = vmatpush1.msra.mxu0 %v407
    %1191 = vmatprep.subr.mxu0 0.0
    %1192 = vmatpush1.msra.mxu0 %v410
    %1193 = vmatprep.subr.mxu0 0.0
    %1194 = vmatpush1.msra.mxu0 %v413
    %1195 = vmatprep.subr.mxu0 0.0
    %1196 = vmatpush1.msra.mxu0 %v416
    %1197 = vmatprep.subr.mxu0 0.0
    %1198 = vmatpush1.msra.mxu0 %v419
    %1199 = vmatprep.subr.mxu0 0.0
    %1200 = vmatpush1.msra.mxu0 %v422
    %1201 = vmatprep.subr.mxu0 0.0
    %1202 = vmatpush1.msra.mxu0 %v425
    %1203 = vmatprep.subr.mxu0 0.0
    %1204 = vmatpush1.msra.mxu0 %v428
    %1205 = vmatprep.subr.mxu0 0.0
    %1206 = vmatpush1.msra.mxu0 %v431
    %1207 = vmatprep.subr.mxu0 0.0
    %1208 = vmatpush1.msra.mxu0 %v434
    %1209 = vmatprep.subr.mxu0 0.0
    %1210 = vmatpush1.msra.mxu0 %v437
    %1211 = vmatprep.subr.mxu0 0.0
    %1212 = vmatpush1.msra.mxu0 %v440
    %1213 = vmatprep.subr.mxu0 0.0
    %1214 = vmatpush1.msra.mxu0 %v443
    %1215 = vmatprep.subr.mxu0 0.0
    %1216 = vmatpush1.msra.mxu0 %v446
    %1217 = vmatprep.subr.mxu0 0.0
    %1218 = vmatpush1.msra.mxu0 %v449
    %1219 = vmatprep.subr.mxu0 0.0
    %1220 = vmatpush1.msra.mxu0 0.0
    %1221 = vmatprep.subr.mxu0 0.0
    %1222 = vmatpush1.msra.mxu0 0.0
    %1223 = vmatprep.subr.mxu0 0.0
    %1224 = vmatpush1.msra.mxu0 0.0
    %1225 = vmatprep.subr.mxu0 0.0
    %1226 = vmatpush1.msra.mxu0 0.0
    %1227 = vmatprep.subr.mxu0 0.0
    %1228 = vmatpush1.msra.mxu0 0.0
    %1229 = vmatprep.subr.mxu0 0.0
    %1230 = vmatpush1.msra.mxu0 0.0
    %1231 = vmatprep.subr.mxu0 0.0
    %1232 = vmatpush1.msra.mxu0 0.0
    %1233 = vmatprep.subr.mxu0 0.0
    %1234 = vmatpush1.msra.mxu0 0.0
    %1235 = vmatprep.subr.mxu0 0.0
    %1236 = vmatpush1.msra.mxu0 0.0
    %1237 = vmatprep.subr.mxu0 0.0
    %1238 = vmatpush1.msra.mxu0 0.0
    %1239 = vmatprep.subr.mxu0 0.0
    %1240 = vmatpush1.msra.mxu0 0.0
    %1241 = vmatprep.subr.mxu0 0.0
    %1242 = vmatpush1.msra.mxu0 0.0
    %1243 = vmatprep.subr.mxu0 0.0
    %1244 = vmatpush1.msra.mxu0 0.0
    %1245 = vmatprep.subr.mxu0 0.0
    %1246 = vmatpush1.msra.mxu0 0.0
    %1247 = vmatprep.subr.mxu0 0.0
    %1248 = vmatpush1.msra.mxu0 0.0
    %1249 = vmatprep.subr.mxu0 0.0
    %1250 = vmatpush1.msra.mxu0 0.0
    %1251 = vmatprep.mubr.f32.mxu0 0.0
    %1252 = vmatmul.mubr.f32.gmra.mrb[0].mxu0 %v1113
    %v1253 = vpop.f32.mrb[0].mxu0
    %v1254 = vadd.f32 0.0, %v1253
    %v1255 = vpop.f32.mrb[0].mxu0
    %1256 = vdwg.mxu0
    %s1257 = scalar_lea.vmem [#allocation4], 96
    %v1258 = vld [vmem:[%s1257] sm:$0xff]
    %v1259 = vld [vmem:[%s1257 + $0x8] sm:$0xff]
    %v1260 = vld [vmem:[%s1257 + $0x10] sm:$0xff]
    %v1261 = vadd.f32 %v1258, %v1183
    %v1262 = vmul.f32 %v1261, 0.5
    %v1263 = vtanh.pop %v1262
    %v1264 = vmul.f32 %v1263, 0.5
    %v1265 = vadd.f32 %v1264, 0.5
    %v1266 = vadd.f32 %v1259, %v1185
    %v1267 = vmul.f32 %v1266, 0.5
    %v1268 = vtanh.pop %v1267
    %v1269 = vmul.f32 %v1268, 0.5
    %v1270 = vadd.f32 %v1269, 0.5
    %v1271 = vadd.f32 %v1254, %v610
    %v1272 = vmul.f32 %v1265, %v1271
    %v1273 = vadd.f32 %v1260, %v1272
    %v1274 = vtanh.pop %v1273
    %v1275 = vsub.f32 1.0, %v1270
    %v1276 = vmul.f32 %v1275, %v1274
    %v1277 = vmul.f32 %v1270, %v1113
    %v1278 = vadd.f32 %v1276, %v1277
    %s1279 = scalar_lea.vmem [#allocation3], 32
    %1280 = vst [vmem:[%s1279] sm:$0xff] %v1278
    %1281 = vmatprep.subr.mxu0 %v403
    %1282 = vmatpush1.msra.mxu0 %v402
    %1283 = vmatprep.subr.mxu0 %v406
    %1284 = vmatpush1.msra.mxu0 %v405
    %1285 = vmatprep.subr.mxu0 %v409
    %1286 = vmatpush1.msra.mxu0 %v408
    %1287 = vmatprep.subr.mxu0 %v412
    %1288 = vmatpush1.msra.mxu0 %v411
    %1289 = vmatprep.subr.mxu0 %v415
    %1290 = vmatpush1.msra.mxu0 %v414
    %1291 = vmatprep.subr.mxu0 %v418
    %1292 = vmatpush1.msra.mxu0 %v417
    %1293 = vmatprep.subr.mxu0 %v421
    %1294 = vmatpush1.msra.mxu0 %v420
    %1295 = vmatprep.subr.mxu0 %v424
    %1296 = vmatpush1.msra.mxu0 %v423
    %1297 = vmatprep.subr.mxu0 %v427
    %1298 = vmatpush1.msra.mxu0 %v426
    %1299 = vmatprep.subr.mxu0 %v430
    %1300 = vmatpush1.msra.mxu0 %v429
    %1301 = vmatprep.subr.mxu0 %v433
    %1302 = vmatpush1.msra.mxu0 %v432
    %1303 = vmatprep.subr.mxu0 %v436
    %1304 = vmatpush1.msra.mxu0 %v435
    %1305 = vmatprep.subr.mxu0 %v439
    %1306 = vmatpush1.msra.mxu0 %v438
    %1307 = vmatprep.subr.mxu0 %v442
    %1308 = vmatpush1.msra.mxu0 %v441
    %1309 = vmatprep.subr.mxu0 %v445
    %1310 = vmatpush1.msra.mxu0 %v444
    %1311 = vmatprep.subr.mxu0 %v448
    %1312 = vmatpush1.msra.mxu0 %v447
    %1313 = vmatprep.subr.mxu0 0.0
    %1314 = vmatpush1.msra.mxu0 0.0
    %1315 = vmatprep.subr.mxu0 0.0
    %1316 = vmatpush1.msra.mxu0 0.0
    %1317 = vmatprep.subr.mxu0 0.0
    %1318 = vmatpush1.msra.mxu0 0.0
    %1319 = vmatprep.subr.mxu0 0.0
    %1320 = vmatpush1.msra.mxu0 0.0
    %1321 = vmatprep.subr.mxu0 0.0
    %1322 = vmatpush1.msra.mxu0 0.0
    %1323 = vmatprep.subr.mxu0 0.0
    %1324 = vmatpush1.msra.mxu0 0.0
    %1325 = vmatprep.subr.mxu0 0.0
    %1326 = vmatpush1.msra.mxu0 0.0
    %1327 = vmatprep.subr.mxu0 0.0
    %1328 = vmatpush1.msra.mxu0 0.0
    %1329 = vmatprep.subr.mxu0 0.0
    %1330 = vmatpush1.msra.mxu0 0.0
    %1331 = vmatprep.subr.mxu0 0.0
    %1332 = vmatpush1.msra.mxu0 0.0
    %1333 = vmatprep.subr.mxu0 0.0
    %1334 = vmatpush1.msra.mxu0 0.0
    %1335 = vmatprep.subr.mxu0 0.0
    %1336 = vmatpush1.msra.mxu0 0.0
    %1337 = vmatprep.subr.mxu0 0.0
    %1338 = vmatpush1.msra.mxu0 0.0
    %1339 = vmatprep.subr.mxu0 0.0
    %1340 = vmatpush1.msra.mxu0 0.0
    %1341 = vmatprep.subr.mxu0 0.0
    %1342 = vmatpush1.msra.mxu0 0.0
    %1343 = vmatprep.subr.mxu0 0.0
    %1344 = vmatpush1.msra.mxu0 0.0
    %1345 = vmatprep.mubr.f32.mxu0 0.0
    %1346 = vmatmul.mubr.f32.gmra.mrb[0].mxu0 %v1278
    %v1347 = vpop.f32.mrb[0].mxu0
    %v1348 = vadd.f32 0.0, %v1347
    %v1349 = vpop.f32.mrb[0].mxu0
    %v1350 = vadd.f32 0.0, %v1349
    %1351 = vdwg.mxu0
    %1352 = vmatprep.subr.mxu0 0.0
    %1353 = vmatpush1.msra.mxu0 %v404
    %1354 = vmatprep.subr.mxu0 0.0
    %1355 = vmatpush1.msra.mxu0 %v407
    %1356 = vmatprep.subr.mxu0 0.0
    %1357 = vmatpush1.msra.mxu0 %v410
    %1358 = vmatprep.subr.mxu0 0.0
    %1359 = vmatpush1.msra.mxu0 %v413
    %1360 = vmatprep.subr.mxu0 0.0
    %1361 = vmatpush1.msra.mxu0 %v416
    %1362 = vmatprep.subr.mxu0 0.0
    %1363 = vmatpush1.msra.mxu0 %v419
    %1364 = vmatprep.subr.mxu0 0.0
    %1365 = vmatpush1.msra.mxu0 %v422
    %1366 = vmatprep.subr.mxu0 0.0
    %1367 = vmatpush1.msra.mxu0 %v425
    %1368 = vmatprep.subr.mxu0 0.0
    %1369 = vmatpush1.msra.mxu0 %v428
    %1370 = vmatprep.subr.mxu0 0.0
    %1371 = vmatpush1.msra.mxu0 %v431
    %1372 = vmatprep.subr.mxu0 0.0
    %1373 = vmatpush1.msra.mxu0 %v434
    %1374 = vmatprep.subr.mxu0 0.0
    %1375 = vmatpush1.msra.mxu0 %v437
    %1376 = vmatprep.subr.mxu0 0.0
    %1377 = vmatpush1.msra.mxu0 %v440
    %1378 = vmatprep.subr.mxu0 0.0
    %1379 = vmatpush1.msra.mxu0 %v443
    %1380 = vmatprep.subr.mxu0 0.0
    %1381 = vmatpush1.msra.mxu0 %v446
    %1382 = vmatprep.subr.mxu0 0.0
    %1383 = vmatpush1.msra.mxu0 %v449
    %1384 = vmatprep.subr.mxu0 0.0
    %1385 = vmatpush1.msra.mxu0 0.0
    %1386 = vmatprep.subr.mxu0 0.0
    %1387 = vmatpush1.msra.mxu0 0.0
    %1388 = vmatprep.subr.mxu0 0.0
    %1389 = vmatpush1.msra.mxu0 0.0
    %1390 = vmatprep.subr.mxu0 0.0
    %1391 = vmatpush1.msra.mxu0 0.0
    %1392 = vmatprep.subr.mxu0 0.0
    %1393 = vmatpush1.msra.mxu0 0.0
    %1394 = vmatprep.subr.mxu0 0.0
    %1395 = vmatpush1.msra.mxu0 0.0
    %1396 = vmatprep.subr.mxu0 0.0
    %1397 = vmatpush1.msra.mxu0 0.0
    %1398 = vmatprep.subr.mxu0 0.0
    %1399 = vmatpush1.msra.mxu0 0.0
    %1400 = vmatprep.subr.mxu0 0.0
    %1401 = vmatpush1.msra.mxu0 0.0
    %1402 = vmatprep.subr.mxu0 0.0
    %1403 = vmatpush1.msra.mxu0 0.0
    %1404 = vmatprep.subr.mxu0 0.0
    %1405 = vmatpush1.msra.mxu0 0.0
    %1406 = vmatprep.subr.mxu0 0.0
    %1407 = vmatpush1.msra.mxu0 0.0
    %1408 = vmatprep.subr.mxu0 0.0
    %1409 = vmatpush1.msra.mxu0 0.0
    %1410 = vmatprep.subr.mxu0 0.0
    %1411 = vmatpush1.msra.mxu0 0.0
    %1412 = vmatprep.subr.mxu0 0.0
    %1413 = vmatpush1.msra.mxu0 0.0
    %1414 = vmatprep.subr.mxu0 0.0
    %1415 = vmatpush1.msra.mxu0 0.0
    %1416 = vmatprep.mubr.f32.mxu0 0.0
    %1417 = vmatmul.mubr.f32.gmra.mrb[0].mxu0 %v1278
    %v1418 = vpop.f32.mrb[0].mxu0
    %v1419 = vadd.f32 0.0, %v1418
    %v1420 = vpop.f32.mrb[0].mxu0
    %1421 = vdwg.mxu0
    %s1422 = scalar_lea.vmem [#allocation4], 120
    %v1423 = vld [vmem:[%s1422] sm:$0xff]
    %v1424 = vld [vmem:[%s1422 + $0x8] sm:$0xff]
    %v1425 = vld [vmem:[%s1422 + $0x10] sm:$0xff]
    %v1426 = vadd.f32 %v1423, %v1348
    %v1427 = vmul.f32 %v1426, 0.5
    %v1428 = vtanh.pop %v1427
    %v1429 = vmul.f32 %v1428, 0.5
    %v1430 = vadd.f32 %v1429, 0.5
    %v1431 = vadd.f32 %v1424, %v1350
    %v1432 = vmul.f32 %v1431, 0.5
    %v1433 = vtanh.pop %v1432
    %v1434 = vmul.f32 %v1433, 0.5
    %v1435 = vadd.f32 %v1434, 0.5
    %v1436 = vadd.f32 %v1419, %v610
    %v1437 = vmul.f32 %v1430, %v1436
    %v1438 = vadd.f32 %v1425, %v1437
    %v1439 = vtanh.pop %v1438
    %v1440 = vsub.f32 1.0, %v1435
    %v1441 = vmul.f32 %v1440, %v1439
    %v1442 = vmul.f32 %v1435, %v1278
    %v1443 = vadd.f32 %v1441, %v1442
    %s1444 = scalar_lea.vmem [#allocation3], 40
    %1445 = vst [vmem:[%s1444] sm:$0xff] %v1443
    %1446 = vmatprep.subr.mxu0 %v403
    %1447 = vmatpush1.msra.mxu0 %v402
    %1448 = vmatprep.subr.mxu0 %v406
    %1449 = vmatpush1.msra.mxu0 %v405
    %1450 = vmatprep.subr.mxu0 %v409
    %1451 = vmatpush1.msra.mxu0 %v408
    %1452 = vmatprep.subr.mxu0 %v412
    %1453 = vmatpush1.msra.mxu0 %v411
    %1454 = vmatprep.subr.mxu0 %v415
    %1455 = vmatpush1.msra.mxu0 %v414
    %1456 = vmatprep.subr.mxu0 %v418
    %1457 = vmatpush1.msra.mxu0 %v417
    %1458 = vmatprep.subr.mxu0 %v421
    %1459 = vmatpush1.msra.mxu0 %v420
    %1460 = vmatprep.subr.mxu0 %v424
    %1461 = vmatpush1.msra.mxu0 %v423
    %1462 = vmatprep.subr.mxu0 %v427
    %1463 = vmatpush1.msra.mxu0 %v426
    %1464 = vmatprep.subr.mxu0 %v430
    %1465 = vmatpush1.msra.mxu0 %v429
    %1466 = vmatprep.subr.mxu0 %v433
    %1467 = vmatpush1.msra.mxu0 %v432
    %1468 = vmatprep.subr.mxu0 %v436
    %1469 = vmatpush1.msra.mxu0 %v435
    %1470 = vmatprep.subr.mxu0 %v439
    %1471 = vmatpush1.msra.mxu0 %v438
    %1472 = vmatprep.subr.mxu0 %v442
    %1473 = vmatpush1.msra.mxu0 %v441
    %1474 = vmatprep.subr.mxu0 %v445
    %1475 = vmatpush1.msra.mxu0 %v444
    %1476 = vmatprep.subr.mxu0 %v448
    %1477 = vmatpush1.msra.mxu0 %v447
    %1478 = vmatprep.subr.mxu0 0.0
    %1479 = vmatpush1.msra.mxu0 0.0
    %1480 = vmatprep.subr.mxu0 0.0
    %1481 = vmatpush1.msra.mxu0 0.0
    %1482 = vmatprep.subr.mxu0 0.0
    %1483 = vmatpush1.msra.mxu0 0.0
    %1484 = vmatprep.subr.mxu0 0.0
    %1485 = vmatpush1.msra.mxu0 0.0
    %1486 = vmatprep.subr.mxu0 0.0
    %1487 = vmatpush1.msra.mxu0 0.0
    %1488 = vmatprep.subr.mxu0 0.0
    %1489 = vmatpush1.msra.mxu0 0.0
    %1490 = vmatprep.subr.mxu0 0.0
    %1491 = vmatpush1.msra.mxu0 0.0
    %1492 = vmatprep.subr.mxu0 0.0
    %1493 = vmatpush1.msra.mxu0 0.0
    %1494 = vmatprep.subr.mxu0 0.0
    %1495 = vmatpush1.msra.mxu0 0.0
    %1496 = vmatprep.subr.mxu0 0.0
    %1497 = vmatpush1.msra.mxu0 0.0
    %1498 = vmatprep.subr.mxu0 0.0
    %1499 = vmatpush1.msra.mxu0 0.0
    %1500 = vmatprep.subr.mxu0 0.0
    %1501 = vmatpush1.msra.mxu0 0.0
    %1502 = vmatprep.subr.mxu0 0.0
    %1503 = vmatpush1.msra.mxu0 0.0
    %1504 = vmatprep.subr.mxu0 0.0
    %1505 = vmatpush1.msra.mxu0 0.0
    %1506 = vmatprep.subr.mxu0 0.0
    %1507 = vmatpush1.msra.mxu0 0.0
    %1508 = vmatprep.subr.mxu0 0.0
    %1509 = vmatpush1.msra.mxu0 0.0
    %1510 = vmatprep.mubr.f32.mxu0 0.0
    %1511 = vmatmul.mubr.f32.gmra.mrb[0].mxu0 %v1443
    %v1512 = vpop.f32.mrb[0].mxu0
    %v1513 = vadd.f32 0.0, %v1512
    %v1514 = vpop.f32.mrb[0].mxu0
    %v1515 = vadd.f32 0.0, %v1514
    %1516 = vdwg.mxu0
    %1517 = vmatprep.subr.mxu0 0.0
    %1518 = vmatpush1.msra.mxu0 %v404
    %1519 = vmatprep.subr.mxu0 0.0
    %1520 = vmatpush1.msra.mxu0 %v407
    %1521 = vmatprep.subr.mxu0 0.0
    %1522 = vmatpush1.msra.mxu0 %v410
    %1523 = vmatprep.subr.mxu0 0.0
    %1524 = vmatpush1.msra.mxu0 %v413
    %1525 = vmatprep.subr.mxu0 0.0
    %1526 = vmatpush1.msra.mxu0 %v416
    %1527 = vmatprep.subr.mxu0 0.0
    %1528 = vmatpush1.msra.mxu0 %v419
    %1529 = vmatprep.subr.mxu0 0.0
    %1530 = vmatpush1.msra.mxu0 %v422
    %1531 = vmatprep.subr.mxu0 0.0
    %1532 = vmatpush1.msra.mxu0 %v425
    %1533 = vmatprep.subr.mxu0 0.0
    %1534 = vmatpush1.msra.mxu0 %v428
    %1535 = vmatprep.subr.mxu0 0.0
    %1536 = vmatpush1.msra.mxu0 %v431
    %1537 = vmatprep.subr.mxu0 0.0
    %1538 = vmatpush1.msra.mxu0 %v434
    %1539 = vmatprep.subr.mxu0 0.0
    %1540 = vmatpush1.msra.mxu0 %v437
    %1541 = vmatprep.subr.mxu0 0.0
    %1542 = vmatpush1.msra.mxu0 %v440
    %1543 = vmatprep.subr.mxu0 0.0
    %1544 = vmatpush1.msra.mxu0 %v443
    %1545 = vmatprep.subr.mxu0 0.0
    %1546 = vmatpush1.msra.mxu0 %v446
    %1547 = vmatprep.subr.mxu0 0.0
    %1548 = vmatpush1.msra.mxu0 %v449
    %1549 = vmatprep.subr.mxu0 0.0
    %1550 = vmatpush1.msra.mxu0 0.0
    %1551 = vmatprep.subr.mxu0 0.0
    %1552 = vmatpush1.msra.mxu0 0.0
    %1553 = vmatprep.subr.mxu0 0.0
    %1554 = vmatpush1.msra.mxu0 0.0
    %1555 = vmatprep.subr.mxu0 0.0
    %1556 = vmatpush1.msra.mxu0 0.0
    %1557 = vmatprep.subr.mxu0 0.0
    %1558 = vmatpush1.msra.mxu0 0.0
    %1559 = vmatprep.subr.mxu0 0.0
    %1560 = vmatpush1.msra.mxu0 0.0
    %1561 = vmatprep.subr.mxu0 0.0
    %1562 = vmatpush1.msra.mxu0 0.0
    %1563 = vmatprep.subr.mxu0 0.0
    %1564 = vmatpush1.msra.mxu0 0.0
    %1565 = vmatprep.subr.mxu0 0.0
    %1566 = vmatpush1.msra.mxu0 0.0
    %1567 = vmatprep.subr.mxu0 0.0
    %1568 = vmatpush1.msra.mxu0 0.0
    %1569 = vmatprep.subr.mxu0 0.0
    %1570 = vmatpush1.msra.mxu0 0.0
    %1571 = vmatprep.subr.mxu0 0.0
    %1572 = vmatpush1.msra.mxu0 0.0
    %1573 = vmatprep.subr.mxu0 0.0
    %1574 = vmatpush1.msra.mxu0 0.0
    %1575 = vmatprep.subr.mxu0 0.0
    %1576 = vmatpush1.msra.mxu0 0.0
    %1577 = vmatprep.subr.mxu0 0.0
    %1578 = vmatpush1.msra.mxu0 0.0
    %1579 = vmatprep.subr.mxu0 0.0
    %1580 = vmatpush1.msra.mxu0 0.0
    %1581 = vmatprep.mubr.f32.mxu0 0.0
    %1582 = vmatmul.mubr.f32.gmra.mrb[0].mxu0 %v1443
    %v1583 = vpop.f32.mrb[0].mxu0
    %v1584 = vadd.f32 0.0, %v1583
    %v1585 = vpop.f32.mrb[0].mxu0
    %1586 = vdwg.mxu0
    %s1587 = scalar_lea.vmem [#allocation4], 144
    %v1588 = vld [vmem:[%s1587] sm:$0xff]
    %v1589 = vld [vmem:[%s1587 + $0x8] sm:$0xff]
    %v1590 = vld [vmem:[%s1587 + $0x10] sm:$0xff]
    %v1591 = vadd.f32 %v1588, %v1513
    %v1592 = vmul.f32 %v1591, 0.5
    %v1593 = vtanh.pop %v1592
    %v1594 = vmul.f32 %v1593, 0.5
    %v1595 = vadd.f32 %v1594, 0.5
    %v1596 = vadd.f32 %v1589, %v1515
    %v1597 = vmul.f32 %v1596, 0.5
    %v1598 = vtanh.pop %v1597
    %v1599 = vmul.f32 %v1598, 0.5
    %v1600 = vadd.f32 %v1599, 0.5
    %v1601 = vadd.f32 %v1584, %v610
    %v1602 = vmul.f32 %v1595, %v1601
    %v1603 = vadd.f32 %v1590, %v1602
    %v1604 = vtanh.pop %v1603
    %v1605 = vsub.f32 1.0, %v1600
    %v1606 = vmul.f32 %v1605, %v1604
    %v1607 = vmul.f32 %v1600, %v1443
    %v1608 = vadd.f32 %v1606, %v1607
    %s1609 = scalar_lea.vmem [#allocation3], 48
    %1610 = vst [vmem:[%s1609] sm:$0xff] %v1608
    %1611 = vmatprep.subr.mxu0 %v403
    %1612 = vmatpush1.msra.mxu0 %v402
    %1613 = vmatprep.subr.mxu0 %v406
    %1614 = vmatpush1.msra.mxu0 %v405
    %1615 = vmatprep.subr.mxu0 %v409
    %1616 = vmatpush1.msra.mxu0 %v408
    %1617 = vmatprep.subr.mxu0 %v412
    %1618 = vmatpush1.msra.mxu0 %v411
    %1619 = vmatprep.subr.mxu0 %v415
    %1620 = vmatpush1.msra.mxu0 %v414
    %1621 = vmatprep.subr.mxu0 %v418
    %1622 = vmatpush1.msra.mxu0 %v417
    %1623 = vmatprep.subr.mxu0 %v421
    %1624 = vmatpush1.msra.mxu0 %v420
    %1625 = vmatprep.subr.mxu0 %v424
    %1626 = vmatpush1.msra.mxu0 %v423
    %1627 = vmatprep.subr.mxu0 %v427
    %1628 = vmatpush1.msra.mxu0 %v426
    %1629 = vmatprep.subr.mxu0 %v430
    %1630 = vmatpush1.msra.mxu0 %v429
    %1631 = vmatprep.subr.mxu0 %v433
    %1632 = vmatpush1.msra.mxu0 %v432
    %1633 = vmatprep.subr.mxu0 %v436
    %1634 = vmatpush1.msra.mxu0 %v435
    %1635 = vmatprep.subr.mxu0 %v439
    %1636 = vmatpush1.msra.mxu0 %v438
    %1637 = vmatprep.subr.mxu0 %v442
    %1638 = vmatpush1.msra.mxu0 %v441
    %1639 = vmatprep.subr.mxu0 %v445
    %1640 = vmatpush1.msra.mxu0 %v444
    %1641 = vmatprep.subr.mxu0 %v448
    %1642 = vmatpush1.msra.mxu0 %v447
    %1643 = vmatprep.subr.mxu0 0.0
    %1644 = vmatpush1.msra.mxu0 0.0
    %1645 = vmatprep.subr.mxu0 0.0
    %1646 = vmatpush1.msra.mxu0 0.0
    %1647 = vmatprep.subr.mxu0 0.0
    %1648 = vmatpush1.msra.mxu0 0.0
    %1649 = vmatprep.subr.mxu0 0.0
    %1650 = vmatpush1.msra.mxu0 0.0
    %1651 = vmatprep.subr.mxu0 0.0
    %1652 = vmatpush1.msra.mxu0 0.0
    %1653 = vmatprep.subr.mxu0 0.0
    %1654 = vmatpush1.msra.mxu0 0.0
    %1655 = vmatprep.subr.mxu0 0.0
    %1656 = vmatpush1.msra.mxu0 0.0
    %1657 = vmatprep.subr.mxu0 0.0
    %1658 = vmatpush1.msra.mxu0 0.0
    %1659 = vmatprep.subr.mxu0 0.0
    %1660 = vmatpush1.msra.mxu0 0.0
    %1661 = vmatprep.subr.mxu0 0.0
    %1662 = vmatpush1.msra.mxu0 0.0
    %1663 = vmatprep.subr.mxu0 0.0
    %1664 = vmatpush1.msra.mxu0 0.0
    %1665 = vmatprep.subr.mxu0 0.0
    %1666 = vmatpush1.msra.mxu0 0.0
    %1667 = vmatprep.subr.mxu0 0.0
    %1668 = vmatpush1.msra.mxu0 0.0
    %1669 = vmatprep.subr.mxu0 0.0
    %1670 = vmatpush1.msra.mxu0 0.0
    %1671 = vmatprep.subr.mxu0 0.0
    %1672 = vmatpush1.msra.mxu0 0.0
    %1673 = vmatprep.subr.mxu0 0.0
    %1674 = vmatpush1.msra.mxu0 0.0
    %1675 = vmatprep.mubr.f32.mxu0 0.0
    %1676 = vmatmul.mubr.f32.gmra.mrb[0].mxu0 %v1608
    %v1677 = vpop.f32.mrb[0].mxu0
    %v1678 = vadd.f32 0.0, %v1677
    %v1679 = vpop.f32.mrb[0].mxu0
    %v1680 = vadd.f32 0.0, %v1679
    %1681 = vdwg.mxu0
    %1682 = vmatprep.subr.mxu0 0.0
    %1683 = vmatpush1.msra.mxu0 %v404
    %1684 = vmatprep.subr.mxu0 0.0
    %1685 = vmatpush1.msra.mxu0 %v407
    %1686 = vmatprep.subr.mxu0 0.0
    %1687 = vmatpush1.msra.mxu0 %v410
    %1688 = vmatprep.subr.mxu0 0.0
    %1689 = vmatpush1.msra.mxu0 %v413
    %1690 = vmatprep.subr.mxu0 0.0
    %1691 = vmatpush1.msra.mxu0 %v416
    %1692 = vmatprep.subr.mxu0 0.0
    %1693 = vmatpush1.msra.mxu0 %v419
    %1694 = vmatprep.subr.mxu0 0.0
    %1695 = vmatpush1.msra.mxu0 %v422
    %1696 = vmatprep.subr.mxu0 0.0
    %1697 = vmatpush1.msra.mxu0 %v425
    %1698 = vmatprep.subr.mxu0 0.0
    %1699 = vmatpush1.msra.mxu0 %v428
    %1700 = vmatprep.subr.mxu0 0.0
    %1701 = vmatpush1.msra.mxu0 %v431
    %1702 = vmatprep.subr.mxu0 0.0
    %1703 = vmatpush1.msra.mxu0 %v434
    %1704 = vmatprep.subr.mxu0 0.0
    %1705 = vmatpush1.msra.mxu0 %v437
    %1706 = vmatprep.subr.mxu0 0.0
    %1707 = vmatpush1.msra.mxu0 %v440
    %1708 = vmatprep.subr.mxu0 0.0
    %1709 = vmatpush1.msra.mxu0 %v443
    %1710 = vmatprep.subr.mxu0 0.0
    %1711 = vmatpush1.msra.mxu0 %v446
    %1712 = vmatprep.subr.mxu0 0.0
    %1713 = vmatpush1.msra.mxu0 %v449
    %1714 = vmatprep.subr.mxu0 0.0
    %1715 = vmatpush1.msra.mxu0 0.0
    %1716 = vmatprep.subr.mxu0 0.0
    %1717 = vmatpush1.msra.mxu0 0.0
    %1718 = vmatprep.subr.mxu0 0.0
    %1719 = vmatpush1.msra.mxu0 0.0
    %1720 = vmatprep.subr.mxu0 0.0
    %1721 = vmatpush1.msra.mxu0 0.0
    %1722 = vmatprep.subr.mxu0 0.0
    %1723 = vmatpush1.msra.mxu0 0.0
    %1724 = vmatprep.subr.mxu0 0.0
    %1725 = vmatpush1.msra.mxu0 0.0
    %1726 = vmatprep.subr.mxu0 0.0
    %1727 = vmatpush1.msra.mxu0 0.0
    %1728 = vmatprep.subr.mxu0 0.0
    %1729 = vmatpush1.msra.mxu0 0.0
    %1730 = vmatprep.subr.mxu0 0.0
    %1731 = vmatpush1.msra.mxu0 0.0
    %1732 = vmatprep.subr.mxu0 0.0
    %1733 = vmatpush1.msra.mxu0 0.0
    %1734 = vmatprep.subr.mxu0 0.0
    %1735 = vmatpush1.msra.mxu0 0.0
    %1736 = vmatprep.subr.mxu0 0.0
    %1737 = vmatpush1.msra.mxu0 0.0
    %1738 = vmatprep.subr.mxu0 0.0
    %1739 = vmatpush1.msra.mxu0 0.0
    %1740 = vmatprep.subr.mxu0 0.0
    %1741 = vmatpush1.msra.mxu0 0.0
    %1742 = vmatprep.subr.mxu0 0.0
    %1743 = vmatpush1.msra.mxu0 0.0
    %1744 = vmatprep.subr.mxu0 0.0
    %1745 = vmatpush1.msra.mxu0 0.0
    %1746 = vmatprep.mubr.f32.mxu0 0.0
    %1747 = vmatmul.mubr.f32.gmra.mrb[0].mxu0 %v1608
    %v1748 = vpop.f32.mrb[0].mxu0
    %v1749 = vadd.f32 0.0, %v1748
    %v1750 = vpop.f32.mrb[0].mxu0
    %1751 = vdwg.mxu0
    %s1752 = scalar_lea.vmem [#allocation4], 168
    %v1753 = vld [vmem:[%s1752] sm:$0xff]
    %v1754 = vld [vmem:[%s1752 + $0x8] sm:$0xff]
    %v1755 = vld [vmem:[%s1752 + $0x10] sm:$0xff]
    %v1756 = vadd.f32 %v1753, %v1678
    %v1757 = vmul.f32 %v1756, 0.5
    %v1758 = vtanh.pop %v1757
    %v1759 = vmul.f32 %v1758, 0.5
    %v1760 = vadd.f32 %v1759, 0.5
    %v1761 = vadd.f32 %v1754, %v1680
    %v1762 = vmul.f32 %v1761, 0.5
    %v1763 = vtanh.pop %v1762
    %v1764 = vmul.f32 %v1763, 0.5
    %v1765 = vadd.f32 %v1764, 0.5
    %v1766 = vadd.f32 %v1749, %v610
    %v1767 = vmul.f32 %v1760, %v1766
    %v1768 = vadd.f32 %v1755, %v1767
    %v1769 = vtanh.pop %v1768
    %v1770 = vsub.f32 1.0, %v1765
    %v1771 = vmul.f32 %v1770, %v1769
    %v1772 = vmul.f32 %v1765, %v1608
    %v1773 = vadd.f32 %v1771, %v1772
    %s1774 = scalar_lea.vmem [#allocation3], 56
    %1775 = vst [vmem:[%s1774] sm:$0xff] %v1773
    %1776 = vst [vmem:[#allocation2] sm:$0xff] %v1773
    %v1777 = vld [vmem:[#allocation3] sm:$0xff]
    %v1778 = vld [vmem:[#allocation3 + $0x8] sm:$0xff]
    %v1779 = vld [vmem:[#allocation3 + $0x10] sm:$0xff]
    %v1780 = vld [vmem:[#allocation3 + $0x18] sm:$0xff]
    %v1781 = vld [vmem:[#allocation3 + $0x20] sm:$0xff]
    %v1782 = vld [vmem:[#allocation3 + $0x28] sm:$0xff]
    %v1783 = vld [vmem:[#allocation3 + $0x30] sm:$0xff]
    %v1784 = vld [vmem:[#allocation3 + $0x38] sm:$0xff]
    %v1785 = vld [vmem:[#allocation10] sm:$0xff]
    %v1786 = vld [vmem:[#allocation10 + $0x8] sm:$0xff]
    %v1787 = vld [vmem:[#allocation10 + $0x10] sm:$0xff]
    %v1788 = vld [vmem:[#allocation10 + $0x18] sm:$0xff]
    %v1789 = vld [vmem:[#allocation10 + $0x20] sm:$0xff]
    %v1790 = vld [vmem:[#allocation10 + $0x28] sm:$0xff]
    %v1791 = vld [vmem:[#allocation10 + $0x30] sm:$0xff]
    %v1792 = vld [vmem:[#allocation10 + $0x38] sm:$0xff]
    %v1793 = vld [vmem:[#allocation10 + $0x40] sm:$0xff]
    %v1794 = vld [vmem:[#allocation10 + $0x48] sm:$0xff]
    %v1795 = vld [vmem:[#allocation10 + $0x50] sm:$0xff]
    %v1796 = vld [vmem:[#allocation10 + $0x58] sm:$0xff]
    %v1797 = vld [vmem:[#allocation10 + $0x60] sm:$0xff]
    %v1798 = vld [vmem:[#allocation10 + $0x68] sm:$0xff]
    %v1799 = vld [vmem:[#allocation10 + $0x70] sm:$0xff]
    %v1800 = vld [vmem:[#allocation10 + $0x78] sm:$0xff]
    %v1801 = vld [vmem:[#allocation10 + $0x80] sm:$0xff]
    %v1802 = vld [vmem:[#allocation10 + $0x88] sm:$0xff]
    %v1803 = vld [vmem:[#allocation10 + $0x90] sm:$0xff]
    %v1804 = vld [vmem:[#allocation10 + $0x98] sm:$0xff]
    %v1805 = vld [vmem:[#allocation10 + $0xa0] sm:$0xff]
    %v1806 = vld [vmem:[#allocation10 + $0xa8] sm:$0xff]
    %v1807 = vld [vmem:[#allocation10 + $0xb0] sm:$0xff]
    %v1808 = vld [vmem:[#allocation10 + $0xb8] sm:$0xff]
    %v1809 = vld [vmem:[#allocation10 + $0xc0] sm:$0xff]
    %v1810 = vld [vmem:[#allocation10 + $0xc8] sm:$0xff]
    %v1811 = vld [vmem:[#allocation10 + $0xd0] sm:$0xff]
    %v1812 = vld [vmem:[#allocation10 + $0xd8] sm:$0xff]
    %v1813 = vld [vmem:[#allocation10 + $0xe0] sm:$0xff]
    %v1814 = vld [vmem:[#allocation10 + $0xe8] sm:$0xff]
    %v1815 = vld [vmem:[#allocation10 + $0xf0] sm:$0xff]
    %v1816 = vld [vmem:[#allocation10 + $0xf8] sm:$0xff]
    %v1817 = vld [vmem:[#allocation10 + $0x100] sm:$0xff]
    %v1818 = vld [vmem:[#allocation10 + $0x108] sm:$0xff]
    %v1819 = vld [vmem:[#allocation10 + $0x110] sm:$0xff]
    %v1820 = vld [vmem:[#allocation10 + $0x118] sm:$0xff]
    %v1821 = vld [vmem:[#allocation10 + $0x120] sm:$0xff]
    %v1822 = vld [vmem:[#allocation10 + $0x128] sm:$0xff]
    %v1823 = vld [vmem:[#allocation10 + $0x130] sm:$0xff]
    %v1824 = vld [vmem:[#allocation10 + $0x138] sm:$0xff]
    %v1825 = vld [vmem:[#allocation10 + $0x140] sm:$0xff]
    %v1826 = vld [vmem:[#allocation10 + $0x148] sm:$0xff]
    %v1827 = vld [vmem:[#allocation10 + $0x150] sm:$0xff]
    %v1828 = vld [vmem:[#allocation10 + $0x158] sm:$0xff]
    %v1829 = vld [vmem:[#allocation10 + $0x160] sm:$0xff]
    %v1830 = vld [vmem:[#allocation10 + $0x168] sm:$0xff]
    %v1831 = vld [vmem:[#allocation10 + $0x170] sm:$0xff]
    %v1832 = vld [vmem:[#allocation10 + $0x178] sm:$0xff]
    %1833 = vmatprep.subr.mxu0 %v1786
    %1834 = vmatpush1.msra.mxu0 %v1785
    %1835 = vmatprep.subr.mxu0 %v1789
    %1836 = vmatpush1.msra.mxu0 %v1788
    %1837 = vmatprep.subr.mxu0 %v1792
    %1838 = vmatpush1.msra.mxu0 %v1791
    %1839 = vmatprep.subr.mxu0 %v1795
    %1840 = vmatpush1.msra.mxu0 %v1794
    %1841 = vmatprep.subr.mxu0 %v1798
    %1842 = vmatpush1.msra.mxu0 %v1797
    %1843 = vmatprep.subr.mxu0 %v1801
    %1844 = vmatpush1.msra.mxu0 %v1800
    %1845 = vmatprep.subr.mxu0 %v1804
    %1846 = vmatpush1.msra.mxu0 %v1803
    %1847 = vmatprep.subr.mxu0 %v1807
    %1848 = vmatpush1.msra.mxu0 %v1806
    %1849 = vmatprep.subr.mxu0 %v1810
    %1850 = vmatpush1.msra.mxu0 %v1809
    %1851 = vmatprep.subr.mxu0 %v1813
    %1852 = vmatpush1.msra.mxu0 %v1812
    %1853 = vmatprep.subr.mxu0 %v1816
    %1854 = vmatpush1.msra.mxu0 %v1815
    %1855 = vmatprep.subr.mxu0 %v1819
    %1856 = vmatpush1.msra.mxu0 %v1818
    %1857 = vmatprep.subr.mxu0 %v1822
    %1858 = vmatpush1.msra.mxu0 %v1821
    %1859 = vmatprep.subr.mxu0 %v1825
    %1860 = vmatpush1.msra.mxu0 %v1824
    %1861 = vmatprep.subr.mxu0 %v1828
    %1862 = vmatpush1.msra.mxu0 %v1827
    %1863 = vmatprep.subr.mxu0 %v1831
    %1864 = vmatpush1.msra.mxu0 %v1830
    %1865 = vmatprep.subr.mxu0 0.0
    %1866 = vmatpush1.msra.mxu0 0.0
    %1867 = vmatprep.subr.mxu0 0.0
    %1868 = vmatpush1.msra.mxu0 0.0
    %1869 = vmatprep.subr.mxu0 0.0
    %1870 = vmatpush1.msra.mxu0 0.0
    %1871 = vmatprep.subr.mxu0 0.0
    %1872 = vmatpush1.msra.mxu0 0.0
    %1873 = vmatprep.subr.mxu0 0.0
    %1874 = vmatpush1.msra.mxu0 0.0
    %1875 = vmatprep.subr.mxu0 0.0
    %1876 = vmatpush1.msra.mxu0 0.0
    %1877 = vmatprep.subr.mxu0 0.0
    %1878 = vmatpush1.msra.mxu0 0.0
    %1879 = vmatprep.subr.mxu0 0.0
    %1880 = vmatpush1.msra.mxu0 0.0
    %1881 = vmatprep.subr.mxu0 0.0
    %1882 = vmatpush1.msra.mxu0 0.0
    %1883 = vmatprep.subr.mxu0 0.0
    %1884 = vmatpush1.msra.mxu0 0.0
    %1885 = vmatprep.subr.mxu0 0.0
    %1886 = vmatpush1.msra.mxu0 0.0
    %1887 = vmatprep.subr.mxu0 0.0
    %1888 = vmatpush1.msra.mxu0 0.0
    %1889 = vmatprep.subr.mxu0 0.0
    %1890 = vmatpush1.msra.mxu0 0.0
    %1891 = vmatprep.subr.mxu0 0.0
    %1892 = vmatpush1.msra.mxu0 0.0
    %1893 = vmatprep.subr.mxu0 0.0
    %1894 = vmatpush1.msra.mxu0 0.0
    %1895 = vmatprep.subr.mxu0 0.0
    %1896 = vmatpush1.msra.mxu0 0.0
    %1897 = vmatprep.mubr.f32.mxu0 0.0
    %1898 = vmatmul.mubr.f32.gmra.mrb[0].mxu0 %v1777
    %v1899 = vpop.f32.mrb[0].mxu0
    %v1900 = vadd.f32 0.0, %v1899
    %v1901 = vpop.f32.mrb[0].mxu0
    %v1902 = vadd.f32 0.0, %v1901
    %1903 = vmatprep.mubr.f32.mxu0 0.0
    %1904 = vmatmul.mubr.f32.gmra.mrb[0].mxu0 %v1778
    %v1905 = vpop.f32.mrb[0].mxu0
    %v1906 = vadd.f32 0.0, %v1905
    %v1907 = vpop.f32.mrb[0].mxu0
    %v1908 = vadd.f32 0.0, %v1907
    %1909 = vmatprep.mubr.f32.mxu0 0.0
    %1910 = vmatmul.mubr.f32.gmra.mrb[0].mxu0 %v1779
    %v1911 = vpop.f32.mrb[0].mxu0
    %v1912 = vadd.f32 0.0, %v1911
    %v1913 = vpop.f32.mrb[0].mxu0
    %v1914 = vadd.f32 0.0, %v1913
    %1915 = vmatprep.mubr.f32.mxu0 0.0
    %1916 = vmatmul.mubr.f32.gmra.mrb[0].mxu0 %v1780
    %v1917 = vpop.f32.mrb[0].mxu0
    %v1918 = vadd.f32 0.0, %v1917
    %v1919 = vpop.f32.mrb[0].mxu0
    %v1920 = vadd.f32 0.0, %v1919
    %1921 = vmatprep.mubr.f32.mxu0 0.0
    %1922 = vmatmul.mubr.f32.gmra.mrb[0].mxu0 %v1781
    %v1923 = vpop.f32.mrb[0].mxu0
    %v1924 = vadd.f32 0.0, %v1923
    %v1925 = vpop.f32.mrb[0].mxu0
    %v1926 = vadd.f32 0.0, %v1925
    %1927 = vmatprep.mubr.f32.mxu0 0.0
    %1928 = vmatmul.mubr.f32.gmra.mrb[0].mxu0 %v1782
    %v1929 = vpop.f32.mrb[0].mxu0
    %v1930 = vadd.f32 0.0, %v1929
    %v1931 = vpop.f32.mrb[0].mxu0
    %v1932 = vadd.f32 0.0, %v1931
    %1933 = vmatprep.mubr.f32.mxu0 0.0
    %1934 = vmatmul.mubr.f32.gmra.mrb[0].mxu0 %v1783
    %v1935 = vpop.f32.mrb[0].mxu0
    %v1936 = vadd.f32 0.0, %v1935
    %v1937 = vpop.f32.mrb[0].mxu0
    %v1938 = vadd.f32 0.0, %v1937
    %1939 = vmatprep.mubr.f32.mxu0 0.0
    %1940 = vmatmul.mubr.f32.gmra.mrb[0].mxu0 %v1784
    %v1941 = vpop.f32.mrb[0].mxu0
    %v1942 = vadd.f32 0.0, %v1941
    %v1943 = vpop.f32.mrb[0].mxu0
    %v1944 = vadd.f32 0.0, %v1943
    %1945 = vdwg.mxu0
    %1946 = vmatprep.subr.mxu0 0.0
    %1947 = vmatpush1.msra.mxu0 %v1787
    %1948 = vmatprep.subr.mxu0 0.0
    %1949 = vmatpush1.msra.mxu0 %v1790
    %1950 = vmatprep.subr.mxu0 0.0
    %1951 = vmatpush1.msra.mxu0 %v1793
    %1952 = vmatprep.subr.mxu0 0.0
    %1953 = vmatpush1.msra.mxu0 %v1796
    %1954 = vmatprep.subr.mxu0 0.0
    %1955 = vmatpush1.msra.mxu0 %v1799
    %1956 = vmatprep.subr.mxu0 0.0
    %1957 = vmatpush1.msra.mxu0 %v1802
    %1958 = vmatprep.subr.mxu0 0.0
    %1959 = vmatpush1.msra.mxu0 %v1805
    %1960 = vmatprep.subr.mxu0 0.0
    %1961 = vmatpush1.msra.mxu0 %v1808
    %1962 = vmatprep.subr.mxu0 0.0
    %1963 = vmatpush1.msra.mxu0 %v1811
    %1964 = vmatprep.subr.mxu0 0.0
    %1965 = vmatpush1.msra.mxu0 %v1814
    %1966 = vmatprep.subr.mxu0 0.0
    %1967 = vmatpush1.msra.mxu0 %v1817
    %1968 = vmatprep.subr.mxu0 0.0
    %1969 = vmatpush1.msra.mxu0 %v1820
    %1970 = vmatprep.subr.mxu0 0.0
    %1971 = vmatpush1.msra.mxu0 %v1823
    %1972 = vmatprep.subr.mxu0 0.0
    %1973 = vmatpush1.msra.mxu0 %v1826
    %1974 = vmatprep.subr.mxu0 0.0
    %1975 = vmatpush1.msra.mxu0 %v1829
    %1976 = vmatprep.subr.mxu0 0.0
    %1977 = vmatpush1.msra.mxu0 %v1832
    %1978 = vmatprep.subr.mxu0 0.0
    %1979 = vmatpush1.msra.mxu0 0.0
    %1980 = vmatprep.subr.mxu0 0.0
    %1981 = vmatpush1.msra.mxu0 0.0
    %1982 = vmatprep.subr.mxu0 0.0
    %1983 = vmatpush1.msra.mxu0 0.0
    %1984 = vmatprep.subr.mxu0 0.0
    %1985 = vmatpush1.msra.mxu0 0.0
    %1986 = vmatprep.subr.mxu0 0.0
    %1987 = vmatpush1.msra.mxu0 0.0
    %1988 = vmatprep.subr.mxu0 0.0
    %1989 = vmatpush1.msra.mxu0 0.0
    %1990 = vmatprep.subr.mxu0 0.0
    %1991 = vmatpush1.msra.mxu0 0.0
    %1992 = vmatprep.subr.mxu0 0.0
    %1993 = vmatpush1.msra.mxu0 0.0
    %1994 = vmatprep.subr.mxu0 0.0
    %1995 = vmatpush1.msra.mxu0 0.0
    %1996 = vmatprep.subr.mxu0 0.0
    %1997 = vmatpush1.msra.mxu0 0.0
    %1998 = vmatprep.subr.mxu0 0.0
    %1999 = vmatpush1.msra.mxu0 0.0
    %2000 = vmatprep.subr.mxu0 0.0
    %2001 = vmatpush1.msra.mxu0 0.0
    %2002 = vmatprep.subr.mxu0 0.0
    %2003 = vmatpush1.msra.mxu0 0.0
    %2004 = vmatprep.subr.mxu0 0.0
    %2005 = vmatpush1.msra.mxu0 0.0
    %2006 = vmatprep.subr.mxu0 0.0
    %2007 = vmatpush1.msra.mxu0 0.0
    %2008 = vmatprep.subr.mxu0 0.0
    %2009 = vmatpush1.msra.mxu0 0.0
    %2010 = vmatprep.mubr.f32.mxu0 0.0
    %2011 = vmatmul.mubr.f32.gmra.mrb[0].mxu0 %v1777
    %v2012 = vpop.f32.mrb[0].mxu0
    %v2013 = vadd.f32 0.0, %v2012
    %v2014 = vpop.f32.mrb[0].mxu0
    %2015 = vmatprep.mubr.f32.mxu0 0.0
    %2016 = vmatmul.mubr.f32.gmra.mrb[0].mxu0 %v1778
    %v2017 = vpop.f32.mrb[0].mxu0
    %v2018 = vadd.f32 0.0, %v2017
    %v2019 = vpop.f32.mrb[0].mxu0
    %2020 = vmatprep.mubr.f32.mxu0 0.0
    %2021 = vmatmul.mubr.f32.gmra.mrb[0].mxu0 %v1779
    %v2022 = vpop.f32.mrb[0].mxu0
    %v2023 = vadd.f32 0.0, %v2022
    %v2024 = vpop.f32.mrb[0].mxu0
    %2025 = vmatprep.mubr.f32.mxu0 0.0
    %2026 = vmatmul.mubr.f32.gmra.mrb[0].mxu0 %v1780
    %v2027 = vpop.f32.mrb[0].mxu0
    %v2028 = vadd.f32 0.0, %v2027
    %v2029 = vpop.f32.mrb[0].mxu0
    %2030 = vmatprep.mubr.f32.mxu0 0.0
    %2031 = vmatmul.mubr.f32.gmra.mrb[0].mxu0 %v1781
    %v2032 = vpop.f32.mrb[0].mxu0
    %v2033 = vadd.f32 0.0, %v2032
    %v2034 = vpop.f32.mrb[0].mxu0
    %2035 = vmatprep.mubr.f32.mxu0 0.0
    %2036 = vmatmul.mubr.f32.gmra.mrb[0].mxu0 %v1782
    %v2037 = vpop.f32.mrb[0].mxu0
    %v2038 = vadd.f32 0.0, %v2037
    %v2039 = vpop.f32.mrb[0].mxu0
    %2040 = vmatprep.mubr.f32.mxu0 0.0
    %2041 = vmatmul.mubr.f32.gmra.mrb[0].mxu0 %v1783
    %v2042 = vpop.f32.mrb[0].mxu0
    %v2043 = vadd.f32 0.0, %v2042
    %v2044 = vpop.f32.mrb[0].mxu0
    %2045 = vmatprep.mubr.f32.mxu0 0.0
    %2046 = vmatmul.mubr.f32.gmra.mrb[0].mxu0 %v1784
    %v2047 = vpop.f32.mrb[0].mxu0
    %v2048 = vadd.f32 0.0, %v2047
    %v2049 = vpop.f32.mrb[0].mxu0
    %2050 = vdwg.mxu0
    %s2051 = scalar_lea.vmem %s4, 3
    %v2052 = vld [vmem:[%s2051] sm:$0x7]
    %v2054 = vlaneseq
    %v2055 = vshrl.u32 %v2054, 7
    %v2056 = vsub.s32 0, %v2055
    %v2057 = vrot.slane %v2052, %v2056
    %v2058 = vlaneseq
    %v2059 = vshrl.u32 %v2058, 7
    %v2060 = vsub.s32 1, %v2059
    %v2061 = vrot.slane %v2052, %v2060
    %v2062 = vlaneseq
    %v2063 = vshrl.u32 %v2062, 7
    %v2064 = vsub.s32 2, %v2063
    %v2065 = vrot.slane %v2052, %v2064
    %v2069 = vadd.f32 %v1900, %v2057
    %v2070 = vadd.f32 %v1902, %v2061
    %v2071 = vadd.f32 %v2013, %v2065
    %v2072 = vadd.f32 %v1906, %v2057
    %v2073 = vadd.f32 %v1908, %v2061
    %v2074 = vadd.f32 %v2018, %v2065
    %v2075 = vadd.f32 %v1912, %v2057
    %v2076 = vadd.f32 %v1914, %v2061
    %v2077 = vadd.f32 %v2023, %v2065
    %v2078 = vadd.f32 %v1918, %v2057
    %v2079 = vadd.f32 %v1920, %v2061
    %v2080 = vadd.f32 %v2028, %v2065
    %v2081 = vadd.f32 %v1924, %v2057
    %v2082 = vadd.f32 %v1926, %v2061
    %v2083 = vadd.f32 %v2033, %v2065
    %v2084 = vadd.f32 %v1930, %v2057
    %v2085 = vadd.f32 %v1932, %v2061
    %v2086 = vadd.f32 %v2038, %v2065
    %v2087 = vadd.f32 %v1936, %v2057
    %v2088 = vadd.f32 %v1938, %v2061
    %v2089 = vadd.f32 %v2043, %v2065
    %v2090 = vadd.f32 %v1942, %v2057
    %v2091 = vadd.f32 %v1944, %v2061
    %v2092 = vadd.f32 %v2048, %v2065
    %2093 = vst [vmem:[#allocation4] sm:$0xff] %v2069
    %2094 = vst [vmem:[#allocation4 + $0x8] sm:$0xff] %v2070
    %2095 = vst [vmem:[#allocation4 + $0x10] sm:$0xff] %v2071
    %2096 = vst [vmem:[#allocation4 + $0x18] sm:$0xff] %v2072
    %2097 = vst [vmem:[#allocation4 + $0x20] sm:$0xff] %v2073
    %2098 = vst [vmem:[#allocation4 + $0x28] sm:$0xff] %v2074
    %2099 = vst [vmem:[#allocation4 + $0x30] sm:$0xff] %v2075
    %2100 = vst [vmem:[#allocation4 + $0x38] sm:$0xff] %v2076
    %2101 = vst [vmem:[#allocation4 + $0x40] sm:$0xff] %v2077
    %2102 = vst [vmem:[#allocation4 + $0x48] sm:$0xff] %v2078
    %2103 = vst [vmem:[#allocation4 + $0x50] sm:$0xff] %v2079
    %2104 = vst [vmem:[#allocation4 + $0x58] sm:$0xff] %v2080
    %2105 = vst [vmem:[#allocation4 + $0x60] sm:$0xff] %v2081
    %2106 = vst [vmem:[#allocation4 + $0x68] sm:$0xff] %v2082
    %2107 = vst [vmem:[#allocation4 + $0x70] sm:$0xff] %v2083
    %2108 = vst [vmem:[#allocation4 + $0x78] sm:$0xff] %v2084
    %2109 = vst [vmem:[#allocation4 + $0x80] sm:$0xff] %v2085
    %2110 = vst [vmem:[#allocation4 + $0x88] sm:$0xff] %v2086
    %2111 = vst [vmem:[#allocation4 + $0x90] sm:$0xff] %v2087
    %2112 = vst [vmem:[#allocation4 + $0x98] sm:$0xff] %v2088
    %2113 = vst [vmem:[#allocation4 + $0xa0] sm:$0xff] %v2089
    %2114 = vst [vmem:[#allocation4 + $0xa8] sm:$0xff] %v2090
    %2115 = vst [vmem:[#allocation4 + $0xb0] sm:$0xff] %v2091
    %2116 = vst [vmem:[#allocation4 + $0xb8] sm:$0xff] %v2092
    %s2117 = scalar_lea.vmem [#allocation11], 384
    %v2118 = vld [vmem:[%s2117] sm:$0xff]
    %v2119 = vld [vmem:[%s2117 + $0x8] sm:$0xff]
    %v2120 = vld [vmem:[%s2117 + $0x10] sm:$0xff]
    %v2121 = vld [vmem:[%s2117 + $0x18] sm:$0xff]
    %v2122 = vld [vmem:[%s2117 + $0x20] sm:$0xff]
    %v2123 = vld [vmem:[%s2117 + $0x28] sm:$0xff]
    %v2124 = vld [vmem:[%s2117 + $0x30] sm:$0xff]
    %v2125 = vld [vmem:[%s2117 + $0x38] sm:$0xff]
    %v2126 = vld [vmem:[%s2117 + $0x40] sm:$0xff]
    %v2127 = vld [vmem:[%s2117 + $0x48] sm:$0xff]
    %v2128 = vld [vmem:[%s2117 + $0x50] sm:$0xff]
    %v2129 = vld [vmem:[%s2117 + $0x58] sm:$0xff]
    %v2130 = vld [vmem:[%s2117 + $0x60] sm:$0xff]
    %v2131 = vld [vmem:[%s2117 + $0x68] sm:$0xff]
    %v2132 = vld [vmem:[%s2117 + $0x70] sm:$0xff]
    %v2133 = vld [vmem:[%s2117 + $0x78] sm:$0xff]
    %v2134 = vld [vmem:[%s2117 + $0x80] sm:$0xff]
    %v2135 = vld [vmem:[%s2117 + $0x88] sm:$0xff]
    %v2136 = vld [vmem:[%s2117 + $0x90] sm:$0xff]
    %v2137 = vld [vmem:[%s2117 + $0x98] sm:$0xff]
    %v2138 = vld [vmem:[%s2117 + $0xa0] sm:$0xff]
    %v2139 = vld [vmem:[%s2117 + $0xa8] sm:$0xff]
    %v2140 = vld [vmem:[%s2117 + $0xb0] sm:$0xff]
    %v2141 = vld [vmem:[%s2117 + $0xb8] sm:$0xff]
    %v2142 = vld [vmem:[%s2117 + $0xc0] sm:$0xff]
    %v2143 = vld [vmem:[%s2117 + $0xc8] sm:$0xff]
    %v2144 = vld [vmem:[%s2117 + $0xd0] sm:$0xff]
    %v2145 = vld [vmem:[%s2117 + $0xd8] sm:$0xff]
    %v2146 = vld [vmem:[%s2117 + $0xe0] sm:$0xff]
    %v2147 = vld [vmem:[%s2117 + $0xe8] sm:$0xff]
    %v2148 = vld [vmem:[%s2117 + $0xf0] sm:$0xff]
    %v2149 = vld [vmem:[%s2117 + $0xf8] sm:$0xff]
    %v2150 = vld [vmem:[%s2117 + $0x100] sm:$0xff]
    %v2151 = vld [vmem:[%s2117 + $0x108] sm:$0xff]
    %v2152 = vld [vmem:[%s2117 + $0x110] sm:$0xff]
    %v2153 = vld [vmem:[%s2117 + $0x118] sm:$0xff]
    %v2154 = vld [vmem:[%s2117 + $0x120] sm:$0xff]
    %v2155 = vld [vmem:[%s2117 + $0x128] sm:$0xff]
    %v2156 = vld [vmem:[%s2117 + $0x130] sm:$0xff]
    %v2157 = vld [vmem:[%s2117 + $0x138] sm:$0xff]
    %v2158 = vld [vmem:[%s2117 + $0x140] sm:$0xff]
    %v2159 = vld [vmem:[%s2117 + $0x148] sm:$0xff]
    %v2160 = vld [vmem:[%s2117 + $0x150] sm:$0xff]
    %v2161 = vld [vmem:[%s2117 + $0x158] sm:$0xff]
    %v2162 = vld [vmem:[%s2117 + $0x160] sm:$0xff]
    %v2163 = vld [vmem:[%s2117 + $0x168] sm:$0xff]
    %v2164 = vld [vmem:[%s2117 + $0x170] sm:$0xff]
    %v2165 = vld [vmem:[%s2117 + $0x178] sm:$0xff]
    %s2166 = scalar_lea.vmem %s5, 1
    %v2167 = vld [vmem:[%s2166] sm:$0x1]
    %s2168 = scalar_lea.vmem [#allocation2], 8
    %v2169 = vld [vmem:[%s2168] sm:$0xff]
    %2170 = vmatprep.subr.mxu0 %v2119
    %2171 = vmatpush1.msra.mxu0 %v2118
    %2172 = vmatprep.subr.mxu0 %v2122
    %2173 = vmatpush1.msra.mxu0 %v2121
    %2174 = vmatprep.subr.mxu0 %v2125
    %2175 = vmatpush1.msra.mxu0 %v2124
    %2176 = vmatprep.subr.mxu0 %v2128
    %2177 = vmatpush1.msra.mxu0 %v2127
    %2178 = vmatprep.subr.mxu0 %v2131
    %2179 = vmatpush1.msra.mxu0 %v2130
    %2180 = vmatprep.subr.mxu0 %v2134
    %2181 = vmatpush1.msra.mxu0 %v2133
    %2182 = vmatprep.subr.mxu0 %v2137
    %2183 = vmatpush1.msra.mxu0 %v2136
    %2184 = vmatprep.subr.mxu0 %v2140
    %2185 = vmatpush1.msra.mxu0 %v2139
    %2186 = vmatprep.subr.mxu0 %v2143
    %2187 = vmatpush1.msra.mxu0 %v2142
    %2188 = vmatprep.subr.mxu0 %v2146
    %2189 = vmatpush1.msra.mxu0 %v2145
    %2190 = vmatprep.subr.mxu0 %v2149
    %2191 = vmatpush1.msra.mxu0 %v2148
    %2192 = vmatprep.subr.mxu0 %v2152
    %2193 = vmatpush1.msra.mxu0 %v2151
    %2194 = vmatprep.subr.mxu0 %v2155
    %2195 = vmatpush1.msra.mxu0 %v2154
    %2196 = vmatprep.subr.mxu0 %v2158
    %2197 = vmatpush1.msra.mxu0 %v2157
    %2198 = vmatprep.subr.mxu0 %v2161
    %2199 = vmatpush1.msra.mxu0 %v2160
    %2200 = vmatprep.subr.mxu0 %v2164
    %2201 = vmatpush1.msra.mxu0 %v2163
    %2202 = vmatprep.subr.mxu0 0.0
    %2203 = vmatpush1.msra.mxu0 0.0
    %2204 = vmatprep.subr.mxu0 0.0
    %2205 = vmatpush1.msra.mxu0 0.0
    %2206 = vmatprep.subr.mxu0 0.0
    %2207 = vmatpush1.msra.mxu0 0.0
    %2208 = vmatprep.subr.mxu0 0.0
    %2209 = vmatpush1.msra.mxu0 0.0
    %2210 = vmatprep.subr.mxu0 0.0
    %2211 = vmatpush1.msra.mxu0 0.0
    %2212 = vmatprep.subr.mxu0 0.0
    %2213 = vmatpush1.msra.mxu0 0.0
    %2214 = vmatprep.subr.mxu0 0.0
    %2215 = vmatpush1.msra.mxu0 0.0
    %2216 = vmatprep.subr.mxu0 0.0
    %2217 = vmatpush1.msra.mxu0 0.0
    %2218 = vmatprep.subr.mxu0 0.0
    %2219 = vmatpush1.msra.mxu0 0.0
    %2220 = vmatprep.subr.mxu0 0.0
    %2221 = vmatpush1.msra.mxu0 0.0
    %2222 = vmatprep.subr.mxu0 0.0
    %2223 = vmatpush1.msra.mxu0 0.0
    %2224 = vmatprep.subr.mxu0 0.0
    %2225 = vmatpush1.msra.mxu0 0.0
    %2226 = vmatprep.subr.mxu0 0.0
    %2227 = vmatpush1.msra.mxu0 0.0
    %2228 = vmatprep.subr.mxu0 0.0
    %2229 = vmatpush1.msra.mxu0 0.0
    %2230 = vmatprep.subr.mxu0 0.0
    %2231 = vmatpush1.msra.mxu0 0.0
    %2232 = vmatprep.subr.mxu0 0.0
    %2233 = vmatpush1.msra.mxu0 0.0
    %2234 = vmatprep.mubr.f32.mxu0 0.0
    %2235 = vmatmul.mubr.f32.gmra.mrb[0].mxu0 %v2169
    %v2236 = vpop.f32.mrb[0].mxu0
    %v2237 = vadd.f32 0.0, %v2236
    %v2238 = vpop.f32.mrb[0].mxu0
    %v2239 = vadd.f32 0.0, %v2238
    %2240 = vdwg.mxu0
    %2241 = vmatprep.subr.mxu0 0.0
    %2242 = vmatpush1.msra.mxu0 %v2120
    %2243 = vmatprep.subr.mxu0 0.0
    %2244 = vmatpush1.msra.mxu0 %v2123
    %2245 = vmatprep.subr.mxu0 0.0
    %2246 = vmatpush1.msra.mxu0 %v2126
    %2247 = vmatprep.subr.mxu0 0.0
    %2248 = vmatpush1.msra.mxu0 %v2129
    %2249 = vmatprep.subr.mxu0 0.0
    %2250 = vmatpush1.msra.mxu0 %v2132
    %2251 = vmatprep.subr.mxu0 0.0
    %2252 = vmatpush1.msra.mxu0 %v2135
    %2253 = vmatprep.subr.mxu0 0.0
    %2254 = vmatpush1.msra.mxu0 %v2138
    %2255 = vmatprep.subr.mxu0 0.0
    %2256 = vmatpush1.msra.mxu0 %v2141
    %2257 = vmatprep.subr.mxu0 0.0
    %2258 = vmatpush1.msra.mxu0 %v2144
    %2259 = vmatprep.subr.mxu0 0.0
    %2260 = vmatpush1.msra.mxu0 %v2147
    %2261 = vmatprep.subr.mxu0 0.0
    %2262 = vmatpush1.msra.mxu0 %v2150
    %2263 = vmatprep.subr.mxu0 0.0
    %2264 = vmatpush1.msra.mxu0 %v2153
    %2265 = vmatprep.subr.mxu0 0.0
    %2266 = vmatpush1.msra.mxu0 %v2156
    %2267 = vmatprep.subr.mxu0 0.0
    %2268 = vmatpush1.msra.mxu0 %v2159
    %2269 = vmatprep.subr.mxu0 0.0
    %2270 = vmatpush1.msra.mxu0 %v2162
    %2271 = vmatprep.subr.mxu0 0.0
    %2272 = vmatpush1.msra.mxu0 %v2165
    %2273 = vmatprep.subr.mxu0 0.0
    %2274 = vmatpush1.msra.mxu0 0.0
    %2275 = vmatprep.subr.mxu0 0.0
    %2276 = vmatpush1.msra.mxu0 0.0
    %2277 = vmatprep.subr.mxu0 0.0
    %2278 = vmatpush1.msra.mxu0 0.0
    %2279 = vmatprep.subr.mxu0 0.0
    %2280 = vmatpush1.msra.mxu0 0.0
    %2281 = vmatprep.subr.mxu0 0.0
    %2282 = vmatpush1.msra.mxu0 0.0
    %2283 = vmatprep.subr.mxu0 0.0
    %2284 = vmatpush1.msra.mxu0 0.0
    %2285 = vmatprep.subr.mxu0 0.0
    %2286 = vmatpush1.msra.mxu0 0.0
    %2287 = vmatprep.subr.mxu0 0.0
    %2288 = vmatpush1.msra.mxu0 0.0
    %2289 = vmatprep.subr.mxu0 0.0
    %2290 = vmatpush1.msra.mxu0 0.0
    %2291 = vmatprep.subr.mxu0 0.0
    %2292 = vmatpush1.msra.mxu0 0.0
    %2293 = vmatprep.subr.mxu0 0.0
    %2294 = vmatpush1.msra.mxu0 0.0
    %2295 = vmatprep.subr.mxu0 0.0
    %2296 = vmatpush1.msra.mxu0 0.0
    %2297 = vmatprep.subr.mxu0 0.0
    %2298 = vmatpush1.msra.mxu0 0.0
    %2299 = vmatprep.subr.mxu0 0.0
    %2300 = vmatpush1.msra.mxu0 0.0
    %2301 = vmatprep.subr.mxu0 0.0
    %2302 = vmatpush1.msra.mxu0 0.0
    %2303 = vmatprep.subr.mxu0 0.0
    %2304 = vmatpush1.msra.mxu0 0.0
    %2305 = vmatprep.mubr.f32.mxu0 0.0
    %2306 = vmatmul.mubr.f32.gmra.mrb[0].mxu0 %v2169
    %v2307 = vpop.f32.mrb[0].mxu0
    %v2308 = vadd.f32 0.0, %v2307
    %v2309 = vpop.f32.mrb[0].mxu0
    %2310 = vdwg.mxu0
    %v2311 = vld [vmem:[#allocation4] sm:$0xff]
    %v2312 = vld [vmem:[#allocation4 + $0x8] sm:$0xff]
    %v2313 = vld [vmem:[#allocation4 + $0x10] sm:$0xff]
    %v2314 = vadd.f32 %v2311, %v2237
    %v2315 = vmul.f32 %v2314, 0.5
    %v2316 = vtanh.pop %v2315
    %v2317 = vmul.f32 %v2316, 0.5
    %v2318 = vadd.f32 %v2317, 0.5
    %v2319 = vadd.f32 %v2312, %v2239
    %v2320 = vmul.f32 %v2319, 0.5
    %v2321 = vtanh.pop %v2320
    %v2322 = vmul.f32 %v2321, 0.5
    %v2323 = vadd.f32 %v2322, 0.5
    %v2325 = vlaneseq
    %v2326 = vshrl.u32 %v2325, 7
    %v2327 = vsub.s32 0, %v2326
    %v2328 = vrot.slane %v2167, %v2327
    %v2330 = vadd.f32 %v2308, %v2328
    %v2331 = vmul.f32 %v2318, %v2330
    %v2332 = vadd.f32 %v2313, %v2331
    %v2333 = vtanh.pop %v2332
    %v2334 = vsub.f32 1.0, %v2323
    %v2335 = vmul.f32 %v2334, %v2333
    %v2336 = vmul.f32 %v2323, %v2169
    %v2337 = vadd.f32 %v2335, %v2336
    %2338 = vst [vmem:[#allocation13] sm:$0xff] %v2337
    %2339 = vmatprep.subr.mxu0 %v2119
    %2340 = vmatpush1.msra.mxu0 %v2118
    %2341 = vmatprep.subr.mxu0 %v2122
    %2342 = vmatpush1.msra.mxu0 %v2121
    %2343 = vmatprep.subr.mxu0 %v2125
    %2344 = vmatpush1.msra.mxu0 %v2124
    %2345 = vmatprep.subr.mxu0 %v2128
    %2346 = vmatpush1.msra.mxu0 %v2127
    %2347 = vmatprep.subr.mxu0 %v2131
    %2348 = vmatpush1.msra.mxu0 %v2130
    %2349 = vmatprep.subr.mxu0 %v2134
    %2350 = vmatpush1.msra.mxu0 %v2133
    %2351 = vmatprep.subr.mxu0 %v2137
    %2352 = vmatpush1.msra.mxu0 %v2136
    %2353 = vmatprep.subr.mxu0 %v2140
    %2354 = vmatpush1.msra.mxu0 %v2139
    %2355 = vmatprep.subr.mxu0 %v2143
    %2356 = vmatpush1.msra.mxu0 %v2142
    %2357 = vmatprep.subr.mxu0 %v2146
    %2358 = vmatpush1.msra.mxu0 %v2145
    %2359 = vmatprep.subr.mxu0 %v2149
    %2360 = vmatpush1.msra.mxu0 %v2148
    %2361 = vmatprep.subr.mxu0 %v2152
    %2362 = vmatpush1.msra.mxu0 %v2151
    %2363 = vmatprep.subr.mxu0 %v2155
    %2364 = vmatpush1.msra.mxu0 %v2154
    %2365 = vmatprep.subr.mxu0 %v2158
    %2366 = vmatpush1.msra.mxu0 %v2157
    %2367 = vmatprep.subr.mxu0 %v2161
    %2368 = vmatpush1.msra.mxu0 %v2160
    %2369 = vmatprep.subr.mxu0 %v2164
    %2370 = vmatpush1.msra.mxu0 %v2163
    %2371 = vmatprep.subr.mxu0 0.0
    %2372 = vmatpush1.msra.mxu0 0.0
    %2373 = vmatprep.subr.mxu0 0.0
    %2374 = vmatpush1.msra.mxu0 0.0
    %2375 = vmatprep.subr.mxu0 0.0
    %2376 = vmatpush1.msra.mxu0 0.0
    %2377 = vmatprep.subr.mxu0 0.0
    %2378 = vmatpush1.msra.mxu0 0.0
    %2379 = vmatprep.subr.mxu0 0.0
    %2380 = vmatpush1.msra.mxu0 0.0
    %2381 = vmatprep.subr.mxu0 0.0
    %2382 = vmatpush1.msra.mxu0 0.0
    %2383 = vmatprep.subr.mxu0 0.0
    %2384 = vmatpush1.msra.mxu0 0.0
    %2385 = vmatprep.subr.mxu0 0.0
    %2386 = vmatpush1.msra.mxu0 0.0
    %2387 = vmatprep.subr.mxu0 0.0
    %2388 = vmatpush1.msra.mxu0 0.0
    %2389 = vmatprep.subr.mxu0 0.0
    %2390 = vmatpush1.msra.mxu0 0.0
    %2391 = vmatprep.subr.mxu0 0.0
    %2392 = vmatpush1.msra.mxu0 0.0
    %2393 = vmatprep.subr.mxu0 0.0
    %2394 = vmatpush1.msra.mxu0 0.0
    %2395 = vmatprep.subr.mxu0 0.0
    %2396 = vmatpush1.msra.mxu0 0.0
    %2397 = vmatprep.subr.mxu0 0.0
    %2398 = vmatpush1.msra.mxu0 0.0
    %2399 = vmatprep.subr.mxu0 0.0
    %2400 = vmatpush1.msra.mxu0 0.0
    %2401 = vmatprep.subr.mxu0 0.0
    %2402 = vmatpush1.msra.mxu0 0.0
    %2403 = vmatprep.mubr.f32.mxu0 0.0
    %2404 = vmatmul.mubr.f32.gmra.mrb[0].mxu0 %v2337
    %v2405 = vpop.f32.mrb[0].mxu0
    %v2406 = vadd.f32 0.0, %v2405
    %v2407 = vpop.f32.mrb[0].mxu0
    %v2408 = vadd.f32 0.0, %v2407
    %2409 = vdwg.mxu0
    %2410 = vmatprep.subr.mxu0 0.0
    %2411 = vmatpush1.msra.mxu0 %v2120
    %2412 = vmatprep.subr.mxu0 0.0
    %2413 = vmatpush1.msra.mxu0 %v2123
    %2414 = vmatprep.subr.mxu0 0.0
    %2415 = vmatpush1.msra.mxu0 %v2126
    %2416 = vmatprep.subr.mxu0 0.0
    %2417 = vmatpush1.msra.mxu0 %v2129
    %2418 = vmatprep.subr.mxu0 0.0
    %2419 = vmatpush1.msra.mxu0 %v2132
    %2420 = vmatprep.subr.mxu0 0.0
    %2421 = vmatpush1.msra.mxu0 %v2135
    %2422 = vmatprep.subr.mxu0 0.0
    %2423 = vmatpush1.msra.mxu0 %v2138
    %2424 = vmatprep.subr.mxu0 0.0
    %2425 = vmatpush1.msra.mxu0 %v2141
    %2426 = vmatprep.subr.mxu0 0.0
    %2427 = vmatpush1.msra.mxu0 %v2144
    %2428 = vmatprep.subr.mxu0 0.0
    %2429 = vmatpush1.msra.mxu0 %v2147
    %2430 = vmatprep.subr.mxu0 0.0
    %2431 = vmatpush1.msra.mxu0 %v2150
    %2432 = vmatprep.subr.mxu0 0.0
    %2433 = vmatpush1.msra.mxu0 %v2153
    %2434 = vmatprep.subr.mxu0 0.0
    %2435 = vmatpush1.msra.mxu0 %v2156
    %2436 = vmatprep.subr.mxu0 0.0
    %2437 = vmatpush1.msra.mxu0 %v2159
    %2438 = vmatprep.subr.mxu0 0.0
    %2439 = vmatpush1.msra.mxu0 %v2162
    %2440 = vmatprep.subr.mxu0 0.0
    %2441 = vmatpush1.msra.mxu0 %v2165
    %2442 = vmatprep.subr.mxu0 0.0
    %2443 = vmatpush1.msra.mxu0 0.0
    %2444 = vmatprep.subr.mxu0 0.0
    %2445 = vmatpush1.msra.mxu0 0.0
    %2446 = vmatprep.subr.mxu0 0.0
    %2447 = vmatpush1.msra.mxu0 0.0
    %2448 = vmatprep.subr.mxu0 0.0
    %2449 = vmatpush1.msra.mxu0 0.0
    %2450 = vmatprep.subr.mxu0 0.0
    %2451 = vmatpush1.msra.mxu0 0.0
    %2452 = vmatprep.subr.mxu0 0.0
    %2453 = vmatpush1.msra.mxu0 0.0
    %2454 = vmatprep.subr.mxu0 0.0
    %2455 = vmatpush1.msra.mxu0 0.0
    %2456 = vmatprep.subr.mxu0 0.0
    %2457 = vmatpush1.msra.mxu0 0.0
    %2458 = vmatprep.subr.mxu0 0.0
    %2459 = vmatpush1.msra.mxu0 0.0
    %2460 = vmatprep.subr.mxu0 0.0
    %2461 = vmatpush1.msra.mxu0 0.0
    %2462 = vmatprep.subr.mxu0 0.0
    %2463 = vmatpush1.msra.mxu0 0.0
    %2464 = vmatprep.subr.mxu0 0.0
    %2465 = vmatpush1.msra.mxu0 0.0
    %2466 = vmatprep.subr.mxu0 0.0
    %2467 = vmatpush1.msra.mxu0 0.0
    %2468 = vmatprep.subr.mxu0 0.0
    %2469 = vmatpush1.msra.mxu0 0.0
    %2470 = vmatprep.subr.mxu0 0.0
    %2471 = vmatpush1.msra.mxu0 0.0
    %2472 = vmatprep.subr.mxu0 0.0
    %2473 = vmatpush1.msra.mxu0 0.0
    %2474 = vmatprep.mubr.f32.mxu0 0.0
    %2475 = vmatmul.mubr.f32.gmra.mrb[0].mxu0 %v2337
    %v2476 = vpop.f32.mrb[0].mxu0
    %v2477 = vadd.f32 0.0, %v2476
    %v2478 = vpop.f32.mrb[0].mxu0
    %2479 = vdwg.mxu0
    %v2480 = vld [vmem:[%s762] sm:$0xff]
    %v2481 = vld [vmem:[%s762 + $0x8] sm:$0xff]
    %v2482 = vld [vmem:[%s762 + $0x10] sm:$0xff]
    %v2483 = vadd.f32 %v2480, %v2406
    %v2484 = vmul.f32 %v2483, 0.5
    %v2485 = vtanh.pop %v2484
    %v2486 = vmul.f32 %v2485, 0.5
    %v2487 = vadd.f32 %v2486, 0.5
    %v2488 = vadd.f32 %v2481, %v2408
    %v2489 = vmul.f32 %v2488, 0.5
    %v2490 = vtanh.pop %v2489
    %v2491 = vmul.f32 %v2490, 0.5
    %v2492 = vadd.f32 %v2491, 0.5
    %v2493 = vadd.f32 %v2477, %v2328
    %v2494 = vmul.f32 %v2487, %v2493
    %v2495 = vadd.f32 %v2482, %v2494
    %v2496 = vtanh.pop %v2495
    %v2497 = vsub.f32 1.0, %v2492
    %v2498 = vmul.f32 %v2497, %v2496
    %v2499 = vmul.f32 %v2492, %v2337
    %v2500 = vadd.f32 %v2498, %v2499
    %s2501 = scalar_lea.vmem [#allocation13], 8
    %2502 = vst [vmem:[%s2501] sm:$0xff] %v2500
    %2503 = vmatprep.subr.mxu0 %v2119
    %2504 = vmatpush1.msra.mxu0 %v2118
    %2505 = vmatprep.subr.mxu0 %v2122
    %2506 = vmatpush1.msra.mxu0 %v2121
    %2507 = vmatprep.subr.mxu0 %v2125
    %2508 = vmatpush1.msra.mxu0 %v2124
    %2509 = vmatprep.subr.mxu0 %v2128
    %2510 = vmatpush1.msra.mxu0 %v2127
    %2511 = vmatprep.subr.mxu0 %v2131
    %2512 = vmatpush1.msra.mxu0 %v2130
    %2513 = vmatprep.subr.mxu0 %v2134
    %2514 = vmatpush1.msra.mxu0 %v2133
    %2515 = vmatprep.subr.mxu0 %v2137
    %2516 = vmatpush1.msra.mxu0 %v2136
    %2517 = vmatprep.subr.mxu0 %v2140
    %2518 = vmatpush1.msra.mxu0 %v2139
    %2519 = vmatprep.subr.mxu0 %v2143
    %2520 = vmatpush1.msra.mxu0 %v2142
    %2521 = vmatprep.subr.mxu0 %v2146
    %2522 = vmatpush1.msra.mxu0 %v2145
    %2523 = vmatprep.subr.mxu0 %v2149
    %2524 = vmatpush1.msra.mxu0 %v2148
    %2525 = vmatprep.subr.mxu0 %v2152
    %2526 = vmatpush1.msra.mxu0 %v2151
    %2527 = vmatprep.subr.mxu0 %v2155
    %2528 = vmatpush1.msra.mxu0 %v2154
    %2529 = vmatprep.subr.mxu0 %v2158
    %2530 = vmatpush1.msra.mxu0 %v2157
    %2531 = vmatprep.subr.mxu0 %v2161
    %2532 = vmatpush1.msra.mxu0 %v2160
    %2533 = vmatprep.subr.mxu0 %v2164
    %2534 = vmatpush1.msra.mxu0 %v2163
    %2535 = vmatprep.subr.mxu0 0.0
    %2536 = vmatpush1.msra.mxu0 0.0
    %2537 = vmatprep.subr.mxu0 0.0
    %2538 = vmatpush1.msra.mxu0 0.0
    %2539 = vmatprep.subr.mxu0 0.0
    %2540 = vmatpush1.msra.mxu0 0.0
    %2541 = vmatprep.subr.mxu0 0.0
    %2542 = vmatpush1.msra.mxu0 0.0
    %2543 = vmatprep.subr.mxu0 0.0
    %2544 = vmatpush1.msra.mxu0 0.0
    %2545 = vmatprep.subr.mxu0 0.0
    %2546 = vmatpush1.msra.mxu0 0.0
    %2547 = vmatprep.subr.mxu0 0.0
    %2548 = vmatpush1.msra.mxu0 0.0
    %2549 = vmatprep.subr.mxu0 0.0
    %2550 = vmatpush1.msra.mxu0 0.0
    %2551 = vmatprep.subr.mxu0 0.0
    %2552 = vmatpush1.msra.mxu0 0.0
    %2553 = vmatprep.subr.mxu0 0.0
    %2554 = vmatpush1.msra.mxu0 0.0
    %2555 = vmatprep.subr.mxu0 0.0
    %2556 = vmatpush1.msra.mxu0 0.0
    %2557 = vmatprep.subr.mxu0 0.0
    %2558 = vmatpush1.msra.mxu0 0.0
    %2559 = vmatprep.subr.mxu0 0.0
    %2560 = vmatpush1.msra.mxu0 0.0
    %2561 = vmatprep.subr.mxu0 0.0
    %2562 = vmatpush1.msra.mxu0 0.0
    %2563 = vmatprep.subr.mxu0 0.0
    %2564 = vmatpush1.msra.mxu0 0.0
    %2565 = vmatprep.subr.mxu0 0.0
    %2566 = vmatpush1.msra.mxu0 0.0
    %2567 = vmatprep.mubr.f32.mxu0 0.0
    %2568 = vmatmul.mubr.f32.gmra.mrb[0].mxu0 %v2500
    %v2569 = vpop.f32.mrb[0].mxu0
    %v2570 = vadd.f32 0.0, %v2569
    %v2571 = vpop.f32.mrb[0].mxu0
    %v2572 = vadd.f32 0.0, %v2571
    %2573 = vdwg.mxu0
    %2574 = vmatprep.subr.mxu0 0.0
    %2575 = vmatpush1.msra.mxu0 %v2120
    %2576 = vmatprep.subr.mxu0 0.0
    %2577 = vmatpush1.msra.mxu0 %v2123
    %2578 = vmatprep.subr.mxu0 0.0
    %2579 = vmatpush1.msra.mxu0 %v2126
    %2580 = vmatprep.subr.mxu0 0.0
    %2581 = vmatpush1.msra.mxu0 %v2129
    %2582 = vmatprep.subr.mxu0 0.0
    %2583 = vmatpush1.msra.mxu0 %v2132
    %2584 = vmatprep.subr.mxu0 0.0
    %2585 = vmatpush1.msra.mxu0 %v2135
    %2586 = vmatprep.subr.mxu0 0.0
    %2587 = vmatpush1.msra.mxu0 %v2138
    %2588 = vmatprep.subr.mxu0 0.0
    %2589 = vmatpush1.msra.mxu0 %v2141
    %2590 = vmatprep.subr.mxu0 0.0
    %2591 = vmatpush1.msra.mxu0 %v2144
    %2592 = vmatprep.subr.mxu0 0.0
    %2593 = vmatpush1.msra.mxu0 %v2147
    %2594 = vmatprep.subr.mxu0 0.0
    %2595 = vmatpush1.msra.mxu0 %v2150
    %2596 = vmatprep.subr.mxu0 0.0
    %2597 = vmatpush1.msra.mxu0 %v2153
    %2598 = vmatprep.subr.mxu0 0.0
    %2599 = vmatpush1.msra.mxu0 %v2156
    %2600 = vmatprep.subr.mxu0 0.0
    %2601 = vmatpush1.msra.mxu0 %v2159
    %2602 = vmatprep.subr.mxu0 0.0
    %2603 = vmatpush1.msra.mxu0 %v2162
    %2604 = vmatprep.subr.mxu0 0.0
    %2605 = vmatpush1.msra.mxu0 %v2165
    %2606 = vmatprep.subr.mxu0 0.0
    %2607 = vmatpush1.msra.mxu0 0.0
    %2608 = vmatprep.subr.mxu0 0.0
    %2609 = vmatpush1.msra.mxu0 0.0
    %2610 = vmatprep.subr.mxu0 0.0
    %2611 = vmatpush1.msra.mxu0 0.0
    %2612 = vmatprep.subr.mxu0 0.0
    %2613 = vmatpush1.msra.mxu0 0.0
    %2614 = vmatprep.subr.mxu0 0.0
    %2615 = vmatpush1.msra.mxu0 0.0
    %2616 = vmatprep.subr.mxu0 0.0
    %2617 = vmatpush1.msra.mxu0 0.0
    %2618 = vmatprep.subr.mxu0 0.0
    %2619 = vmatpush1.msra.mxu0 0.0
    %2620 = vmatprep.subr.mxu0 0.0
    %2621 = vmatpush1.msra.mxu0 0.0
    %2622 = vmatprep.subr.mxu0 0.0
    %2623 = vmatpush1.msra.mxu0 0.0
    %2624 = vmatprep.subr.mxu0 0.0
    %2625 = vmatpush1.msra.mxu0 0.0
    %2626 = vmatprep.subr.mxu0 0.0
    %2627 = vmatpush1.msra.mxu0 0.0
    %2628 = vmatprep.subr.mxu0 0.0
    %2629 = vmatpush1.msra.mxu0 0.0
    %2630 = vmatprep.subr.mxu0 0.0
    %2631 = vmatpush1.msra.mxu0 0.0
    %2632 = vmatprep.subr.mxu0 0.0
    %2633 = vmatpush1.msra.mxu0 0.0
    %2634 = vmatprep.subr.mxu0 0.0
    %2635 = vmatpush1.msra.mxu0 0.0
    %2636 = vmatprep.subr.mxu0 0.0
    %2637 = vmatpush1.msra.mxu0 0.0
    %2638 = vmatprep.mubr.f32.mxu0 0.0
    %2639 = vmatmul.mubr.f32.gmra.mrb[0].mxu0 %v2500
    %v2640 = vpop.f32.mrb[0].mxu0
    %v2641 = vadd.f32 0.0, %v2640
    %v2642 = vpop.f32.mrb[0].mxu0
    %2643 = vdwg.mxu0
    %v2644 = vld [vmem:[%s927] sm:$0xff]
    %v2645 = vld [vmem:[%s927 + $0x8] sm:$0xff]
    %v2646 = vld [vmem:[%s927 + $0x10] sm:$0xff]
    %v2647 = vadd.f32 %v2644, %v2570
    %v2648 = vmul.f32 %v2647, 0.5
    %v2649 = vtanh.pop %v2648
    %v2650 = vmul.f32 %v2649, 0.5
    %v2651 = vadd.f32 %v2650, 0.5
    %v2652 = vadd.f32 %v2645, %v2572
    %v2653 = vmul.f32 %v2652, 0.5
    %v2654 = vtanh.pop %v2653
    %v2655 = vmul.f32 %v2654, 0.5
    %v2656 = vadd.f32 %v2655, 0.5
    %v2657 = vadd.f32 %v2641, %v2328
    %v2658 = vmul.f32 %v2651, %v2657
    %v2659 = vadd.f32 %v2646, %v2658
    %v2660 = vtanh.pop %v2659
    %v2661 = vsub.f32 1.0, %v2656
    %v2662 = vmul.f32 %v2661, %v2660
    %v2663 = vmul.f32 %v2656, %v2500
    %v2664 = vadd.f32 %v2662, %v2663
    %s2665 = scalar_lea.vmem [#allocation13], 16
    %2666 = vst [vmem:[%s2665] sm:$0xff] %v2664
    %2667 = vmatprep.subr.mxu0 %v2119
    %2668 = vmatpush1.msra.mxu0 %v2118
    %2669 = vmatprep.subr.mxu0 %v2122
    %2670 = vmatpush1.msra.mxu0 %v2121
    %2671 = vmatprep.subr.mxu0 %v2125
    %2672 = vmatpush1.msra.mxu0 %v2124
    %2673 = vmatprep.subr.mxu0 %v2128
    %2674 = vmatpush1.msra.mxu0 %v2127
    %2675 = vmatprep.subr.mxu0 %v2131
    %2676 = vmatpush1.msra.mxu0 %v2130
    %2677 = vmatprep.subr.mxu0 %v2134
    %2678 = vmatpush1.msra.mxu0 %v2133
    %2679 = vmatprep.subr.mxu0 %v2137
    %2680 = vmatpush1.msra.mxu0 %v2136
    %2681 = vmatprep.subr.mxu0 %v2140
    %2682 = vmatpush1.msra.mxu0 %v2139
    %2683 = vmatprep.subr.mxu0 %v2143
    %2684 = vmatpush1.msra.mxu0 %v2142
    %2685 = vmatprep.subr.mxu0 %v2146
    %2686 = vmatpush1.msra.mxu0 %v2145
    %2687 = vmatprep.subr.mxu0 %v2149
    %2688 = vmatpush1.msra.mxu0 %v2148
    %2689 = vmatprep.subr.mxu0 %v2152
    %2690 = vmatpush1.msra.mxu0 %v2151
    %2691 = vmatprep.subr.mxu0 %v2155
    %2692 = vmatpush1.msra.mxu0 %v2154
    %2693 = vmatprep.subr.mxu0 %v2158
    %2694 = vmatpush1.msra.mxu0 %v2157
    %2695 = vmatprep.subr.mxu0 %v2161
    %2696 = vmatpush1.msra.mxu0 %v2160
    %2697 = vmatprep.subr.mxu0 %v2164
    %2698 = vmatpush1.msra.mxu0 %v2163
    %2699 = vmatprep.subr.mxu0 0.0
    %2700 = vmatpush1.msra.mxu0 0.0
    %2701 = vmatprep.subr.mxu0 0.0
    %2702 = vmatpush1.msra.mxu0 0.0
    %2703 = vmatprep.subr.mxu0 0.0
    %2704 = vmatpush1.msra.mxu0 0.0
    %2705 = vmatprep.subr.mxu0 0.0
    %2706 = vmatpush1.msra.mxu0 0.0
    %2707 = vmatprep.subr.mxu0 0.0
    %2708 = vmatpush1.msra.mxu0 0.0
    %2709 = vmatprep.subr.mxu0 0.0
    %2710 = vmatpush1.msra.mxu0 0.0
    %2711 = vmatprep.subr.mxu0 0.0
    %2712 = vmatpush1.msra.mxu0 0.0
    %2713 = vmatprep.subr.mxu0 0.0
    %2714 = vmatpush1.msra.mxu0 0.0
    %2715 = vmatprep.subr.mxu0 0.0
    %2716 = vmatpush1.msra.mxu0 0.0
    %2717 = vmatprep.subr.mxu0 0.0
    %2718 = vmatpush1.msra.mxu0 0.0
    %2719 = vmatprep.subr.mxu0 0.0
    %2720 = vmatpush1.msra.mxu0 0.0
    %2721 = vmatprep.subr.mxu0 0.0
    %2722 = vmatpush1.msra.mxu0 0.0
    %2723 = vmatprep.subr.mxu0 0.0
    %2724 = vmatpush1.msra.mxu0 0.0
    %2725 = vmatprep.subr.mxu0 0.0
    %2726 = vmatpush1.msra.mxu0 0.0
    %2727 = vmatprep.subr.mxu0 0.0
    %2728 = vmatpush1.msra.mxu0 0.0
    %2729 = vmatprep.subr.mxu0 0.0
    %2730 = vmatpush1.msra.mxu0 0.0
    %2731 = vmatprep.mubr.f32.mxu0 0.0
    %2732 = vmatmul.mubr.f32.gmra.mrb[0].mxu0 %v2664
    %v2733 = vpop.f32.mrb[0].mxu0
    %v2734 = vadd.f32 0.0, %v2733
    %v2735 = vpop.f32.mrb[0].mxu0
    %v2736 = vadd.f32 0.0, %v2735
    %2737 = vdwg.mxu0
    %2738 = vmatprep.subr.mxu0 0.0
    %2739 = vmatpush1.msra.mxu0 %v2120
    %2740 = vmatprep.subr.mxu0 0.0
    %2741 = vmatpush1.msra.mxu0 %v2123
    %2742 = vmatprep.subr.mxu0 0.0
    %2743 = vmatpush1.msra.mxu0 %v2126
    %2744 = vmatprep.subr.mxu0 0.0
    %2745 = vmatpush1.msra.mxu0 %v2129
    %2746 = vmatprep.subr.mxu0 0.0
    %2747 = vmatpush1.msra.mxu0 %v2132
    %2748 = vmatprep.subr.mxu0 0.0
    %2749 = vmatpush1.msra.mxu0 %v2135
    %2750 = vmatprep.subr.mxu0 0.0
    %2751 = vmatpush1.msra.mxu0 %v2138
    %2752 = vmatprep.subr.mxu0 0.0
    %2753 = vmatpush1.msra.mxu0 %v2141
    %2754 = vmatprep.subr.mxu0 0.0
    %2755 = vmatpush1.msra.mxu0 %v2144
    %2756 = vmatprep.subr.mxu0 0.0
    %2757 = vmatpush1.msra.mxu0 %v2147
    %2758 = vmatprep.subr.mxu0 0.0
    %2759 = vmatpush1.msra.mxu0 %v2150
    %2760 = vmatprep.subr.mxu0 0.0
    %2761 = vmatpush1.msra.mxu0 %v2153
    %2762 = vmatprep.subr.mxu0 0.0
    %2763 = vmatpush1.msra.mxu0 %v2156
    %2764 = vmatprep.subr.mxu0 0.0
    %2765 = vmatpush1.msra.mxu0 %v2159
    %2766 = vmatprep.subr.mxu0 0.0
    %2767 = vmatpush1.msra.mxu0 %v2162
    %2768 = vmatprep.subr.mxu0 0.0
    %2769 = vmatpush1.msra.mxu0 %v2165
    %2770 = vmatprep.subr.mxu0 0.0
    %2771 = vmatpush1.msra.mxu0 0.0
    %2772 = vmatprep.subr.mxu0 0.0
    %2773 = vmatpush1.msra.mxu0 0.0
    %2774 = vmatprep.subr.mxu0 0.0
    %2775 = vmatpush1.msra.mxu0 0.0
    %2776 = vmatprep.subr.mxu0 0.0
    %2777 = vmatpush1.msra.mxu0 0.0
    %2778 = vmatprep.subr.mxu0 0.0
    %2779 = vmatpush1.msra.mxu0 0.0
    %2780 = vmatprep.subr.mxu0 0.0
    %2781 = vmatpush1.msra.mxu0 0.0
    %2782 = vmatprep.subr.mxu0 0.0
    %2783 = vmatpush1.msra.mxu0 0.0
    %2784 = vmatprep.subr.mxu0 0.0
    %2785 = vmatpush1.msra.mxu0 0.0
    %2786 = vmatprep.subr.mxu0 0.0
    %2787 = vmatpush1.msra.mxu0 0.0
    %2788 = vmatprep.subr.mxu0 0.0
    %2789 = vmatpush1.msra.mxu0 0.0
    %2790 = vmatprep.subr.mxu0 0.0
    %2791 = vmatpush1.msra.mxu0 0.0
    %2792 = vmatprep.subr.mxu0 0.0
    %2793 = vmatpush1.msra.mxu0 0.0
    %2794 = vmatprep.subr.mxu0 0.0
    %2795 = vmatpush1.msra.mxu0 0.0
    %2796 = vmatprep.subr.mxu0 0.0
    %2797 = vmatpush1.msra.mxu0 0.0
    %2798 = vmatprep.subr.mxu0 0.0
    %2799 = vmatpush1.msra.mxu0 0.0
    %2800 = vmatprep.subr.mxu0 0.0
    %2801 = vmatpush1.msra.mxu0 0.0
    %2802 = vmatprep.mubr.f32.mxu0 0.0
    %2803 = vmatmul.mubr.f32.gmra.mrb[0].mxu0 %v2664
    %v2804 = vpop.f32.mrb[0].mxu0
    %v2805 = vadd.f32 0.0, %v2804
    %v2806 = vpop.f32.mrb[0].mxu0
    %2807 = vdwg.mxu0
    %v2808 = vld [vmem:[%s1092] sm:$0xff]
    %v2809 = vld [vmem:[%s1092 + $0x8] sm:$0xff]
    %v2810 = vld [vmem:[%s1092 + $0x10] sm:$0xff]
    %v2811 = vadd.f32 %v2808, %v2734
    %v2812 = vmul.f32 %v2811, 0.5
    %v2813 = vtanh.pop %v2812
    %v2814 = vmul.f32 %v2813, 0.5
    %v2815 = vadd.f32 %v2814, 0.5
    %v2816 = vadd.f32 %v2809, %v2736
    %v2817 = vmul.f32 %v2816, 0.5
    %v2818 = vtanh.pop %v2817
    %v2819 = vmul.f32 %v2818, 0.5
    %v2820 = vadd.f32 %v2819, 0.5
    %v2821 = vadd.f32 %v2805, %v2328
    %v2822 = vmul.f32 %v2815, %v2821
    %v2823 = vadd.f32 %v2810, %v2822
    %v2824 = vtanh.pop %v2823
    %v2825 = vsub.f32 1.0, %v2820
    %v2826 = vmul.f32 %v2825, %v2824
    %v2827 = vmul.f32 %v2820, %v2664
    %v2828 = vadd.f32 %v2826, %v2827
    %s2829 = scalar_lea.vmem [#allocation13], 24
    %2830 = vst [vmem:[%s2829] sm:$0xff] %v2828
    %2831 = vmatprep.subr.mxu0 %v2119
    %2832 = vmatpush1.msra.mxu0 %v2118
    %2833 = vmatprep.subr.mxu0 %v2122
    %2834 = vmatpush1.msra.mxu0 %v2121
    %2835 = vmatprep.subr.mxu0 %v2125
    %2836 = vmatpush1.msra.mxu0 %v2124
    %2837 = vmatprep.subr.mxu0 %v2128
    %2838 = vmatpush1.msra.mxu0 %v2127
    %2839 = vmatprep.subr.mxu0 %v2131
    %2840 = vmatpush1.msra.mxu0 %v2130
    %2841 = vmatprep.subr.mxu0 %v2134
    %2842 = vmatpush1.msra.mxu0 %v2133
    %2843 = vmatprep.subr.mxu0 %v2137
    %2844 = vmatpush1.msra.mxu0 %v2136
    %2845 = vmatprep.subr.mxu0 %v2140
    %2846 = vmatpush1.msra.mxu0 %v2139
    %2847 = vmatprep.subr.mxu0 %v2143
    %2848 = vmatpush1.msra.mxu0 %v2142
    %2849 = vmatprep.subr.mxu0 %v2146
    %2850 = vmatpush1.msra.mxu0 %v2145
    %2851 = vmatprep.subr.mxu0 %v2149
    %2852 = vmatpush1.msra.mxu0 %v2148
    %2853 = vmatprep.subr.mxu0 %v2152
    %2854 = vmatpush1.msra.mxu0 %v2151
    %2855 = vmatprep.subr.mxu0 %v2155
    %2856 = vmatpush1.msra.mxu0 %v2154
    %2857 = vmatprep.subr.mxu0 %v2158
    %2858 = vmatpush1.msra.mxu0 %v2157
    %2859 = vmatprep.subr.mxu0 %v2161
    %2860 = vmatpush1.msra.mxu0 %v2160
    %2861 = vmatprep.subr.mxu0 %v2164
    %2862 = vmatpush1.msra.mxu0 %v2163
    %2863 = vmatprep.subr.mxu0 0.0
    %2864 = vmatpush1.msra.mxu0 0.0
    %2865 = vmatprep.subr.mxu0 0.0
    %2866 = vmatpush1.msra.mxu0 0.0
    %2867 = vmatprep.subr.mxu0 0.0
    %2868 = vmatpush1.msra.mxu0 0.0
    %2869 = vmatprep.subr.mxu0 0.0
    %2870 = vmatpush1.msra.mxu0 0.0
    %2871 = vmatprep.subr.mxu0 0.0
    %2872 = vmatpush1.msra.mxu0 0.0
    %2873 = vmatprep.subr.mxu0 0.0
    %2874 = vmatpush1.msra.mxu0 0.0
    %2875 = vmatprep.subr.mxu0 0.0
    %2876 = vmatpush1.msra.mxu0 0.0
    %2877 = vmatprep.subr.mxu0 0.0
    %2878 = vmatpush1.msra.mxu0 0.0
    %2879 = vmatprep.subr.mxu0 0.0
    %2880 = vmatpush1.msra.mxu0 0.0
    %2881 = vmatprep.subr.mxu0 0.0
    %2882 = vmatpush1.msra.mxu0 0.0
    %2883 = vmatprep.subr.mxu0 0.0
    %2884 = vmatpush1.msra.mxu0 0.0
    %2885 = vmatprep.subr.mxu0 0.0
    %2886 = vmatpush1.msra.mxu0 0.0
    %2887 = vmatprep.subr.mxu0 0.0
    %2888 = vmatpush1.msra.mxu0 0.0
    %2889 = vmatprep.subr.mxu0 0.0
    %2890 = vmatpush1.msra.mxu0 0.0
    %2891 = vmatprep.subr.mxu0 0.0
    %2892 = vmatpush1.msra.mxu0 0.0
    %2893 = vmatprep.subr.mxu0 0.0
    %2894 = vmatpush1.msra.mxu0 0.0
    %2895 = vmatprep.mubr.f32.mxu0 0.0
    %2896 = vmatmul.mubr.f32.gmra.mrb[0].mxu0 %v2828
    %v2897 = vpop.f32.mrb[0].mxu0
    %v2898 = vadd.f32 0.0, %v2897
    %v2899 = vpop.f32.mrb[0].mxu0
    %v2900 = vadd.f32 0.0, %v2899
    %2901 = vdwg.mxu0
    %2902 = vmatprep.subr.mxu0 0.0
    %2903 = vmatpush1.msra.mxu0 %v2120
    %2904 = vmatprep.subr.mxu0 0.0
    %2905 = vmatpush1.msra.mxu0 %v2123
    %2906 = vmatprep.subr.mxu0 0.0
    %2907 = vmatpush1.msra.mxu0 %v2126
    %2908 = vmatprep.subr.mxu0 0.0
    %2909 = vmatpush1.msra.mxu0 %v2129
    %2910 = vmatprep.subr.mxu0 0.0
    %2911 = vmatpush1.msra.mxu0 %v2132
    %2912 = vmatprep.subr.mxu0 0.0
    %2913 = vmatpush1.msra.mxu0 %v2135
    %2914 = vmatprep.subr.mxu0 0.0
    %2915 = vmatpush1.msra.mxu0 %v2138
    %2916 = vmatprep.subr.mxu0 0.0
    %2917 = vmatpush1.msra.mxu0 %v2141
    %2918 = vmatprep.subr.mxu0 0.0
    %2919 = vmatpush1.msra.mxu0 %v2144
    %2920 = vmatprep.subr.mxu0 0.0
    %2921 = vmatpush1.msra.mxu0 %v2147
    %2922 = vmatprep.subr.mxu0 0.0
    %2923 = vmatpush1.msra.mxu0 %v2150
    %2924 = vmatprep.subr.mxu0 0.0
    %2925 = vmatpush1.msra.mxu0 %v2153
    %2926 = vmatprep.subr.mxu0 0.0
    %2927 = vmatpush1.msra.mxu0 %v2156
    %2928 = vmatprep.subr.mxu0 0.0
    %2929 = vmatpush1.msra.mxu0 %v2159
    %2930 = vmatprep.subr.mxu0 0.0
    %2931 = vmatpush1.msra.mxu0 %v2162
    %2932 = vmatprep.subr.mxu0 0.0
    %2933 = vmatpush1.msra.mxu0 %v2165
    %2934 = vmatprep.subr.mxu0 0.0
    %2935 = vmatpush1.msra.mxu0 0.0
    %2936 = vmatprep.subr.mxu0 0.0
    %2937 = vmatpush1.msra.mxu0 0.0
    %2938 = vmatprep.subr.mxu0 0.0
    %2939 = vmatpush1.msra.mxu0 0.0
    %2940 = vmatprep.subr.mxu0 0.0
    %2941 = vmatpush1.msra.mxu0 0.0
    %2942 = vmatprep.subr.mxu0 0.0
    %2943 = vmatpush1.msra.mxu0 0.0
    %2944 = vmatprep.subr.mxu0 0.0
    %2945 = vmatpush1.msra.mxu0 0.0
    %2946 = vmatprep.subr.mxu0 0.0
    %2947 = vmatpush1.msra.mxu0 0.0
    %2948 = vmatprep.subr.mxu0 0.0
    %2949 = vmatpush1.msra.mxu0 0.0
    %2950 = vmatprep.subr.mxu0 0.0
    %2951 = vmatpush1.msra.mxu0 0.0
    %2952 = vmatprep.subr.mxu0 0.0
    %2953 = vmatpush1.msra.mxu0 0.0
    %2954 = vmatprep.subr.mxu0 0.0
    %2955 = vmatpush1.msra.mxu0 0.0
    %2956 = vmatprep.subr.mxu0 0.0
    %2957 = vmatpush1.msra.mxu0 0.0
    %2958 = vmatprep.subr.mxu0 0.0
    %2959 = vmatpush1.msra.mxu0 0.0
    %2960 = vmatprep.subr.mxu0 0.0
    %2961 = vmatpush1.msra.mxu0 0.0
    %2962 = vmatprep.subr.mxu0 0.0
    %2963 = vmatpush1.msra.mxu0 0.0
    %2964 = vmatprep.subr.mxu0 0.0
    %2965 = vmatpush1.msra.mxu0 0.0
    %2966 = vmatprep.mubr.f32.mxu0 0.0
    %2967 = vmatmul.mubr.f32.gmra.mrb[0].mxu0 %v2828
    %v2968 = vpop.f32.mrb[0].mxu0
    %v2969 = vadd.f32 0.0, %v2968
    %v2970 = vpop.f32.mrb[0].mxu0
    %2971 = vdwg.mxu0
    %v2972 = vld [vmem:[%s1257] sm:$0xff]
    %v2973 = vld [vmem:[%s1257 + $0x8] sm:$0xff]
    %v2974 = vld [vmem:[%s1257 + $0x10] sm:$0xff]
    %v2975 = vadd.f32 %v2972, %v2898
    %v2976 = vmul.f32 %v2975, 0.5
    %v2977 = vtanh.pop %v2976
    %v2978 = vmul.f32 %v2977, 0.5
    %v2979 = vadd.f32 %v2978, 0.5
    %v2980 = vadd.f32 %v2973, %v2900
    %v2981 = vmul.f32 %v2980, 0.5
    %v2982 = vtanh.pop %v2981
    %v2983 = vmul.f32 %v2982, 0.5
    %v2984 = vadd.f32 %v2983, 0.5
    %v2985 = vadd.f32 %v2969, %v2328
    %v2986 = vmul.f32 %v2979, %v2985
    %v2987 = vadd.f32 %v2974, %v2986
    %v2988 = vtanh.pop %v2987
    %v2989 = vsub.f32 1.0, %v2984
    %v2990 = vmul.f32 %v2989, %v2988
    %v2991 = vmul.f32 %v2984, %v2828
    %v2992 = vadd.f32 %v2990, %v2991
    %s2993 = scalar_lea.vmem [#allocation13], 32
    %2994 = vst [vmem:[%s2993] sm:$0xff] %v2992
    %2995 = vmatprep.subr.mxu0 %v2119
    %2996 = vmatpush1.msra.mxu0 %v2118
    %2997 = vmatprep.subr.mxu0 %v2122
    %2998 = vmatpush1.msra.mxu0 %v2121
    %2999 = vmatprep.subr.mxu0 %v2125
    %3000 = vmatpush1.msra.mxu0 %v2124
    %3001 = vmatprep.subr.mxu0 %v2128
    %3002 = vmatpush1.msra.mxu0 %v2127
    %3003 = vmatprep.subr.mxu0 %v2131
    %3004 = vmatpush1.msra.mxu0 %v2130
    %3005 = vmatprep.subr.mxu0 %v2134
    %3006 = vmatpush1.msra.mxu0 %v2133
    %3007 = vmatprep.subr.mxu0 %v2137
    %3008 = vmatpush1.msra.mxu0 %v2136
    %3009 = vmatprep.subr.mxu0 %v2140
    %3010 = vmatpush1.msra.mxu0 %v2139
    %3011 = vmatprep.subr.mxu0 %v2143
    %3012 = vmatpush1.msra.mxu0 %v2142
    %3013 = vmatprep.subr.mxu0 %v2146
    %3014 = vmatpush1.msra.mxu0 %v2145
    %3015 = vmatprep.subr.mxu0 %v2149
    %3016 = vmatpush1.msra.mxu0 %v2148
    %3017 = vmatprep.subr.mxu0 %v2152
    %3018 = vmatpush1.msra.mxu0 %v2151
    %3019 = vmatprep.subr.mxu0 %v2155
    %3020 = vmatpush1.msra.mxu0 %v2154
    %3021 = vmatprep.subr.mxu0 %v2158
    %3022 = vmatpush1.msra.mxu0 %v2157
    %3023 = vmatprep.subr.mxu0 %v2161
    %3024 = vmatpush1.msra.mxu0 %v2160
    %3025 = vmatprep.subr.mxu0 %v2164
    %3026 = vmatpush1.msra.mxu0 %v2163
    %3027 = vmatprep.subr.mxu0 0.0
    %3028 = vmatpush1.msra.mxu0 0.0
    %3029 = vmatprep.subr.mxu0 0.0
    %3030 = vmatpush1.msra.mxu0 0.0
    %3031 = vmatprep.subr.mxu0 0.0
    %3032 = vmatpush1.msra.mxu0 0.0
    %3033 = vmatprep.subr.mxu0 0.0
    %3034 = vmatpush1.msra.mxu0 0.0
    %3035 = vmatprep.subr.mxu0 0.0
    %3036 = vmatpush1.msra.mxu0 0.0
    %3037 = vmatprep.subr.mxu0 0.0
    %3038 = vmatpush1.msra.mxu0 0.0
    %3039 = vmatprep.subr.mxu0 0.0
    %3040 = vmatpush1.msra.mxu0 0.0
    %3041 = vmatprep.subr.mxu0 0.0
    %3042 = vmatpush1.msra.mxu0 0.0
    %3043 = vmatprep.subr.mxu0 0.0
    %3044 = vmatpush1.msra.mxu0 0.0
    %3045 = vmatprep.subr.mxu0 0.0
    %3046 = vmatpush1.msra.mxu0 0.0
    %3047 = vmatprep.subr.mxu0 0.0
    %3048 = vmatpush1.msra.mxu0 0.0
    %3049 = vmatprep.subr.mxu0 0.0
    %3050 = vmatpush1.msra.mxu0 0.0
    %3051 = vmatprep.subr.mxu0 0.0
    %3052 = vmatpush1.msra.mxu0 0.0
    %3053 = vmatprep.subr.mxu0 0.0
    %3054 = vmatpush1.msra.mxu0 0.0
    %3055 = vmatprep.subr.mxu0 0.0
    %3056 = vmatpush1.msra.mxu0 0.0
    %3057 = vmatprep.subr.mxu0 0.0
    %3058 = vmatpush1.msra.mxu0 0.0
    %3059 = vmatprep.mubr.f32.mxu0 0.0
    %3060 = vmatmul.mubr.f32.gmra.mrb[0].mxu0 %v2992
    %v3061 = vpop.f32.mrb[0].mxu0
    %v3062 = vadd.f32 0.0, %v3061
    %v3063 = vpop.f32.mrb[0].mxu0
    %v3064 = vadd.f32 0.0, %v3063
    %3065 = vdwg.mxu0
    %3066 = vmatprep.subr.mxu0 0.0
    %3067 = vmatpush1.msra.mxu0 %v2120
    %3068 = vmatprep.subr.mxu0 0.0
    %3069 = vmatpush1.msra.mxu0 %v2123
    %3070 = vmatprep.subr.mxu0 0.0
    %3071 = vmatpush1.msra.mxu0 %v2126
    %3072 = vmatprep.subr.mxu0 0.0
    %3073 = vmatpush1.msra.mxu0 %v2129
    %3074 = vmatprep.subr.mxu0 0.0
    %3075 = vmatpush1.msra.mxu0 %v2132
    %3076 = vmatprep.subr.mxu0 0.0
    %3077 = vmatpush1.msra.mxu0 %v2135
    %3078 = vmatprep.subr.mxu0 0.0
    %3079 = vmatpush1.msra.mxu0 %v2138
    %3080 = vmatprep.subr.mxu0 0.0
    %3081 = vmatpush1.msra.mxu0 %v2141
    %3082 = vmatprep.subr.mxu0 0.0
    %3083 = vmatpush1.msra.mxu0 %v2144
    %3084 = vmatprep.subr.mxu0 0.0
    %3085 = vmatpush1.msra.mxu0 %v2147
    %3086 = vmatprep.subr.mxu0 0.0
    %3087 = vmatpush1.msra.mxu0 %v2150
    %3088 = vmatprep.subr.mxu0 0.0
    %3089 = vmatpush1.msra.mxu0 %v2153
    %3090 = vmatprep.subr.mxu0 0.0
    %3091 = vmatpush1.msra.mxu0 %v2156
    %3092 = vmatprep.subr.mxu0 0.0
    %3093 = vmatpush1.msra.mxu0 %v2159
    %3094 = vmatprep.subr.mxu0 0.0
    %3095 = vmatpush1.msra.mxu0 %v2162
    %3096 = vmatprep.subr.mxu0 0.0
    %3097 = vmatpush1.msra.mxu0 %v2165
    %3098 = vmatprep.subr.mxu0 0.0
    %3099 = vmatpush1.msra.mxu0 0.0
    %3100 = vmatprep.subr.mxu0 0.0
    %3101 = vmatpush1.msra.mxu0 0.0
    %3102 = vmatprep.subr.mxu0 0.0
    %3103 = vmatpush1.msra.mxu0 0.0
    %3104 = vmatprep.subr.mxu0 0.0
    %3105 = vmatpush1.msra.mxu0 0.0
    %3106 = vmatprep.subr.mxu0 0.0
    %3107 = vmatpush1.msra.mxu0 0.0
    %3108 = vmatprep.subr.mxu0 0.0
    %3109 = vmatpush1.msra.mxu0 0.0
    %3110 = vmatprep.subr.mxu0 0.0
    %3111 = vmatpush1.msra.mxu0 0.0
    %3112 = vmatprep.subr.mxu0 0.0
    %3113 = vmatpush1.msra.mxu0 0.0
    %3114 = vmatprep.subr.mxu0 0.0
    %3115 = vmatpush1.msra.mxu0 0.0
    %3116 = vmatprep.subr.mxu0 0.0
    %3117 = vmatpush1.msra.mxu0 0.0
    %3118 = vmatprep.subr.mxu0 0.0
    %3119 = vmatpush1.msra.mxu0 0.0
    %3120 = vmatprep.subr.mxu0 0.0
    %3121 = vmatpush1.msra.mxu0 0.0
    %3122 = vmatprep.subr.mxu0 0.0
    %3123 = vmatpush1.msra.mxu0 0.0
    %3124 = vmatprep.subr.mxu0 0.0
    %3125 = vmatpush1.msra.mxu0 0.0
    %3126 = vmatprep.subr.mxu0 0.0
    %3127 = vmatpush1.msra.mxu0 0.0
    %3128 = vmatprep.subr.mxu0 0.0
    %3129 = vmatpush1.msra.mxu0 0.0
    %3130 = vmatprep.mubr.f32.mxu0 0.0
    %3131 = vmatmul.mubr.f32.gmra.mrb[0].mxu0 %v2992
    %v3132 = vpop.f32.mrb[0].mxu0
    %v3133 = vadd.f32 0.0, %v3132
    %v3134 = vpop.f32.mrb[0].mxu0
    %3135 = vdwg.mxu0
    %v3136 = vld [vmem:[%s1422] sm:$0xff]
    %v3137 = vld [vmem:[%s1422 + $0x8] sm:$0xff]
    %v3138 = vld [vmem:[%s1422 + $0x10] sm:$0xff]
    %v3139 = vadd.f32 %v3136, %v3062
    %v3140 = vmul.f32 %v3139, 0.5
    %v3141 = vtanh.pop %v3140
    %v3142 = vmul.f32 %v3141, 0.5
    %v3143 = vadd.f32 %v3142, 0.5
    %v3144 = vadd.f32 %v3137, %v3064
    %v3145 = vmul.f32 %v3144, 0.5
    %v3146 = vtanh.pop %v3145
    %v3147 = vmul.f32 %v3146, 0.5
    %v3148 = vadd.f32 %v3147, 0.5
    %v3149 = vadd.f32 %v3133, %v2328
    %v3150 = vmul.f32 %v3143, %v3149
    %v3151 = vadd.f32 %v3138, %v3150
    %v3152 = vtanh.pop %v3151
    %v3153 = vsub.f32 1.0, %v3148
    %v3154 = vmul.f32 %v3153, %v3152
    %v3155 = vmul.f32 %v3148, %v2992
    %v3156 = vadd.f32 %v3154, %v3155
    %s3157 = scalar_lea.vmem [#allocation13], 40
    %3158 = vst [vmem:[%s3157] sm:$0xff] %v3156
    %3159 = vmatprep.subr.mxu0 %v2119
    %3160 = vmatpush1.msra.mxu0 %v2118
    %3161 = vmatprep.subr.mxu0 %v2122
    %3162 = vmatpush1.msra.mxu0 %v2121
    %3163 = vmatprep.subr.mxu0 %v2125
    %3164 = vmatpush1.msra.mxu0 %v2124
    %3165 = vmatprep.subr.mxu0 %v2128
    %3166 = vmatpush1.msra.mxu0 %v2127
    %3167 = vmatprep.subr.mxu0 %v2131
    %3168 = vmatpush1.msra.mxu0 %v2130
    %3169 = vmatprep.subr.mxu0 %v2134
    %3170 = vmatpush1.msra.mxu0 %v2133
    %3171 = vmatprep.subr.mxu0 %v2137
    %3172 = vmatpush1.msra.mxu0 %v2136
    %3173 = vmatprep.subr.mxu0 %v2140
    %3174 = vmatpush1.msra.mxu0 %v2139
    %3175 = vmatprep.subr.mxu0 %v2143
    %3176 = vmatpush1.msra.mxu0 %v2142
    %3177 = vmatprep.subr.mxu0 %v2146
    %3178 = vmatpush1.msra.mxu0 %v2145
    %3179 = vmatprep.subr.mxu0 %v2149
    %3180 = vmatpush1.msra.mxu0 %v2148
    %3181 = vmatprep.subr.mxu0 %v2152
    %3182 = vmatpush1.msra.mxu0 %v2151
    %3183 = vmatprep.subr.mxu0 %v2155
    %3184 = vmatpush1.msra.mxu0 %v2154
    %3185 = vmatprep.subr.mxu0 %v2158
    %3186 = vmatpush1.msra.mxu0 %v2157
    %3187 = vmatprep.subr.mxu0 %v2161
    %3188 = vmatpush1.msra.mxu0 %v2160
    %3189 = vmatprep.subr.mxu0 %v2164
    %3190 = vmatpush1.msra.mxu0 %v2163
    %3191 = vmatprep.subr.mxu0 0.0
    %3192 = vmatpush1.msra.mxu0 0.0
    %3193 = vmatprep.subr.mxu0 0.0
    %3194 = vmatpush1.msra.mxu0 0.0
    %3195 = vmatprep.subr.mxu0 0.0
    %3196 = vmatpush1.msra.mxu0 0.0
    %3197 = vmatprep.subr.mxu0 0.0
    %3198 = vmatpush1.msra.mxu0 0.0
    %3199 = vmatprep.subr.mxu0 0.0
    %3200 = vmatpush1.msra.mxu0 0.0
    %3201 = vmatprep.subr.mxu0 0.0
    %3202 = vmatpush1.msra.mxu0 0.0
    %3203 = vmatprep.subr.mxu0 0.0
    %3204 = vmatpush1.msra.mxu0 0.0
    %3205 = vmatprep.subr.mxu0 0.0
    %3206 = vmatpush1.msra.mxu0 0.0
    %3207 = vmatprep.subr.mxu0 0.0
    %3208 = vmatpush1.msra.mxu0 0.0
    %3209 = vmatprep.subr.mxu0 0.0
    %3210 = vmatpush1.msra.mxu0 0.0
    %3211 = vmatprep.subr.mxu0 0.0
    %3212 = vmatpush1.msra.mxu0 0.0
    %3213 = vmatprep.subr.mxu0 0.0
    %3214 = vmatpush1.msra.mxu0 0.0
    %3215 = vmatprep.subr.mxu0 0.0
    %3216 = vmatpush1.msra.mxu0 0.0
    %3217 = vmatprep.subr.mxu0 0.0
    %3218 = vmatpush1.msra.mxu0 0.0
    %3219 = vmatprep.subr.mxu0 0.0
    %3220 = vmatpush1.msra.mxu0 0.0
    %3221 = vmatprep.subr.mxu0 0.0
    %3222 = vmatpush1.msra.mxu0 0.0
    %3223 = vmatprep.mubr.f32.mxu0 0.0
    %3224 = vmatmul.mubr.f32.gmra.mrb[0].mxu0 %v3156
    %v3225 = vpop.f32.mrb[0].mxu0
    %v3226 = vadd.f32 0.0, %v3225
    %v3227 = vpop.f32.mrb[0].mxu0
    %v3228 = vadd.f32 0.0, %v3227
    %3229 = vdwg.mxu0
    %3230 = vmatprep.subr.mxu0 0.0
    %3231 = vmatpush1.msra.mxu0 %v2120
    %3232 = vmatprep.subr.mxu0 0.0
    %3233 = vmatpush1.msra.mxu0 %v2123
    %3234 = vmatprep.subr.mxu0 0.0
    %3235 = vmatpush1.msra.mxu0 %v2126
    %3236 = vmatprep.subr.mxu0 0.0
    %3237 = vmatpush1.msra.mxu0 %v2129
    %3238 = vmatprep.subr.mxu0 0.0
    %3239 = vmatpush1.msra.mxu0 %v2132
    %3240 = vmatprep.subr.mxu0 0.0
    %3241 = vmatpush1.msra.mxu0 %v2135
    %3242 = vmatprep.subr.mxu0 0.0
    %3243 = vmatpush1.msra.mxu0 %v2138
    %3244 = vmatprep.subr.mxu0 0.0
    %3245 = vmatpush1.msra.mxu0 %v2141
    %3246 = vmatprep.subr.mxu0 0.0
    %3247 = vmatpush1.msra.mxu0 %v2144
    %3248 = vmatprep.subr.mxu0 0.0
    %3249 = vmatpush1.msra.mxu0 %v2147
    %3250 = vmatprep.subr.mxu0 0.0
    %3251 = vmatpush1.msra.mxu0 %v2150
    %3252 = vmatprep.subr.mxu0 0.0
    %3253 = vmatpush1.msra.mxu0 %v2153
    %3254 = vmatprep.subr.mxu0 0.0
    %3255 = vmatpush1.msra.mxu0 %v2156
    %3256 = vmatprep.subr.mxu0 0.0
    %3257 = vmatpush1.msra.mxu0 %v2159
    %3258 = vmatprep.subr.mxu0 0.0
    %3259 = vmatpush1.msra.mxu0 %v2162
    %3260 = vmatprep.subr.mxu0 0.0
    %3261 = vmatpush1.msra.mxu0 %v2165
    %3262 = vmatprep.subr.mxu0 0.0
    %3263 = vmatpush1.msra.mxu0 0.0
    %3264 = vmatprep.subr.mxu0 0.0
    %3265 = vmatpush1.msra.mxu0 0.0
    %3266 = vmatprep.subr.mxu0 0.0
    %3267 = vmatpush1.msra.mxu0 0.0
    %3268 = vmatprep.subr.mxu0 0.0
    %3269 = vmatpush1.msra.mxu0 0.0
    %3270 = vmatprep.subr.mxu0 0.0
    %3271 = vmatpush1.msra.mxu0 0.0
    %3272 = vmatprep.subr.mxu0 0.0
    %3273 = vmatpush1.msra.mxu0 0.0
    %3274 = vmatprep.subr.mxu0 0.0
    %3275 = vmatpush1.msra.mxu0 0.0
    %3276 = vmatprep.subr.mxu0 0.0
    %3277 = vmatpush1.msra.mxu0 0.0
    %3278 = vmatprep.subr.mxu0 0.0
    %3279 = vmatpush1.msra.mxu0 0.0
    %3280 = vmatprep.subr.mxu0 0.0
    %3281 = vmatpush1.msra.mxu0 0.0
    %3282 = vmatprep.subr.mxu0 0.0
    %3283 = vmatpush1.msra.mxu0 0.0
    %3284 = vmatprep.subr.mxu0 0.0
    %3285 = vmatpush1.msra.mxu0 0.0
    %3286 = vmatprep.subr.mxu0 0.0
    %3287 = vmatpush1.msra.mxu0 0.0
    %3288 = vmatprep.subr.mxu0 0.0
    %3289 = vmatpush1.msra.mxu0 0.0
    %3290 = vmatprep.subr.mxu0 0.0
    %3291 = vmatpush1.msra.mxu0 0.0
    %3292 = vmatprep.subr.mxu0 0.0
    %3293 = vmatpush1.msra.mxu0 0.0
    %3294 = vmatprep.mubr.f32.mxu0 0.0
    %3295 = vmatmul.mubr.f32.gmra.mrb[0].mxu0 %v3156
    %v3296 = vpop.f32.mrb[0].mxu0
    %v3297 = vadd.f32 0.0, %v3296
    %v3298 = vpop.f32.mrb[0].mxu0
    %3299 = vdwg.mxu0
    %v3300 = vld [vmem:[%s1587] sm:$0xff]
    %v3301 = vld [vmem:[%s1587 + $0x8] sm:$0xff]
    %v3302 = vld [vmem:[%s1587 + $0x10] sm:$0xff]
    %v3303 = vadd.f32 %v3300, %v3226
    %v3304 = vmul.f32 %v3303, 0.5
    %v3305 = vtanh.pop %v3304
    %v3306 = vmul.f32 %v3305, 0.5
    %v3307 = vadd.f32 %v3306, 0.5
    %v3308 = vadd.f32 %v3301, %v3228
    %v3309 = vmul.f32 %v3308, 0.5
    %v3310 = vtanh.pop %v3309
    %v3311 = vmul.f32 %v3310, 0.5
    %v3312 = vadd.f32 %v3311, 0.5
    %v3313 = vadd.f32 %v3297, %v2328
    %v3314 = vmul.f32 %v3307, %v3313
    %v3315 = vadd.f32 %v3302, %v3314
    %v3316 = vtanh.pop %v3315
    %v3317 = vsub.f32 1.0, %v3312
    %v3318 = vmul.f32 %v3317, %v3316
    %v3319 = vmul.f32 %v3312, %v3156
    %v3320 = vadd.f32 %v3318, %v3319
    %s3321 = scalar_lea.vmem [#allocation13], 48
    %3322 = vst [vmem:[%s3321] sm:$0xff] %v3320
    %3323 = vmatprep.subr.mxu0 %v2119
    %3324 = vmatpush1.msra.mxu0 %v2118
    %3325 = vmatprep.subr.mxu0 %v2122
    %3326 = vmatpush1.msra.mxu0 %v2121
    %3327 = vmatprep.subr.mxu0 %v2125
    %3328 = vmatpush1.msra.mxu0 %v2124
    %3329 = vmatprep.subr.mxu0 %v2128
    %3330 = vmatpush1.msra.mxu0 %v2127
    %3331 = vmatprep.subr.mxu0 %v2131
    %3332 = vmatpush1.msra.mxu0 %v2130
    %3333 = vmatprep.subr.mxu0 %v2134
    %3334 = vmatpush1.msra.mxu0 %v2133
    %3335 = vmatprep.subr.mxu0 %v2137
    %3336 = vmatpush1.msra.mxu0 %v2136
    %3337 = vmatprep.subr.mxu0 %v2140
    %3338 = vmatpush1.msra.mxu0 %v2139
    %3339 = vmatprep.subr.mxu0 %v2143
    %3340 = vmatpush1.msra.mxu0 %v2142
    %3341 = vmatprep.subr.mxu0 %v2146
    %3342 = vmatpush1.msra.mxu0 %v2145
    %3343 = vmatprep.subr.mxu0 %v2149
    %3344 = vmatpush1.msra.mxu0 %v2148
    %3345 = vmatprep.subr.mxu0 %v2152
    %3346 = vmatpush1.msra.mxu0 %v2151
    %3347 = vmatprep.subr.mxu0 %v2155
    %3348 = vmatpush1.msra.mxu0 %v2154
    %3349 = vmatprep.subr.mxu0 %v2158
    %3350 = vmatpush1.msra.mxu0 %v2157
    %3351 = vmatprep.subr.mxu0 %v2161
    %3352 = vmatpush1.msra.mxu0 %v2160
    %3353 = vmatprep.subr.mxu0 %v2164
    %3354 = vmatpush1.msra.mxu0 %v2163
    %3355 = vmatprep.subr.mxu0 0.0
    %3356 = vmatpush1.msra.mxu0 0.0
    %3357 = vmatprep.subr.mxu0 0.0
    %3358 = vmatpush1.msra.mxu0 0.0
    %3359 = vmatprep.subr.mxu0 0.0
    %3360 = vmatpush1.msra.mxu0 0.0
    %3361 = vmatprep.subr.mxu0 0.0
    %3362 = vmatpush1.msra.mxu0 0.0
    %3363 = vmatprep.subr.mxu0 0.0
    %3364 = vmatpush1.msra.mxu0 0.0
    %3365 = vmatprep.subr.mxu0 0.0
    %3366 = vmatpush1.msra.mxu0 0.0
    %3367 = vmatprep.subr.mxu0 0.0
    %3368 = vmatpush1.msra.mxu0 0.0
    %3369 = vmatprep.subr.mxu0 0.0
    %3370 = vmatpush1.msra.mxu0 0.0
    %3371 = vmatprep.subr.mxu0 0.0
    %3372 = vmatpush1.msra.mxu0 0.0
    %3373 = vmatprep.subr.mxu0 0.0
    %3374 = vmatpush1.msra.mxu0 0.0
    %3375 = vmatprep.subr.mxu0 0.0
    %3376 = vmatpush1.msra.mxu0 0.0
    %3377 = vmatprep.subr.mxu0 0.0
    %3378 = vmatpush1.msra.mxu0 0.0
    %3379 = vmatprep.subr.mxu0 0.0
    %3380 = vmatpush1.msra.mxu0 0.0
    %3381 = vmatprep.subr.mxu0 0.0
    %3382 = vmatpush1.msra.mxu0 0.0
    %3383 = vmatprep.subr.mxu0 0.0
    %3384 = vmatpush1.msra.mxu0 0.0
    %3385 = vmatprep.subr.mxu0 0.0
    %3386 = vmatpush1.msra.mxu0 0.0
    %3387 = vmatprep.mubr.f32.mxu0 0.0
    %3388 = vmatmul.mubr.f32.gmra.mrb[0].mxu0 %v3320
    %v3389 = vpop.f32.mrb[0].mxu0
    %v3390 = vadd.f32 0.0, %v3389
    %v3391 = vpop.f32.mrb[0].mxu0
    %v3392 = vadd.f32 0.0, %v3391
    %3393 = vdwg.mxu0
    %3394 = vmatprep.subr.mxu0 0.0
    %3395 = vmatpush1.msra.mxu0 %v2120
    %3396 = vmatprep.subr.mxu0 0.0
    %3397 = vmatpush1.msra.mxu0 %v2123
    %3398 = vmatprep.subr.mxu0 0.0
    %3399 = vmatpush1.msra.mxu0 %v2126
    %3400 = vmatprep.subr.mxu0 0.0
    %3401 = vmatpush1.msra.mxu0 %v2129
    %3402 = vmatprep.subr.mxu0 0.0
    %3403 = vmatpush1.msra.mxu0 %v2132
    %3404 = vmatprep.subr.mxu0 0.0
    %3405 = vmatpush1.msra.mxu0 %v2135
    %3406 = vmatprep.subr.mxu0 0.0
    %3407 = vmatpush1.msra.mxu0 %v2138
    %3408 = vmatprep.subr.mxu0 0.0
    %3409 = vmatpush1.msra.mxu0 %v2141
    %3410 = vmatprep.subr.mxu0 0.0
    %3411 = vmatpush1.msra.mxu0 %v2144
    %3412 = vmatprep.subr.mxu0 0.0
    %3413 = vmatpush1.msra.mxu0 %v2147
    %3414 = vmatprep.subr.mxu0 0.0
    %3415 = vmatpush1.msra.mxu0 %v2150
    %3416 = vmatprep.subr.mxu0 0.0
    %3417 = vmatpush1.msra.mxu0 %v2153
    %3418 = vmatprep.subr.mxu0 0.0
    %3419 = vmatpush1.msra.mxu0 %v2156
    %3420 = vmatprep.subr.mxu0 0.0
    %3421 = vmatpush1.msra.mxu0 %v2159
    %3422 = vmatprep.subr.mxu0 0.0
    %3423 = vmatpush1.msra.mxu0 %v2162
    %3424 = vmatprep.subr.mxu0 0.0
    %3425 = vmatpush1.msra.mxu0 %v2165
    %3426 = vmatprep.subr.mxu0 0.0
    %3427 = vmatpush1.msra.mxu0 0.0
    %3428 = vmatprep.subr.mxu0 0.0
    %3429 = vmatpush1.msra.mxu0 0.0
    %3430 = vmatprep.subr.mxu0 0.0
    %3431 = vmatpush1.msra.mxu0 0.0
    %3432 = vmatprep.subr.mxu0 0.0
    %3433 = vmatpush1.msra.mxu0 0.0
    %3434 = vmatprep.subr.mxu0 0.0
    %3435 = vmatpush1.msra.mxu0 0.0
    %3436 = vmatprep.subr.mxu0 0.0
    %3437 = vmatpush1.msra.mxu0 0.0
    %3438 = vmatprep.subr.mxu0 0.0
    %3439 = vmatpush1.msra.mxu0 0.0
    %3440 = vmatprep.subr.mxu0 0.0
    %3441 = vmatpush1.msra.mxu0 0.0
    %3442 = vmatprep.subr.mxu0 0.0
    %3443 = vmatpush1.msra.mxu0 0.0
    %3444 = vmatprep.subr.mxu0 0.0
    %3445 = vmatpush1.msra.mxu0 0.0
    %3446 = vmatprep.subr.mxu0 0.0
    %3447 = vmatpush1.msra.mxu0 0.0
    %3448 = vmatprep.subr.mxu0 0.0
    %3449 = vmatpush1.msra.mxu0 0.0
    %3450 = vmatprep.subr.mxu0 0.0
    %3451 = vmatpush1.msra.mxu0 0.0
    %3452 = vmatprep.subr.mxu0 0.0
    %3453 = vmatpush1.msra.mxu0 0.0
    %3454 = vmatprep.subr.mxu0 0.0
    %3455 = vmatpush1.msra.mxu0 0.0
    %3456 = vmatprep.subr.mxu0 0.0
    %3457 = vmatpush1.msra.mxu0 0.0
    %3458 = vmatprep.mubr.f32.mxu0 0.0
    %3459 = vmatmul.mubr.f32.gmra.mrb[0].mxu0 %v3320
    %v3460 = vpop.f32.mrb[0].mxu0
    %v3461 = vadd.f32 0.0, %v3460
    %v3462 = vpop.f32.mrb[0].mxu0
    %3463 = vdwg.mxu0
    %v3464 = vld [vmem:[%s1752] sm:$0xff]
    %v3465 = vld [vmem:[%s1752 + $0x8] sm:$0xff]
    %v3466 = vld [vmem:[%s1752 + $0x10] sm:$0xff]
    %v3467 = vadd.f32 %v3464, %v3390
    %v3468 = vmul.f32 %v3467, 0.5
    %v3469 = vtanh.pop %v3468
    %v3470 = vmul.f32 %v3469, 0.5
    %v3471 = vadd.f32 %v3470, 0.5
    %v3472 = vadd.f32 %v3465, %v3392
    %v3473 = vmul.f32 %v3472, 0.5
    %v3474 = vtanh.pop %v3473
    %v3475 = vmul.f32 %v3474, 0.5
    %v3476 = vadd.f32 %v3475, 0.5
    %v3477 = vadd.f32 %v3461, %v2328
    %v3478 = vmul.f32 %v3471, %v3477
    %v3479 = vadd.f32 %v3466, %v3478
    %v3480 = vtanh.pop %v3479
    %v3481 = vsub.f32 1.0, %v3476
    %v3482 = vmul.f32 %v3481, %v3480
    %v3483 = vmul.f32 %v3476, %v3320
    %v3484 = vadd.f32 %v3482, %v3483
    %s3485 = scalar_lea.vmem [#allocation13], 56
    %3486 = vst [vmem:[%s3485] sm:$0xff] %v3484
    %3487 = vst [vmem:[%s2168] sm:$0xff] %v3484
    // Predicated region
    $region46: #{tpu_custom_call.1} parent=1 // pred_check
      _
    $region47: #{tpu_custom_call.1} parent=1 // pred_check_branch
      %3489 = sbr.rel (0) target = $region49
    $region48: #{tpu_custom_call.1} parent=1 // pred_region
      %s3491 = ssub.s32 1024, 1024
      %3492 = vsyncadd [#allocation7], %s3491
      %s3493 = sshll.u32 [#allocation13], 4
      %s3494 = int_to_ptr.vmem [resolvable:$true] %s3493
      %3499 = dma.vmem_to_hbm [thread:$0]  %s3494, 1024, %s6, [#allocation7], 128, 128, 8
    $region49: #{tpu_custom_call.1} parent=1 // pred_fallthru
      _
    // Predicated region
    $region50: #{tpu_custom_call.1} parent=1 // pred_check
      _
    $region51: #{tpu_custom_call.1} parent=1 // pred_check_branch
      %3501 = sbr.rel (0) target = $region53
    $region52: #{tpu_custom_call.1} parent=1 // pred_region
      %3502 = dma.done [#allocation7], 1024
    $region53: #{tpu_custom_call.1} parent=1 // pred_fallthru
      _
    %3503 = vsyncpa [#allocation6], 1
    %3504 = vsyncpa [#allocation9], 1
    %3505 = vsyncpa [#allocation12], 1
    %3506 = vsyncpa [#allocation7], 1

</llo_original>
